<compile_context>
chip_gen: v6e
topology: v6e:2x2x1
jax: 0.10.0
libtpu: 0.0.40
codegen_flags: <defaults>
</compile_context>

<pallas_src>
import jax
import jax.numpy as jnp
from jax.experimental import pallas as pl
from jax.experimental.pallas import tpu as pltpu

NUM_FEATURES = 15
FEAT_PAD = 16            # features padded 15 -> 16 (row 15 is the bias row == 1.0)
NUM_EMBEDDING = 66
EMBEDDING_DIM = 2
READ_SIZE = 20
H1, H2, H3 = 320, 160, 64
BN_EPS = 1e-5


def _round_up(n, m):
    return ((n + m - 1) // m) * m


# ---------------------------------------------------------------------------
# Fused Pallas kernel: 4-layer MLP (BN + b1 folded) + sigmoid + site reduction
# ---------------------------------------------------------------------------
def _fused_site_kernel(x_ref, w1_ref, w2_ref, b2_ref, w3_ref, b3_ref,
                       w4_ref, b4_ref, out_ref):
    """x_ref: (16, R*TS) features (row 15 == 1.0), reads+sites on lanes.

    Lane ordering within the block is read-major / site-minor:
    lane r*TS + s  <->  (read r, local site s).  out_ref: (1, TS).
    """
    ts = out_ref.shape[-1]
    n_reads = x_ref.shape[-1] // ts

    x = x_ref[...]                                                   # (16, R*TS) f32
    # Layer 1: bias folded into column 15 of w1 (input row 15 is constant 1).
    h = jnp.dot(w1_ref[...], x, preferred_element_type=jnp.float32)  # (H1, R*TS)
    h = jnp.maximum(h, 0.0)                                          # relu1
    h = jnp.dot(w2_ref[...], h, preferred_element_type=jnp.float32) + b2_ref[...]
    h = jnp.maximum(h, 0.0)                                          # relu2
    h = jnp.dot(w3_ref[...], h, preferred_element_type=jnp.float32) + b3_ref[...]
    h = jnp.maximum(h, 0.0)                                          # relu3 (H3, R*TS)

    # Final H3 -> 1 layer on VPU + sublane reduce (avoid an M=1 MXU pass).
    logit = jnp.sum(h * w4_ref[...], axis=0, keepdims=True) + b4_ref[...]  # (1, R*TS)
    p = jax.nn.sigmoid(logit)
    one_minus = 1.0 - p                                              # (1, R*TS)

    # Per-site reduction over reads: product across the 20 lane-aligned
    # read slabs (each slice offset is a multiple of TS, TS % 128 == 0).
    acc = jnp.ones((1, ts), jnp.float32)
    for r in range(n_reads):                                         # 20 tiny (1,TS) muls
        acc = acc * one_minus[:, r * ts:(r + 1) * ts]
    out_ref[...] = 1.0 - acc                                         # (1, TS)


# ---------------------------------------------------------------------------
# Wrapper around pallas_call
# ---------------------------------------------------------------------------
def run_fused(feats_t, folded, tile_sites, n_reads):
    num_tiles, feat, lanes = feats_t.shape
    assert feat == FEAT_PAD and lanes == n_reads * tile_sites
    w1, w2, b2, w3, b3, w4, b4 = folded

    def const_spec(arr):
        # Constant index map -> DMA'd once, stays VMEM-resident across steps.
        return pl.BlockSpec(arr.shape, lambda i: (0, 0))

    out = pl.pallas_call(
        _fused_site_kernel,
        out_shape=jax.ShapeDtypeStruct((num_tiles, 1, tile_sites), jnp.float32),
        grid=(num_tiles,),
        in_specs=[
            pl.BlockSpec((None, feat, lanes), lambda i: (i, 0, 0)),
            const_spec(w1),
            const_spec(w2), const_spec(b2),
            const_spec(w3), const_spec(b3),
            const_spec(w4), const_spec(b4),
        ],
        out_specs=pl.BlockSpec((None, 1, tile_sites), lambda i: (i, 0, 0)),
        compiler_params=pltpu.CompilerParams(
            dimension_semantics=("parallel",),
            vmem_limit_bytes=48 * 1024 * 1024),
    )(feats_t, w1, w2, b2, w3, b3, w4, b4)
    return out.reshape(num_tiles * tile_sites)                       # (b_pad,)


# ---------------------------------------------------------------------------
# Parameter init (deterministic, PyTorch-like shapes) and BN folding
# ---------------------------------------------------------------------------
def init_params(key):
    ks = jax.random.split(key, 24)

    def lin(kw, kb, fan_in, fan_out):
        bound = 1.0 / jnp.sqrt(jnp.float32(fan_in))
        w = jax.random.uniform(kw, (fan_in, fan_out), jnp.float32, -bound, bound)
        b = jax.random.uniform(kb, (fan_out,), jnp.float32, -bound, bound)
        return w, b

    def bn(kg, kb, km, kv, c):
        gamma = 1.0 + 0.1 * jax.random.normal(kg, (c,), jnp.float32)
        beta = 0.1 * jax.random.normal(kb, (c,), jnp.float32)
        mean = 0.1 * jax.random.normal(km, (c,), jnp.float32)
        var = 1.0 + 0.1 * jax.random.uniform(kv, (c,), jnp.float32)
        return gamma, beta, mean, var

    emb = jax.random.normal(ks[0], (NUM_EMBEDDING, EMBEDDING_DIM), jnp.float32)
    w1, b1 = lin(ks[1], ks[2], NUM_FEATURES, H1)
    w2, b2 = lin(ks[3], ks[4], H1, H2)
    w3, b3 = lin(ks[5], ks[6], H2, H3)
    w4, b4 = lin(ks[7], ks[8], H3, 1)
    bn0 = bn(ks[9], ks[10], ks[11], ks[12], NUM_FEATURES)
    bn1 = bn(ks[13], ks[14], ks[15], ks[16], H1)
    bn2 = bn(ks[17], ks[18], ks[19], ks[20], H2)
    bn3 = bn(ks[21], ks[22], ks[23], ks[0], H3)
    return dict(emb=emb, w1=w1, b1=b1, w2=w2, b2=b2, w3=w3, b3=b3,
                w4=w4, b4=b4, bn0=bn0, bn1=bn1, bn2=bn2, bn3=bn3)


def _bn_scale_shift(bn_params):
    gamma, beta, mean, var = bn_params
    s = gamma / jnp.sqrt(var + BN_EPS)
    t = beta - s * mean
    return s, t


def fold_params(params):
    """Fold eval-mode BatchNorms into the Linears; emit transposed f32 weights.

    Model order: norm0 -> l1 -> norm1 -> relu -> l2 -> norm2 -> relu
                 -> l3 -> norm3 -> relu -> l4 -> sigmoid  (dropout = identity).
    b1 is folded into column 15 of w1 (matched by the constant-1 feature row).
    """
    s0, t0 = _bn_scale_shift(params["bn0"])
    s1, t1 = _bn_scale_shift(params["bn1"])
    s2, t2 = _bn_scale_shift(params["bn2"])
    s3, t3 = _bn_scale_shift(params["bn3"])

    w1 = (s0[:, None] * params["w1"]) * s1[None, :]            # (15, H1)
    b1 = (t0 @ params["w1"] + params["b1"]) * s1 + t1          # (H1,)
    w2 = params["w2"] * s2[None, :]                            # (H1, H2)
    b2 = params["b2"] * s2 + t2
    w3 = params["w3"] * s3[None, :]                            # (H2, H3)
    b3 = params["b3"] * s3 + t3
    w4, b4 = params["w4"], params["b4"]                        # (H3, 1), (1,)

    w1t = jnp.concatenate([w1.T, b1[:, None]], axis=1).astype(jnp.float32)  # (H1, 16)
    w2t = w2.T.astype(jnp.float32)                             # (H2, H1)
    w3t = w3.T.astype(jnp.float32)                             # (H3, H2)
    return (w1t,
            w2t, b2[:, None].astype(jnp.float32),
            w3t, b3[:, None].astype(jnp.float32),
            w4.astype(jnp.float32),                            # (H3, 1) -> VPU
            b4[None, :].astype(jnp.float32))                   # (1, 1)


# ---------------------------------------------------------------------------
# Full forward (mirrors NeuralNetModel.forward, eval mode)
# ---------------------------------------------------------------------------
def neural_net_forward(x, params, tile_sites=256):
    B, R, _ = x.shape
    signal = x[:, :, :9].astype(jnp.float32)                       # (B, R, 9)
    idx = x[:, :, 9:].astype(jnp.int32)                            # (B, R, 3)
    emb = jnp.take(params["emb"], idx, axis=0).reshape(B, R, 6)    # embedder
    feats = jnp.concatenate([signal, emb], axis=2)                 # (B, R, 15)

    # Pick the site tile: multiple of 128; >= 2 tiles when B allows (v7x).
    b_pad128 = _round_up(B, 128)
    ts = min(tile_sites, b_pad128)
    if b_pad128 // ts < 2 and b_pad128 >= 256:
        ts = _round_up(b_pad128 // 2, 128)
    b_pad = _round_up(B, ts)
    num_tiles = b_pad // ts

    # Lane-dense slab (num_tiles, 16, R*ts): features on sublanes, reads x
    # sites on lanes (read-major within a tile); feature row 15 is the
    # constant 1.0 bias row matching the b1 column folded into w1.
    feats = jnp.pad(feats, ((0, b_pad - B), (0, 0), (0, 0)))       # (b_pad, R, 15)
    ones = jnp.ones((b_pad, R, 1), jnp.float32)
    feats = jnp.concatenate([feats, ones], axis=2)                 # (b_pad, R, 16)
    feats_t = feats.reshape(num_tiles, ts, R, FEAT_PAD)
    feats_t = jnp.transpose(feats_t, (0, 3, 2, 1))                 # (nt, 16, R, ts)
    feats_t = feats_t.reshape(num_tiles, FEAT_PAD, R * ts)

    folded = fold_params(params)
    site_prob = run_fused(feats_t, folded, ts, R)                  # (b_pad,)
    return site_prob[:B]                                           # (B,)


# ---------------------------------------------------------------------------
# Pure-JAX reference: direct (unfolded) eval-mode forward of the module
# ---------------------------------------------------------------------------
def _reference_forward(x, params):
    B, R, _ = x.shape
    hp = jax.lax.Precision.HIGHEST
    signal = x[:, :, :9].astype(jnp.float32)
    idx = x[:, :, 9:].astype(jnp.int32)
    emb = jnp.take(params["emb"], idx, axis=0).reshape(B, R, 6)
    h = jnp.concatenate([signal, emb], axis=2)                     # (B, R, 15)

    def bn(v, p):
        g, b, m, var = p
        return (v - m) * (g / jnp.sqrt(var + BN_EPS)) + b

    h = bn(h, params["bn0"])
    h = jnp.einsum("brf,fh->brh", h, params["w1"], precision=hp) + params["b1"]
    h = jnp.maximum(bn(h, params["bn1"]), 0.0)
    h = jnp.einsum("brf,fh->brh", h, params["w2"], precision=hp) + params["b2"]
    h = jnp.maximum(bn(h, params["bn2"]), 0.0)
    h = jnp.einsum("brf,fh->brh", h, params["w3"], precision=hp) + params["b3"]
    h = jnp.maximum(bn(h, params["bn3"]), 0.0)
    logit = jnp.einsum("brf,fo->bro", h, params["w4"], precision=hp) + params["b4"]
    p = jax.nn.sigmoid(logit).reshape(B, R)
    return 1.0 - jnp.prod(1.0 - p, axis=1)                         # (B,)


if __name__ == "__main__":
    B = 8               # sites
    R = READ_SIZE       # 20 reads per site

    key = jax.random.PRNGKey(0)
    kx, kidx, kp = jax.random.split(key, 3)
    signal = jax.random.normal(kx, (B, R, 9), jnp.float32)
    fivemer = jax.random.randint(kidx, (B, R, 3), 0, NUM_EMBEDDING).astype(jnp.float32)
    x = jnp.concatenate([signal, fivemer], axis=2)                 # (B, R, 12)

    params = init_params(kp)
    out = jax.jit(neural_net_forward)(x, params)
    out = jax.block_until_ready(out)

    ref = _reference_forward(x, params)

    assert out.shape == (B,)
    assert bool(jnp.all(jnp.isfinite(out)))
    assert bool(jnp.all((out >= 0.0) & (out <= 1.0)))
    err = float(jnp.max(jnp.abs(out - ref)))
    assert err < 2e-3, f"max abs err vs reference: {err}"
    print("KERNEL_OK")
</pallas_src>

<mosaic_0001>
module attributes {stable_mosaic.version = 11 : i64} {
  func.func @_fused_site_kernel(%arg0: i32, %arg1: memref<1x16x2560xf32, #tpu.memory_space<vmem>>, %arg2: memref<320x16xf32, #tpu.memory_space<vmem>>, %arg3: memref<160x320xf32, #tpu.memory_space<vmem>>, %arg4: memref<160x1xf32, #tpu.memory_space<vmem>>, %arg5: memref<64x160xf32, #tpu.memory_space<vmem>>, %arg6: memref<64x1xf32, #tpu.memory_space<vmem>>, %arg7: memref<64x1xf32, #tpu.memory_space<vmem>>, %arg8: memref<1x1xf32, #tpu.memory_space<vmem>>, %arg9: memref<1x1x128xf32, #tpu.memory_space<vmem>>) attributes {dimension_semantics = [#tpu.dimension_semantics<parallel>], iteration_bounds = array<i64: 1>, scalar_prefetch = 0 : i64, scratch_operands = 0 : i64, tpu.core_type = #tpu.core_type<tc>, window_params = [{transform_indices = @transform_0, window_bounds = array<i64: 1, 16, 2560>}, {pipeline_mode = #tpu.pipeline_mode<synchronous>, transform_indices = @transform_1, window_bounds = array<i64: 320, 16>}, {pipeline_mode = #tpu.pipeline_mode<synchronous>, transform_indices = @transform_2, window_bounds = array<i64: 160, 320>}, {pipeline_mode = #tpu.pipeline_mode<synchronous>, transform_indices = @transform_3, window_bounds = array<i64: 160, 1>}, {pipeline_mode = #tpu.pipeline_mode<synchronous>, transform_indices = @transform_4, window_bounds = array<i64: 64, 160>}, {pipeline_mode = #tpu.pipeline_mode<synchronous>, transform_indices = @transform_5, window_bounds = array<i64: 64, 1>}, {pipeline_mode = #tpu.pipeline_mode<synchronous>, transform_indices = @transform_6, window_bounds = array<i64: 64, 1>}, {pipeline_mode = #tpu.pipeline_mode<synchronous>, transform_indices = @transform_7, window_bounds = array<i64: 1, 1>}, {transform_indices = @transform_8, window_bounds = array<i64: 1, 1, 128>}]} {
    %c0 = arith.constant 0 : index
    %c0_0 = arith.constant 0 : index
    %c0_1 = arith.constant 0 : index
    %0 = vector.load %arg1[%c0, %c0_0, %c0_1] : memref<1x16x2560xf32, #tpu.memory_space<vmem>>, vector<1x16x2560xf32>
    %1 = vector.shape_cast %0 : vector<1x16x2560xf32> to vector<16x2560xf32>
    %c0_2 = arith.constant 0 : index
    %c0_3 = arith.constant 0 : index
    %2 = vector.load %arg2[%c0_2, %c0_3] : memref<320x16xf32, #tpu.memory_space<vmem>>, vector<320x16xf32>
    %cst = arith.constant dense<0.000000e+00> : vector<320x2560xf32>
    %3 = tpu.matmul %2, %1, %cst {dimension_numbers = #tpu.dot_dimension_numbers<[1], [0], [0], [1], [0, 0, 1, 1], [], []>} : vector<320x16xf32>, vector<16x2560xf32>, vector<320x2560xf32> -> vector<320x2560xf32>
    %cst_4 = arith.constant 0.000000e+00 : f32
    %4 = vector.broadcast %cst_4 : f32 to vector<320x2560xf32>
    %5 = arith.maximumf %3, %4 : vector<320x2560xf32>
    %c0_5 = arith.constant 0 : index
    %c0_6 = arith.constant 0 : index
    %6 = vector.load %arg3[%c0_5, %c0_6] : memref<160x320xf32, #tpu.memory_space<vmem>>, vector<160x320xf32>
    %cst_7 = arith.constant dense<0.000000e+00> : vector<160x2560xf32>
    %7 = tpu.matmul %6, %5, %cst_7 {dimension_numbers = #tpu.dot_dimension_numbers<[1], [0], [0], [1], [0, 0, 1, 1], [], []>} : vector<160x320xf32>, vector<320x2560xf32>, vector<160x2560xf32> -> vector<160x2560xf32>
    %c0_8 = arith.constant 0 : index
    %c0_9 = arith.constant 0 : index
    %8 = vector.load %arg4[%c0_8, %c0_9] : memref<160x1xf32, #tpu.memory_space<vmem>>, vector<160x1xf32>
    %9 = vector.broadcast %8 : vector<160x1xf32> to vector<160x2560xf32>
    %10 = arith.addf %7, %9 : vector<160x2560xf32>
    %cst_10 = arith.constant 0.000000e+00 : f32
    %11 = vector.broadcast %cst_10 : f32 to vector<160x2560xf32>
    %12 = arith.maximumf %10, %11 : vector<160x2560xf32>
    %c0_11 = arith.constant 0 : index
    %c0_12 = arith.constant 0 : index
    %13 = vector.load %arg5[%c0_11, %c0_12] : memref<64x160xf32, #tpu.memory_space<vmem>>, vector<64x160xf32>
    %cst_13 = arith.constant dense<0.000000e+00> : vector<64x2560xf32>
    %14 = tpu.matmul %13, %12, %cst_13 {dimension_numbers = #tpu.dot_dimension_numbers<[1], [0], [0], [1], [0, 0, 1, 1], [], []>} : vector<64x160xf32>, vector<160x2560xf32>, vector<64x2560xf32> -> vector<64x2560xf32>
    %c0_14 = arith.constant 0 : index
    %c0_15 = arith.constant 0 : index
    %15 = vector.load %arg6[%c0_14, %c0_15] : memref<64x1xf32, #tpu.memory_space<vmem>>, vector<64x1xf32>
    %16 = vector.broadcast %15 : vector<64x1xf32> to vector<64x2560xf32>
    %17 = arith.addf %14, %16 : vector<64x2560xf32>
    %cst_16 = arith.constant 0.000000e+00 : f32
    %18 = vector.broadcast %cst_16 : f32 to vector<64x2560xf32>
    %19 = arith.maximumf %17, %18 : vector<64x2560xf32>
    %c0_17 = arith.constant 0 : index
    %c0_18 = arith.constant 0 : index
    %20 = vector.load %arg7[%c0_17, %c0_18] : memref<64x1xf32, #tpu.memory_space<vmem>>, vector<64x1xf32>
    %21 = vector.broadcast %20 : vector<64x1xf32> to vector<64x2560xf32>
    %22 = arith.mulf %19, %21 : vector<64x2560xf32>
    %cst_19 = arith.constant dense<0.000000e+00> : vector<2560xf32>
    %23 = vector.multi_reduction <add>, %22, %cst_19 [0] : vector<64x2560xf32> to vector<2560xf32>
    %24 = vector.shape_cast %23 : vector<2560xf32> to vector<1x2560xf32>
    %c0_20 = arith.constant 0 : index
    %c0_21 = arith.constant 0 : index
    %25 = vector.load %arg8[%c0_20, %c0_21] : memref<1x1xf32, #tpu.memory_space<vmem>>, vector<1x1xf32>
    %26 = vector.broadcast %25 : vector<1x1xf32> to vector<1x2560xf32>
    %27 = arith.addf %24, %26 : vector<1x2560xf32>
    %28 = arith.negf %27 : vector<1x2560xf32>
    %29 = math.exp %28 : vector<1x2560xf32>
    %cst_22 = arith.constant 1.000000e+00 : f32
    %30 = vector.broadcast %cst_22 : f32 to vector<1x2560xf32>
    %31 = arith.addf %30, %29 : vector<1x2560xf32>
    %32 = arith.divf %30, %31 : vector<1x2560xf32>
    %cst_23 = arith.constant 1.000000e+00 : f32
    %33 = vector.broadcast %cst_23 : f32 to vector<1x2560xf32>
    %34 = arith.subf %33, %32 : vector<1x2560xf32>
    %cst_24 = arith.constant 1.000000e+00 : f32
    %35 = vector.broadcast %cst_24 : f32 to vector<1x128xf32>
    %36 = vector.extract_strided_slice %34 {offsets = [0, 0], sizes = [1, 128], strides = [1, 1]} : vector<1x2560xf32> to vector<1x128xf32>
    %37 = arith.mulf %35, %36 : vector<1x128xf32>
    %38 = vector.extract_strided_slice %34 {offsets = [0, 128], sizes = [1, 128], strides = [1, 1]} : vector<1x2560xf32> to vector<1x128xf32>
    %39 = arith.mulf %37, %38 : vector<1x128xf32>
    %40 = vector.extract_strided_slice %34 {offsets = [0, 256], sizes = [1, 128], strides = [1, 1]} : vector<1x2560xf32> to vector<1x128xf32>
    %41 = arith.mulf %39, %40 : vector<1x128xf32>
    %42 = vector.extract_strided_slice %34 {offsets = [0, 384], sizes = [1, 128], strides = [1, 1]} : vector<1x2560xf32> to vector<1x128xf32>
    %43 = arith.mulf %41, %42 : vector<1x128xf32>
    %44 = vector.extract_strided_slice %34 {offsets = [0, 512], sizes = [1, 128], strides = [1, 1]} : vector<1x2560xf32> to vector<1x128xf32>
    %45 = arith.mulf %43, %44 : vector<1x128xf32>
    %46 = vector.extract_strided_slice %34 {offsets = [0, 640], sizes = [1, 128], strides = [1, 1]} : vector<1x2560xf32> to vector<1x128xf32>
    %47 = arith.mulf %45, %46 : vector<1x128xf32>
    %48 = vector.extract_strided_slice %34 {offsets = [0, 768], sizes = [1, 128], strides = [1, 1]} : vector<1x2560xf32> to vector<1x128xf32>
    %49 = arith.mulf %47, %48 : vector<1x128xf32>
    %50 = vector.extract_strided_slice %34 {offsets = [0, 896], sizes = [1, 128], strides = [1, 1]} : vector<1x2560xf32> to vector<1x128xf32>
    %51 = arith.mulf %49, %50 : vector<1x128xf32>
    %52 = vector.extract_strided_slice %34 {offsets = [0, 1024], sizes = [1, 128], strides = [1, 1]} : vector<1x2560xf32> to vector<1x128xf32>
    %53 = arith.mulf %51, %52 : vector<1x128xf32>
    %54 = vector.extract_strided_slice %34 {offsets = [0, 1152], sizes = [1, 128], strides = [1, 1]} : vector<1x2560xf32> to vector<1x128xf32>
    %55 = arith.mulf %53, %54 : vector<1x128xf32>
    %56 = vector.extract_strided_slice %34 {offsets = [0, 1280], sizes = [1, 128], strides = [1, 1]} : vector<1x2560xf32> to vector<1x128xf32>
    %57 = arith.mulf %55, %56 : vector<1x128xf32>
    %58 = vector.extract_strided_slice %34 {offsets = [0, 1408], sizes = [1, 128], strides = [1, 1]} : vector<1x2560xf32> to vector<1x128xf32>
    %59 = arith.mulf %57, %58 : vector<1x128xf32>
    %60 = vector.extract_strided_slice %34 {offsets = [0, 1536], sizes = [1, 128], strides = [1, 1]} : vector<1x2560xf32> to vector<1x128xf32>
    %61 = arith.mulf %59, %60 : vector<1x128xf32>
    %62 = vector.extract_strided_slice %34 {offsets = [0, 1664], sizes = [1, 128], strides = [1, 1]} : vector<1x2560xf32> to vector<1x128xf32>
    %63 = arith.mulf %61, %62 : vector<1x128xf32>
    %64 = vector.extract_strided_slice %34 {offsets = [0, 1792], sizes = [1, 128], strides = [1, 1]} : vector<1x2560xf32> to vector<1x128xf32>
    %65 = arith.mulf %63, %64 : vector<1x128xf32>
    %66 = vector.extract_strided_slice %34 {offsets = [0, 1920], sizes = [1, 128], strides = [1, 1]} : vector<1x2560xf32> to vector<1x128xf32>
    %67 = arith.mulf %65, %66 : vector<1x128xf32>
    %68 = vector.extract_strided_slice %34 {offsets = [0, 2048], sizes = [1, 128], strides = [1, 1]} : vector<1x2560xf32> to vector<1x128xf32>
    %69 = arith.mulf %67, %68 : vector<1x128xf32>
    %70 = vector.extract_strided_slice %34 {offsets = [0, 2176], sizes = [1, 128], strides = [1, 1]} : vector<1x2560xf32> to vector<1x128xf32>
    %71 = arith.mulf %69, %70 : vector<1x128xf32>
    %72 = vector.extract_strided_slice %34 {offsets = [0, 2304], sizes = [1, 128], strides = [1, 1]} : vector<1x2560xf32> to vector<1x128xf32>
    %73 = arith.mulf %71, %72 : vector<1x128xf32>
    %74 = vector.extract_strided_slice %34 {offsets = [0, 2432], sizes = [1, 128], strides = [1, 1]} : vector<1x2560xf32> to vector<1x128xf32>
    %75 = arith.mulf %73, %74 : vector<1x128xf32>
    %cst_25 = arith.constant 1.000000e+00 : f32
    %76 = vector.broadcast %cst_25 : f32 to vector<1x128xf32>
    %77 = arith.subf %76, %75 : vector<1x128xf32>
    %c0_26 = arith.constant 0 : index
    %c0_27 = arith.constant 0 : index
    %c0_28 = arith.constant 0 : index
    %78 = vector.load %arg9[%c0_26, %c0_27, %c0_28] : memref<1x1x128xf32, #tpu.memory_space<vmem>>, vector<1x1x128xf32>
    %79 = vector.shape_cast %78 : vector<1x1x128xf32> to vector<1x128xf32>
    %80 = vector.shape_cast %77 : vector<1x128xf32> to vector<1x1x128xf32>
    tpu.vector_store %arg9[%c0_26, %c0_27, %c0_28], %80 {strides = array<i32>} : memref<1x1x128xf32, #tpu.memory_space<vmem>>, vector<1x1x128xf32>,
    return
  }
  func.func @transform_0(%arg0: i32) -> (i32, i32, i32) {
    %c0_i32 = arith.constant 0 : i32
    %c0_i32_0 = arith.constant 0 : i32
    %c0_i32_1 = arith.constant 0 : i32
    return %arg0, %c0_i32, %c0_i32_0 : i32, i32, i32
  }
  func.func @transform_1(%arg0: i32) -> (i32, i32) {
    %c0_i32 = arith.constant 0 : i32
    %c0_i32_0 = arith.constant 0 : i32
    %c0_i32_1 = arith.constant 0 : i32
    return %c0_i32, %c0_i32_0 : i32, i32
  }
  func.func @transform_2(%arg0: i32) -> (i32, i32) {
    %c0_i32 = arith.constant 0 : i32
    %c0_i32_0 = arith.constant 0 : i32
    %c0_i32_1 = arith.constant 0 : i32
    return %c0_i32, %c0_i32_0 : i32, i32
  }
  func.func @transform_3(%arg0: i32) -> (i32, i32) {
    %c0_i32 = arith.constant 0 : i32
    %c0_i32_0 = arith.constant 0 : i32
    %c0_i32_1 = arith.constant 0 : i32
    return %c0_i32, %c0_i32_0 : i32, i32
  }
  func.func @transform_4(%arg0: i32) -> (i32, i32) {
    %c0_i32 = arith.constant 0 : i32
    %c0_i32_0 = arith.constant 0 : i32
    %c0_i32_1 = arith.constant 0 : i32
    return %c0_i32, %c0_i32_0 : i32, i32
  }
  func.func @transform_5(%arg0: i32) -> (i32, i32) {
    %c0_i32 = arith.constant 0 : i32
    %c0_i32_0 = arith.constant 0 : i32
    %c0_i32_1 = arith.constant 0 : i32
    return %c0_i32, %c0_i32_0 : i32, i32
  }
  func.func @transform_6(%arg0: i32) -> (i32, i32) {
    %c0_i32 = arith.constant 0 : i32
    %c0_i32_0 = arith.constant 0 : i32
    %c0_i32_1 = arith.constant 0 : i32
    return %c0_i32, %c0_i32_0 : i32, i32
  }
  func.func @transform_7(%arg0: i32) -> (i32, i32) {
    %c0_i32 = arith.constant 0 : i32
    %c0_i32_0 = arith.constant 0 : i32
    %c0_i32_1 = arith.constant 0 : i32
    return %c0_i32, %c0_i32_0 : i32, i32
  }
  func.func @transform_8(%arg0: i32) -> (i32, i32, i32) {
    %c0_i32 = arith.constant 0 : i32
    %c0_i32_0 = arith.constant 0 : i32
    %c0_i32_1 = arith.constant 0 : i32
    return %arg0, %c0_i32, %c0_i32_0 : i32, i32, i32
  }
}

</mosaic_0001>

<llo_original>
// kernel: neural_net_forward.1
$region0: #{neural_net_forward.1}
  #allocation0 [shape = 'u32[]', space=smem, size = 0x4, offset = 0x4, fixed_abs, tag = 'smem constant byte address 0x4 - core index']
  #allocation1 [shape = 'u32[144,128]{1,0:T(1,128)}', space=vmem, size = 0x12000, scoped, tag = 'internal scratch']
  #allocation2 [shape = 'f32[1,1]{1,0:T(1,128)S(1)}', space=vmem, size = 0x200, scoped, tag = 'scoped memory for neural_net_forward.1']
  %s0 = inlined_call_operand.vmem [shape: f32[1,16,2560], index: 0, kind: input, shape index: {}]
  %s1 = inlined_call_operand.vmem [shape: f32[320,16], index: 1, kind: input, shape index: {}]
  %s2 = inlined_call_operand.vmem [shape: f32[160,320], index: 2, kind: input, shape index: {}]
  %s3 = inlined_call_operand.vmem [shape: f32[160,1], index: 3, kind: input, shape index: {}]
  %s4 = inlined_call_operand.vmem [shape: f32[64,160], index: 4, kind: input, shape index: {}]
  %s5 = inlined_call_operand.vmem [shape: f32[64,1], index: 5, kind: input, shape index: {}]
  %s6 = inlined_call_operand.vmem [shape: f32[64,1], index: 6, kind: input, shape index: {}]
  %s7 = inlined_call_operand.<no memory space> [shape: f32[1,1], index: 7, kind: input, shape index: {}]
  %s8 = inlined_call_operand.vmem [shape: f32[1,1,128], index: 8, kind: output, shape index: {}]
  %s9 = sld [smem:[#allocation0]]
  $region42: #{neural_net_forward.1} parent=0
    _
  %s11 = ssub.s32 1, %s9
  %s12 = scalar_select 0, %s11, %s9
  %v13 = vstv %s7
  %14 = vst [vmem:[#allocation2] sm:$0x1] %v13
  // Predicated region
  $region2: #{neural_net_forward.1} parent=0 // pred_check
    _
  $region3: #{neural_net_forward.1} parent=0 // pred_check_branch
    %16 = sbr.rel (0) target = $region5
  $region4: #{neural_net_forward.1} parent=0 // pred_region
    _
  $region5: #{neural_net_forward.1} parent=0 // pred_fallthru
    _
  // Predicated region
  $region6: #{neural_net_forward.1} parent=0 // pred_check
    _
  $region7: #{neural_net_forward.1} parent=0 // pred_check_branch
    %18 = sbr.rel (0) target = $region9
  $region8: #{neural_net_forward.1} parent=0 // pred_region
    _
  $region9: #{neural_net_forward.1} parent=0 // pred_fallthru
    _
  // Predicated region
  $region10: #{neural_net_forward.1} parent=0 // pred_check
    _
  $region11: #{neural_net_forward.1} parent=0 // pred_check_branch
    %20 = sbr.rel (0) target = $region13
  $region12: #{neural_net_forward.1} parent=0 // pred_region
    _
  $region13: #{neural_net_forward.1} parent=0 // pred_fallthru
    _
  // Predicated region
  $region14: #{neural_net_forward.1} parent=0 // pred_check
    _
  $region15: #{neural_net_forward.1} parent=0 // pred_check_branch
    %22 = sbr.rel (0) target = $region17
  $region16: #{neural_net_forward.1} parent=0 // pred_region
    _
  $region17: #{neural_net_forward.1} parent=0 // pred_fallthru
    _
  // Predicated region
  $region18: #{neural_net_forward.1} parent=0 // pred_check
    _
  $region19: #{neural_net_forward.1} parent=0 // pred_check_branch
    %24 = sbr.rel (0) target = $region21
  $region20: #{neural_net_forward.1} parent=0 // pred_region
    _
  $region21: #{neural_net_forward.1} parent=0 // pred_fallthru
    _
  // Predicated region
  $region22: #{neural_net_forward.1} parent=0 // pred_check
    _
  $region23: #{neural_net_forward.1} parent=0 // pred_check_branch
    %26 = sbr.rel (0) target = $region25
  $region24: #{neural_net_forward.1} parent=0 // pred_region
    _
  $region25: #{neural_net_forward.1} parent=0 // pred_fallthru
    _
  // Predicated region
  $region26: #{neural_net_forward.1} parent=0 // pred_check
    _
  $region27: #{neural_net_forward.1} parent=0 // pred_check_branch
    %28 = sbr.rel (0) target = $region29
  $region28: #{neural_net_forward.1} parent=0 // pred_region
    _
  $region29: #{neural_net_forward.1} parent=0 // pred_fallthru
    _
  // Predicated region
  $region30: #{neural_net_forward.1} parent=0 // pred_check
    _
  $region31: #{neural_net_forward.1} parent=0 // pred_check_branch
    %30 = sbr.rel (0) target = $region33
  $region32: #{neural_net_forward.1} parent=0 // pred_region
    _
  $region33: #{neural_net_forward.1} parent=0 // pred_fallthru
    _
  %v31 = vld [vmem:[%s0] sm:$0xff]
  %v32 = vld [vmem:[%s0 + $0x8] sm:$0xff]
  %v33 = vld [vmem:[%s0 + $0x10] sm:$0xff]
  %v34 = vld [vmem:[%s0 + $0x18] sm:$0xff]
  %v35 = vld [vmem:[%s0 + $0x20] sm:$0xff]
  %v36 = vld [vmem:[%s0 + $0x28] sm:$0xff]
  %v37 = vld [vmem:[%s0 + $0x30] sm:$0xff]
  %v38 = vld [vmem:[%s0 + $0x38] sm:$0xff]
  %v39 = vld [vmem:[%s0 + $0x40] sm:$0xff]
  %v40 = vld [vmem:[%s0 + $0x48] sm:$0xff]
  %v41 = vld [vmem:[%s0 + $0x50] sm:$0xff]
  %v42 = vld [vmem:[%s0 + $0x58] sm:$0xff]
  %v43 = vld [vmem:[%s0 + $0x60] sm:$0xff]
  %v44 = vld [vmem:[%s0 + $0x68] sm:$0xff]
  %v45 = vld [vmem:[%s0 + $0x70] sm:$0xff]
  %v46 = vld [vmem:[%s0 + $0x78] sm:$0xff]
  %v47 = vld [vmem:[%s0 + $0x80] sm:$0xff]
  %v48 = vld [vmem:[%s0 + $0x88] sm:$0xff]
  %v49 = vld [vmem:[%s0 + $0x90] sm:$0xff]
  %v50 = vld [vmem:[%s0 + $0x98] sm:$0xff]
  %v51 = vld [vmem:[%s0 + $0xa0] sm:$0xff]
  %v52 = vld [vmem:[%s0 + $0xa8] sm:$0xff]
  %v53 = vld [vmem:[%s0 + $0xb0] sm:$0xff]
  %v54 = vld [vmem:[%s0 + $0xb8] sm:$0xff]
  %v55 = vld [vmem:[%s0 + $0xc0] sm:$0xff]
  %v56 = vld [vmem:[%s0 + $0xc8] sm:$0xff]
  %v57 = vld [vmem:[%s0 + $0xd0] sm:$0xff]
  %v58 = vld [vmem:[%s0 + $0xd8] sm:$0xff]
  %v59 = vld [vmem:[%s0 + $0xe0] sm:$0xff]
  %v60 = vld [vmem:[%s0 + $0xe8] sm:$0xff]
  %v61 = vld [vmem:[%s0 + $0xf0] sm:$0xff]
  %v62 = vld [vmem:[%s0 + $0xf8] sm:$0xff]
  %v63 = vld [vmem:[%s0 + $0x100] sm:$0xff]
  %v64 = vld [vmem:[%s0 + $0x108] sm:$0xff]
  %v65 = vld [vmem:[%s0 + $0x110] sm:$0xff]
  %v66 = vld [vmem:[%s0 + $0x118] sm:$0xff]
  %v67 = vld [vmem:[%s0 + $0x120] sm:$0xff]
  %v68 = vld [vmem:[%s0 + $0x128] sm:$0xff]
  %v69 = vld [vmem:[%s0 + $0x130] sm:$0xff]
  %v70 = vld [vmem:[%s0 + $0x138] sm:$0xff]
  %v71 = vld [vmem:[%s1] sm:$0xff]
  %v72 = vld [vmem:[%s1 + $0x8] sm:$0xff]
  %v73 = vld [vmem:[%s1 + $0x10] sm:$0xff]
  %v74 = vld [vmem:[%s1 + $0x18] sm:$0xff]
  %v75 = vld [vmem:[%s1 + $0x20] sm:$0xff]
  %v76 = vld [vmem:[%s1 + $0x28] sm:$0xff]
  %v77 = vld [vmem:[%s1 + $0x30] sm:$0xff]
  %v78 = vld [vmem:[%s1 + $0x38] sm:$0xff]
  %v79 = vld [vmem:[%s1 + $0x40] sm:$0xff]
  %v80 = vld [vmem:[%s1 + $0x48] sm:$0xff]
  %v81 = vld [vmem:[%s1 + $0x50] sm:$0xff]
  %v82 = vld [vmem:[%s1 + $0x58] sm:$0xff]
  %v83 = vld [vmem:[%s1 + $0x60] sm:$0xff]
  %v84 = vld [vmem:[%s1 + $0x68] sm:$0xff]
  %v85 = vld [vmem:[%s1 + $0x70] sm:$0xff]
  %v86 = vld [vmem:[%s1 + $0x78] sm:$0xff]
  %v87 = vld [vmem:[%s1 + $0x80] sm:$0xff]
  %v88 = vld [vmem:[%s1 + $0x88] sm:$0xff]
  %v89 = vld [vmem:[%s1 + $0x90] sm:$0xff]
  %v90 = vld [vmem:[%s1 + $0x98] sm:$0xff]
  %v91 = vld [vmem:[%s1 + $0xa0] sm:$0xff]
  %v92 = vld [vmem:[%s1 + $0xa8] sm:$0xff]
  %v93 = vld [vmem:[%s1 + $0xb0] sm:$0xff]
  %v94 = vld [vmem:[%s1 + $0xb8] sm:$0xff]
  %v95 = vld [vmem:[%s1 + $0xc0] sm:$0xff]
  %v96 = vld [vmem:[%s1 + $0xc8] sm:$0xff]
  %v97 = vld [vmem:[%s1 + $0xd0] sm:$0xff]
  %v98 = vld [vmem:[%s1 + $0xd8] sm:$0xff]
  %v99 = vld [vmem:[%s1 + $0xe0] sm:$0xff]
  %v100 = vld [vmem:[%s1 + $0xe8] sm:$0xff]
  %v101 = vld [vmem:[%s1 + $0xf0] sm:$0xff]
  %v102 = vld [vmem:[%s1 + $0xf8] sm:$0xff]
  %v103 = vld [vmem:[%s1 + $0x100] sm:$0xff]
  %v104 = vld [vmem:[%s1 + $0x108] sm:$0xff]
  %v105 = vld [vmem:[%s1 + $0x110] sm:$0xff]
  %v106 = vld [vmem:[%s1 + $0x118] sm:$0xff]
  %v107 = vld [vmem:[%s1 + $0x120] sm:$0xff]
  %v108 = vld [vmem:[%s1 + $0x128] sm:$0xff]
  %v109 = vld [vmem:[%s1 + $0x130] sm:$0xff]
  %v110 = vld [vmem:[%s1 + $0x138] sm:$0xff]
  %vm111 = vcmask 130048
  %v113 = vsel %vm111, %v71, 0
  %v116 = vsel %vm111, %v72, 0
  %v119 = vsel %vm111, %v73, 0
  %v122 = vsel %vm111, %v74, 0
  %v125 = vsel %vm111, %v75, 0
  %v128 = vsel %vm111, %v76, 0
  %v131 = vsel %vm111, %v77, 0
  %v134 = vsel %vm111, %v78, 0
  %v137 = vsel %vm111, %v79, 0
  %v140 = vsel %vm111, %v80, 0
  %v143 = vsel %vm111, %v81, 0
  %v146 = vsel %vm111, %v82, 0
  %v149 = vsel %vm111, %v83, 0
  %v152 = vsel %vm111, %v84, 0
  %v155 = vsel %vm111, %v85, 0
  %v158 = vsel %vm111, %v86, 0
  %v161 = vsel %vm111, %v87, 0
  %v164 = vsel %vm111, %v88, 0
  %v167 = vsel %vm111, %v89, 0
  %v170 = vsel %vm111, %v90, 0
  %v173 = vsel %vm111, %v91, 0
  %v176 = vsel %vm111, %v92, 0
  %v179 = vsel %vm111, %v93, 0
  %v182 = vsel %vm111, %v94, 0
  %v185 = vsel %vm111, %v95, 0
  %v188 = vsel %vm111, %v96, 0
  %v191 = vsel %vm111, %v97, 0
  %v194 = vsel %vm111, %v98, 0
  %v197 = vsel %vm111, %v99, 0
  %v200 = vsel %vm111, %v100, 0
  %v203 = vsel %vm111, %v101, 0
  %v206 = vsel %vm111, %v102, 0
  %v209 = vsel %vm111, %v103, 0
  %v212 = vsel %vm111, %v104, 0
  %v215 = vsel %vm111, %v105, 0
  %v218 = vsel %vm111, %v106, 0
  %v221 = vsel %vm111, %v107, 0
  %v224 = vsel %vm111, %v108, 0
  %v227 = vsel %vm111, %v109, 0
  %v230 = vsel %vm111, %v110, 0
  %232 = vmatprep.subr.mxu0 0.0
  %233 = vmatpush1.msra.mxu0 0.0
  %234 = vmatprep.subr.mxu0 0.0
  %235 = vmatpush1.msra.mxu0 0.0
  %236 = vmatprep.subr.mxu0 0.0
  %237 = vmatpush1.msra.mxu0 0.0
  %238 = vmatprep.subr.mxu0 0.0
  %239 = vmatpush1.msra.mxu0 0.0
  %240 = vmatprep.subr.mxu0 0.0
  %241 = vmatpush1.msra.mxu0 0.0
  %242 = vmatprep.subr.mxu0 0.0
  %243 = vmatpush1.msra.mxu0 0.0
  %244 = vmatprep.subr.mxu0 0.0
  %245 = vmatpush1.msra.mxu0 0.0
  %246 = vmatprep.subr.mxu0 0.0
  %247 = vmatpush1.msra.mxu0 0.0
  %248 = vmatprep.subr.mxu0 0.0
  %249 = vmatpush1.msra.mxu0 0.0
  %250 = vmatprep.subr.mxu0 0.0
  %251 = vmatpush1.msra.mxu0 0.0
  %252 = vmatprep.subr.mxu0 0.0
  %253 = vmatpush1.msra.mxu0 0.0
  %254 = vmatprep.subr.mxu0 0.0
  %255 = vmatpush1.msra.mxu0 0.0
  %256 = vmatprep.subr.mxu0 0.0
  %257 = vmatpush1.msra.mxu0 0.0
  %258 = vmatprep.subr.mxu0 0.0
  %259 = vmatpush1.msra.mxu0 0.0
  %260 = vmatprep.subr.mxu0 %v52
  %261 = vmatpush1.msra.mxu0 %v51
  %262 = vmatprep.subr.mxu0 %v32
  %263 = vmatpush1.msra.mxu0 %v31
  %264 = vmatprep.subr.mxu0 0.0
  %265 = vmatpush2.msra.mxu0 0.0
  %266 = vmatprep.subr.mxu0 0.0
  %267 = vmatpush2.msra.mxu0 0.0
  %268 = vmatprep.subr.mxu0 0.0
  %269 = vmatpush2.msra.mxu0 0.0
  %270 = vmatprep.subr.mxu0 0.0
  %271 = vmatpush2.msra.mxu0 0.0
  %272 = vmatprep.subr.mxu0 0.0
  %273 = vmatpush2.msra.mxu0 0.0
  %274 = vmatprep.subr.mxu0 0.0
  %275 = vmatpush2.msra.mxu0 0.0
  %276 = vmatprep.subr.mxu0 0.0
  %277 = vmatpush2.msra.mxu0 0.0
  %278 = vmatprep.subr.mxu0 0.0
  %279 = vmatpush2.msra.mxu0 0.0
  %280 = vmatprep.subr.mxu0 0.0
  %281 = vmatpush2.msra.mxu0 0.0
  %282 = vmatprep.subr.mxu0 0.0
  %283 = vmatpush2.msra.mxu0 0.0
  %284 = vmatprep.subr.mxu0 0.0
  %285 = vmatpush2.msra.mxu0 0.0
  %286 = vmatprep.subr.mxu0 0.0
  %287 = vmatpush2.msra.mxu0 0.0
  %288 = vmatprep.subr.mxu0 0.0
  %289 = vmatpush2.msra.mxu0 0.0
  %290 = vmatprep.subr.mxu0 0.0
  %291 = vmatpush2.msra.mxu0 0.0
  %292 = vmatprep.subr.mxu0 0.0
  %293 = vmatpush2.msra.mxu0 0.0
  %294 = vmatprep.subr.mxu0 0.0
  %295 = vmatpush2.msra.mxu0 0.0
  %296 = vmatprep.mubr.f32.mxu0 0.0
  %297 = vmatmul.mubr.f32.gmra.mxu0 %v113
  %v298 = vpop.f32.mrf.mxu0
  %v299 = vadd.f32 0.0, %v298
  %v300 = vpop.f32.mrf.mxu0
  %v301 = vadd.f32 0.0, %v300
  %302 = vmatprep.mubr.f32.mxu0 0.0
  %303 = vmatmul.mubr.f32.gmra.mxu0 %v116
  %v304 = vpop.f32.mrf.mxu0
  %v305 = vadd.f32 0.0, %v304
  %v306 = vpop.f32.mrf.mxu0
  %v307 = vadd.f32 0.0, %v306
  %308 = vmatprep.mubr.f32.mxu0 0.0
  %309 = vmatmul.mubr.f32.gmra.mxu0 %v119
  %v310 = vpop.f32.mrf.mxu0
  %v311 = vadd.f32 0.0, %v310
  %v312 = vpop.f32.mrf.mxu0
  %v313 = vadd.f32 0.0, %v312
  %314 = vmatprep.mubr.f32.mxu0 0.0
  %315 = vmatmul.mubr.f32.gmra.mxu0 %v122
  %v316 = vpop.f32.mrf.mxu0
  %v317 = vadd.f32 0.0, %v316
  %v318 = vpop.f32.mrf.mxu0
  %v319 = vadd.f32 0.0, %v318
  %320 = vmatprep.mubr.f32.mxu0 0.0
  %321 = vmatmul.mubr.f32.gmra.mxu0 %v125
  %v322 = vpop.f32.mrf.mxu0
  %v323 = vadd.f32 0.0, %v322
  %v324 = vpop.f32.mrf.mxu0
  %v325 = vadd.f32 0.0, %v324
  %326 = vmatprep.mubr.f32.mxu0 0.0
  %327 = vmatmul.mubr.f32.gmra.mxu0 %v128
  %v328 = vpop.f32.mrf.mxu0
  %v329 = vadd.f32 0.0, %v328
  %v330 = vpop.f32.mrf.mxu0
  %v331 = vadd.f32 0.0, %v330
  %332 = vmatprep.mubr.f32.mxu0 0.0
  %333 = vmatmul.mubr.f32.gmra.mxu0 %v131
  %v334 = vpop.f32.mrf.mxu0
  %v335 = vadd.f32 0.0, %v334
  %v336 = vpop.f32.mrf.mxu0
  %v337 = vadd.f32 0.0, %v336
  %338 = vmatprep.mubr.f32.mxu0 0.0
  %339 = vmatmul.mubr.f32.gmra.mxu0 %v134
  %v340 = vpop.f32.mrf.mxu0
  %v341 = vadd.f32 0.0, %v340
  %v342 = vpop.f32.mrf.mxu0
  %v343 = vadd.f32 0.0, %v342
  %344 = vmatprep.mubr.f32.mxu0 0.0
  %345 = vmatmul.mubr.f32.gmra.mxu0 %v137
  %v346 = vpop.f32.mrf.mxu0
  %v347 = vadd.f32 0.0, %v346
  %v348 = vpop.f32.mrf.mxu0
  %v349 = vadd.f32 0.0, %v348
  %350 = vmatprep.mubr.f32.mxu0 0.0
  %351 = vmatmul.mubr.f32.gmra.mxu0 %v140
  %v352 = vpop.f32.mrf.mxu0
  %v353 = vadd.f32 0.0, %v352
  %v354 = vpop.f32.mrf.mxu0
  %v355 = vadd.f32 0.0, %v354
  %356 = vmatprep.mubr.f32.mxu0 0.0
  %357 = vmatmul.mubr.f32.gmra.mxu0 %v143
  %v358 = vpop.f32.mrf.mxu0
  %v359 = vadd.f32 0.0, %v358
  %v360 = vpop.f32.mrf.mxu0
  %v361 = vadd.f32 0.0, %v360
  %362 = vmatprep.mubr.f32.mxu0 0.0
  %363 = vmatmul.mubr.f32.gmra.mxu0 %v146
  %v364 = vpop.f32.mrf.mxu0
  %v365 = vadd.f32 0.0, %v364
  %v366 = vpop.f32.mrf.mxu0
  %v367 = vadd.f32 0.0, %v366
  %368 = vmatprep.mubr.f32.mxu0 0.0
  %369 = vmatmul.mubr.f32.gmra.mxu0 %v149
  %v370 = vpop.f32.mrf.mxu0
  %v371 = vadd.f32 0.0, %v370
  %v372 = vpop.f32.mrf.mxu0
  %v373 = vadd.f32 0.0, %v372
  %374 = vmatprep.mubr.f32.mxu0 0.0
  %375 = vmatmul.mubr.f32.gmra.mxu0 %v152
  %v376 = vpop.f32.mrf.mxu0
  %v377 = vadd.f32 0.0, %v376
  %v378 = vpop.f32.mrf.mxu0
  %v379 = vadd.f32 0.0, %v378
  %380 = vmatprep.mubr.f32.mxu0 0.0
  %381 = vmatmul.mubr.f32.gmra.mxu0 %v155
  %v382 = vpop.f32.mrf.mxu0
  %v383 = vadd.f32 0.0, %v382
  %v384 = vpop.f32.mrf.mxu0
  %v385 = vadd.f32 0.0, %v384
  %386 = vmatprep.mubr.f32.mxu0 0.0
  %387 = vmatmul.mubr.f32.gmra.mxu0 %v158
  %v388 = vpop.f32.mrf.mxu0
  %v389 = vadd.f32 0.0, %v388
  %v390 = vpop.f32.mrf.mxu0
  %v391 = vadd.f32 0.0, %v390
  %392 = vmatprep.mubr.f32.mxu0 0.0
  %393 = vmatmul.mubr.f32.gmra.mxu0 %v161
  %v394 = vpop.f32.mrf.mxu0
  %v395 = vadd.f32 0.0, %v394
  %v396 = vpop.f32.mrf.mxu0
  %v397 = vadd.f32 0.0, %v396
  %398 = vmatprep.mubr.f32.mxu0 0.0
  %399 = vmatmul.mubr.f32.gmra.mxu0 %v164
  %v400 = vpop.f32.mrf.mxu0
  %v401 = vadd.f32 0.0, %v400
  %v402 = vpop.f32.mrf.mxu0
  %v403 = vadd.f32 0.0, %v402
  %404 = vmatprep.mubr.f32.mxu0 0.0
  %405 = vmatmul.mubr.f32.gmra.mxu0 %v167
  %v406 = vpop.f32.mrf.mxu0
  %v407 = vadd.f32 0.0, %v406
  %v408 = vpop.f32.mrf.mxu0
  %v409 = vadd.f32 0.0, %v408
  %410 = vmatprep.mubr.f32.mxu0 0.0
  %411 = vmatmul.mubr.f32.gmra.mxu0 %v170
  %v412 = vpop.f32.mrf.mxu0
  %v413 = vadd.f32 0.0, %v412
  %v414 = vpop.f32.mrf.mxu0
  %v415 = vadd.f32 0.0, %v414
  %416 = vmatprep.mubr.f32.mxu0 0.0
  %417 = vmatmul.mubr.f32.gmra.mxu0 %v173
  %v418 = vpop.f32.mrf.mxu0
  %v419 = vadd.f32 0.0, %v418
  %v420 = vpop.f32.mrf.mxu0
  %v421 = vadd.f32 0.0, %v420
  %422 = vmatprep.mubr.f32.mxu0 0.0
  %423 = vmatmul.mubr.f32.gmra.mxu0 %v176
  %v424 = vpop.f32.mrf.mxu0
  %v425 = vadd.f32 0.0, %v424
  %v426 = vpop.f32.mrf.mxu0
  %v427 = vadd.f32 0.0, %v426
  %428 = vmatprep.mubr.f32.mxu0 0.0
  %429 = vmatmul.mubr.f32.gmra.mxu0 %v179
  %v430 = vpop.f32.mrf.mxu0
  %v431 = vadd.f32 0.0, %v430
  %v432 = vpop.f32.mrf.mxu0
  %v433 = vadd.f32 0.0, %v432
  %434 = vmatprep.mubr.f32.mxu0 0.0
  %435 = vmatmul.mubr.f32.gmra.mxu0 %v182
  %v436 = vpop.f32.mrf.mxu0
  %v437 = vadd.f32 0.0, %v436
  %v438 = vpop.f32.mrf.mxu0
  %v439 = vadd.f32 0.0, %v438
  %440 = vmatprep.mubr.f32.mxu0 0.0
  %441 = vmatmul.mubr.f32.gmra.mxu0 %v185
  %v442 = vpop.f32.mrf.mxu0
  %v443 = vadd.f32 0.0, %v442
  %v444 = vpop.f32.mrf.mxu0
  %v445 = vadd.f32 0.0, %v444
  %446 = vmatprep.mubr.f32.mxu0 0.0
  %447 = vmatmul.mubr.f32.gmra.mxu0 %v188
  %v448 = vpop.f32.mrf.mxu0
  %v449 = vadd.f32 0.0, %v448
  %v450 = vpop.f32.mrf.mxu0
  %v451 = vadd.f32 0.0, %v450
  %452 = vmatprep.mubr.f32.mxu0 0.0
  %453 = vmatmul.mubr.f32.gmra.mxu0 %v191
  %v454 = vpop.f32.mrf.mxu0
  %v455 = vadd.f32 0.0, %v454
  %v456 = vpop.f32.mrf.mxu0
  %v457 = vadd.f32 0.0, %v456
  %458 = vmatprep.mubr.f32.mxu0 0.0
  %459 = vmatmul.mubr.f32.gmra.mxu0 %v194
  %v460 = vpop.f32.mrf.mxu0
  %v461 = vadd.f32 0.0, %v460
  %v462 = vpop.f32.mrf.mxu0
  %v463 = vadd.f32 0.0, %v462
  %464 = vmatprep.mubr.f32.mxu0 0.0
  %465 = vmatmul.mubr.f32.gmra.mxu0 %v197
  %v466 = vpop.f32.mrf.mxu0
  %v467 = vadd.f32 0.0, %v466
  %v468 = vpop.f32.mrf.mxu0
  %v469 = vadd.f32 0.0, %v468
  %470 = vmatprep.mubr.f32.mxu0 0.0
  %471 = vmatmul.mubr.f32.gmra.mxu0 %v200
  %v472 = vpop.f32.mrf.mxu0
  %v473 = vadd.f32 0.0, %v472
  %v474 = vpop.f32.mrf.mxu0
  %v475 = vadd.f32 0.0, %v474
  %476 = vmatprep.mubr.f32.mxu0 0.0
  %477 = vmatmul.mubr.f32.gmra.mxu0 %v203
  %v478 = vpop.f32.mrf.mxu0
  %v479 = vadd.f32 0.0, %v478
  %v480 = vpop.f32.mrf.mxu0
  %v481 = vadd.f32 0.0, %v480
  %482 = vmatprep.mubr.f32.mxu0 0.0
  %483 = vmatmul.mubr.f32.gmra.mxu0 %v206
  %v484 = vpop.f32.mrf.mxu0
  %v485 = vadd.f32 0.0, %v484
  %v486 = vpop.f32.mrf.mxu0
  %v487 = vadd.f32 0.0, %v486
  %488 = vmatprep.mubr.f32.mxu0 0.0
  %489 = vmatmul.mubr.f32.gmra.mxu0 %v209
  %v490 = vpop.f32.mrf.mxu0
  %v491 = vadd.f32 0.0, %v490
  %v492 = vpop.f32.mrf.mxu0
  %v493 = vadd.f32 0.0, %v492
  %494 = vmatprep.mubr.f32.mxu0 0.0
  %495 = vmatmul.mubr.f32.gmra.mxu0 %v212
  %v496 = vpop.f32.mrf.mxu0
  %v497 = vadd.f32 0.0, %v496
  %v498 = vpop.f32.mrf.mxu0
  %v499 = vadd.f32 0.0, %v498
  %500 = vmatprep.mubr.f32.mxu0 0.0
  %501 = vmatmul.mubr.f32.gmra.mxu0 %v215
  %v502 = vpop.f32.mrf.mxu0
  %v503 = vadd.f32 0.0, %v502
  %v504 = vpop.f32.mrf.mxu0
  %v505 = vadd.f32 0.0, %v504
  %506 = vmatprep.mubr.f32.mxu0 0.0
  %507 = vmatmul.mubr.f32.gmra.mxu0 %v218
  %v508 = vpop.f32.mrf.mxu0
  %v509 = vadd.f32 0.0, %v508
  %v510 = vpop.f32.mrf.mxu0
  %v511 = vadd.f32 0.0, %v510
  %512 = vmatprep.mubr.f32.mxu0 0.0
  %513 = vmatmul.mubr.f32.gmra.mxu0 %v221
  %v514 = vpop.f32.mrf.mxu0
  %v515 = vadd.f32 0.0, %v514
  %v516 = vpop.f32.mrf.mxu0
  %v517 = vadd.f32 0.0, %v516
  %518 = vmatprep.mubr.f32.mxu0 0.0
  %519 = vmatmul.mubr.f32.gmra.mxu0 %v224
  %v520 = vpop.f32.mrf.mxu0
  %v521 = vadd.f32 0.0, %v520
  %v522 = vpop.f32.mrf.mxu0
  %v523 = vadd.f32 0.0, %v522
  %524 = vmatprep.mubr.f32.mxu0 0.0
  %525 = vmatmul.mubr.f32.gmra.mxu0 %v227
  %v526 = vpop.f32.mrf.mxu0
  %v527 = vadd.f32 0.0, %v526
  %v528 = vpop.f32.mrf.mxu0
  %v529 = vadd.f32 0.0, %v528
  %530 = vmatprep.mubr.f32.mxu0 0.0
  %531 = vmatmul.mubr.f32.gmra.mxu0 %v230
  %v532 = vpop.f32.mrf.mxu0
  %v533 = vadd.f32 0.0, %v532
  %v534 = vpop.f32.mrf.mxu0
  %v535 = vadd.f32 0.0, %v534
  %536 = vdwg.mxu0
  %537 = vmatprep.subr.mxu0 0.0
  %538 = vmatpush1.msra.mxu0 0.0
  %539 = vmatprep.subr.mxu0 0.0
  %540 = vmatpush1.msra.mxu0 0.0
  %541 = vmatprep.subr.mxu0 0.0
  %542 = vmatpush1.msra.mxu0 0.0
  %543 = vmatprep.subr.mxu0 0.0
  %544 = vmatpush1.msra.mxu0 0.0
  %545 = vmatprep.subr.mxu0 0.0
  %546 = vmatpush1.msra.mxu0 0.0
  %547 = vmatprep.subr.mxu0 0.0
  %548 = vmatpush1.msra.mxu0 0.0
  %549 = vmatprep.subr.mxu0 0.0
  %550 = vmatpush1.msra.mxu0 0.0
  %551 = vmatprep.subr.mxu0 0.0
  %552 = vmatpush1.msra.mxu0 0.0
  %553 = vmatprep.subr.mxu0 0.0
  %554 = vmatpush1.msra.mxu0 0.0
  %555 = vmatprep.subr.mxu0 0.0
  %556 = vmatpush1.msra.mxu0 0.0
  %557 = vmatprep.subr.mxu0 0.0
  %558 = vmatpush1.msra.mxu0 0.0
  %559 = vmatprep.subr.mxu0 0.0
  %560 = vmatpush1.msra.mxu0 0.0
  %561 = vmatprep.subr.mxu0 0.0
  %562 = vmatpush1.msra.mxu0 0.0
  %563 = vmatprep.subr.mxu0 0.0
  %564 = vmatpush1.msra.mxu0 0.0
  %565 = vmatprep.subr.mxu0 %v54
  %566 = vmatpush1.msra.mxu0 %v53
  %567 = vmatprep.subr.mxu0 %v34
  %568 = vmatpush1.msra.mxu0 %v33
  %569 = vmatprep.subr.mxu0 0.0
  %570 = vmatpush2.msra.mxu0 0.0
  %571 = vmatprep.subr.mxu0 0.0
  %572 = vmatpush2.msra.mxu0 0.0
  %573 = vmatprep.subr.mxu0 0.0
  %574 = vmatpush2.msra.mxu0 0.0
  %575 = vmatprep.subr.mxu0 0.0
  %576 = vmatpush2.msra.mxu0 0.0
  %577 = vmatprep.subr.mxu0 0.0
  %578 = vmatpush2.msra.mxu0 0.0
  %579 = vmatprep.subr.mxu0 0.0
  %580 = vmatpush2.msra.mxu0 0.0
  %581 = vmatprep.subr.mxu0 0.0
  %582 = vmatpush2.msra.mxu0 0.0
  %583 = vmatprep.subr.mxu0 0.0
  %584 = vmatpush2.msra.mxu0 0.0
  %585 = vmatprep.subr.mxu0 0.0
  %586 = vmatpush2.msra.mxu0 0.0
  %587 = vmatprep.subr.mxu0 0.0
  %588 = vmatpush2.msra.mxu0 0.0
  %589 = vmatprep.subr.mxu0 0.0
  %590 = vmatpush2.msra.mxu0 0.0
  %591 = vmatprep.subr.mxu0 0.0
  %592 = vmatpush2.msra.mxu0 0.0
  %593 = vmatprep.subr.mxu0 0.0
  %594 = vmatpush2.msra.mxu0 0.0
  %595 = vmatprep.subr.mxu0 0.0
  %596 = vmatpush2.msra.mxu0 0.0
  %597 = vmatprep.subr.mxu0 0.0
  %598 = vmatpush2.msra.mxu0 0.0
  %599 = vmatprep.subr.mxu0 0.0
  %600 = vmatpush2.msra.mxu0 0.0
  %601 = vmatprep.mubr.f32.mxu0 0.0
  %602 = vmatmul.mubr.f32.gmra.mxu0 %v113
  %v603 = vpop.f32.mrf.mxu0
  %v604 = vadd.f32 0.0, %v603
  %v605 = vpop.f32.mrf.mxu0
  %v606 = vadd.f32 0.0, %v605
  %607 = vmatprep.mubr.f32.mxu0 0.0
  %608 = vmatmul.mubr.f32.gmra.mxu0 %v116
  %v609 = vpop.f32.mrf.mxu0
  %v610 = vadd.f32 0.0, %v609
  %v611 = vpop.f32.mrf.mxu0
  %v612 = vadd.f32 0.0, %v611
  %613 = vmatprep.mubr.f32.mxu0 0.0
  %614 = vmatmul.mubr.f32.gmra.mxu0 %v119
  %v615 = vpop.f32.mrf.mxu0
  %v616 = vadd.f32 0.0, %v615
  %v617 = vpop.f32.mrf.mxu0
  %v618 = vadd.f32 0.0, %v617
  %619 = vmatprep.mubr.f32.mxu0 0.0
  %620 = vmatmul.mubr.f32.gmra.mxu0 %v122
  %v621 = vpop.f32.mrf.mxu0
  %v622 = vadd.f32 0.0, %v621
  %v623 = vpop.f32.mrf.mxu0
  %v624 = vadd.f32 0.0, %v623
  %625 = vmatprep.mubr.f32.mxu0 0.0
  %626 = vmatmul.mubr.f32.gmra.mxu0 %v125
  %v627 = vpop.f32.mrf.mxu0
  %v628 = vadd.f32 0.0, %v627
  %v629 = vpop.f32.mrf.mxu0
  %v630 = vadd.f32 0.0, %v629
  %631 = vmatprep.mubr.f32.mxu0 0.0
  %632 = vmatmul.mubr.f32.gmra.mxu0 %v128
  %v633 = vpop.f32.mrf.mxu0
  %v634 = vadd.f32 0.0, %v633
  %v635 = vpop.f32.mrf.mxu0
  %v636 = vadd.f32 0.0, %v635
  %637 = vmatprep.mubr.f32.mxu0 0.0
  %638 = vmatmul.mubr.f32.gmra.mxu0 %v131
  %v639 = vpop.f32.mrf.mxu0
  %v640 = vadd.f32 0.0, %v639
  %v641 = vpop.f32.mrf.mxu0
  %v642 = vadd.f32 0.0, %v641
  %643 = vmatprep.mubr.f32.mxu0 0.0
  %644 = vmatmul.mubr.f32.gmra.mxu0 %v134
  %v645 = vpop.f32.mrf.mxu0
  %v646 = vadd.f32 0.0, %v645
  %v647 = vpop.f32.mrf.mxu0
  %v648 = vadd.f32 0.0, %v647
  %649 = vmatprep.mubr.f32.mxu0 0.0
  %650 = vmatmul.mubr.f32.gmra.mxu0 %v137
  %v651 = vpop.f32.mrf.mxu0
  %v652 = vadd.f32 0.0, %v651
  %v653 = vpop.f32.mrf.mxu0
  %v654 = vadd.f32 0.0, %v653
  %655 = vmatprep.mubr.f32.mxu0 0.0
  %656 = vmatmul.mubr.f32.gmra.mxu0 %v140
  %v657 = vpop.f32.mrf.mxu0
  %v658 = vadd.f32 0.0, %v657
  %v659 = vpop.f32.mrf.mxu0
  %v660 = vadd.f32 0.0, %v659
  %661 = vmatprep.mubr.f32.mxu0 0.0
  %662 = vmatmul.mubr.f32.gmra.mxu0 %v143
  %v663 = vpop.f32.mrf.mxu0
  %v664 = vadd.f32 0.0, %v663
  %v665 = vpop.f32.mrf.mxu0
  %v666 = vadd.f32 0.0, %v665
  %667 = vmatprep.mubr.f32.mxu0 0.0
  %668 = vmatmul.mubr.f32.gmra.mxu0 %v146
  %v669 = vpop.f32.mrf.mxu0
  %v670 = vadd.f32 0.0, %v669
  %v671 = vpop.f32.mrf.mxu0
  %v672 = vadd.f32 0.0, %v671
  %673 = vmatprep.mubr.f32.mxu0 0.0
  %674 = vmatmul.mubr.f32.gmra.mxu0 %v149
  %v675 = vpop.f32.mrf.mxu0
  %v676 = vadd.f32 0.0, %v675
  %v677 = vpop.f32.mrf.mxu0
  %v678 = vadd.f32 0.0, %v677
  %679 = vmatprep.mubr.f32.mxu0 0.0
  %680 = vmatmul.mubr.f32.gmra.mxu0 %v152
  %v681 = vpop.f32.mrf.mxu0
  %v682 = vadd.f32 0.0, %v681
  %v683 = vpop.f32.mrf.mxu0
  %v684 = vadd.f32 0.0, %v683
  %685 = vmatprep.mubr.f32.mxu0 0.0
  %686 = vmatmul.mubr.f32.gmra.mxu0 %v155
  %v687 = vpop.f32.mrf.mxu0
  %v688 = vadd.f32 0.0, %v687
  %v689 = vpop.f32.mrf.mxu0
  %v690 = vadd.f32 0.0, %v689
  %691 = vmatprep.mubr.f32.mxu0 0.0
  %692 = vmatmul.mubr.f32.gmra.mxu0 %v158
  %v693 = vpop.f32.mrf.mxu0
  %v694 = vadd.f32 0.0, %v693
  %v695 = vpop.f32.mrf.mxu0
  %v696 = vadd.f32 0.0, %v695
  %697 = vmatprep.mubr.f32.mxu0 0.0
  %698 = vmatmul.mubr.f32.gmra.mxu0 %v161
  %v699 = vpop.f32.mrf.mxu0
  %v700 = vadd.f32 0.0, %v699
  %v701 = vpop.f32.mrf.mxu0
  %v702 = vadd.f32 0.0, %v701
  %703 = vmatprep.mubr.f32.mxu0 0.0
  %704 = vmatmul.mubr.f32.gmra.mxu0 %v164
  %v705 = vpop.f32.mrf.mxu0
  %v706 = vadd.f32 0.0, %v705
  %v707 = vpop.f32.mrf.mxu0
  %v708 = vadd.f32 0.0, %v707
  %709 = vmatprep.mubr.f32.mxu0 0.0
  %710 = vmatmul.mubr.f32.gmra.mxu0 %v167
  %v711 = vpop.f32.mrf.mxu0
  %v712 = vadd.f32 0.0, %v711
  %v713 = vpop.f32.mrf.mxu0
  %v714 = vadd.f32 0.0, %v713
  %715 = vmatprep.mubr.f32.mxu0 0.0
  %716 = vmatmul.mubr.f32.gmra.mxu0 %v170
  %v717 = vpop.f32.mrf.mxu0
  %v718 = vadd.f32 0.0, %v717
  %v719 = vpop.f32.mrf.mxu0
  %v720 = vadd.f32 0.0, %v719
  %721 = vmatprep.mubr.f32.mxu0 0.0
  %722 = vmatmul.mubr.f32.gmra.mxu0 %v173
  %v723 = vpop.f32.mrf.mxu0
  %v724 = vadd.f32 0.0, %v723
  %v725 = vpop.f32.mrf.mxu0
  %v726 = vadd.f32 0.0, %v725
  %727 = vmatprep.mubr.f32.mxu0 0.0
  %728 = vmatmul.mubr.f32.gmra.mxu0 %v176
  %v729 = vpop.f32.mrf.mxu0
  %v730 = vadd.f32 0.0, %v729
  %v731 = vpop.f32.mrf.mxu0
  %v732 = vadd.f32 0.0, %v731
  %733 = vmatprep.mubr.f32.mxu0 0.0
  %734 = vmatmul.mubr.f32.gmra.mxu0 %v179
  %v735 = vpop.f32.mrf.mxu0
  %v736 = vadd.f32 0.0, %v735
  %v737 = vpop.f32.mrf.mxu0
  %v738 = vadd.f32 0.0, %v737
  %739 = vmatprep.mubr.f32.mxu0 0.0
  %740 = vmatmul.mubr.f32.gmra.mxu0 %v182
  %v741 = vpop.f32.mrf.mxu0
  %v742 = vadd.f32 0.0, %v741
  %v743 = vpop.f32.mrf.mxu0
  %v744 = vadd.f32 0.0, %v743
  %745 = vmatprep.mubr.f32.mxu0 0.0
  %746 = vmatmul.mubr.f32.gmra.mxu0 %v185
  %v747 = vpop.f32.mrf.mxu0
  %v748 = vadd.f32 0.0, %v747
  %v749 = vpop.f32.mrf.mxu0
  %v750 = vadd.f32 0.0, %v749
  %751 = vmatprep.mubr.f32.mxu0 0.0
  %752 = vmatmul.mubr.f32.gmra.mxu0 %v188
  %v753 = vpop.f32.mrf.mxu0
  %v754 = vadd.f32 0.0, %v753
  %v755 = vpop.f32.mrf.mxu0
  %v756 = vadd.f32 0.0, %v755
  %757 = vmatprep.mubr.f32.mxu0 0.0
  %758 = vmatmul.mubr.f32.gmra.mxu0 %v191
  %v759 = vpop.f32.mrf.mxu0
  %v760 = vadd.f32 0.0, %v759
  %v761 = vpop.f32.mrf.mxu0
  %v762 = vadd.f32 0.0, %v761
  %763 = vmatprep.mubr.f32.mxu0 0.0
  %764 = vmatmul.mubr.f32.gmra.mxu0 %v194
  %v765 = vpop.f32.mrf.mxu0
  %v766 = vadd.f32 0.0, %v765
  %v767 = vpop.f32.mrf.mxu0
  %v768 = vadd.f32 0.0, %v767
  %769 = vmatprep.mubr.f32.mxu0 0.0
  %770 = vmatmul.mubr.f32.gmra.mxu0 %v197
  %v771 = vpop.f32.mrf.mxu0
  %v772 = vadd.f32 0.0, %v771
  %v773 = vpop.f32.mrf.mxu0
  %v774 = vadd.f32 0.0, %v773
  %775 = vmatprep.mubr.f32.mxu0 0.0
  %776 = vmatmul.mubr.f32.gmra.mxu0 %v200
  %v777 = vpop.f32.mrf.mxu0
  %v778 = vadd.f32 0.0, %v777
  %v779 = vpop.f32.mrf.mxu0
  %v780 = vadd.f32 0.0, %v779
  %781 = vmatprep.mubr.f32.mxu0 0.0
  %782 = vmatmul.mubr.f32.gmra.mxu0 %v203
  %v783 = vpop.f32.mrf.mxu0
  %v784 = vadd.f32 0.0, %v783
  %v785 = vpop.f32.mrf.mxu0
  %v786 = vadd.f32 0.0, %v785
  %787 = vmatprep.mubr.f32.mxu0 0.0
  %788 = vmatmul.mubr.f32.gmra.mxu0 %v206
  %v789 = vpop.f32.mrf.mxu0
  %v790 = vadd.f32 0.0, %v789
  %v791 = vpop.f32.mrf.mxu0
  %v792 = vadd.f32 0.0, %v791
  %793 = vmatprep.mubr.f32.mxu0 0.0
  %794 = vmatmul.mubr.f32.gmra.mxu0 %v209
  %v795 = vpop.f32.mrf.mxu0
  %v796 = vadd.f32 0.0, %v795
  %v797 = vpop.f32.mrf.mxu0
  %v798 = vadd.f32 0.0, %v797
  %799 = vmatprep.mubr.f32.mxu0 0.0
  %800 = vmatmul.mubr.f32.gmra.mxu0 %v212
  %v801 = vpop.f32.mrf.mxu0
  %v802 = vadd.f32 0.0, %v801
  %v803 = vpop.f32.mrf.mxu0
  %v804 = vadd.f32 0.0, %v803
  %805 = vmatprep.mubr.f32.mxu0 0.0
  %806 = vmatmul.mubr.f32.gmra.mxu0 %v215
  %v807 = vpop.f32.mrf.mxu0
  %v808 = vadd.f32 0.0, %v807
  %v809 = vpop.f32.mrf.mxu0
  %v810 = vadd.f32 0.0, %v809
  %811 = vmatprep.mubr.f32.mxu0 0.0
  %812 = vmatmul.mubr.f32.gmra.mxu0 %v218
  %v813 = vpop.f32.mrf.mxu0
  %v814 = vadd.f32 0.0, %v813
  %v815 = vpop.f32.mrf.mxu0
  %v816 = vadd.f32 0.0, %v815
  %817 = vmatprep.mubr.f32.mxu0 0.0
  %818 = vmatmul.mubr.f32.gmra.mxu0 %v221
  %v819 = vpop.f32.mrf.mxu0
  %v820 = vadd.f32 0.0, %v819
  %v821 = vpop.f32.mrf.mxu0
  %v822 = vadd.f32 0.0, %v821
  %823 = vmatprep.mubr.f32.mxu0 0.0
  %824 = vmatmul.mubr.f32.gmra.mxu0 %v224
  %v825 = vpop.f32.mrf.mxu0
  %v826 = vadd.f32 0.0, %v825
  %v827 = vpop.f32.mrf.mxu0
  %v828 = vadd.f32 0.0, %v827
  %829 = vmatprep.mubr.f32.mxu0 0.0
  %830 = vmatmul.mubr.f32.gmra.mxu0 %v227
  %v831 = vpop.f32.mrf.mxu0
  %v832 = vadd.f32 0.0, %v831
  %v833 = vpop.f32.mrf.mxu0
  %v834 = vadd.f32 0.0, %v833
  %835 = vmatprep.mubr.f32.mxu0 0.0
  %836 = vmatmul.mubr.f32.gmra.mxu0 %v230
  %v837 = vpop.f32.mrf.mxu0
  %v838 = vadd.f32 0.0, %v837
  %v839 = vpop.f32.mrf.mxu0
  %v840 = vadd.f32 0.0, %v839
  %841 = vdwg.mxu0
  %842 = vmatprep.subr.mxu0 0.0
  %843 = vmatpush1.msra.mxu0 0.0
  %844 = vmatprep.subr.mxu0 0.0
  %845 = vmatpush1.msra.mxu0 0.0
  %846 = vmatprep.subr.mxu0 0.0
  %847 = vmatpush1.msra.mxu0 0.0
  %848 = vmatprep.subr.mxu0 0.0
  %849 = vmatpush1.msra.mxu0 0.0
  %850 = vmatprep.subr.mxu0 0.0
  %851 = vmatpush1.msra.mxu0 0.0
  %852 = vmatprep.subr.mxu0 0.0
  %853 = vmatpush1.msra.mxu0 0.0
  %854 = vmatprep.subr.mxu0 0.0
  %855 = vmatpush1.msra.mxu0 0.0
  %856 = vmatprep.subr.mxu0 0.0
  %857 = vmatpush1.msra.mxu0 0.0
  %858 = vmatprep.subr.mxu0 0.0
  %859 = vmatpush1.msra.mxu0 0.0
  %860 = vmatprep.subr.mxu0 0.0
  %861 = vmatpush1.msra.mxu0 0.0
  %862 = vmatprep.subr.mxu0 0.0
  %863 = vmatpush1.msra.mxu0 0.0
  %864 = vmatprep.subr.mxu0 0.0
  %865 = vmatpush1.msra.mxu0 0.0
  %866 = vmatprep.subr.mxu0 0.0
  %867 = vmatpush1.msra.mxu0 0.0
  %868 = vmatprep.subr.mxu0 0.0
  %869 = vmatpush1.msra.mxu0 0.0
  %870 = vmatprep.subr.mxu0 %v56
  %871 = vmatpush1.msra.mxu0 %v55
  %872 = vmatprep.subr.mxu0 %v36
  %873 = vmatpush1.msra.mxu0 %v35
  %874 = vmatprep.subr.mxu0 0.0
  %875 = vmatpush2.msra.mxu0 0.0
  %876 = vmatprep.subr.mxu0 0.0
  %877 = vmatpush2.msra.mxu0 0.0
  %878 = vmatprep.subr.mxu0 0.0
  %879 = vmatpush2.msra.mxu0 0.0
  %880 = vmatprep.subr.mxu0 0.0
  %881 = vmatpush2.msra.mxu0 0.0
  %882 = vmatprep.subr.mxu0 0.0
  %883 = vmatpush2.msra.mxu0 0.0
  %884 = vmatprep.subr.mxu0 0.0
  %885 = vmatpush2.msra.mxu0 0.0
  %886 = vmatprep.subr.mxu0 0.0
  %887 = vmatpush2.msra.mxu0 0.0
  %888 = vmatprep.subr.mxu0 0.0
  %889 = vmatpush2.msra.mxu0 0.0
  %890 = vmatprep.subr.mxu0 0.0
  %891 = vmatpush2.msra.mxu0 0.0
  %892 = vmatprep.subr.mxu0 0.0
  %893 = vmatpush2.msra.mxu0 0.0
  %894 = vmatprep.subr.mxu0 0.0
  %895 = vmatpush2.msra.mxu0 0.0
  %896 = vmatprep.subr.mxu0 0.0
  %897 = vmatpush2.msra.mxu0 0.0
  %898 = vmatprep.subr.mxu0 0.0
  %899 = vmatpush2.msra.mxu0 0.0
  %900 = vmatprep.subr.mxu0 0.0
  %901 = vmatpush2.msra.mxu0 0.0
  %902 = vmatprep.subr.mxu0 0.0
  %903 = vmatpush2.msra.mxu0 0.0
  %904 = vmatprep.subr.mxu0 0.0
  %905 = vmatpush2.msra.mxu0 0.0
  %906 = vmatprep.mubr.f32.mxu0 0.0
  %907 = vmatmul.mubr.f32.gmra.mxu0 %v113
  %v908 = vpop.f32.mrf.mxu0
  %v909 = vadd.f32 0.0, %v908
  %v910 = vpop.f32.mrf.mxu0
  %v911 = vadd.f32 0.0, %v910
  %912 = vmatprep.mubr.f32.mxu0 0.0
  %913 = vmatmul.mubr.f32.gmra.mxu0 %v116
  %v914 = vpop.f32.mrf.mxu0
  %v915 = vadd.f32 0.0, %v914
  %v916 = vpop.f32.mrf.mxu0
  %v917 = vadd.f32 0.0, %v916
  %918 = vmatprep.mubr.f32.mxu0 0.0
  %919 = vmatmul.mubr.f32.gmra.mxu0 %v119
  %v920 = vpop.f32.mrf.mxu0
  %v921 = vadd.f32 0.0, %v920
  %v922 = vpop.f32.mrf.mxu0
  %v923 = vadd.f32 0.0, %v922
  %924 = vmatprep.mubr.f32.mxu0 0.0
  %925 = vmatmul.mubr.f32.gmra.mxu0 %v122
  %v926 = vpop.f32.mrf.mxu0
  %v927 = vadd.f32 0.0, %v926
  %v928 = vpop.f32.mrf.mxu0
  %v929 = vadd.f32 0.0, %v928
  %930 = vmatprep.mubr.f32.mxu0 0.0
  %931 = vmatmul.mubr.f32.gmra.mxu0 %v125
  %v932 = vpop.f32.mrf.mxu0
  %v933 = vadd.f32 0.0, %v932
  %v934 = vpop.f32.mrf.mxu0
  %v935 = vadd.f32 0.0, %v934
  %936 = vmatprep.mubr.f32.mxu0 0.0
  %937 = vmatmul.mubr.f32.gmra.mxu0 %v128
  %v938 = vpop.f32.mrf.mxu0
  %v939 = vadd.f32 0.0, %v938
  %v940 = vpop.f32.mrf.mxu0
  %v941 = vadd.f32 0.0, %v940
  %942 = vmatprep.mubr.f32.mxu0 0.0
  %943 = vmatmul.mubr.f32.gmra.mxu0 %v131
  %v944 = vpop.f32.mrf.mxu0
  %v945 = vadd.f32 0.0, %v944
  %v946 = vpop.f32.mrf.mxu0
  %v947 = vadd.f32 0.0, %v946
  %948 = vmatprep.mubr.f32.mxu0 0.0
  %949 = vmatmul.mubr.f32.gmra.mxu0 %v134
  %v950 = vpop.f32.mrf.mxu0
  %v951 = vadd.f32 0.0, %v950
  %v952 = vpop.f32.mrf.mxu0
  %v953 = vadd.f32 0.0, %v952
  %954 = vmatprep.mubr.f32.mxu0 0.0
  %955 = vmatmul.mubr.f32.gmra.mxu0 %v137
  %v956 = vpop.f32.mrf.mxu0
  %v957 = vadd.f32 0.0, %v956
  %v958 = vpop.f32.mrf.mxu0
  %v959 = vadd.f32 0.0, %v958
  %960 = vmatprep.mubr.f32.mxu0 0.0
  %961 = vmatmul.mubr.f32.gmra.mxu0 %v140
  %v962 = vpop.f32.mrf.mxu0
  %v963 = vadd.f32 0.0, %v962
  %v964 = vpop.f32.mrf.mxu0
  %v965 = vadd.f32 0.0, %v964
  %966 = vmatprep.mubr.f32.mxu0 0.0
  %967 = vmatmul.mubr.f32.gmra.mxu0 %v143
  %v968 = vpop.f32.mrf.mxu0
  %v969 = vadd.f32 0.0, %v968
  %v970 = vpop.f32.mrf.mxu0
  %v971 = vadd.f32 0.0, %v970
  %972 = vmatprep.mubr.f32.mxu0 0.0
  %973 = vmatmul.mubr.f32.gmra.mxu0 %v146
  %v974 = vpop.f32.mrf.mxu0
  %v975 = vadd.f32 0.0, %v974
  %v976 = vpop.f32.mrf.mxu0
  %v977 = vadd.f32 0.0, %v976
  %978 = vmatprep.mubr.f32.mxu0 0.0
  %979 = vmatmul.mubr.f32.gmra.mxu0 %v149
  %v980 = vpop.f32.mrf.mxu0
  %v981 = vadd.f32 0.0, %v980
  %v982 = vpop.f32.mrf.mxu0
  %v983 = vadd.f32 0.0, %v982
  %984 = vmatprep.mubr.f32.mxu0 0.0
  %985 = vmatmul.mubr.f32.gmra.mxu0 %v152
  %v986 = vpop.f32.mrf.mxu0
  %v987 = vadd.f32 0.0, %v986
  %v988 = vpop.f32.mrf.mxu0
  %v989 = vadd.f32 0.0, %v988
  %990 = vmatprep.mubr.f32.mxu0 0.0
  %991 = vmatmul.mubr.f32.gmra.mxu0 %v155
  %v992 = vpop.f32.mrf.mxu0
  %v993 = vadd.f32 0.0, %v992
  %v994 = vpop.f32.mrf.mxu0
  %v995 = vadd.f32 0.0, %v994
  %996 = vmatprep.mubr.f32.mxu0 0.0
  %997 = vmatmul.mubr.f32.gmra.mxu0 %v158
  %v998 = vpop.f32.mrf.mxu0
  %v999 = vadd.f32 0.0, %v998
  %v1000 = vpop.f32.mrf.mxu0
  %v1001 = vadd.f32 0.0, %v1000
  %1002 = vmatprep.mubr.f32.mxu0 0.0
  %1003 = vmatmul.mubr.f32.gmra.mxu0 %v161
  %v1004 = vpop.f32.mrf.mxu0
  %v1005 = vadd.f32 0.0, %v1004
  %v1006 = vpop.f32.mrf.mxu0
  %v1007 = vadd.f32 0.0, %v1006
  %1008 = vmatprep.mubr.f32.mxu0 0.0
  %1009 = vmatmul.mubr.f32.gmra.mxu0 %v164
  %v1010 = vpop.f32.mrf.mxu0
  %v1011 = vadd.f32 0.0, %v1010
  %v1012 = vpop.f32.mrf.mxu0
  %v1013 = vadd.f32 0.0, %v1012
  %1014 = vmatprep.mubr.f32.mxu0 0.0
  %1015 = vmatmul.mubr.f32.gmra.mxu0 %v167
  %v1016 = vpop.f32.mrf.mxu0
  %v1017 = vadd.f32 0.0, %v1016
  %v1018 = vpop.f32.mrf.mxu0
  %v1019 = vadd.f32 0.0, %v1018
  %1020 = vmatprep.mubr.f32.mxu0 0.0
  %1021 = vmatmul.mubr.f32.gmra.mxu0 %v170
  %v1022 = vpop.f32.mrf.mxu0
  %v1023 = vadd.f32 0.0, %v1022
  %v1024 = vpop.f32.mrf.mxu0
  %v1025 = vadd.f32 0.0, %v1024
  %1026 = vmatprep.mubr.f32.mxu0 0.0
  %1027 = vmatmul.mubr.f32.gmra.mxu0 %v173
  %v1028 = vpop.f32.mrf.mxu0
  %v1029 = vadd.f32 0.0, %v1028
  %v1030 = vpop.f32.mrf.mxu0
  %v1031 = vadd.f32 0.0, %v1030
  %1032 = vmatprep.mubr.f32.mxu0 0.0
  %1033 = vmatmul.mubr.f32.gmra.mxu0 %v176
  %v1034 = vpop.f32.mrf.mxu0
  %v1035 = vadd.f32 0.0, %v1034
  %v1036 = vpop.f32.mrf.mxu0
  %v1037 = vadd.f32 0.0, %v1036
  %1038 = vmatprep.mubr.f32.mxu0 0.0
  %1039 = vmatmul.mubr.f32.gmra.mxu0 %v179
  %v1040 = vpop.f32.mrf.mxu0
  %v1041 = vadd.f32 0.0, %v1040
  %v1042 = vpop.f32.mrf.mxu0
  %v1043 = vadd.f32 0.0, %v1042
  %1044 = vmatprep.mubr.f32.mxu0 0.0
  %1045 = vmatmul.mubr.f32.gmra.mxu0 %v182
  %v1046 = vpop.f32.mrf.mxu0
  %v1047 = vadd.f32 0.0, %v1046
  %v1048 = vpop.f32.mrf.mxu0
  %v1049 = vadd.f32 0.0, %v1048
  %1050 = vmatprep.mubr.f32.mxu0 0.0
  %1051 = vmatmul.mubr.f32.gmra.mxu0 %v185
  %v1052 = vpop.f32.mrf.mxu0
  %v1053 = vadd.f32 0.0, %v1052
  %v1054 = vpop.f32.mrf.mxu0
  %v1055 = vadd.f32 0.0, %v1054
  %1056 = vmatprep.mubr.f32.mxu0 0.0
  %1057 = vmatmul.mubr.f32.gmra.mxu0 %v188
  %v1058 = vpop.f32.mrf.mxu0
  %v1059 = vadd.f32 0.0, %v1058
  %v1060 = vpop.f32.mrf.mxu0
  %v1061 = vadd.f32 0.0, %v1060
  %1062 = vmatprep.mubr.f32.mxu0 0.0
  %1063 = vmatmul.mubr.f32.gmra.mxu0 %v191
  %v1064 = vpop.f32.mrf.mxu0
  %v1065 = vadd.f32 0.0, %v1064
  %v1066 = vpop.f32.mrf.mxu0
  %v1067 = vadd.f32 0.0, %v1066
  %1068 = vmatprep.mubr.f32.mxu0 0.0
  %1069 = vmatmul.mubr.f32.gmra.mxu0 %v194
  %v1070 = vpop.f32.mrf.mxu0
  %v1071 = vadd.f32 0.0, %v1070
  %v1072 = vpop.f32.mrf.mxu0
  %v1073 = vadd.f32 0.0, %v1072
  %1074 = vmatprep.mubr.f32.mxu0 0.0
  %1075 = vmatmul.mubr.f32.gmra.mxu0 %v197
  %v1076 = vpop.f32.mrf.mxu0
  %v1077 = vadd.f32 0.0, %v1076
  %v1078 = vpop.f32.mrf.mxu0
  %v1079 = vadd.f32 0.0, %v1078
  %1080 = vmatprep.mubr.f32.mxu0 0.0
  %1081 = vmatmul.mubr.f32.gmra.mxu0 %v200
  %v1082 = vpop.f32.mrf.mxu0
  %v1083 = vadd.f32 0.0, %v1082
  %v1084 = vpop.f32.mrf.mxu0
  %v1085 = vadd.f32 0.0, %v1084
  %1086 = vmatprep.mubr.f32.mxu0 0.0
  %1087 = vmatmul.mubr.f32.gmra.mxu0 %v203
  %v1088 = vpop.f32.mrf.mxu0
  %v1089 = vadd.f32 0.0, %v1088
  %v1090 = vpop.f32.mrf.mxu0
  %v1091 = vadd.f32 0.0, %v1090
  %1092 = vmatprep.mubr.f32.mxu0 0.0
  %1093 = vmatmul.mubr.f32.gmra.mxu0 %v206
  %v1094 = vpop.f32.mrf.mxu0
  %v1095 = vadd.f32 0.0, %v1094
  %v1096 = vpop.f32.mrf.mxu0
  %v1097 = vadd.f32 0.0, %v1096
  %1098 = vmatprep.mubr.f32.mxu0 0.0
  %1099 = vmatmul.mubr.f32.gmra.mxu0 %v209
  %v1100 = vpop.f32.mrf.mxu0
  %v1101 = vadd.f32 0.0, %v1100
  %v1102 = vpop.f32.mrf.mxu0
  %v1103 = vadd.f32 0.0, %v1102
  %1104 = vmatprep.mubr.f32.mxu0 0.0
  %1105 = vmatmul.mubr.f32.gmra.mxu0 %v212
  %v1106 = vpop.f32.mrf.mxu0
  %v1107 = vadd.f32 0.0, %v1106
  %v1108 = vpop.f32.mrf.mxu0
  %v1109 = vadd.f32 0.0, %v1108
  %1110 = vmatprep.mubr.f32.mxu0 0.0
  %1111 = vmatmul.mubr.f32.gmra.mxu0 %v215
  %v1112 = vpop.f32.mrf.mxu0
  %v1113 = vadd.f32 0.0, %v1112
  %v1114 = vpop.f32.mrf.mxu0
  %v1115 = vadd.f32 0.0, %v1114
  %1116 = vmatprep.mubr.f32.mxu0 0.0
  %1117 = vmatmul.mubr.f32.gmra.mxu0 %v218
  %v1118 = vpop.f32.mrf.mxu0
  %v1119 = vadd.f32 0.0, %v1118
  %v1120 = vpop.f32.mrf.mxu0
  %v1121 = vadd.f32 0.0, %v1120
  %1122 = vmatprep.mubr.f32.mxu0 0.0
  %1123 = vmatmul.mubr.f32.gmra.mxu0 %v221
  %v1124 = vpop.f32.mrf.mxu0
  %v1125 = vadd.f32 0.0, %v1124
  %v1126 = vpop.f32.mrf.mxu0
  %v1127 = vadd.f32 0.0, %v1126
  %1128 = vmatprep.mubr.f32.mxu0 0.0
  %1129 = vmatmul.mubr.f32.gmra.mxu0 %v224
  %v1130 = vpop.f32.mrf.mxu0
  %v1131 = vadd.f32 0.0, %v1130
  %v1132 = vpop.f32.mrf.mxu0
  %v1133 = vadd.f32 0.0, %v1132
  %1134 = vmatprep.mubr.f32.mxu0 0.0
  %1135 = vmatmul.mubr.f32.gmra.mxu0 %v227
  %v1136 = vpop.f32.mrf.mxu0
  %v1137 = vadd.f32 0.0, %v1136
  %v1138 = vpop.f32.mrf.mxu0
  %v1139 = vadd.f32 0.0, %v1138
  %1140 = vmatprep.mubr.f32.mxu0 0.0
  %1141 = vmatmul.mubr.f32.gmra.mxu0 %v230
  %v1142 = vpop.f32.mrf.mxu0
  %v1143 = vadd.f32 0.0, %v1142
  %v1144 = vpop.f32.mrf.mxu0
  %v1145 = vadd.f32 0.0, %v1144
  %1146 = vdwg.mxu0
  %1147 = vmatprep.subr.mxu0 0.0
  %1148 = vmatpush1.msra.mxu0 0.0
  %1149 = vmatprep.subr.mxu0 0.0
  %1150 = vmatpush1.msra.mxu0 0.0
  %1151 = vmatprep.subr.mxu0 0.0
  %1152 = vmatpush1.msra.mxu0 0.0
  %1153 = vmatprep.subr.mxu0 0.0
  %1154 = vmatpush1.msra.mxu0 0.0
  %1155 = vmatprep.subr.mxu0 0.0
  %1156 = vmatpush1.msra.mxu0 0.0
  %1157 = vmatprep.subr.mxu0 0.0
  %1158 = vmatpush1.msra.mxu0 0.0
  %1159 = vmatprep.subr.mxu0 0.0
  %1160 = vmatpush1.msra.mxu0 0.0
  %1161 = vmatprep.subr.mxu0 0.0
  %1162 = vmatpush1.msra.mxu0 0.0
  %1163 = vmatprep.subr.mxu0 0.0
  %1164 = vmatpush1.msra.mxu0 0.0
  %1165 = vmatprep.subr.mxu0 0.0
  %1166 = vmatpush1.msra.mxu0 0.0
  %1167 = vmatprep.subr.mxu0 0.0
  %1168 = vmatpush1.msra.mxu0 0.0
  %1169 = vmatprep.subr.mxu0 0.0
  %1170 = vmatpush1.msra.mxu0 0.0
  %1171 = vmatprep.subr.mxu0 0.0
  %1172 = vmatpush1.msra.mxu0 0.0
  %1173 = vmatprep.subr.mxu0 0.0
  %1174 = vmatpush1.msra.mxu0 0.0
  %1175 = vmatprep.subr.mxu0 %v58
  %1176 = vmatpush1.msra.mxu0 %v57
  %1177 = vmatprep.subr.mxu0 %v38
  %1178 = vmatpush1.msra.mxu0 %v37
  %1179 = vmatprep.subr.mxu0 0.0
  %1180 = vmatpush2.msra.mxu0 0.0
  %1181 = vmatprep.subr.mxu0 0.0
  %1182 = vmatpush2.msra.mxu0 0.0
  %1183 = vmatprep.subr.mxu0 0.0
  %1184 = vmatpush2.msra.mxu0 0.0
  %1185 = vmatprep.subr.mxu0 0.0
  %1186 = vmatpush2.msra.mxu0 0.0
  %1187 = vmatprep.subr.mxu0 0.0
  %1188 = vmatpush2.msra.mxu0 0.0
  %1189 = vmatprep.subr.mxu0 0.0
  %1190 = vmatpush2.msra.mxu0 0.0
  %1191 = vmatprep.subr.mxu0 0.0
  %1192 = vmatpush2.msra.mxu0 0.0
  %1193 = vmatprep.subr.mxu0 0.0
  %1194 = vmatpush2.msra.mxu0 0.0
  %1195 = vmatprep.subr.mxu0 0.0
  %1196 = vmatpush2.msra.mxu0 0.0
  %1197 = vmatprep.subr.mxu0 0.0
  %1198 = vmatpush2.msra.mxu0 0.0
  %1199 = vmatprep.subr.mxu0 0.0
  %1200 = vmatpush2.msra.mxu0 0.0
  %1201 = vmatprep.subr.mxu0 0.0
  %1202 = vmatpush2.msra.mxu0 0.0
  %1203 = vmatprep.subr.mxu0 0.0
  %1204 = vmatpush2.msra.mxu0 0.0
  %1205 = vmatprep.subr.mxu0 0.0
  %1206 = vmatpush2.msra.mxu0 0.0
  %1207 = vmatprep.subr.mxu0 0.0
  %1208 = vmatpush2.msra.mxu0 0.0
  %1209 = vmatprep.subr.mxu0 0.0
  %1210 = vmatpush2.msra.mxu0 0.0
  %1211 = vmatprep.mubr.f32.mxu0 0.0
  %1212 = vmatmul.mubr.f32.gmra.mxu0 %v113
  %v1213 = vpop.f32.mrf.mxu0
  %v1214 = vadd.f32 0.0, %v1213
  %v1215 = vpop.f32.mrf.mxu0
  %v1216 = vadd.f32 0.0, %v1215
  %1217 = vmatprep.mubr.f32.mxu0 0.0
  %1218 = vmatmul.mubr.f32.gmra.mxu0 %v116
  %v1219 = vpop.f32.mrf.mxu0
  %v1220 = vadd.f32 0.0, %v1219
  %v1221 = vpop.f32.mrf.mxu0
  %v1222 = vadd.f32 0.0, %v1221
  %1223 = vmatprep.mubr.f32.mxu0 0.0
  %1224 = vmatmul.mubr.f32.gmra.mxu0 %v119
  %v1225 = vpop.f32.mrf.mxu0
  %v1226 = vadd.f32 0.0, %v1225
  %v1227 = vpop.f32.mrf.mxu0
  %v1228 = vadd.f32 0.0, %v1227
  %1229 = vmatprep.mubr.f32.mxu0 0.0
  %1230 = vmatmul.mubr.f32.gmra.mxu0 %v122
  %v1231 = vpop.f32.mrf.mxu0
  %v1232 = vadd.f32 0.0, %v1231
  %v1233 = vpop.f32.mrf.mxu0
  %v1234 = vadd.f32 0.0, %v1233
  %1235 = vmatprep.mubr.f32.mxu0 0.0
  %1236 = vmatmul.mubr.f32.gmra.mxu0 %v125
  %v1237 = vpop.f32.mrf.mxu0
  %v1238 = vadd.f32 0.0, %v1237
  %v1239 = vpop.f32.mrf.mxu0
  %v1240 = vadd.f32 0.0, %v1239
  %1241 = vmatprep.mubr.f32.mxu0 0.0
  %1242 = vmatmul.mubr.f32.gmra.mxu0 %v128
  %v1243 = vpop.f32.mrf.mxu0
  %v1244 = vadd.f32 0.0, %v1243
  %v1245 = vpop.f32.mrf.mxu0
  %v1246 = vadd.f32 0.0, %v1245
  %1247 = vmatprep.mubr.f32.mxu0 0.0
  %1248 = vmatmul.mubr.f32.gmra.mxu0 %v131
  %v1249 = vpop.f32.mrf.mxu0
  %v1250 = vadd.f32 0.0, %v1249
  %v1251 = vpop.f32.mrf.mxu0
  %v1252 = vadd.f32 0.0, %v1251
  %1253 = vmatprep.mubr.f32.mxu0 0.0
  %1254 = vmatmul.mubr.f32.gmra.mxu0 %v134
  %v1255 = vpop.f32.mrf.mxu0
  %v1256 = vadd.f32 0.0, %v1255
  %v1257 = vpop.f32.mrf.mxu0
  %v1258 = vadd.f32 0.0, %v1257
  %1259 = vmatprep.mubr.f32.mxu0 0.0
  %1260 = vmatmul.mubr.f32.gmra.mxu0 %v137
  %v1261 = vpop.f32.mrf.mxu0
  %v1262 = vadd.f32 0.0, %v1261
  %v1263 = vpop.f32.mrf.mxu0
  %v1264 = vadd.f32 0.0, %v1263
  %1265 = vmatprep.mubr.f32.mxu0 0.0
  %1266 = vmatmul.mubr.f32.gmra.mxu0 %v140
  %v1267 = vpop.f32.mrf.mxu0
  %v1268 = vadd.f32 0.0, %v1267
  %v1269 = vpop.f32.mrf.mxu0
  %v1270 = vadd.f32 0.0, %v1269
  %1271 = vmatprep.mubr.f32.mxu0 0.0
  %1272 = vmatmul.mubr.f32.gmra.mxu0 %v143
  %v1273 = vpop.f32.mrf.mxu0
  %v1274 = vadd.f32 0.0, %v1273
  %v1275 = vpop.f32.mrf.mxu0
  %v1276 = vadd.f32 0.0, %v1275
  %1277 = vmatprep.mubr.f32.mxu0 0.0
  %1278 = vmatmul.mubr.f32.gmra.mxu0 %v146
  %v1279 = vpop.f32.mrf.mxu0
  %v1280 = vadd.f32 0.0, %v1279
  %v1281 = vpop.f32.mrf.mxu0
  %v1282 = vadd.f32 0.0, %v1281
  %1283 = vmatprep.mubr.f32.mxu0 0.0
  %1284 = vmatmul.mubr.f32.gmra.mxu0 %v149
  %v1285 = vpop.f32.mrf.mxu0
  %v1286 = vadd.f32 0.0, %v1285
  %v1287 = vpop.f32.mrf.mxu0
  %v1288 = vadd.f32 0.0, %v1287
  %1289 = vmatprep.mubr.f32.mxu0 0.0
  %1290 = vmatmul.mubr.f32.gmra.mxu0 %v152
  %v1291 = vpop.f32.mrf.mxu0
  %v1292 = vadd.f32 0.0, %v1291
  %v1293 = vpop.f32.mrf.mxu0
  %v1294 = vadd.f32 0.0, %v1293
  %1295 = vmatprep.mubr.f32.mxu0 0.0
  %1296 = vmatmul.mubr.f32.gmra.mxu0 %v155
  %v1297 = vpop.f32.mrf.mxu0
  %v1298 = vadd.f32 0.0, %v1297
  %v1299 = vpop.f32.mrf.mxu0
  %v1300 = vadd.f32 0.0, %v1299
  %1301 = vmatprep.mubr.f32.mxu0 0.0
  %1302 = vmatmul.mubr.f32.gmra.mxu0 %v158
  %v1303 = vpop.f32.mrf.mxu0
  %v1304 = vadd.f32 0.0, %v1303
  %v1305 = vpop.f32.mrf.mxu0
  %v1306 = vadd.f32 0.0, %v1305
  %1307 = vmatprep.mubr.f32.mxu0 0.0
  %1308 = vmatmul.mubr.f32.gmra.mxu0 %v161
  %v1309 = vpop.f32.mrf.mxu0
  %v1310 = vadd.f32 0.0, %v1309
  %v1311 = vpop.f32.mrf.mxu0
  %v1312 = vadd.f32 0.0, %v1311
  %1313 = vmatprep.mubr.f32.mxu0 0.0
  %1314 = vmatmul.mubr.f32.gmra.mxu0 %v164
  %v1315 = vpop.f32.mrf.mxu0
  %v1316 = vadd.f32 0.0, %v1315
  %v1317 = vpop.f32.mrf.mxu0
  %v1318 = vadd.f32 0.0, %v1317
  %1319 = vmatprep.mubr.f32.mxu0 0.0
  %1320 = vmatmul.mubr.f32.gmra.mxu0 %v167
  %v1321 = vpop.f32.mrf.mxu0
  %v1322 = vadd.f32 0.0, %v1321
  %v1323 = vpop.f32.mrf.mxu0
  %v1324 = vadd.f32 0.0, %v1323
  %1325 = vmatprep.mubr.f32.mxu0 0.0
  %1326 = vmatmul.mubr.f32.gmra.mxu0 %v170
  %v1327 = vpop.f32.mrf.mxu0
  %v1328 = vadd.f32 0.0, %v1327
  %v1329 = vpop.f32.mrf.mxu0
  %v1330 = vadd.f32 0.0, %v1329
  %1331 = vmatprep.mubr.f32.mxu0 0.0
  %1332 = vmatmul.mubr.f32.gmra.mxu0 %v173
  %v1333 = vpop.f32.mrf.mxu0
  %v1334 = vadd.f32 0.0, %v1333
  %v1335 = vpop.f32.mrf.mxu0
  %v1336 = vadd.f32 0.0, %v1335
  %1337 = vmatprep.mubr.f32.mxu0 0.0
  %1338 = vmatmul.mubr.f32.gmra.mxu0 %v176
  %v1339 = vpop.f32.mrf.mxu0
  %v1340 = vadd.f32 0.0, %v1339
  %v1341 = vpop.f32.mrf.mxu0
  %v1342 = vadd.f32 0.0, %v1341
  %1343 = vmatprep.mubr.f32.mxu0 0.0
  %1344 = vmatmul.mubr.f32.gmra.mxu0 %v179
  %v1345 = vpop.f32.mrf.mxu0
  %v1346 = vadd.f32 0.0, %v1345
  %v1347 = vpop.f32.mrf.mxu0
  %v1348 = vadd.f32 0.0, %v1347
  %1349 = vmatprep.mubr.f32.mxu0 0.0
  %1350 = vmatmul.mubr.f32.gmra.mxu0 %v182
  %v1351 = vpop.f32.mrf.mxu0
  %v1352 = vadd.f32 0.0, %v1351
  %v1353 = vpop.f32.mrf.mxu0
  %v1354 = vadd.f32 0.0, %v1353
  %1355 = vmatprep.mubr.f32.mxu0 0.0
  %1356 = vmatmul.mubr.f32.gmra.mxu0 %v185
  %v1357 = vpop.f32.mrf.mxu0
  %v1358 = vadd.f32 0.0, %v1357
  %v1359 = vpop.f32.mrf.mxu0
  %v1360 = vadd.f32 0.0, %v1359
  %1361 = vmatprep.mubr.f32.mxu0 0.0
  %1362 = vmatmul.mubr.f32.gmra.mxu0 %v188
  %v1363 = vpop.f32.mrf.mxu0
  %v1364 = vadd.f32 0.0, %v1363
  %v1365 = vpop.f32.mrf.mxu0
  %v1366 = vadd.f32 0.0, %v1365
  %1367 = vmatprep.mubr.f32.mxu0 0.0
  %1368 = vmatmul.mubr.f32.gmra.mxu0 %v191
  %v1369 = vpop.f32.mrf.mxu0
  %v1370 = vadd.f32 0.0, %v1369
  %v1371 = vpop.f32.mrf.mxu0
  %v1372 = vadd.f32 0.0, %v1371
  %1373 = vmatprep.mubr.f32.mxu0 0.0
  %1374 = vmatmul.mubr.f32.gmra.mxu0 %v194
  %v1375 = vpop.f32.mrf.mxu0
  %v1376 = vadd.f32 0.0, %v1375
  %v1377 = vpop.f32.mrf.mxu0
  %v1378 = vadd.f32 0.0, %v1377
  %1379 = vmatprep.mubr.f32.mxu0 0.0
  %1380 = vmatmul.mubr.f32.gmra.mxu0 %v197
  %v1381 = vpop.f32.mrf.mxu0
  %v1382 = vadd.f32 0.0, %v1381
  %v1383 = vpop.f32.mrf.mxu0
  %v1384 = vadd.f32 0.0, %v1383
  %1385 = vmatprep.mubr.f32.mxu0 0.0
  %1386 = vmatmul.mubr.f32.gmra.mxu0 %v200
  %v1387 = vpop.f32.mrf.mxu0
  %v1388 = vadd.f32 0.0, %v1387
  %v1389 = vpop.f32.mrf.mxu0
  %v1390 = vadd.f32 0.0, %v1389
  %1391 = vmatprep.mubr.f32.mxu0 0.0
  %1392 = vmatmul.mubr.f32.gmra.mxu0 %v203
  %v1393 = vpop.f32.mrf.mxu0
  %v1394 = vadd.f32 0.0, %v1393
  %v1395 = vpop.f32.mrf.mxu0
  %v1396 = vadd.f32 0.0, %v1395
  %1397 = vmatprep.mubr.f32.mxu0 0.0
  %1398 = vmatmul.mubr.f32.gmra.mxu0 %v206
  %v1399 = vpop.f32.mrf.mxu0
  %v1400 = vadd.f32 0.0, %v1399
  %v1401 = vpop.f32.mrf.mxu0
  %v1402 = vadd.f32 0.0, %v1401
  %1403 = vmatprep.mubr.f32.mxu0 0.0
  %1404 = vmatmul.mubr.f32.gmra.mxu0 %v209
  %v1405 = vpop.f32.mrf.mxu0
  %v1406 = vadd.f32 0.0, %v1405
  %v1407 = vpop.f32.mrf.mxu0
  %v1408 = vadd.f32 0.0, %v1407
  %1409 = vmatprep.mubr.f32.mxu0 0.0
  %1410 = vmatmul.mubr.f32.gmra.mxu0 %v212
  %v1411 = vpop.f32.mrf.mxu0
  %v1412 = vadd.f32 0.0, %v1411
  %v1413 = vpop.f32.mrf.mxu0
  %v1414 = vadd.f32 0.0, %v1413
  %1415 = vmatprep.mubr.f32.mxu0 0.0
  %1416 = vmatmul.mubr.f32.gmra.mxu0 %v215
  %v1417 = vpop.f32.mrf.mxu0
  %v1418 = vadd.f32 0.0, %v1417
  %v1419 = vpop.f32.mrf.mxu0
  %v1420 = vadd.f32 0.0, %v1419
  %1421 = vmatprep.mubr.f32.mxu0 0.0
  %1422 = vmatmul.mubr.f32.gmra.mxu0 %v218
  %v1423 = vpop.f32.mrf.mxu0
  %v1424 = vadd.f32 0.0, %v1423
  %v1425 = vpop.f32.mrf.mxu0
  %v1426 = vadd.f32 0.0, %v1425
  %1427 = vmatprep.mubr.f32.mxu0 0.0
  %1428 = vmatmul.mubr.f32.gmra.mxu0 %v221
  %v1429 = vpop.f32.mrf.mxu0
  %v1430 = vadd.f32 0.0, %v1429
  %v1431 = vpop.f32.mrf.mxu0
  %v1432 = vadd.f32 0.0, %v1431
  %1433 = vmatprep.mubr.f32.mxu0 0.0
  %1434 = vmatmul.mubr.f32.gmra.mxu0 %v224
  %v1435 = vpop.f32.mrf.mxu0
  %v1436 = vadd.f32 0.0, %v1435
  %v1437 = vpop.f32.mrf.mxu0
  %v1438 = vadd.f32 0.0, %v1437
  %1439 = vmatprep.mubr.f32.mxu0 0.0
  %1440 = vmatmul.mubr.f32.gmra.mxu0 %v227
  %v1441 = vpop.f32.mrf.mxu0
  %v1442 = vadd.f32 0.0, %v1441
  %v1443 = vpop.f32.mrf.mxu0
  %v1444 = vadd.f32 0.0, %v1443
  %1445 = vmatprep.mubr.f32.mxu0 0.0
  %1446 = vmatmul.mubr.f32.gmra.mxu0 %v230
  %v1447 = vpop.f32.mrf.mxu0
  %v1448 = vadd.f32 0.0, %v1447
  %v1449 = vpop.f32.mrf.mxu0
  %v1450 = vadd.f32 0.0, %v1449
  %1451 = vdwg.mxu0
  %1452 = vmatprep.subr.mxu0 0.0
  %1453 = vmatpush1.msra.mxu0 0.0
  %1454 = vmatprep.subr.mxu0 0.0
  %1455 = vmatpush1.msra.mxu0 0.0
  %1456 = vmatprep.subr.mxu0 0.0
  %1457 = vmatpush1.msra.mxu0 0.0
  %1458 = vmatprep.subr.mxu0 0.0
  %1459 = vmatpush1.msra.mxu0 0.0
  %1460 = vmatprep.subr.mxu0 0.0
  %1461 = vmatpush1.msra.mxu0 0.0
  %1462 = vmatprep.subr.mxu0 0.0
  %1463 = vmatpush1.msra.mxu0 0.0
  %1464 = vmatprep.subr.mxu0 0.0
  %1465 = vmatpush1.msra.mxu0 0.0
  %1466 = vmatprep.subr.mxu0 0.0
  %1467 = vmatpush1.msra.mxu0 0.0
  %1468 = vmatprep.subr.mxu0 0.0
  %1469 = vmatpush1.msra.mxu0 0.0
  %1470 = vmatprep.subr.mxu0 0.0
  %1471 = vmatpush1.msra.mxu0 0.0
  %1472 = vmatprep.subr.mxu0 0.0
  %1473 = vmatpush1.msra.mxu0 0.0
  %1474 = vmatprep.subr.mxu0 0.0
  %1475 = vmatpush1.msra.mxu0 0.0
  %1476 = vmatprep.subr.mxu0 0.0
  %1477 = vmatpush1.msra.mxu0 0.0
  %1478 = vmatprep.subr.mxu0 0.0
  %1479 = vmatpush1.msra.mxu0 0.0
  %1480 = vmatprep.subr.mxu0 %v60
  %1481 = vmatpush1.msra.mxu0 %v59
  %1482 = vmatprep.subr.mxu0 %v40
  %1483 = vmatpush1.msra.mxu0 %v39
  %1484 = vmatprep.subr.mxu0 0.0
  %1485 = vmatpush2.msra.mxu0 0.0
  %1486 = vmatprep.subr.mxu0 0.0
  %1487 = vmatpush2.msra.mxu0 0.0
  %1488 = vmatprep.subr.mxu0 0.0
  %1489 = vmatpush2.msra.mxu0 0.0
  %1490 = vmatprep.subr.mxu0 0.0
  %1491 = vmatpush2.msra.mxu0 0.0
  %1492 = vmatprep.subr.mxu0 0.0
  %1493 = vmatpush2.msra.mxu0 0.0
  %1494 = vmatprep.subr.mxu0 0.0
  %1495 = vmatpush2.msra.mxu0 0.0
  %1496 = vmatprep.subr.mxu0 0.0
  %1497 = vmatpush2.msra.mxu0 0.0
  %1498 = vmatprep.subr.mxu0 0.0
  %1499 = vmatpush2.msra.mxu0 0.0
  %1500 = vmatprep.subr.mxu0 0.0
  %1501 = vmatpush2.msra.mxu0 0.0
  %1502 = vmatprep.subr.mxu0 0.0
  %1503 = vmatpush2.msra.mxu0 0.0
  %1504 = vmatprep.subr.mxu0 0.0
  %1505 = vmatpush2.msra.mxu0 0.0
  %1506 = vmatprep.subr.mxu0 0.0
  %1507 = vmatpush2.msra.mxu0 0.0
  %1508 = vmatprep.subr.mxu0 0.0
  %1509 = vmatpush2.msra.mxu0 0.0
  %1510 = vmatprep.subr.mxu0 0.0
  %1511 = vmatpush2.msra.mxu0 0.0
  %1512 = vmatprep.subr.mxu0 0.0
  %1513 = vmatpush2.msra.mxu0 0.0
  %1514 = vmatprep.subr.mxu0 0.0
  %1515 = vmatpush2.msra.mxu0 0.0
  %1516 = vmatprep.mubr.f32.mxu0 0.0
  %1517 = vmatmul.mubr.f32.gmra.mxu0 %v113
  %v1518 = vpop.f32.mrf.mxu0
  %v1519 = vadd.f32 0.0, %v1518
  %v1520 = vpop.f32.mrf.mxu0
  %v1521 = vadd.f32 0.0, %v1520
  %1522 = vmatprep.mubr.f32.mxu0 0.0
  %1523 = vmatmul.mubr.f32.gmra.mxu0 %v116
  %v1524 = vpop.f32.mrf.mxu0
  %v1525 = vadd.f32 0.0, %v1524
  %v1526 = vpop.f32.mrf.mxu0
  %v1527 = vadd.f32 0.0, %v1526
  %1528 = vmatprep.mubr.f32.mxu0 0.0
  %1529 = vmatmul.mubr.f32.gmra.mxu0 %v119
  %v1530 = vpop.f32.mrf.mxu0
  %v1531 = vadd.f32 0.0, %v1530
  %v1532 = vpop.f32.mrf.mxu0
  %v1533 = vadd.f32 0.0, %v1532
  %1534 = vmatprep.mubr.f32.mxu0 0.0
  %1535 = vmatmul.mubr.f32.gmra.mxu0 %v122
  %v1536 = vpop.f32.mrf.mxu0
  %v1537 = vadd.f32 0.0, %v1536
  %v1538 = vpop.f32.mrf.mxu0
  %v1539 = vadd.f32 0.0, %v1538
  %1540 = vmatprep.mubr.f32.mxu0 0.0
  %1541 = vmatmul.mubr.f32.gmra.mxu0 %v125
  %v1542 = vpop.f32.mrf.mxu0
  %v1543 = vadd.f32 0.0, %v1542
  %v1544 = vpop.f32.mrf.mxu0
  %v1545 = vadd.f32 0.0, %v1544
  %1546 = vmatprep.mubr.f32.mxu0 0.0
  %1547 = vmatmul.mubr.f32.gmra.mxu0 %v128
  %v1548 = vpop.f32.mrf.mxu0
  %v1549 = vadd.f32 0.0, %v1548
  %v1550 = vpop.f32.mrf.mxu0
  %v1551 = vadd.f32 0.0, %v1550
  %1552 = vmatprep.mubr.f32.mxu0 0.0
  %1553 = vmatmul.mubr.f32.gmra.mxu0 %v131
  %v1554 = vpop.f32.mrf.mxu0
  %v1555 = vadd.f32 0.0, %v1554
  %v1556 = vpop.f32.mrf.mxu0
  %v1557 = vadd.f32 0.0, %v1556
  %1558 = vmatprep.mubr.f32.mxu0 0.0
  %1559 = vmatmul.mubr.f32.gmra.mxu0 %v134
  %v1560 = vpop.f32.mrf.mxu0
  %v1561 = vadd.f32 0.0, %v1560
  %v1562 = vpop.f32.mrf.mxu0
  %v1563 = vadd.f32 0.0, %v1562
  %1564 = vmatprep.mubr.f32.mxu0 0.0
  %1565 = vmatmul.mubr.f32.gmra.mxu0 %v137
  %v1566 = vpop.f32.mrf.mxu0
  %v1567 = vadd.f32 0.0, %v1566
  %v1568 = vpop.f32.mrf.mxu0
  %v1569 = vadd.f32 0.0, %v1568
  %1570 = vmatprep.mubr.f32.mxu0 0.0
  %1571 = vmatmul.mubr.f32.gmra.mxu0 %v140
  %v1572 = vpop.f32.mrf.mxu0
  %v1573 = vadd.f32 0.0, %v1572
  %v1574 = vpop.f32.mrf.mxu0
  %v1575 = vadd.f32 0.0, %v1574
  %1576 = vmatprep.mubr.f32.mxu0 0.0
  %1577 = vmatmul.mubr.f32.gmra.mxu0 %v143
  %v1578 = vpop.f32.mrf.mxu0
  %v1579 = vadd.f32 0.0, %v1578
  %v1580 = vpop.f32.mrf.mxu0
  %v1581 = vadd.f32 0.0, %v1580
  %1582 = vmatprep.mubr.f32.mxu0 0.0
  %1583 = vmatmul.mubr.f32.gmra.mxu0 %v146
  %v1584 = vpop.f32.mrf.mxu0
  %v1585 = vadd.f32 0.0, %v1584
  %v1586 = vpop.f32.mrf.mxu0
  %v1587 = vadd.f32 0.0, %v1586
  %1588 = vmatprep.mubr.f32.mxu0 0.0
  %1589 = vmatmul.mubr.f32.gmra.mxu0 %v149
  %v1590 = vpop.f32.mrf.mxu0
  %v1591 = vadd.f32 0.0, %v1590
  %v1592 = vpop.f32.mrf.mxu0
  %v1593 = vadd.f32 0.0, %v1592
  %1594 = vmatprep.mubr.f32.mxu0 0.0
  %1595 = vmatmul.mubr.f32.gmra.mxu0 %v152
  %v1596 = vpop.f32.mrf.mxu0
  %v1597 = vadd.f32 0.0, %v1596
  %v1598 = vpop.f32.mrf.mxu0
  %v1599 = vadd.f32 0.0, %v1598
  %1600 = vmatprep.mubr.f32.mxu0 0.0
  %1601 = vmatmul.mubr.f32.gmra.mxu0 %v155
  %v1602 = vpop.f32.mrf.mxu0
  %v1603 = vadd.f32 0.0, %v1602
  %v1604 = vpop.f32.mrf.mxu0
  %v1605 = vadd.f32 0.0, %v1604
  %1606 = vmatprep.mubr.f32.mxu0 0.0
  %1607 = vmatmul.mubr.f32.gmra.mxu0 %v158
  %v1608 = vpop.f32.mrf.mxu0
  %v1609 = vadd.f32 0.0, %v1608
  %v1610 = vpop.f32.mrf.mxu0
  %v1611 = vadd.f32 0.0, %v1610
  %1612 = vmatprep.mubr.f32.mxu0 0.0
  %1613 = vmatmul.mubr.f32.gmra.mxu0 %v161
  %v1614 = vpop.f32.mrf.mxu0
  %v1615 = vadd.f32 0.0, %v1614
  %v1616 = vpop.f32.mrf.mxu0
  %v1617 = vadd.f32 0.0, %v1616
  %1618 = vmatprep.mubr.f32.mxu0 0.0
  %1619 = vmatmul.mubr.f32.gmra.mxu0 %v164
  %v1620 = vpop.f32.mrf.mxu0
  %v1621 = vadd.f32 0.0, %v1620
  %v1622 = vpop.f32.mrf.mxu0
  %v1623 = vadd.f32 0.0, %v1622
  %1624 = vmatprep.mubr.f32.mxu0 0.0
  %1625 = vmatmul.mubr.f32.gmra.mxu0 %v167
  %v1626 = vpop.f32.mrf.mxu0
  %v1627 = vadd.f32 0.0, %v1626
  %v1628 = vpop.f32.mrf.mxu0
  %v1629 = vadd.f32 0.0, %v1628
  %1630 = vmatprep.mubr.f32.mxu0 0.0
  %1631 = vmatmul.mubr.f32.gmra.mxu0 %v170
  %v1632 = vpop.f32.mrf.mxu0
  %v1633 = vadd.f32 0.0, %v1632
  %v1634 = vpop.f32.mrf.mxu0
  %v1635 = vadd.f32 0.0, %v1634
  %1636 = vmatprep.mubr.f32.mxu0 0.0
  %1637 = vmatmul.mubr.f32.gmra.mxu0 %v173
  %v1638 = vpop.f32.mrf.mxu0
  %v1639 = vadd.f32 0.0, %v1638
  %v1640 = vpop.f32.mrf.mxu0
  %v1641 = vadd.f32 0.0, %v1640
  %1642 = vmatprep.mubr.f32.mxu0 0.0
  %1643 = vmatmul.mubr.f32.gmra.mxu0 %v176
  %v1644 = vpop.f32.mrf.mxu0
  %v1645 = vadd.f32 0.0, %v1644
  %v1646 = vpop.f32.mrf.mxu0
  %v1647 = vadd.f32 0.0, %v1646
  %1648 = vmatprep.mubr.f32.mxu0 0.0
  %1649 = vmatmul.mubr.f32.gmra.mxu0 %v179
  %v1650 = vpop.f32.mrf.mxu0
  %v1651 = vadd.f32 0.0, %v1650
  %v1652 = vpop.f32.mrf.mxu0
  %v1653 = vadd.f32 0.0, %v1652
  %1654 = vmatprep.mubr.f32.mxu0 0.0
  %1655 = vmatmul.mubr.f32.gmra.mxu0 %v182
  %v1656 = vpop.f32.mrf.mxu0
  %v1657 = vadd.f32 0.0, %v1656
  %v1658 = vpop.f32.mrf.mxu0
  %v1659 = vadd.f32 0.0, %v1658
  %1660 = vmatprep.mubr.f32.mxu0 0.0
  %1661 = vmatmul.mubr.f32.gmra.mxu0 %v185
  %v1662 = vpop.f32.mrf.mxu0
  %v1663 = vadd.f32 0.0, %v1662
  %v1664 = vpop.f32.mrf.mxu0
  %v1665 = vadd.f32 0.0, %v1664
  %1666 = vmatprep.mubr.f32.mxu0 0.0
  %1667 = vmatmul.mubr.f32.gmra.mxu0 %v188
  %v1668 = vpop.f32.mrf.mxu0
  %v1669 = vadd.f32 0.0, %v1668
  %v1670 = vpop.f32.mrf.mxu0
  %v1671 = vadd.f32 0.0, %v1670
  %1672 = vmatprep.mubr.f32.mxu0 0.0
  %1673 = vmatmul.mubr.f32.gmra.mxu0 %v191
  %v1674 = vpop.f32.mrf.mxu0
  %v1675 = vadd.f32 0.0, %v1674
  %v1676 = vpop.f32.mrf.mxu0
  %v1677 = vadd.f32 0.0, %v1676
  %1678 = vmatprep.mubr.f32.mxu0 0.0
  %1679 = vmatmul.mubr.f32.gmra.mxu0 %v194
  %v1680 = vpop.f32.mrf.mxu0
  %v1681 = vadd.f32 0.0, %v1680
  %v1682 = vpop.f32.mrf.mxu0
  %v1683 = vadd.f32 0.0, %v1682
  %1684 = vmatprep.mubr.f32.mxu0 0.0
  %1685 = vmatmul.mubr.f32.gmra.mxu0 %v197
  %v1686 = vpop.f32.mrf.mxu0
  %v1687 = vadd.f32 0.0, %v1686
  %v1688 = vpop.f32.mrf.mxu0
  %v1689 = vadd.f32 0.0, %v1688
  %1690 = vmatprep.mubr.f32.mxu0 0.0
  %1691 = vmatmul.mubr.f32.gmra.mxu0 %v200
  %v1692 = vpop.f32.mrf.mxu0
  %v1693 = vadd.f32 0.0, %v1692
  %v1694 = vpop.f32.mrf.mxu0
  %v1695 = vadd.f32 0.0, %v1694
  %1696 = vmatprep.mubr.f32.mxu0 0.0
  %1697 = vmatmul.mubr.f32.gmra.mxu0 %v203
  %v1698 = vpop.f32.mrf.mxu0
  %v1699 = vadd.f32 0.0, %v1698
  %v1700 = vpop.f32.mrf.mxu0
  %v1701 = vadd.f32 0.0, %v1700
  %1702 = vmatprep.mubr.f32.mxu0 0.0
  %1703 = vmatmul.mubr.f32.gmra.mxu0 %v206
  %v1704 = vpop.f32.mrf.mxu0
  %v1705 = vadd.f32 0.0, %v1704
  %v1706 = vpop.f32.mrf.mxu0
  %v1707 = vadd.f32 0.0, %v1706
  %1708 = vmatprep.mubr.f32.mxu0 0.0
  %1709 = vmatmul.mubr.f32.gmra.mxu0 %v209
  %v1710 = vpop.f32.mrf.mxu0
  %v1711 = vadd.f32 0.0, %v1710
  %v1712 = vpop.f32.mrf.mxu0
  %v1713 = vadd.f32 0.0, %v1712
  %1714 = vmatprep.mubr.f32.mxu0 0.0
  %1715 = vmatmul.mubr.f32.gmra.mxu0 %v212
  %v1716 = vpop.f32.mrf.mxu0
  %v1717 = vadd.f32 0.0, %v1716
  %v1718 = vpop.f32.mrf.mxu0
  %v1719 = vadd.f32 0.0, %v1718
  %1720 = vmatprep.mubr.f32.mxu0 0.0
  %1721 = vmatmul.mubr.f32.gmra.mxu0 %v215
  %v1722 = vpop.f32.mrf.mxu0
  %v1723 = vadd.f32 0.0, %v1722
  %v1724 = vpop.f32.mrf.mxu0
  %v1725 = vadd.f32 0.0, %v1724
  %1726 = vmatprep.mubr.f32.mxu0 0.0
  %1727 = vmatmul.mubr.f32.gmra.mxu0 %v218
  %v1728 = vpop.f32.mrf.mxu0
  %v1729 = vadd.f32 0.0, %v1728
  %v1730 = vpop.f32.mrf.mxu0
  %v1731 = vadd.f32 0.0, %v1730
  %1732 = vmatprep.mubr.f32.mxu0 0.0
  %1733 = vmatmul.mubr.f32.gmra.mxu0 %v221
  %v1734 = vpop.f32.mrf.mxu0
  %v1735 = vadd.f32 0.0, %v1734
  %v1736 = vpop.f32.mrf.mxu0
  %v1737 = vadd.f32 0.0, %v1736
  %1738 = vmatprep.mubr.f32.mxu0 0.0
  %1739 = vmatmul.mubr.f32.gmra.mxu0 %v224
  %v1740 = vpop.f32.mrf.mxu0
  %v1741 = vadd.f32 0.0, %v1740
  %v1742 = vpop.f32.mrf.mxu0
  %v1743 = vadd.f32 0.0, %v1742
  %1744 = vmatprep.mubr.f32.mxu0 0.0
  %1745 = vmatmul.mubr.f32.gmra.mxu0 %v227
  %v1746 = vpop.f32.mrf.mxu0
  %v1747 = vadd.f32 0.0, %v1746
  %v1748 = vpop.f32.mrf.mxu0
  %v1749 = vadd.f32 0.0, %v1748
  %1750 = vmatprep.mubr.f32.mxu0 0.0
  %1751 = vmatmul.mubr.f32.gmra.mxu0 %v230
  %v1752 = vpop.f32.mrf.mxu0
  %v1753 = vadd.f32 0.0, %v1752
  %v1754 = vpop.f32.mrf.mxu0
  %v1755 = vadd.f32 0.0, %v1754
  %1756 = vdwg.mxu0
  %1757 = vmatprep.subr.mxu0 0.0
  %1758 = vmatpush1.msra.mxu0 0.0
  %1759 = vmatprep.subr.mxu0 0.0
  %1760 = vmatpush1.msra.mxu0 0.0
  %1761 = vmatprep.subr.mxu0 0.0
  %1762 = vmatpush1.msra.mxu0 0.0
  %1763 = vmatprep.subr.mxu0 0.0
  %1764 = vmatpush1.msra.mxu0 0.0
  %1765 = vmatprep.subr.mxu0 0.0
  %1766 = vmatpush1.msra.mxu0 0.0
  %1767 = vmatprep.subr.mxu0 0.0
  %1768 = vmatpush1.msra.mxu0 0.0
  %1769 = vmatprep.subr.mxu0 0.0
  %1770 = vmatpush1.msra.mxu0 0.0
  %1771 = vmatprep.subr.mxu0 0.0
  %1772 = vmatpush1.msra.mxu0 0.0
  %1773 = vmatprep.subr.mxu0 0.0
  %1774 = vmatpush1.msra.mxu0 0.0
  %1775 = vmatprep.subr.mxu0 0.0
  %1776 = vmatpush1.msra.mxu0 0.0
  %1777 = vmatprep.subr.mxu0 0.0
  %1778 = vmatpush1.msra.mxu0 0.0
  %1779 = vmatprep.subr.mxu0 0.0
  %1780 = vmatpush1.msra.mxu0 0.0
  %1781 = vmatprep.subr.mxu0 0.0
  %1782 = vmatpush1.msra.mxu0 0.0
  %1783 = vmatprep.subr.mxu0 0.0
  %1784 = vmatpush1.msra.mxu0 0.0
  %1785 = vmatprep.subr.mxu0 %v62
  %1786 = vmatpush1.msra.mxu0 %v61
  %1787 = vmatprep.subr.mxu0 %v42
  %1788 = vmatpush1.msra.mxu0 %v41
  %1789 = vmatprep.subr.mxu0 0.0
  %1790 = vmatpush2.msra.mxu0 0.0
  %1791 = vmatprep.subr.mxu0 0.0
  %1792 = vmatpush2.msra.mxu0 0.0
  %1793 = vmatprep.subr.mxu0 0.0
  %1794 = vmatpush2.msra.mxu0 0.0
  %1795 = vmatprep.subr.mxu0 0.0
  %1796 = vmatpush2.msra.mxu0 0.0
  %1797 = vmatprep.subr.mxu0 0.0
  %1798 = vmatpush2.msra.mxu0 0.0
  %1799 = vmatprep.subr.mxu0 0.0
  %1800 = vmatpush2.msra.mxu0 0.0
  %1801 = vmatprep.subr.mxu0 0.0
  %1802 = vmatpush2.msra.mxu0 0.0
  %1803 = vmatprep.subr.mxu0 0.0
  %1804 = vmatpush2.msra.mxu0 0.0
  %1805 = vmatprep.subr.mxu0 0.0
  %1806 = vmatpush2.msra.mxu0 0.0
  %1807 = vmatprep.subr.mxu0 0.0
  %1808 = vmatpush2.msra.mxu0 0.0
  %1809 = vmatprep.subr.mxu0 0.0
  %1810 = vmatpush2.msra.mxu0 0.0
  %1811 = vmatprep.subr.mxu0 0.0
  %1812 = vmatpush2.msra.mxu0 0.0
  %1813 = vmatprep.subr.mxu0 0.0
  %1814 = vmatpush2.msra.mxu0 0.0
  %1815 = vmatprep.subr.mxu0 0.0
  %1816 = vmatpush2.msra.mxu0 0.0
  %1817 = vmatprep.subr.mxu0 0.0
  %1818 = vmatpush2.msra.mxu0 0.0
  %1819 = vmatprep.subr.mxu0 0.0
  %1820 = vmatpush2.msra.mxu0 0.0
  %1821 = vmatprep.mubr.f32.mxu0 0.0
  %1822 = vmatmul.mubr.f32.gmra.mxu0 %v113
  %v1823 = vpop.f32.mrf.mxu0
  %v1824 = vadd.f32 0.0, %v1823
  %v1825 = vpop.f32.mrf.mxu0
  %v1826 = vadd.f32 0.0, %v1825
  %1827 = vmatprep.mubr.f32.mxu0 0.0
  %1828 = vmatmul.mubr.f32.gmra.mxu0 %v116
  %v1829 = vpop.f32.mrf.mxu0
  %v1830 = vadd.f32 0.0, %v1829
  %v1831 = vpop.f32.mrf.mxu0
  %v1832 = vadd.f32 0.0, %v1831
  %1833 = vmatprep.mubr.f32.mxu0 0.0
  %1834 = vmatmul.mubr.f32.gmra.mxu0 %v119
  %v1835 = vpop.f32.mrf.mxu0
  %v1836 = vadd.f32 0.0, %v1835
  %v1837 = vpop.f32.mrf.mxu0
  %v1838 = vadd.f32 0.0, %v1837
  %1839 = vmatprep.mubr.f32.mxu0 0.0
  %1840 = vmatmul.mubr.f32.gmra.mxu0 %v122
  %v1841 = vpop.f32.mrf.mxu0
  %v1842 = vadd.f32 0.0, %v1841
  %v1843 = vpop.f32.mrf.mxu0
  %v1844 = vadd.f32 0.0, %v1843
  %1845 = vmatprep.mubr.f32.mxu0 0.0
  %1846 = vmatmul.mubr.f32.gmra.mxu0 %v125
  %v1847 = vpop.f32.mrf.mxu0
  %v1848 = vadd.f32 0.0, %v1847
  %v1849 = vpop.f32.mrf.mxu0
  %v1850 = vadd.f32 0.0, %v1849
  %1851 = vmatprep.mubr.f32.mxu0 0.0
  %1852 = vmatmul.mubr.f32.gmra.mxu0 %v128
  %v1853 = vpop.f32.mrf.mxu0
  %v1854 = vadd.f32 0.0, %v1853
  %v1855 = vpop.f32.mrf.mxu0
  %v1856 = vadd.f32 0.0, %v1855
  %1857 = vmatprep.mubr.f32.mxu0 0.0
  %1858 = vmatmul.mubr.f32.gmra.mxu0 %v131
  %v1859 = vpop.f32.mrf.mxu0
  %v1860 = vadd.f32 0.0, %v1859
  %v1861 = vpop.f32.mrf.mxu0
  %v1862 = vadd.f32 0.0, %v1861
  %1863 = vmatprep.mubr.f32.mxu0 0.0
  %1864 = vmatmul.mubr.f32.gmra.mxu0 %v134
  %v1865 = vpop.f32.mrf.mxu0
  %v1866 = vadd.f32 0.0, %v1865
  %v1867 = vpop.f32.mrf.mxu0
  %v1868 = vadd.f32 0.0, %v1867
  %1869 = vmatprep.mubr.f32.mxu0 0.0
  %1870 = vmatmul.mubr.f32.gmra.mxu0 %v137
  %v1871 = vpop.f32.mrf.mxu0
  %v1872 = vadd.f32 0.0, %v1871
  %v1873 = vpop.f32.mrf.mxu0
  %v1874 = vadd.f32 0.0, %v1873
  %1875 = vmatprep.mubr.f32.mxu0 0.0
  %1876 = vmatmul.mubr.f32.gmra.mxu0 %v140
  %v1877 = vpop.f32.mrf.mxu0
  %v1878 = vadd.f32 0.0, %v1877
  %v1879 = vpop.f32.mrf.mxu0
  %v1880 = vadd.f32 0.0, %v1879
  %1881 = vmatprep.mubr.f32.mxu0 0.0
  %1882 = vmatmul.mubr.f32.gmra.mxu0 %v143
  %v1883 = vpop.f32.mrf.mxu0
  %v1884 = vadd.f32 0.0, %v1883
  %v1885 = vpop.f32.mrf.mxu0
  %v1886 = vadd.f32 0.0, %v1885
  %1887 = vmatprep.mubr.f32.mxu0 0.0
  %1888 = vmatmul.mubr.f32.gmra.mxu0 %v146
  %v1889 = vpop.f32.mrf.mxu0
  %v1890 = vadd.f32 0.0, %v1889
  %v1891 = vpop.f32.mrf.mxu0
  %v1892 = vadd.f32 0.0, %v1891
  %1893 = vmatprep.mubr.f32.mxu0 0.0
  %1894 = vmatmul.mubr.f32.gmra.mxu0 %v149
  %v1895 = vpop.f32.mrf.mxu0
  %v1896 = vadd.f32 0.0, %v1895
  %v1897 = vpop.f32.mrf.mxu0
  %v1898 = vadd.f32 0.0, %v1897
  %1899 = vmatprep.mubr.f32.mxu0 0.0
  %1900 = vmatmul.mubr.f32.gmra.mxu0 %v152
  %v1901 = vpop.f32.mrf.mxu0
  %v1902 = vadd.f32 0.0, %v1901
  %v1903 = vpop.f32.mrf.mxu0
  %v1904 = vadd.f32 0.0, %v1903
  %1905 = vmatprep.mubr.f32.mxu0 0.0
  %1906 = vmatmul.mubr.f32.gmra.mxu0 %v155
  %v1907 = vpop.f32.mrf.mxu0
  %v1908 = vadd.f32 0.0, %v1907
  %v1909 = vpop.f32.mrf.mxu0
  %v1910 = vadd.f32 0.0, %v1909
  %1911 = vmatprep.mubr.f32.mxu0 0.0
  %1912 = vmatmul.mubr.f32.gmra.mxu0 %v158
  %v1913 = vpop.f32.mrf.mxu0
  %v1914 = vadd.f32 0.0, %v1913
  %v1915 = vpop.f32.mrf.mxu0
  %v1916 = vadd.f32 0.0, %v1915
  %1917 = vmatprep.mubr.f32.mxu0 0.0
  %1918 = vmatmul.mubr.f32.gmra.mxu0 %v161
  %v1919 = vpop.f32.mrf.mxu0
  %v1920 = vadd.f32 0.0, %v1919
  %v1921 = vpop.f32.mrf.mxu0
  %v1922 = vadd.f32 0.0, %v1921
  %1923 = vmatprep.mubr.f32.mxu0 0.0
  %1924 = vmatmul.mubr.f32.gmra.mxu0 %v164
  %v1925 = vpop.f32.mrf.mxu0
  %v1926 = vadd.f32 0.0, %v1925
  %v1927 = vpop.f32.mrf.mxu0
  %v1928 = vadd.f32 0.0, %v1927
  %1929 = vmatprep.mubr.f32.mxu0 0.0
  %1930 = vmatmul.mubr.f32.gmra.mxu0 %v167
  %v1931 = vpop.f32.mrf.mxu0
  %v1932 = vadd.f32 0.0, %v1931
  %v1933 = vpop.f32.mrf.mxu0
  %v1934 = vadd.f32 0.0, %v1933
  %1935 = vmatprep.mubr.f32.mxu0 0.0
  %1936 = vmatmul.mubr.f32.gmra.mxu0 %v170
  %v1937 = vpop.f32.mrf.mxu0
  %v1938 = vadd.f32 0.0, %v1937
  %v1939 = vpop.f32.mrf.mxu0
  %v1940 = vadd.f32 0.0, %v1939
  %1941 = vmatprep.mubr.f32.mxu0 0.0
  %1942 = vmatmul.mubr.f32.gmra.mxu0 %v173
  %v1943 = vpop.f32.mrf.mxu0
  %v1944 = vadd.f32 0.0, %v1943
  %v1945 = vpop.f32.mrf.mxu0
  %v1946 = vadd.f32 0.0, %v1945
  %1947 = vmatprep.mubr.f32.mxu0 0.0
  %1948 = vmatmul.mubr.f32.gmra.mxu0 %v176
  %v1949 = vpop.f32.mrf.mxu0
  %v1950 = vadd.f32 0.0, %v1949
  %v1951 = vpop.f32.mrf.mxu0
  %v1952 = vadd.f32 0.0, %v1951
  %1953 = vmatprep.mubr.f32.mxu0 0.0
  %1954 = vmatmul.mubr.f32.gmra.mxu0 %v179
  %v1955 = vpop.f32.mrf.mxu0
  %v1956 = vadd.f32 0.0, %v1955
  %v1957 = vpop.f32.mrf.mxu0
  %v1958 = vadd.f32 0.0, %v1957
  %1959 = vmatprep.mubr.f32.mxu0 0.0
  %1960 = vmatmul.mubr.f32.gmra.mxu0 %v182
  %v1961 = vpop.f32.mrf.mxu0
  %v1962 = vadd.f32 0.0, %v1961
  %v1963 = vpop.f32.mrf.mxu0
  %v1964 = vadd.f32 0.0, %v1963
  %1965 = vmatprep.mubr.f32.mxu0 0.0
  %1966 = vmatmul.mubr.f32.gmra.mxu0 %v185
  %v1967 = vpop.f32.mrf.mxu0
  %v1968 = vadd.f32 0.0, %v1967
  %v1969 = vpop.f32.mrf.mxu0
  %v1970 = vadd.f32 0.0, %v1969
  %1971 = vmatprep.mubr.f32.mxu0 0.0
  %1972 = vmatmul.mubr.f32.gmra.mxu0 %v188
  %v1973 = vpop.f32.mrf.mxu0
  %v1974 = vadd.f32 0.0, %v1973
  %v1975 = vpop.f32.mrf.mxu0
  %v1976 = vadd.f32 0.0, %v1975
  %1977 = vmatprep.mubr.f32.mxu0 0.0
  %1978 = vmatmul.mubr.f32.gmra.mxu0 %v191
  %v1979 = vpop.f32.mrf.mxu0
  %v1980 = vadd.f32 0.0, %v1979
  %v1981 = vpop.f32.mrf.mxu0
  %v1982 = vadd.f32 0.0, %v1981
  %1983 = vmatprep.mubr.f32.mxu0 0.0
  %1984 = vmatmul.mubr.f32.gmra.mxu0 %v194
  %v1985 = vpop.f32.mrf.mxu0
  %v1986 = vadd.f32 0.0, %v1985
  %v1987 = vpop.f32.mrf.mxu0
  %v1988 = vadd.f32 0.0, %v1987
  %1989 = vmatprep.mubr.f32.mxu0 0.0
  %1990 = vmatmul.mubr.f32.gmra.mxu0 %v197
  %v1991 = vpop.f32.mrf.mxu0
  %v1992 = vadd.f32 0.0, %v1991
  %v1993 = vpop.f32.mrf.mxu0
  %v1994 = vadd.f32 0.0, %v1993
  %1995 = vmatprep.mubr.f32.mxu0 0.0
  %1996 = vmatmul.mubr.f32.gmra.mxu0 %v200
  %v1997 = vpop.f32.mrf.mxu0
  %v1998 = vadd.f32 0.0, %v1997
  %v1999 = vpop.f32.mrf.mxu0
  %v2000 = vadd.f32 0.0, %v1999
  %2001 = vmatprep.mubr.f32.mxu0 0.0
  %2002 = vmatmul.mubr.f32.gmra.mxu0 %v203
  %v2003 = vpop.f32.mrf.mxu0
  %v2004 = vadd.f32 0.0, %v2003
  %v2005 = vpop.f32.mrf.mxu0
  %v2006 = vadd.f32 0.0, %v2005
  %2007 = vmatprep.mubr.f32.mxu0 0.0
  %2008 = vmatmul.mubr.f32.gmra.mxu0 %v206
  %v2009 = vpop.f32.mrf.mxu0
  %v2010 = vadd.f32 0.0, %v2009
  %v2011 = vpop.f32.mrf.mxu0
  %v2012 = vadd.f32 0.0, %v2011
  %2013 = vmatprep.mubr.f32.mxu0 0.0
  %2014 = vmatmul.mubr.f32.gmra.mxu0 %v209
  %v2015 = vpop.f32.mrf.mxu0
  %v2016 = vadd.f32 0.0, %v2015
  %v2017 = vpop.f32.mrf.mxu0
  %v2018 = vadd.f32 0.0, %v2017
  %2019 = vmatprep.mubr.f32.mxu0 0.0
  %2020 = vmatmul.mubr.f32.gmra.mxu0 %v212
  %v2021 = vpop.f32.mrf.mxu0
  %v2022 = vadd.f32 0.0, %v2021
  %v2023 = vpop.f32.mrf.mxu0
  %v2024 = vadd.f32 0.0, %v2023
  %2025 = vmatprep.mubr.f32.mxu0 0.0
  %2026 = vmatmul.mubr.f32.gmra.mxu0 %v215
  %v2027 = vpop.f32.mrf.mxu0
  %v2028 = vadd.f32 0.0, %v2027
  %v2029 = vpop.f32.mrf.mxu0
  %v2030 = vadd.f32 0.0, %v2029
  %2031 = vmatprep.mubr.f32.mxu0 0.0
  %2032 = vmatmul.mubr.f32.gmra.mxu0 %v218
  %v2033 = vpop.f32.mrf.mxu0
  %v2034 = vadd.f32 0.0, %v2033
  %v2035 = vpop.f32.mrf.mxu0
  %v2036 = vadd.f32 0.0, %v2035
  %2037 = vmatprep.mubr.f32.mxu0 0.0
  %2038 = vmatmul.mubr.f32.gmra.mxu0 %v221
  %v2039 = vpop.f32.mrf.mxu0
  %v2040 = vadd.f32 0.0, %v2039
  %v2041 = vpop.f32.mrf.mxu0
  %v2042 = vadd.f32 0.0, %v2041
  %2043 = vmatprep.mubr.f32.mxu0 0.0
  %2044 = vmatmul.mubr.f32.gmra.mxu0 %v224
  %v2045 = vpop.f32.mrf.mxu0
  %v2046 = vadd.f32 0.0, %v2045
  %v2047 = vpop.f32.mrf.mxu0
  %v2048 = vadd.f32 0.0, %v2047
  %2049 = vmatprep.mubr.f32.mxu0 0.0
  %2050 = vmatmul.mubr.f32.gmra.mxu0 %v227
  %v2051 = vpop.f32.mrf.mxu0
  %v2052 = vadd.f32 0.0, %v2051
  %v2053 = vpop.f32.mrf.mxu0
  %v2054 = vadd.f32 0.0, %v2053
  %2055 = vmatprep.mubr.f32.mxu0 0.0
  %2056 = vmatmul.mubr.f32.gmra.mxu0 %v230
  %v2057 = vpop.f32.mrf.mxu0
  %v2058 = vadd.f32 0.0, %v2057
  %v2059 = vpop.f32.mrf.mxu0
  %v2060 = vadd.f32 0.0, %v2059
  %2061 = vdwg.mxu0
  %2062 = vmatprep.subr.mxu0 0.0
  %2063 = vmatpush1.msra.mxu0 0.0
  %2064 = vmatprep.subr.mxu0 0.0
  %2065 = vmatpush1.msra.mxu0 0.0
  %2066 = vmatprep.subr.mxu0 0.0
  %2067 = vmatpush1.msra.mxu0 0.0
  %2068 = vmatprep.subr.mxu0 0.0
  %2069 = vmatpush1.msra.mxu0 0.0
  %2070 = vmatprep.subr.mxu0 0.0
  %2071 = vmatpush1.msra.mxu0 0.0
  %2072 = vmatprep.subr.mxu0 0.0
  %2073 = vmatpush1.msra.mxu0 0.0
  %2074 = vmatprep.subr.mxu0 0.0
  %2075 = vmatpush1.msra.mxu0 0.0
  %2076 = vmatprep.subr.mxu0 0.0
  %2077 = vmatpush1.msra.mxu0 0.0
  %2078 = vmatprep.subr.mxu0 0.0
  %2079 = vmatpush1.msra.mxu0 0.0
  %2080 = vmatprep.subr.mxu0 0.0
  %2081 = vmatpush1.msra.mxu0 0.0
  %2082 = vmatprep.subr.mxu0 0.0
  %2083 = vmatpush1.msra.mxu0 0.0
  %2084 = vmatprep.subr.mxu0 0.0
  %2085 = vmatpush1.msra.mxu0 0.0
  %2086 = vmatprep.subr.mxu0 0.0
  %2087 = vmatpush1.msra.mxu0 0.0
  %2088 = vmatprep.subr.mxu0 0.0
  %2089 = vmatpush1.msra.mxu0 0.0
  %2090 = vmatprep.subr.mxu0 %v64
  %2091 = vmatpush1.msra.mxu0 %v63
  %2092 = vmatprep.subr.mxu0 %v44
  %2093 = vmatpush1.msra.mxu0 %v43
  %2094 = vmatprep.subr.mxu0 0.0
  %2095 = vmatpush2.msra.mxu0 0.0
  %2096 = vmatprep.subr.mxu0 0.0
  %2097 = vmatpush2.msra.mxu0 0.0
  %2098 = vmatprep.subr.mxu0 0.0
  %2099 = vmatpush2.msra.mxu0 0.0
  %2100 = vmatprep.subr.mxu0 0.0
  %2101 = vmatpush2.msra.mxu0 0.0
  %2102 = vmatprep.subr.mxu0 0.0
  %2103 = vmatpush2.msra.mxu0 0.0
  %2104 = vmatprep.subr.mxu0 0.0
  %2105 = vmatpush2.msra.mxu0 0.0
  %2106 = vmatprep.subr.mxu0 0.0
  %2107 = vmatpush2.msra.mxu0 0.0
  %2108 = vmatprep.subr.mxu0 0.0
  %2109 = vmatpush2.msra.mxu0 0.0
  %2110 = vmatprep.subr.mxu0 0.0
  %2111 = vmatpush2.msra.mxu0 0.0
  %2112 = vmatprep.subr.mxu0 0.0
  %2113 = vmatpush2.msra.mxu0 0.0
  %2114 = vmatprep.subr.mxu0 0.0
  %2115 = vmatpush2.msra.mxu0 0.0
  %2116 = vmatprep.subr.mxu0 0.0
  %2117 = vmatpush2.msra.mxu0 0.0
  %2118 = vmatprep.subr.mxu0 0.0
  %2119 = vmatpush2.msra.mxu0 0.0
  %2120 = vmatprep.subr.mxu0 0.0
  %2121 = vmatpush2.msra.mxu0 0.0
  %2122 = vmatprep.subr.mxu0 0.0
  %2123 = vmatpush2.msra.mxu0 0.0
  %2124 = vmatprep.subr.mxu0 0.0
  %2125 = vmatpush2.msra.mxu0 0.0
  %2126 = vmatprep.mubr.f32.mxu0 0.0
  %2127 = vmatmul.mubr.f32.gmra.mxu0 %v113
  %v2128 = vpop.f32.mrf.mxu0
  %v2129 = vadd.f32 0.0, %v2128
  %v2130 = vpop.f32.mrf.mxu0
  %v2131 = vadd.f32 0.0, %v2130
  %2132 = vmatprep.mubr.f32.mxu0 0.0
  %2133 = vmatmul.mubr.f32.gmra.mxu0 %v116
  %v2134 = vpop.f32.mrf.mxu0
  %v2135 = vadd.f32 0.0, %v2134
  %v2136 = vpop.f32.mrf.mxu0
  %v2137 = vadd.f32 0.0, %v2136
  %2138 = vmatprep.mubr.f32.mxu0 0.0
  %2139 = vmatmul.mubr.f32.gmra.mxu0 %v119
  %v2140 = vpop.f32.mrf.mxu0
  %v2141 = vadd.f32 0.0, %v2140
  %v2142 = vpop.f32.mrf.mxu0
  %v2143 = vadd.f32 0.0, %v2142
  %2144 = vmatprep.mubr.f32.mxu0 0.0
  %2145 = vmatmul.mubr.f32.gmra.mxu0 %v122
  %v2146 = vpop.f32.mrf.mxu0
  %v2147 = vadd.f32 0.0, %v2146
  %v2148 = vpop.f32.mrf.mxu0
  %v2149 = vadd.f32 0.0, %v2148
  %2150 = vmatprep.mubr.f32.mxu0 0.0
  %2151 = vmatmul.mubr.f32.gmra.mxu0 %v125
  %v2152 = vpop.f32.mrf.mxu0
  %v2153 = vadd.f32 0.0, %v2152
  %v2154 = vpop.f32.mrf.mxu0
  %v2155 = vadd.f32 0.0, %v2154
  %2156 = vmatprep.mubr.f32.mxu0 0.0
  %2157 = vmatmul.mubr.f32.gmra.mxu0 %v128
  %v2158 = vpop.f32.mrf.mxu0
  %v2159 = vadd.f32 0.0, %v2158
  %v2160 = vpop.f32.mrf.mxu0
  %v2161 = vadd.f32 0.0, %v2160
  %2162 = vmatprep.mubr.f32.mxu0 0.0
  %2163 = vmatmul.mubr.f32.gmra.mxu0 %v131
  %v2164 = vpop.f32.mrf.mxu0
  %v2165 = vadd.f32 0.0, %v2164
  %v2166 = vpop.f32.mrf.mxu0
  %v2167 = vadd.f32 0.0, %v2166
  %2168 = vmatprep.mubr.f32.mxu0 0.0
  %2169 = vmatmul.mubr.f32.gmra.mxu0 %v134
  %v2170 = vpop.f32.mrf.mxu0
  %v2171 = vadd.f32 0.0, %v2170
  %v2172 = vpop.f32.mrf.mxu0
  %v2173 = vadd.f32 0.0, %v2172
  %2174 = vmatprep.mubr.f32.mxu0 0.0
  %2175 = vmatmul.mubr.f32.gmra.mxu0 %v137
  %v2176 = vpop.f32.mrf.mxu0
  %v2177 = vadd.f32 0.0, %v2176
  %v2178 = vpop.f32.mrf.mxu0
  %v2179 = vadd.f32 0.0, %v2178
  %2180 = vmatprep.mubr.f32.mxu0 0.0
  %2181 = vmatmul.mubr.f32.gmra.mxu0 %v140
  %v2182 = vpop.f32.mrf.mxu0
  %v2183 = vadd.f32 0.0, %v2182
  %v2184 = vpop.f32.mrf.mxu0
  %v2185 = vadd.f32 0.0, %v2184
  %2186 = vmatprep.mubr.f32.mxu0 0.0
  %2187 = vmatmul.mubr.f32.gmra.mxu0 %v143
  %v2188 = vpop.f32.mrf.mxu0
  %v2189 = vadd.f32 0.0, %v2188
  %v2190 = vpop.f32.mrf.mxu0
  %v2191 = vadd.f32 0.0, %v2190
  %2192 = vmatprep.mubr.f32.mxu0 0.0
  %2193 = vmatmul.mubr.f32.gmra.mxu0 %v146
  %v2194 = vpop.f32.mrf.mxu0
  %v2195 = vadd.f32 0.0, %v2194
  %v2196 = vpop.f32.mrf.mxu0
  %v2197 = vadd.f32 0.0, %v2196
  %2198 = vmatprep.mubr.f32.mxu0 0.0
  %2199 = vmatmul.mubr.f32.gmra.mxu0 %v149
  %v2200 = vpop.f32.mrf.mxu0
  %v2201 = vadd.f32 0.0, %v2200
  %v2202 = vpop.f32.mrf.mxu0
  %v2203 = vadd.f32 0.0, %v2202
  %2204 = vmatprep.mubr.f32.mxu0 0.0
  %2205 = vmatmul.mubr.f32.gmra.mxu0 %v152
  %v2206 = vpop.f32.mrf.mxu0
  %v2207 = vadd.f32 0.0, %v2206
  %v2208 = vpop.f32.mrf.mxu0
  %v2209 = vadd.f32 0.0, %v2208
  %2210 = vmatprep.mubr.f32.mxu0 0.0
  %2211 = vmatmul.mubr.f32.gmra.mxu0 %v155
  %v2212 = vpop.f32.mrf.mxu0
  %v2213 = vadd.f32 0.0, %v2212
  %v2214 = vpop.f32.mrf.mxu0
  %v2215 = vadd.f32 0.0, %v2214
  %2216 = vmatprep.mubr.f32.mxu0 0.0
  %2217 = vmatmul.mubr.f32.gmra.mxu0 %v158
  %v2218 = vpop.f32.mrf.mxu0
  %v2219 = vadd.f32 0.0, %v2218
  %v2220 = vpop.f32.mrf.mxu0
  %v2221 = vadd.f32 0.0, %v2220
  %2222 = vmatprep.mubr.f32.mxu0 0.0
  %2223 = vmatmul.mubr.f32.gmra.mxu0 %v161
  %v2224 = vpop.f32.mrf.mxu0
  %v2225 = vadd.f32 0.0, %v2224
  %v2226 = vpop.f32.mrf.mxu0
  %v2227 = vadd.f32 0.0, %v2226
  %2228 = vmatprep.mubr.f32.mxu0 0.0
  %2229 = vmatmul.mubr.f32.gmra.mxu0 %v164
  %v2230 = vpop.f32.mrf.mxu0
  %v2231 = vadd.f32 0.0, %v2230
  %v2232 = vpop.f32.mrf.mxu0
  %v2233 = vadd.f32 0.0, %v2232
  %2234 = vmatprep.mubr.f32.mxu0 0.0
  %2235 = vmatmul.mubr.f32.gmra.mxu0 %v167
  %v2236 = vpop.f32.mrf.mxu0
  %v2237 = vadd.f32 0.0, %v2236
  %v2238 = vpop.f32.mrf.mxu0
  %v2239 = vadd.f32 0.0, %v2238
  %2240 = vmatprep.mubr.f32.mxu0 0.0
  %2241 = vmatmul.mubr.f32.gmra.mxu0 %v170
  %v2242 = vpop.f32.mrf.mxu0
  %v2243 = vadd.f32 0.0, %v2242
  %v2244 = vpop.f32.mrf.mxu0
  %v2245 = vadd.f32 0.0, %v2244
  %2246 = vmatprep.mubr.f32.mxu0 0.0
  %2247 = vmatmul.mubr.f32.gmra.mxu0 %v173
  %v2248 = vpop.f32.mrf.mxu0
  %v2249 = vadd.f32 0.0, %v2248
  %v2250 = vpop.f32.mrf.mxu0
  %v2251 = vadd.f32 0.0, %v2250
  %2252 = vmatprep.mubr.f32.mxu0 0.0
  %2253 = vmatmul.mubr.f32.gmra.mxu0 %v176
  %v2254 = vpop.f32.mrf.mxu0
  %v2255 = vadd.f32 0.0, %v2254
  %v2256 = vpop.f32.mrf.mxu0
  %v2257 = vadd.f32 0.0, %v2256
  %2258 = vmatprep.mubr.f32.mxu0 0.0
  %2259 = vmatmul.mubr.f32.gmra.mxu0 %v179
  %v2260 = vpop.f32.mrf.mxu0
  %v2261 = vadd.f32 0.0, %v2260
  %v2262 = vpop.f32.mrf.mxu0
  %v2263 = vadd.f32 0.0, %v2262
  %2264 = vmatprep.mubr.f32.mxu0 0.0
  %2265 = vmatmul.mubr.f32.gmra.mxu0 %v182
  %v2266 = vpop.f32.mrf.mxu0
  %v2267 = vadd.f32 0.0, %v2266
  %v2268 = vpop.f32.mrf.mxu0
  %v2269 = vadd.f32 0.0, %v2268
  %2270 = vmatprep.mubr.f32.mxu0 0.0
  %2271 = vmatmul.mubr.f32.gmra.mxu0 %v185
  %v2272 = vpop.f32.mrf.mxu0
  %v2273 = vadd.f32 0.0, %v2272
  %v2274 = vpop.f32.mrf.mxu0
  %v2275 = vadd.f32 0.0, %v2274
  %2276 = vmatprep.mubr.f32.mxu0 0.0
  %2277 = vmatmul.mubr.f32.gmra.mxu0 %v188
  %v2278 = vpop.f32.mrf.mxu0
  %v2279 = vadd.f32 0.0, %v2278
  %v2280 = vpop.f32.mrf.mxu0
  %v2281 = vadd.f32 0.0, %v2280
  %2282 = vmatprep.mubr.f32.mxu0 0.0
  %2283 = vmatmul.mubr.f32.gmra.mxu0 %v191
  %v2284 = vpop.f32.mrf.mxu0
  %v2285 = vadd.f32 0.0, %v2284
  %v2286 = vpop.f32.mrf.mxu0
  %v2287 = vadd.f32 0.0, %v2286
  %2288 = vmatprep.mubr.f32.mxu0 0.0
  %2289 = vmatmul.mubr.f32.gmra.mxu0 %v194
  %v2290 = vpop.f32.mrf.mxu0
  %v2291 = vadd.f32 0.0, %v2290
  %v2292 = vpop.f32.mrf.mxu0
  %v2293 = vadd.f32 0.0, %v2292
  %2294 = vmatprep.mubr.f32.mxu0 0.0
  %2295 = vmatmul.mubr.f32.gmra.mxu0 %v197
  %v2296 = vpop.f32.mrf.mxu0
  %v2297 = vadd.f32 0.0, %v2296
  %v2298 = vpop.f32.mrf.mxu0
  %v2299 = vadd.f32 0.0, %v2298
  %2300 = vmatprep.mubr.f32.mxu0 0.0
  %2301 = vmatmul.mubr.f32.gmra.mxu0 %v200
  %v2302 = vpop.f32.mrf.mxu0
  %v2303 = vadd.f32 0.0, %v2302
  %v2304 = vpop.f32.mrf.mxu0
  %v2305 = vadd.f32 0.0, %v2304
  %2306 = vmatprep.mubr.f32.mxu0 0.0
  %2307 = vmatmul.mubr.f32.gmra.mxu0 %v203
  %v2308 = vpop.f32.mrf.mxu0
  %v2309 = vadd.f32 0.0, %v2308
  %v2310 = vpop.f32.mrf.mxu0
  %v2311 = vadd.f32 0.0, %v2310
  %2312 = vmatprep.mubr.f32.mxu0 0.0
  %2313 = vmatmul.mubr.f32.gmra.mxu0 %v206
  %v2314 = vpop.f32.mrf.mxu0
  %v2315 = vadd.f32 0.0, %v2314
  %v2316 = vpop.f32.mrf.mxu0
  %v2317 = vadd.f32 0.0, %v2316
  %2318 = vmatprep.mubr.f32.mxu0 0.0
  %2319 = vmatmul.mubr.f32.gmra.mxu0 %v209
  %v2320 = vpop.f32.mrf.mxu0
  %v2321 = vadd.f32 0.0, %v2320
  %v2322 = vpop.f32.mrf.mxu0
  %v2323 = vadd.f32 0.0, %v2322
  %2324 = vmatprep.mubr.f32.mxu0 0.0
  %2325 = vmatmul.mubr.f32.gmra.mxu0 %v212
  %v2326 = vpop.f32.mrf.mxu0
  %v2327 = vadd.f32 0.0, %v2326
  %v2328 = vpop.f32.mrf.mxu0
  %v2329 = vadd.f32 0.0, %v2328
  %2330 = vmatprep.mubr.f32.mxu0 0.0
  %2331 = vmatmul.mubr.f32.gmra.mxu0 %v215
  %v2332 = vpop.f32.mrf.mxu0
  %v2333 = vadd.f32 0.0, %v2332
  %v2334 = vpop.f32.mrf.mxu0
  %v2335 = vadd.f32 0.0, %v2334
  %2336 = vmatprep.mubr.f32.mxu0 0.0
  %2337 = vmatmul.mubr.f32.gmra.mxu0 %v218
  %v2338 = vpop.f32.mrf.mxu0
  %v2339 = vadd.f32 0.0, %v2338
  %v2340 = vpop.f32.mrf.mxu0
  %v2341 = vadd.f32 0.0, %v2340
  %2342 = vmatprep.mubr.f32.mxu0 0.0
  %2343 = vmatmul.mubr.f32.gmra.mxu0 %v221
  %v2344 = vpop.f32.mrf.mxu0
  %v2345 = vadd.f32 0.0, %v2344
  %v2346 = vpop.f32.mrf.mxu0
  %v2347 = vadd.f32 0.0, %v2346
  %2348 = vmatprep.mubr.f32.mxu0 0.0
  %2349 = vmatmul.mubr.f32.gmra.mxu0 %v224
  %v2350 = vpop.f32.mrf.mxu0
  %v2351 = vadd.f32 0.0, %v2350
  %v2352 = vpop.f32.mrf.mxu0
  %v2353 = vadd.f32 0.0, %v2352
  %2354 = vmatprep.mubr.f32.mxu0 0.0
  %2355 = vmatmul.mubr.f32.gmra.mxu0 %v227
  %v2356 = vpop.f32.mrf.mxu0
  %v2357 = vadd.f32 0.0, %v2356
  %v2358 = vpop.f32.mrf.mxu0
  %v2359 = vadd.f32 0.0, %v2358
  %2360 = vmatprep.mubr.f32.mxu0 0.0
  %2361 = vmatmul.mubr.f32.gmra.mxu0 %v230
  %v2362 = vpop.f32.mrf.mxu0
  %v2363 = vadd.f32 0.0, %v2362
  %v2364 = vpop.f32.mrf.mxu0
  %v2365 = vadd.f32 0.0, %v2364
  %2366 = vdwg.mxu0
  %2367 = vmatprep.subr.mxu0 0.0
  %2368 = vmatpush1.msra.mxu0 0.0
  %2369 = vmatprep.subr.mxu0 0.0
  %2370 = vmatpush1.msra.mxu0 0.0
  %2371 = vmatprep.subr.mxu0 0.0
  %2372 = vmatpush1.msra.mxu0 0.0
  %2373 = vmatprep.subr.mxu0 0.0
  %2374 = vmatpush1.msra.mxu0 0.0
  %2375 = vmatprep.subr.mxu0 0.0
  %2376 = vmatpush1.msra.mxu0 0.0
  %2377 = vmatprep.subr.mxu0 0.0
  %2378 = vmatpush1.msra.mxu0 0.0
  %2379 = vmatprep.subr.mxu0 0.0
  %2380 = vmatpush1.msra.mxu0 0.0
  %2381 = vmatprep.subr.mxu0 0.0
  %2382 = vmatpush1.msra.mxu0 0.0
  %2383 = vmatprep.subr.mxu0 0.0
  %2384 = vmatpush1.msra.mxu0 0.0
  %2385 = vmatprep.subr.mxu0 0.0
  %2386 = vmatpush1.msra.mxu0 0.0
  %2387 = vmatprep.subr.mxu0 0.0
  %2388 = vmatpush1.msra.mxu0 0.0
  %2389 = vmatprep.subr.mxu0 0.0
  %2390 = vmatpush1.msra.mxu0 0.0
  %2391 = vmatprep.subr.mxu0 0.0
  %2392 = vmatpush1.msra.mxu0 0.0
  %2393 = vmatprep.subr.mxu0 0.0
  %2394 = vmatpush1.msra.mxu0 0.0
  %2395 = vmatprep.subr.mxu0 %v66
  %2396 = vmatpush1.msra.mxu0 %v65
  %2397 = vmatprep.subr.mxu0 %v46
  %2398 = vmatpush1.msra.mxu0 %v45
  %2399 = vmatprep.subr.mxu0 0.0
  %2400 = vmatpush2.msra.mxu0 0.0
  %2401 = vmatprep.subr.mxu0 0.0
  %2402 = vmatpush2.msra.mxu0 0.0
  %2403 = vmatprep.subr.mxu0 0.0
  %2404 = vmatpush2.msra.mxu0 0.0
  %2405 = vmatprep.subr.mxu0 0.0
  %2406 = vmatpush2.msra.mxu0 0.0
  %2407 = vmatprep.subr.mxu0 0.0
  %2408 = vmatpush2.msra.mxu0 0.0
  %2409 = vmatprep.subr.mxu0 0.0
  %2410 = vmatpush2.msra.mxu0 0.0
  %2411 = vmatprep.subr.mxu0 0.0
  %2412 = vmatpush2.msra.mxu0 0.0
  %2413 = vmatprep.subr.mxu0 0.0
  %2414 = vmatpush2.msra.mxu0 0.0
  %2415 = vmatprep.subr.mxu0 0.0
  %2416 = vmatpush2.msra.mxu0 0.0
  %2417 = vmatprep.subr.mxu0 0.0
  %2418 = vmatpush2.msra.mxu0 0.0
  %2419 = vmatprep.subr.mxu0 0.0
  %2420 = vmatpush2.msra.mxu0 0.0
  %2421 = vmatprep.subr.mxu0 0.0
  %2422 = vmatpush2.msra.mxu0 0.0
  %2423 = vmatprep.subr.mxu0 0.0
  %2424 = vmatpush2.msra.mxu0 0.0
  %2425 = vmatprep.subr.mxu0 0.0
  %2426 = vmatpush2.msra.mxu0 0.0
  %2427 = vmatprep.subr.mxu0 0.0
  %2428 = vmatpush2.msra.mxu0 0.0
  %2429 = vmatprep.subr.mxu0 0.0
  %2430 = vmatpush2.msra.mxu0 0.0
  %2431 = vmatprep.mubr.f32.mxu0 0.0
  %2432 = vmatmul.mubr.f32.gmra.mxu0 %v113
  %v2433 = vpop.f32.mrf.mxu0
  %v2434 = vadd.f32 0.0, %v2433
  %v2435 = vpop.f32.mrf.mxu0
  %v2436 = vadd.f32 0.0, %v2435
  %2437 = vmatprep.mubr.f32.mxu0 0.0
  %2438 = vmatmul.mubr.f32.gmra.mxu0 %v116
  %v2439 = vpop.f32.mrf.mxu0
  %v2440 = vadd.f32 0.0, %v2439
  %v2441 = vpop.f32.mrf.mxu0
  %v2442 = vadd.f32 0.0, %v2441
  %2443 = vmatprep.mubr.f32.mxu0 0.0
  %2444 = vmatmul.mubr.f32.gmra.mxu0 %v119
  %v2445 = vpop.f32.mrf.mxu0
  %v2446 = vadd.f32 0.0, %v2445
  %v2447 = vpop.f32.mrf.mxu0
  %v2448 = vadd.f32 0.0, %v2447
  %2449 = vmatprep.mubr.f32.mxu0 0.0
  %2450 = vmatmul.mubr.f32.gmra.mxu0 %v122
  %v2451 = vpop.f32.mrf.mxu0
  %v2452 = vadd.f32 0.0, %v2451
  %v2453 = vpop.f32.mrf.mxu0
  %v2454 = vadd.f32 0.0, %v2453
  %2455 = vmatprep.mubr.f32.mxu0 0.0
  %2456 = vmatmul.mubr.f32.gmra.mxu0 %v125
  %v2457 = vpop.f32.mrf.mxu0
  %v2458 = vadd.f32 0.0, %v2457
  %v2459 = vpop.f32.mrf.mxu0
  %v2460 = vadd.f32 0.0, %v2459
  %2461 = vmatprep.mubr.f32.mxu0 0.0
  %2462 = vmatmul.mubr.f32.gmra.mxu0 %v128
  %v2463 = vpop.f32.mrf.mxu0
  %v2464 = vadd.f32 0.0, %v2463
  %v2465 = vpop.f32.mrf.mxu0
  %v2466 = vadd.f32 0.0, %v2465
  %2467 = vmatprep.mubr.f32.mxu0 0.0
  %2468 = vmatmul.mubr.f32.gmra.mxu0 %v131
  %v2469 = vpop.f32.mrf.mxu0
  %v2470 = vadd.f32 0.0, %v2469
  %v2471 = vpop.f32.mrf.mxu0
  %v2472 = vadd.f32 0.0, %v2471
  %2473 = vmatprep.mubr.f32.mxu0 0.0
  %2474 = vmatmul.mubr.f32.gmra.mxu0 %v134
  %v2475 = vpop.f32.mrf.mxu0
  %v2476 = vadd.f32 0.0, %v2475
  %v2477 = vpop.f32.mrf.mxu0
  %v2478 = vadd.f32 0.0, %v2477
  %2479 = vmatprep.mubr.f32.mxu0 0.0
  %2480 = vmatmul.mubr.f32.gmra.mxu0 %v137
  %v2481 = vpop.f32.mrf.mxu0
  %v2482 = vadd.f32 0.0, %v2481
  %v2483 = vpop.f32.mrf.mxu0
  %v2484 = vadd.f32 0.0, %v2483
  %2485 = vmatprep.mubr.f32.mxu0 0.0
  %2486 = vmatmul.mubr.f32.gmra.mxu0 %v140
  %v2487 = vpop.f32.mrf.mxu0
  %v2488 = vadd.f32 0.0, %v2487
  %v2489 = vpop.f32.mrf.mxu0
  %v2490 = vadd.f32 0.0, %v2489
  %2491 = vmatprep.mubr.f32.mxu0 0.0
  %2492 = vmatmul.mubr.f32.gmra.mxu0 %v143
  %v2493 = vpop.f32.mrf.mxu0
  %v2494 = vadd.f32 0.0, %v2493
  %v2495 = vpop.f32.mrf.mxu0
  %v2496 = vadd.f32 0.0, %v2495
  %2497 = vmatprep.mubr.f32.mxu0 0.0
  %2498 = vmatmul.mubr.f32.gmra.mxu0 %v146
  %v2499 = vpop.f32.mrf.mxu0
  %v2500 = vadd.f32 0.0, %v2499
  %v2501 = vpop.f32.mrf.mxu0
  %v2502 = vadd.f32 0.0, %v2501
  %2503 = vmatprep.mubr.f32.mxu0 0.0
  %2504 = vmatmul.mubr.f32.gmra.mxu0 %v149
  %v2505 = vpop.f32.mrf.mxu0
  %v2506 = vadd.f32 0.0, %v2505
  %v2507 = vpop.f32.mrf.mxu0
  %v2508 = vadd.f32 0.0, %v2507
  %2509 = vmatprep.mubr.f32.mxu0 0.0
  %2510 = vmatmul.mubr.f32.gmra.mxu0 %v152
  %v2511 = vpop.f32.mrf.mxu0
  %v2512 = vadd.f32 0.0, %v2511
  %v2513 = vpop.f32.mrf.mxu0
  %v2514 = vadd.f32 0.0, %v2513
  %2515 = vmatprep.mubr.f32.mxu0 0.0
  %2516 = vmatmul.mubr.f32.gmra.mxu0 %v155
  %v2517 = vpop.f32.mrf.mxu0
  %v2518 = vadd.f32 0.0, %v2517
  %v2519 = vpop.f32.mrf.mxu0
  %v2520 = vadd.f32 0.0, %v2519
  %2521 = vmatprep.mubr.f32.mxu0 0.0
  %2522 = vmatmul.mubr.f32.gmra.mxu0 %v158
  %v2523 = vpop.f32.mrf.mxu0
  %v2524 = vadd.f32 0.0, %v2523
  %v2525 = vpop.f32.mrf.mxu0
  %v2526 = vadd.f32 0.0, %v2525
  %2527 = vmatprep.mubr.f32.mxu0 0.0
  %2528 = vmatmul.mubr.f32.gmra.mxu0 %v161
  %v2529 = vpop.f32.mrf.mxu0
  %v2530 = vadd.f32 0.0, %v2529
  %v2531 = vpop.f32.mrf.mxu0
  %v2532 = vadd.f32 0.0, %v2531
  %2533 = vmatprep.mubr.f32.mxu0 0.0
  %2534 = vmatmul.mubr.f32.gmra.mxu0 %v164
  %v2535 = vpop.f32.mrf.mxu0
  %v2536 = vadd.f32 0.0, %v2535
  %v2537 = vpop.f32.mrf.mxu0
  %v2538 = vadd.f32 0.0, %v2537
  %2539 = vmatprep.mubr.f32.mxu0 0.0
  %2540 = vmatmul.mubr.f32.gmra.mxu0 %v167
  %v2541 = vpop.f32.mrf.mxu0
  %v2542 = vadd.f32 0.0, %v2541
  %v2543 = vpop.f32.mrf.mxu0
  %v2544 = vadd.f32 0.0, %v2543
  %2545 = vmatprep.mubr.f32.mxu0 0.0
  %2546 = vmatmul.mubr.f32.gmra.mxu0 %v170
  %v2547 = vpop.f32.mrf.mxu0
  %v2548 = vadd.f32 0.0, %v2547
  %v2549 = vpop.f32.mrf.mxu0
  %v2550 = vadd.f32 0.0, %v2549
  %2551 = vmatprep.mubr.f32.mxu0 0.0
  %2552 = vmatmul.mubr.f32.gmra.mxu0 %v173
  %v2553 = vpop.f32.mrf.mxu0
  %v2554 = vadd.f32 0.0, %v2553
  %v2555 = vpop.f32.mrf.mxu0
  %v2556 = vadd.f32 0.0, %v2555
  %2557 = vmatprep.mubr.f32.mxu0 0.0
  %2558 = vmatmul.mubr.f32.gmra.mxu0 %v176
  %v2559 = vpop.f32.mrf.mxu0
  %v2560 = vadd.f32 0.0, %v2559
  %v2561 = vpop.f32.mrf.mxu0
  %v2562 = vadd.f32 0.0, %v2561
  %2563 = vmatprep.mubr.f32.mxu0 0.0
  %2564 = vmatmul.mubr.f32.gmra.mxu0 %v179
  %v2565 = vpop.f32.mrf.mxu0
  %v2566 = vadd.f32 0.0, %v2565
  %v2567 = vpop.f32.mrf.mxu0
  %v2568 = vadd.f32 0.0, %v2567
  %2569 = vmatprep.mubr.f32.mxu0 0.0
  %2570 = vmatmul.mubr.f32.gmra.mxu0 %v182
  %v2571 = vpop.f32.mrf.mxu0
  %v2572 = vadd.f32 0.0, %v2571
  %v2573 = vpop.f32.mrf.mxu0
  %v2574 = vadd.f32 0.0, %v2573
  %2575 = vmatprep.mubr.f32.mxu0 0.0
  %2576 = vmatmul.mubr.f32.gmra.mxu0 %v185
  %v2577 = vpop.f32.mrf.mxu0
  %v2578 = vadd.f32 0.0, %v2577
  %v2579 = vpop.f32.mrf.mxu0
  %v2580 = vadd.f32 0.0, %v2579
  %2581 = vmatprep.mubr.f32.mxu0 0.0
  %2582 = vmatmul.mubr.f32.gmra.mxu0 %v188
  %v2583 = vpop.f32.mrf.mxu0
  %v2584 = vadd.f32 0.0, %v2583
  %v2585 = vpop.f32.mrf.mxu0
  %v2586 = vadd.f32 0.0, %v2585
  %2587 = vmatprep.mubr.f32.mxu0 0.0
  %2588 = vmatmul.mubr.f32.gmra.mxu0 %v191
  %v2589 = vpop.f32.mrf.mxu0
  %v2590 = vadd.f32 0.0, %v2589
  %v2591 = vpop.f32.mrf.mxu0
  %v2592 = vadd.f32 0.0, %v2591
  %2593 = vmatprep.mubr.f32.mxu0 0.0
  %2594 = vmatmul.mubr.f32.gmra.mxu0 %v194
  %v2595 = vpop.f32.mrf.mxu0
  %v2596 = vadd.f32 0.0, %v2595
  %v2597 = vpop.f32.mrf.mxu0
  %v2598 = vadd.f32 0.0, %v2597
  %2599 = vmatprep.mubr.f32.mxu0 0.0
  %2600 = vmatmul.mubr.f32.gmra.mxu0 %v197
  %v2601 = vpop.f32.mrf.mxu0
  %v2602 = vadd.f32 0.0, %v2601
  %v2603 = vpop.f32.mrf.mxu0
  %v2604 = vadd.f32 0.0, %v2603
  %2605 = vmatprep.mubr.f32.mxu0 0.0
  %2606 = vmatmul.mubr.f32.gmra.mxu0 %v200
  %v2607 = vpop.f32.mrf.mxu0
  %v2608 = vadd.f32 0.0, %v2607
  %v2609 = vpop.f32.mrf.mxu0
  %v2610 = vadd.f32 0.0, %v2609
  %2611 = vmatprep.mubr.f32.mxu0 0.0
  %2612 = vmatmul.mubr.f32.gmra.mxu0 %v203
  %v2613 = vpop.f32.mrf.mxu0
  %v2614 = vadd.f32 0.0, %v2613
  %v2615 = vpop.f32.mrf.mxu0
  %v2616 = vadd.f32 0.0, %v2615
  %2617 = vmatprep.mubr.f32.mxu0 0.0
  %2618 = vmatmul.mubr.f32.gmra.mxu0 %v206
  %v2619 = vpop.f32.mrf.mxu0
  %v2620 = vadd.f32 0.0, %v2619
  %v2621 = vpop.f32.mrf.mxu0
  %v2622 = vadd.f32 0.0, %v2621
  %2623 = vmatprep.mubr.f32.mxu0 0.0
  %2624 = vmatmul.mubr.f32.gmra.mxu0 %v209
  %v2625 = vpop.f32.mrf.mxu0
  %v2626 = vadd.f32 0.0, %v2625
  %v2627 = vpop.f32.mrf.mxu0
  %v2628 = vadd.f32 0.0, %v2627
  %2629 = vmatprep.mubr.f32.mxu0 0.0
  %2630 = vmatmul.mubr.f32.gmra.mxu0 %v212
  %v2631 = vpop.f32.mrf.mxu0
  %v2632 = vadd.f32 0.0, %v2631
  %v2633 = vpop.f32.mrf.mxu0
  %v2634 = vadd.f32 0.0, %v2633
  %2635 = vmatprep.mubr.f32.mxu0 0.0
  %2636 = vmatmul.mubr.f32.gmra.mxu0 %v215
  %v2637 = vpop.f32.mrf.mxu0
  %v2638 = vadd.f32 0.0, %v2637
  %v2639 = vpop.f32.mrf.mxu0
  %v2640 = vadd.f32 0.0, %v2639
  %2641 = vmatprep.mubr.f32.mxu0 0.0
  %2642 = vmatmul.mubr.f32.gmra.mxu0 %v218
  %v2643 = vpop.f32.mrf.mxu0
  %v2644 = vadd.f32 0.0, %v2643
  %v2645 = vpop.f32.mrf.mxu0
  %v2646 = vadd.f32 0.0, %v2645
  %2647 = vmatprep.mubr.f32.mxu0 0.0
  %2648 = vmatmul.mubr.f32.gmra.mxu0 %v221
  %v2649 = vpop.f32.mrf.mxu0
  %v2650 = vadd.f32 0.0, %v2649
  %v2651 = vpop.f32.mrf.mxu0
  %v2652 = vadd.f32 0.0, %v2651
  %2653 = vmatprep.mubr.f32.mxu0 0.0
  %2654 = vmatmul.mubr.f32.gmra.mxu0 %v224
  %v2655 = vpop.f32.mrf.mxu0
  %v2656 = vadd.f32 0.0, %v2655
  %v2657 = vpop.f32.mrf.mxu0
  %v2658 = vadd.f32 0.0, %v2657
  %2659 = vmatprep.mubr.f32.mxu0 0.0
  %2660 = vmatmul.mubr.f32.gmra.mxu0 %v227
  %v2661 = vpop.f32.mrf.mxu0
  %v2662 = vadd.f32 0.0, %v2661
  %v2663 = vpop.f32.mrf.mxu0
  %v2664 = vadd.f32 0.0, %v2663
  %2665 = vmatprep.mubr.f32.mxu0 0.0
  %2666 = vmatmul.mubr.f32.gmra.mxu0 %v230
  %v2667 = vpop.f32.mrf.mxu0
  %v2668 = vadd.f32 0.0, %v2667
  %v2669 = vpop.f32.mrf.mxu0
  %v2670 = vadd.f32 0.0, %v2669
  %2671 = vdwg.mxu0
  %2672 = vmatprep.subr.mxu0 0.0
  %2673 = vmatpush1.msra.mxu0 0.0
  %2674 = vmatprep.subr.mxu0 0.0
  %2675 = vmatpush1.msra.mxu0 0.0
  %2676 = vmatprep.subr.mxu0 0.0
  %2677 = vmatpush1.msra.mxu0 0.0
  %2678 = vmatprep.subr.mxu0 0.0
  %2679 = vmatpush1.msra.mxu0 0.0
  %2680 = vmatprep.subr.mxu0 0.0
  %2681 = vmatpush1.msra.mxu0 0.0
  %2682 = vmatprep.subr.mxu0 0.0
  %2683 = vmatpush1.msra.mxu0 0.0
  %2684 = vmatprep.subr.mxu0 0.0
  %2685 = vmatpush1.msra.mxu0 0.0
  %2686 = vmatprep.subr.mxu0 0.0
  %2687 = vmatpush1.msra.mxu0 0.0
  %2688 = vmatprep.subr.mxu0 0.0
  %2689 = vmatpush1.msra.mxu0 0.0
  %2690 = vmatprep.subr.mxu0 0.0
  %2691 = vmatpush1.msra.mxu0 0.0
  %2692 = vmatprep.subr.mxu0 0.0
  %2693 = vmatpush1.msra.mxu0 0.0
  %2694 = vmatprep.subr.mxu0 0.0
  %2695 = vmatpush1.msra.mxu0 0.0
  %2696 = vmatprep.subr.mxu0 0.0
  %2697 = vmatpush1.msra.mxu0 0.0
  %2698 = vmatprep.subr.mxu0 0.0
  %2699 = vmatpush1.msra.mxu0 0.0
  %2700 = vmatprep.subr.mxu0 %v68
  %2701 = vmatpush1.msra.mxu0 %v67
  %2702 = vmatprep.subr.mxu0 %v48
  %2703 = vmatpush1.msra.mxu0 %v47
  %2704 = vmatprep.subr.mxu0 0.0
  %2705 = vmatpush2.msra.mxu0 0.0
  %2706 = vmatprep.subr.mxu0 0.0
  %2707 = vmatpush2.msra.mxu0 0.0
  %2708 = vmatprep.subr.mxu0 0.0
  %2709 = vmatpush2.msra.mxu0 0.0
  %2710 = vmatprep.subr.mxu0 0.0
  %2711 = vmatpush2.msra.mxu0 0.0
  %2712 = vmatprep.subr.mxu0 0.0
  %2713 = vmatpush2.msra.mxu0 0.0
  %2714 = vmatprep.subr.mxu0 0.0
  %2715 = vmatpush2.msra.mxu0 0.0
  %2716 = vmatprep.subr.mxu0 0.0
  %2717 = vmatpush2.msra.mxu0 0.0
  %2718 = vmatprep.subr.mxu0 0.0
  %2719 = vmatpush2.msra.mxu0 0.0
  %2720 = vmatprep.subr.mxu0 0.0
  %2721 = vmatpush2.msra.mxu0 0.0
  %2722 = vmatprep.subr.mxu0 0.0
  %2723 = vmatpush2.msra.mxu0 0.0
  %2724 = vmatprep.subr.mxu0 0.0
  %2725 = vmatpush2.msra.mxu0 0.0
  %2726 = vmatprep.subr.mxu0 0.0
  %2727 = vmatpush2.msra.mxu0 0.0
  %2728 = vmatprep.subr.mxu0 0.0
  %2729 = vmatpush2.msra.mxu0 0.0
  %2730 = vmatprep.subr.mxu0 0.0
  %2731 = vmatpush2.msra.mxu0 0.0
  %2732 = vmatprep.subr.mxu0 0.0
  %2733 = vmatpush2.msra.mxu0 0.0
  %2734 = vmatprep.subr.mxu0 0.0
  %2735 = vmatpush2.msra.mxu0 0.0
  %2736 = vmatprep.mubr.f32.mxu0 0.0
  %2737 = vmatmul.mubr.f32.gmra.mxu0 %v113
  %v2738 = vpop.f32.mrf.mxu0
  %v2739 = vadd.f32 0.0, %v2738
  %v2740 = vpop.f32.mrf.mxu0
  %v2741 = vadd.f32 0.0, %v2740
  %2742 = vmatprep.mubr.f32.mxu0 0.0
  %2743 = vmatmul.mubr.f32.gmra.mxu0 %v116
  %v2744 = vpop.f32.mrf.mxu0
  %v2745 = vadd.f32 0.0, %v2744
  %v2746 = vpop.f32.mrf.mxu0
  %v2747 = vadd.f32 0.0, %v2746
  %2748 = vmatprep.mubr.f32.mxu0 0.0
  %2749 = vmatmul.mubr.f32.gmra.mxu0 %v119
  %v2750 = vpop.f32.mrf.mxu0
  %v2751 = vadd.f32 0.0, %v2750
  %v2752 = vpop.f32.mrf.mxu0
  %v2753 = vadd.f32 0.0, %v2752
  %2754 = vmatprep.mubr.f32.mxu0 0.0
  %2755 = vmatmul.mubr.f32.gmra.mxu0 %v122
  %v2756 = vpop.f32.mrf.mxu0
  %v2757 = vadd.f32 0.0, %v2756
  %v2758 = vpop.f32.mrf.mxu0
  %v2759 = vadd.f32 0.0, %v2758
  %2760 = vmatprep.mubr.f32.mxu0 0.0
  %2761 = vmatmul.mubr.f32.gmra.mxu0 %v125
  %v2762 = vpop.f32.mrf.mxu0
  %v2763 = vadd.f32 0.0, %v2762
  %v2764 = vpop.f32.mrf.mxu0
  %v2765 = vadd.f32 0.0, %v2764
  %2766 = vmatprep.mubr.f32.mxu0 0.0
  %2767 = vmatmul.mubr.f32.gmra.mxu0 %v128
  %v2768 = vpop.f32.mrf.mxu0
  %v2769 = vadd.f32 0.0, %v2768
  %v2770 = vpop.f32.mrf.mxu0
  %v2771 = vadd.f32 0.0, %v2770
  %2772 = vmatprep.mubr.f32.mxu0 0.0
  %2773 = vmatmul.mubr.f32.gmra.mxu0 %v131
  %v2774 = vpop.f32.mrf.mxu0
  %v2775 = vadd.f32 0.0, %v2774
  %v2776 = vpop.f32.mrf.mxu0
  %v2777 = vadd.f32 0.0, %v2776
  %2778 = vmatprep.mubr.f32.mxu0 0.0
  %2779 = vmatmul.mubr.f32.gmra.mxu0 %v134
  %v2780 = vpop.f32.mrf.mxu0
  %v2781 = vadd.f32 0.0, %v2780
  %v2782 = vpop.f32.mrf.mxu0
  %v2783 = vadd.f32 0.0, %v2782
  %2784 = vmatprep.mubr.f32.mxu0 0.0
  %2785 = vmatmul.mubr.f32.gmra.mxu0 %v137
  %v2786 = vpop.f32.mrf.mxu0
  %v2787 = vadd.f32 0.0, %v2786
  %v2788 = vpop.f32.mrf.mxu0
  %v2789 = vadd.f32 0.0, %v2788
  %2790 = vmatprep.mubr.f32.mxu0 0.0
  %2791 = vmatmul.mubr.f32.gmra.mxu0 %v140
  %v2792 = vpop.f32.mrf.mxu0
  %v2793 = vadd.f32 0.0, %v2792
  %v2794 = vpop.f32.mrf.mxu0
  %v2795 = vadd.f32 0.0, %v2794
  %2796 = vmatprep.mubr.f32.mxu0 0.0
  %2797 = vmatmul.mubr.f32.gmra.mxu0 %v143
  %v2798 = vpop.f32.mrf.mxu0
  %v2799 = vadd.f32 0.0, %v2798
  %v2800 = vpop.f32.mrf.mxu0
  %v2801 = vadd.f32 0.0, %v2800
  %2802 = vmatprep.mubr.f32.mxu0 0.0
  %2803 = vmatmul.mubr.f32.gmra.mxu0 %v146
  %v2804 = vpop.f32.mrf.mxu0
  %v2805 = vadd.f32 0.0, %v2804
  %v2806 = vpop.f32.mrf.mxu0
  %v2807 = vadd.f32 0.0, %v2806
  %2808 = vmatprep.mubr.f32.mxu0 0.0
  %2809 = vmatmul.mubr.f32.gmra.mxu0 %v149
  %v2810 = vpop.f32.mrf.mxu0
  %v2811 = vadd.f32 0.0, %v2810
  %v2812 = vpop.f32.mrf.mxu0
  %v2813 = vadd.f32 0.0, %v2812
  %2814 = vmatprep.mubr.f32.mxu0 0.0
  %2815 = vmatmul.mubr.f32.gmra.mxu0 %v152
  %v2816 = vpop.f32.mrf.mxu0
  %v2817 = vadd.f32 0.0, %v2816
  %v2818 = vpop.f32.mrf.mxu0
  %v2819 = vadd.f32 0.0, %v2818
  %2820 = vmatprep.mubr.f32.mxu0 0.0
  %2821 = vmatmul.mubr.f32.gmra.mxu0 %v155
  %v2822 = vpop.f32.mrf.mxu0
  %v2823 = vadd.f32 0.0, %v2822
  %v2824 = vpop.f32.mrf.mxu0
  %v2825 = vadd.f32 0.0, %v2824
  %2826 = vmatprep.mubr.f32.mxu0 0.0
  %2827 = vmatmul.mubr.f32.gmra.mxu0 %v158
  %v2828 = vpop.f32.mrf.mxu0
  %v2829 = vadd.f32 0.0, %v2828
  %v2830 = vpop.f32.mrf.mxu0
  %v2831 = vadd.f32 0.0, %v2830
  %2832 = vmatprep.mubr.f32.mxu0 0.0
  %2833 = vmatmul.mubr.f32.gmra.mxu0 %v161
  %v2834 = vpop.f32.mrf.mxu0
  %v2835 = vadd.f32 0.0, %v2834
  %v2836 = vpop.f32.mrf.mxu0
  %v2837 = vadd.f32 0.0, %v2836
  %2838 = vmatprep.mubr.f32.mxu0 0.0
  %2839 = vmatmul.mubr.f32.gmra.mxu0 %v164
  %v2840 = vpop.f32.mrf.mxu0
  %v2841 = vadd.f32 0.0, %v2840
  %v2842 = vpop.f32.mrf.mxu0
  %v2843 = vadd.f32 0.0, %v2842
  %2844 = vmatprep.mubr.f32.mxu0 0.0
  %2845 = vmatmul.mubr.f32.gmra.mxu0 %v167
  %v2846 = vpop.f32.mrf.mxu0
  %v2847 = vadd.f32 0.0, %v2846
  %v2848 = vpop.f32.mrf.mxu0
  %v2849 = vadd.f32 0.0, %v2848
  %2850 = vmatprep.mubr.f32.mxu0 0.0
  %2851 = vmatmul.mubr.f32.gmra.mxu0 %v170
  %v2852 = vpop.f32.mrf.mxu0
  %v2853 = vadd.f32 0.0, %v2852
  %v2854 = vpop.f32.mrf.mxu0
  %v2855 = vadd.f32 0.0, %v2854
  %2856 = vmatprep.mubr.f32.mxu0 0.0
  %2857 = vmatmul.mubr.f32.gmra.mxu0 %v173
  %v2858 = vpop.f32.mrf.mxu0
  %v2859 = vadd.f32 0.0, %v2858
  %v2860 = vpop.f32.mrf.mxu0
  %v2861 = vadd.f32 0.0, %v2860
  %2862 = vmatprep.mubr.f32.mxu0 0.0
  %2863 = vmatmul.mubr.f32.gmra.mxu0 %v176
  %v2864 = vpop.f32.mrf.mxu0
  %v2865 = vadd.f32 0.0, %v2864
  %v2866 = vpop.f32.mrf.mxu0
  %v2867 = vadd.f32 0.0, %v2866
  %2868 = vmatprep.mubr.f32.mxu0 0.0
  %2869 = vmatmul.mubr.f32.gmra.mxu0 %v179
  %v2870 = vpop.f32.mrf.mxu0
  %v2871 = vadd.f32 0.0, %v2870
  %v2872 = vpop.f32.mrf.mxu0
  %v2873 = vadd.f32 0.0, %v2872
  %2874 = vmatprep.mubr.f32.mxu0 0.0
  %2875 = vmatmul.mubr.f32.gmra.mxu0 %v182
  %v2876 = vpop.f32.mrf.mxu0
  %v2877 = vadd.f32 0.0, %v2876
  %v2878 = vpop.f32.mrf.mxu0
  %v2879 = vadd.f32 0.0, %v2878
  %2880 = vmatprep.mubr.f32.mxu0 0.0
  %2881 = vmatmul.mubr.f32.gmra.mxu0 %v185
  %v2882 = vpop.f32.mrf.mxu0
  %v2883 = vadd.f32 0.0, %v2882
  %v2884 = vpop.f32.mrf.mxu0
  %v2885 = vadd.f32 0.0, %v2884
  %2886 = vmatprep.mubr.f32.mxu0 0.0
  %2887 = vmatmul.mubr.f32.gmra.mxu0 %v188
  %v2888 = vpop.f32.mrf.mxu0
  %v2889 = vadd.f32 0.0, %v2888
  %v2890 = vpop.f32.mrf.mxu0
  %v2891 = vadd.f32 0.0, %v2890
  %2892 = vmatprep.mubr.f32.mxu0 0.0
  %2893 = vmatmul.mubr.f32.gmra.mxu0 %v191
  %v2894 = vpop.f32.mrf.mxu0
  %v2895 = vadd.f32 0.0, %v2894
  %v2896 = vpop.f32.mrf.mxu0
  %v2897 = vadd.f32 0.0, %v2896
  %2898 = vmatprep.mubr.f32.mxu0 0.0
  %2899 = vmatmul.mubr.f32.gmra.mxu0 %v194
  %v2900 = vpop.f32.mrf.mxu0
  %v2901 = vadd.f32 0.0, %v2900
  %v2902 = vpop.f32.mrf.mxu0
  %v2903 = vadd.f32 0.0, %v2902
  %2904 = vmatprep.mubr.f32.mxu0 0.0
  %2905 = vmatmul.mubr.f32.gmra.mxu0 %v197
  %v2906 = vpop.f32.mrf.mxu0
  %v2907 = vadd.f32 0.0, %v2906
  %v2908 = vpop.f32.mrf.mxu0
  %v2909 = vadd.f32 0.0, %v2908
  %2910 = vmatprep.mubr.f32.mxu0 0.0
  %2911 = vmatmul.mubr.f32.gmra.mxu0 %v200
  %v2912 = vpop.f32.mrf.mxu0
  %v2913 = vadd.f32 0.0, %v2912
  %v2914 = vpop.f32.mrf.mxu0
  %v2915 = vadd.f32 0.0, %v2914
  %2916 = vmatprep.mubr.f32.mxu0 0.0
  %2917 = vmatmul.mubr.f32.gmra.mxu0 %v203
  %v2918 = vpop.f32.mrf.mxu0
  %v2919 = vadd.f32 0.0, %v2918
  %v2920 = vpop.f32.mrf.mxu0
  %v2921 = vadd.f32 0.0, %v2920
  %2922 = vmatprep.mubr.f32.mxu0 0.0
  %2923 = vmatmul.mubr.f32.gmra.mxu0 %v206
  %v2924 = vpop.f32.mrf.mxu0
  %v2925 = vadd.f32 0.0, %v2924
  %v2926 = vpop.f32.mrf.mxu0
  %v2927 = vadd.f32 0.0, %v2926
  %2928 = vmatprep.mubr.f32.mxu0 0.0
  %2929 = vmatmul.mubr.f32.gmra.mxu0 %v209
  %v2930 = vpop.f32.mrf.mxu0
  %v2931 = vadd.f32 0.0, %v2930
  %v2932 = vpop.f32.mrf.mxu0
  %v2933 = vadd.f32 0.0, %v2932
  %2934 = vmatprep.mubr.f32.mxu0 0.0
  %2935 = vmatmul.mubr.f32.gmra.mxu0 %v212
  %v2936 = vpop.f32.mrf.mxu0
  %v2937 = vadd.f32 0.0, %v2936
  %v2938 = vpop.f32.mrf.mxu0
  %v2939 = vadd.f32 0.0, %v2938
  %2940 = vmatprep.mubr.f32.mxu0 0.0
  %2941 = vmatmul.mubr.f32.gmra.mxu0 %v215
  %v2942 = vpop.f32.mrf.mxu0
  %v2943 = vadd.f32 0.0, %v2942
  %v2944 = vpop.f32.mrf.mxu0
  %v2945 = vadd.f32 0.0, %v2944
  %2946 = vmatprep.mubr.f32.mxu0 0.0
  %2947 = vmatmul.mubr.f32.gmra.mxu0 %v218
  %v2948 = vpop.f32.mrf.mxu0
  %v2949 = vadd.f32 0.0, %v2948
  %v2950 = vpop.f32.mrf.mxu0
  %v2951 = vadd.f32 0.0, %v2950
  %2952 = vmatprep.mubr.f32.mxu0 0.0
  %2953 = vmatmul.mubr.f32.gmra.mxu0 %v221
  %v2954 = vpop.f32.mrf.mxu0
  %v2955 = vadd.f32 0.0, %v2954
  %v2956 = vpop.f32.mrf.mxu0
  %v2957 = vadd.f32 0.0, %v2956
  %2958 = vmatprep.mubr.f32.mxu0 0.0
  %2959 = vmatmul.mubr.f32.gmra.mxu0 %v224
  %v2960 = vpop.f32.mrf.mxu0
  %v2961 = vadd.f32 0.0, %v2960
  %v2962 = vpop.f32.mrf.mxu0
  %v2963 = vadd.f32 0.0, %v2962
  %2964 = vmatprep.mubr.f32.mxu0 0.0
  %2965 = vmatmul.mubr.f32.gmra.mxu0 %v227
  %v2966 = vpop.f32.mrf.mxu0
  %v2967 = vadd.f32 0.0, %v2966
  %v2968 = vpop.f32.mrf.mxu0
  %v2969 = vadd.f32 0.0, %v2968
  %2970 = vmatprep.mubr.f32.mxu0 0.0
  %2971 = vmatmul.mubr.f32.gmra.mxu0 %v230
  %v2972 = vpop.f32.mrf.mxu0
  %v2973 = vadd.f32 0.0, %v2972
  %v2974 = vpop.f32.mrf.mxu0
  %v2975 = vadd.f32 0.0, %v2974
  %2976 = vdwg.mxu0
  %2977 = vmatprep.subr.mxu0 0.0
  %2978 = vmatpush1.msra.mxu0 0.0
  %2979 = vmatprep.subr.mxu0 0.0
  %2980 = vmatpush1.msra.mxu0 0.0
  %2981 = vmatprep.subr.mxu0 0.0
  %2982 = vmatpush1.msra.mxu0 0.0
  %2983 = vmatprep.subr.mxu0 0.0
  %2984 = vmatpush1.msra.mxu0 0.0
  %2985 = vmatprep.subr.mxu0 0.0
  %2986 = vmatpush1.msra.mxu0 0.0
  %2987 = vmatprep.subr.mxu0 0.0
  %2988 = vmatpush1.msra.mxu0 0.0
  %2989 = vmatprep.subr.mxu0 0.0
  %2990 = vmatpush1.msra.mxu0 0.0
  %2991 = vmatprep.subr.mxu0 0.0
  %2992 = vmatpush1.msra.mxu0 0.0
  %2993 = vmatprep.subr.mxu0 0.0
  %2994 = vmatpush1.msra.mxu0 0.0
  %2995 = vmatprep.subr.mxu0 0.0
  %2996 = vmatpush1.msra.mxu0 0.0
  %2997 = vmatprep.subr.mxu0 0.0
  %2998 = vmatpush1.msra.mxu0 0.0
  %2999 = vmatprep.subr.mxu0 0.0
  %3000 = vmatpush1.msra.mxu0 0.0
  %3001 = vmatprep.subr.mxu0 0.0
  %3002 = vmatpush1.msra.mxu0 0.0
  %3003 = vmatprep.subr.mxu0 0.0
  %3004 = vmatpush1.msra.mxu0 0.0
  %3005 = vmatprep.subr.mxu0 %v70
  %3006 = vmatpush1.msra.mxu0 %v69
  %3007 = vmatprep.subr.mxu0 %v50
  %3008 = vmatpush1.msra.mxu0 %v49
  %3009 = vmatprep.subr.mxu0 0.0
  %3010 = vmatpush2.msra.mxu0 0.0
  %3011 = vmatprep.subr.mxu0 0.0
  %3012 = vmatpush2.msra.mxu0 0.0
  %3013 = vmatprep.subr.mxu0 0.0
  %3014 = vmatpush2.msra.mxu0 0.0
  %3015 = vmatprep.subr.mxu0 0.0
  %3016 = vmatpush2.msra.mxu0 0.0
  %3017 = vmatprep.subr.mxu0 0.0
  %3018 = vmatpush2.msra.mxu0 0.0
  %3019 = vmatprep.subr.mxu0 0.0
  %3020 = vmatpush2.msra.mxu0 0.0
  %3021 = vmatprep.subr.mxu0 0.0
  %3022 = vmatpush2.msra.mxu0 0.0
  %3023 = vmatprep.subr.mxu0 0.0
  %3024 = vmatpush2.msra.mxu0 0.0
  %3025 = vmatprep.subr.mxu0 0.0
  %3026 = vmatpush2.msra.mxu0 0.0
  %3027 = vmatprep.subr.mxu0 0.0
  %3028 = vmatpush2.msra.mxu0 0.0
  %3029 = vmatprep.subr.mxu0 0.0
  %3030 = vmatpush2.msra.mxu0 0.0
  %3031 = vmatprep.subr.mxu0 0.0
  %3032 = vmatpush2.msra.mxu0 0.0
  %3033 = vmatprep.subr.mxu0 0.0
  %3034 = vmatpush2.msra.mxu0 0.0
  %3035 = vmatprep.subr.mxu0 0.0
  %3036 = vmatpush2.msra.mxu0 0.0
  %3037 = vmatprep.subr.mxu0 0.0
  %3038 = vmatpush2.msra.mxu0 0.0
  %3039 = vmatprep.subr.mxu0 0.0
  %3040 = vmatpush2.msra.mxu0 0.0
  %3041 = vmatprep.mubr.f32.mxu0 0.0
  %3042 = vmatmul.mubr.f32.gmra.mxu0 %v113
  %v3043 = vpop.f32.mrf.mxu0
  %v3044 = vadd.f32 0.0, %v3043
  %v3045 = vpop.f32.mrf.mxu0
  %v3046 = vadd.f32 0.0, %v3045
  %3047 = vmatprep.mubr.f32.mxu0 0.0
  %3048 = vmatmul.mubr.f32.gmra.mxu0 %v116
  %v3049 = vpop.f32.mrf.mxu0
  %v3050 = vadd.f32 0.0, %v3049
  %v3051 = vpop.f32.mrf.mxu0
  %v3052 = vadd.f32 0.0, %v3051
  %3053 = vmatprep.mubr.f32.mxu0 0.0
  %3054 = vmatmul.mubr.f32.gmra.mxu0 %v119
  %v3055 = vpop.f32.mrf.mxu0
  %v3056 = vadd.f32 0.0, %v3055
  %v3057 = vpop.f32.mrf.mxu0
  %v3058 = vadd.f32 0.0, %v3057
  %3059 = vmatprep.mubr.f32.mxu0 0.0
  %3060 = vmatmul.mubr.f32.gmra.mxu0 %v122
  %v3061 = vpop.f32.mrf.mxu0
  %v3062 = vadd.f32 0.0, %v3061
  %v3063 = vpop.f32.mrf.mxu0
  %v3064 = vadd.f32 0.0, %v3063
  %3065 = vmatprep.mubr.f32.mxu0 0.0
  %3066 = vmatmul.mubr.f32.gmra.mxu0 %v125
  %v3067 = vpop.f32.mrf.mxu0
  %v3068 = vadd.f32 0.0, %v3067
  %v3069 = vpop.f32.mrf.mxu0
  %v3070 = vadd.f32 0.0, %v3069
  %3071 = vmatprep.mubr.f32.mxu0 0.0
  %3072 = vmatmul.mubr.f32.gmra.mxu0 %v128
  %v3073 = vpop.f32.mrf.mxu0
  %v3074 = vadd.f32 0.0, %v3073
  %v3075 = vpop.f32.mrf.mxu0
  %v3076 = vadd.f32 0.0, %v3075
  %3077 = vmatprep.mubr.f32.mxu0 0.0
  %3078 = vmatmul.mubr.f32.gmra.mxu0 %v131
  %v3079 = vpop.f32.mrf.mxu0
  %v3080 = vadd.f32 0.0, %v3079
  %v3081 = vpop.f32.mrf.mxu0
  %v3082 = vadd.f32 0.0, %v3081
  %3083 = vmatprep.mubr.f32.mxu0 0.0
  %3084 = vmatmul.mubr.f32.gmra.mxu0 %v134
  %v3085 = vpop.f32.mrf.mxu0
  %v3086 = vadd.f32 0.0, %v3085
  %v3087 = vpop.f32.mrf.mxu0
  %v3088 = vadd.f32 0.0, %v3087
  %3089 = vmatprep.mubr.f32.mxu0 0.0
  %3090 = vmatmul.mubr.f32.gmra.mxu0 %v137
  %v3091 = vpop.f32.mrf.mxu0
  %v3092 = vadd.f32 0.0, %v3091
  %v3093 = vpop.f32.mrf.mxu0
  %v3094 = vadd.f32 0.0, %v3093
  %3095 = vmatprep.mubr.f32.mxu0 0.0
  %3096 = vmatmul.mubr.f32.gmra.mxu0 %v140
  %v3097 = vpop.f32.mrf.mxu0
  %v3098 = vadd.f32 0.0, %v3097
  %v3099 = vpop.f32.mrf.mxu0
  %v3100 = vadd.f32 0.0, %v3099
  %3101 = vmatprep.mubr.f32.mxu0 0.0
  %3102 = vmatmul.mubr.f32.gmra.mxu0 %v143
  %v3103 = vpop.f32.mrf.mxu0
  %v3104 = vadd.f32 0.0, %v3103
  %v3105 = vpop.f32.mrf.mxu0
  %v3106 = vadd.f32 0.0, %v3105
  %3107 = vmatprep.mubr.f32.mxu0 0.0
  %3108 = vmatmul.mubr.f32.gmra.mxu0 %v146
  %v3109 = vpop.f32.mrf.mxu0
  %v3110 = vadd.f32 0.0, %v3109
  %v3111 = vpop.f32.mrf.mxu0
  %v3112 = vadd.f32 0.0, %v3111
  %3113 = vmatprep.mubr.f32.mxu0 0.0
  %3114 = vmatmul.mubr.f32.gmra.mxu0 %v149
  %v3115 = vpop.f32.mrf.mxu0
  %v3116 = vadd.f32 0.0, %v3115
  %v3117 = vpop.f32.mrf.mxu0
  %v3118 = vadd.f32 0.0, %v3117
  %3119 = vmatprep.mubr.f32.mxu0 0.0
  %3120 = vmatmul.mubr.f32.gmra.mxu0 %v152
  %v3121 = vpop.f32.mrf.mxu0
  %v3122 = vadd.f32 0.0, %v3121
  %v3123 = vpop.f32.mrf.mxu0
  %v3124 = vadd.f32 0.0, %v3123
  %3125 = vmatprep.mubr.f32.mxu0 0.0
  %3126 = vmatmul.mubr.f32.gmra.mxu0 %v155
  %v3127 = vpop.f32.mrf.mxu0
  %v3128 = vadd.f32 0.0, %v3127
  %v3129 = vpop.f32.mrf.mxu0
  %v3130 = vadd.f32 0.0, %v3129
  %3131 = vmatprep.mubr.f32.mxu0 0.0
  %3132 = vmatmul.mubr.f32.gmra.mxu0 %v158
  %v3133 = vpop.f32.mrf.mxu0
  %v3134 = vadd.f32 0.0, %v3133
  %v3135 = vpop.f32.mrf.mxu0
  %v3136 = vadd.f32 0.0, %v3135
  %3137 = vmatprep.mubr.f32.mxu0 0.0
  %3138 = vmatmul.mubr.f32.gmra.mxu0 %v161
  %v3139 = vpop.f32.mrf.mxu0
  %v3140 = vadd.f32 0.0, %v3139
  %v3141 = vpop.f32.mrf.mxu0
  %v3142 = vadd.f32 0.0, %v3141
  %3143 = vmatprep.mubr.f32.mxu0 0.0
  %3144 = vmatmul.mubr.f32.gmra.mxu0 %v164
  %v3145 = vpop.f32.mrf.mxu0
  %v3146 = vadd.f32 0.0, %v3145
  %v3147 = vpop.f32.mrf.mxu0
  %v3148 = vadd.f32 0.0, %v3147
  %3149 = vmatprep.mubr.f32.mxu0 0.0
  %3150 = vmatmul.mubr.f32.gmra.mxu0 %v167
  %v3151 = vpop.f32.mrf.mxu0
  %v3152 = vadd.f32 0.0, %v3151
  %v3153 = vpop.f32.mrf.mxu0
  %v3154 = vadd.f32 0.0, %v3153
  %3155 = vmatprep.mubr.f32.mxu0 0.0
  %3156 = vmatmul.mubr.f32.gmra.mxu0 %v170
  %v3157 = vpop.f32.mrf.mxu0
  %v3158 = vadd.f32 0.0, %v3157
  %v3159 = vpop.f32.mrf.mxu0
  %v3160 = vadd.f32 0.0, %v3159
  %3161 = vmatprep.mubr.f32.mxu0 0.0
  %3162 = vmatmul.mubr.f32.gmra.mxu0 %v173
  %v3163 = vpop.f32.mrf.mxu0
  %v3164 = vadd.f32 0.0, %v3163
  %v3165 = vpop.f32.mrf.mxu0
  %v3166 = vadd.f32 0.0, %v3165
  %3167 = vmatprep.mubr.f32.mxu0 0.0
  %3168 = vmatmul.mubr.f32.gmra.mxu0 %v176
  %v3169 = vpop.f32.mrf.mxu0
  %v3170 = vadd.f32 0.0, %v3169
  %v3171 = vpop.f32.mrf.mxu0
  %v3172 = vadd.f32 0.0, %v3171
  %3173 = vmatprep.mubr.f32.mxu0 0.0
  %3174 = vmatmul.mubr.f32.gmra.mxu0 %v179
  %v3175 = vpop.f32.mrf.mxu0
  %v3176 = vadd.f32 0.0, %v3175
  %v3177 = vpop.f32.mrf.mxu0
  %v3178 = vadd.f32 0.0, %v3177
  %3179 = vmatprep.mubr.f32.mxu0 0.0
  %3180 = vmatmul.mubr.f32.gmra.mxu0 %v182
  %v3181 = vpop.f32.mrf.mxu0
  %v3182 = vadd.f32 0.0, %v3181
  %v3183 = vpop.f32.mrf.mxu0
  %v3184 = vadd.f32 0.0, %v3183
  %3185 = vmatprep.mubr.f32.mxu0 0.0
  %3186 = vmatmul.mubr.f32.gmra.mxu0 %v185
  %v3187 = vpop.f32.mrf.mxu0
  %v3188 = vadd.f32 0.0, %v3187
  %v3189 = vpop.f32.mrf.mxu0
  %v3190 = vadd.f32 0.0, %v3189
  %3191 = vmatprep.mubr.f32.mxu0 0.0
  %3192 = vmatmul.mubr.f32.gmra.mxu0 %v188
  %v3193 = vpop.f32.mrf.mxu0
  %v3194 = vadd.f32 0.0, %v3193
  %v3195 = vpop.f32.mrf.mxu0
  %v3196 = vadd.f32 0.0, %v3195
  %3197 = vmatprep.mubr.f32.mxu0 0.0
  %3198 = vmatmul.mubr.f32.gmra.mxu0 %v191
  %v3199 = vpop.f32.mrf.mxu0
  %v3200 = vadd.f32 0.0, %v3199
  %v3201 = vpop.f32.mrf.mxu0
  %v3202 = vadd.f32 0.0, %v3201
  %3203 = vmatprep.mubr.f32.mxu0 0.0
  %3204 = vmatmul.mubr.f32.gmra.mxu0 %v194
  %v3205 = vpop.f32.mrf.mxu0
  %v3206 = vadd.f32 0.0, %v3205
  %v3207 = vpop.f32.mrf.mxu0
  %v3208 = vadd.f32 0.0, %v3207
  %3209 = vmatprep.mubr.f32.mxu0 0.0
  %3210 = vmatmul.mubr.f32.gmra.mxu0 %v197
  %v3211 = vpop.f32.mrf.mxu0
  %v3212 = vadd.f32 0.0, %v3211
  %v3213 = vpop.f32.mrf.mxu0
  %v3214 = vadd.f32 0.0, %v3213
  %3215 = vmatprep.mubr.f32.mxu0 0.0
  %3216 = vmatmul.mubr.f32.gmra.mxu0 %v200
  %v3217 = vpop.f32.mrf.mxu0
  %v3218 = vadd.f32 0.0, %v3217
  %v3219 = vpop.f32.mrf.mxu0
  %v3220 = vadd.f32 0.0, %v3219
  %3221 = vmatprep.mubr.f32.mxu0 0.0
  %3222 = vmatmul.mubr.f32.gmra.mxu0 %v203
  %v3223 = vpop.f32.mrf.mxu0
  %v3224 = vadd.f32 0.0, %v3223
  %v3225 = vpop.f32.mrf.mxu0
  %v3226 = vadd.f32 0.0, %v3225
  %3227 = vmatprep.mubr.f32.mxu0 0.0
  %3228 = vmatmul.mubr.f32.gmra.mxu0 %v206
  %v3229 = vpop.f32.mrf.mxu0
  %v3230 = vadd.f32 0.0, %v3229
  %v3231 = vpop.f32.mrf.mxu0
  %v3232 = vadd.f32 0.0, %v3231
  %3233 = vmatprep.mubr.f32.mxu0 0.0
  %3234 = vmatmul.mubr.f32.gmra.mxu0 %v209
  %v3235 = vpop.f32.mrf.mxu0
  %v3236 = vadd.f32 0.0, %v3235
  %v3237 = vpop.f32.mrf.mxu0
  %v3238 = vadd.f32 0.0, %v3237
  %3239 = vmatprep.mubr.f32.mxu0 0.0
  %3240 = vmatmul.mubr.f32.gmra.mxu0 %v212
  %v3241 = vpop.f32.mrf.mxu0
  %v3242 = vadd.f32 0.0, %v3241
  %v3243 = vpop.f32.mrf.mxu0
  %v3244 = vadd.f32 0.0, %v3243
  %3245 = vmatprep.mubr.f32.mxu0 0.0
  %3246 = vmatmul.mubr.f32.gmra.mxu0 %v215
  %v3247 = vpop.f32.mrf.mxu0
  %v3248 = vadd.f32 0.0, %v3247
  %v3249 = vpop.f32.mrf.mxu0
  %v3250 = vadd.f32 0.0, %v3249
  %3251 = vmatprep.mubr.f32.mxu0 0.0
  %3252 = vmatmul.mubr.f32.gmra.mxu0 %v218
  %v3253 = vpop.f32.mrf.mxu0
  %v3254 = vadd.f32 0.0, %v3253
  %v3255 = vpop.f32.mrf.mxu0
  %v3256 = vadd.f32 0.0, %v3255
  %3257 = vmatprep.mubr.f32.mxu0 0.0
  %3258 = vmatmul.mubr.f32.gmra.mxu0 %v221
  %v3259 = vpop.f32.mrf.mxu0
  %v3260 = vadd.f32 0.0, %v3259
  %v3261 = vpop.f32.mrf.mxu0
  %v3262 = vadd.f32 0.0, %v3261
  %3263 = vmatprep.mubr.f32.mxu0 0.0
  %3264 = vmatmul.mubr.f32.gmra.mxu0 %v224
  %v3265 = vpop.f32.mrf.mxu0
  %v3266 = vadd.f32 0.0, %v3265
  %v3267 = vpop.f32.mrf.mxu0
  %v3268 = vadd.f32 0.0, %v3267
  %3269 = vmatprep.mubr.f32.mxu0 0.0
  %3270 = vmatmul.mubr.f32.gmra.mxu0 %v227
  %v3271 = vpop.f32.mrf.mxu0
  %v3272 = vadd.f32 0.0, %v3271
  %v3273 = vpop.f32.mrf.mxu0
  %v3274 = vadd.f32 0.0, %v3273
  %3275 = vmatprep.mubr.f32.mxu0 0.0
  %3276 = vmatmul.mubr.f32.gmra.mxu0 %v230
  %v3277 = vpop.f32.mrf.mxu0
  %v3278 = vadd.f32 0.0, %v3277
  %v3279 = vpop.f32.mrf.mxu0
  %v3280 = vadd.f32 0.0, %v3279
  %3281 = vdwg.mxu0
  %v3282 = vmax.f32 %v299, 0.0
  %v3283 = vmax.f32 %v301, 0.0
  %v3284 = vmax.f32 %v604, 0.0
  %v3285 = vmax.f32 %v606, 0.0
  %v3286 = vmax.f32 %v909, 0.0
  %v3287 = vmax.f32 %v911, 0.0
  %v3288 = vmax.f32 %v1214, 0.0
  %v3289 = vmax.f32 %v1216, 0.0
  %v3290 = vmax.f32 %v1519, 0.0
  %v3291 = vmax.f32 %v1521, 0.0
  %v3292 = vmax.f32 %v1824, 0.0
  %v3293 = vmax.f32 %v1826, 0.0
  %v3294 = vmax.f32 %v2129, 0.0
  %v3295 = vmax.f32 %v2131, 0.0
  %v3296 = vmax.f32 %v2434, 0.0
  %v3297 = vmax.f32 %v2436, 0.0
  %v3298 = vmax.f32 %v2739, 0.0
  %v3299 = vmax.f32 %v2741, 0.0
  %v3300 = vmax.f32 %v3044, 0.0
  %v3301 = vmax.f32 %v3046, 0.0
  %v3302 = vmax.f32 %v305, 0.0
  %v3303 = vmax.f32 %v307, 0.0
  %v3304 = vmax.f32 %v610, 0.0
  %v3305 = vmax.f32 %v612, 0.0
  %v3306 = vmax.f32 %v915, 0.0
  %v3307 = vmax.f32 %v917, 0.0
  %v3308 = vmax.f32 %v1220, 0.0
  %v3309 = vmax.f32 %v1222, 0.0
  %v3310 = vmax.f32 %v1525, 0.0
  %v3311 = vmax.f32 %v1527, 0.0
  %v3312 = vmax.f32 %v1830, 0.0
  %v3313 = vmax.f32 %v1832, 0.0
  %v3314 = vmax.f32 %v2135, 0.0
  %v3315 = vmax.f32 %v2137, 0.0
  %v3316 = vmax.f32 %v2440, 0.0
  %v3317 = vmax.f32 %v2442, 0.0
  %v3318 = vmax.f32 %v2745, 0.0
  %v3319 = vmax.f32 %v2747, 0.0
  %v3320 = vmax.f32 %v3050, 0.0
  %v3321 = vmax.f32 %v3052, 0.0
  %v3322 = vmax.f32 %v311, 0.0
  %v3323 = vmax.f32 %v313, 0.0
  %v3324 = vmax.f32 %v616, 0.0
  %v3325 = vmax.f32 %v618, 0.0
  %v3326 = vmax.f32 %v921, 0.0
  %v3327 = vmax.f32 %v923, 0.0
  %v3328 = vmax.f32 %v1226, 0.0
  %v3329 = vmax.f32 %v1228, 0.0
  %v3330 = vmax.f32 %v1531, 0.0
  %v3331 = vmax.f32 %v1533, 0.0
  %v3332 = vmax.f32 %v1836, 0.0
  %v3333 = vmax.f32 %v1838, 0.0
  %v3334 = vmax.f32 %v2141, 0.0
  %v3335 = vmax.f32 %v2143, 0.0
  %v3336 = vmax.f32 %v2446, 0.0
  %v3337 = vmax.f32 %v2448, 0.0
  %v3338 = vmax.f32 %v2751, 0.0
  %v3339 = vmax.f32 %v2753, 0.0
  %v3340 = vmax.f32 %v3056, 0.0
  %v3341 = vmax.f32 %v3058, 0.0
  %v3342 = vmax.f32 %v317, 0.0
  %v3343 = vmax.f32 %v319, 0.0
  %v3344 = vmax.f32 %v622, 0.0
  %v3345 = vmax.f32 %v624, 0.0
  %v3346 = vmax.f32 %v927, 0.0
  %v3347 = vmax.f32 %v929, 0.0
  %v3348 = vmax.f32 %v1232, 0.0
  %v3349 = vmax.f32 %v1234, 0.0
  %v3350 = vmax.f32 %v1537, 0.0
  %v3351 = vmax.f32 %v1539, 0.0
  %v3352 = vmax.f32 %v1842, 0.0
  %v3353 = vmax.f32 %v1844, 0.0
  %v3354 = vmax.f32 %v2147, 0.0
  %v3355 = vmax.f32 %v2149, 0.0
  %v3356 = vmax.f32 %v2452, 0.0
  %v3357 = vmax.f32 %v2454, 0.0
  %v3358 = vmax.f32 %v2757, 0.0
  %v3359 = vmax.f32 %v2759, 0.0
  %v3360 = vmax.f32 %v3062, 0.0
  %v3361 = vmax.f32 %v3064, 0.0
  %v3362 = vmax.f32 %v323, 0.0
  %v3363 = vmax.f32 %v325, 0.0
  %v3364 = vmax.f32 %v628, 0.0
  %v3365 = vmax.f32 %v630, 0.0
  %v3366 = vmax.f32 %v933, 0.0
  %v3367 = vmax.f32 %v935, 0.0
  %v3368 = vmax.f32 %v1238, 0.0
  %v3369 = vmax.f32 %v1240, 0.0
  %v3370 = vmax.f32 %v1543, 0.0
  %v3371 = vmax.f32 %v1545, 0.0
  %v3372 = vmax.f32 %v1848, 0.0
  %v3373 = vmax.f32 %v1850, 0.0
  %v3374 = vmax.f32 %v2153, 0.0
  %v3375 = vmax.f32 %v2155, 0.0
  %v3376 = vmax.f32 %v2458, 0.0
  %v3377 = vmax.f32 %v2460, 0.0
  %v3378 = vmax.f32 %v2763, 0.0
  %v3379 = vmax.f32 %v2765, 0.0
  %v3380 = vmax.f32 %v3068, 0.0
  %v3381 = vmax.f32 %v3070, 0.0
  %v3382 = vmax.f32 %v329, 0.0
  %v3383 = vmax.f32 %v331, 0.0
  %v3384 = vmax.f32 %v634, 0.0
  %v3385 = vmax.f32 %v636, 0.0
  %v3386 = vmax.f32 %v939, 0.0
  %v3387 = vmax.f32 %v941, 0.0
  %v3388 = vmax.f32 %v1244, 0.0
  %v3389 = vmax.f32 %v1246, 0.0
  %v3390 = vmax.f32 %v1549, 0.0
  %v3391 = vmax.f32 %v1551, 0.0
  %v3392 = vmax.f32 %v1854, 0.0
  %v3393 = vmax.f32 %v1856, 0.0
  %v3394 = vmax.f32 %v2159, 0.0
  %v3395 = vmax.f32 %v2161, 0.0
  %v3396 = vmax.f32 %v2464, 0.0
  %v3397 = vmax.f32 %v2466, 0.0
  %v3398 = vmax.f32 %v2769, 0.0
  %v3399 = vmax.f32 %v2771, 0.0
  %v3400 = vmax.f32 %v3074, 0.0
  %v3401 = vmax.f32 %v3076, 0.0
  %v3402 = vmax.f32 %v335, 0.0
  %v3403 = vmax.f32 %v337, 0.0
  %v3404 = vmax.f32 %v640, 0.0
  %v3405 = vmax.f32 %v642, 0.0
  %v3406 = vmax.f32 %v945, 0.0
  %v3407 = vmax.f32 %v947, 0.0
  %v3408 = vmax.f32 %v1250, 0.0
  %v3409 = vmax.f32 %v1252, 0.0
  %v3410 = vmax.f32 %v1555, 0.0
  %v3411 = vmax.f32 %v1557, 0.0
  %v3412 = vmax.f32 %v1860, 0.0
  %v3413 = vmax.f32 %v1862, 0.0
  %v3414 = vmax.f32 %v2165, 0.0
  %v3415 = vmax.f32 %v2167, 0.0
  %v3416 = vmax.f32 %v2470, 0.0
  %v3417 = vmax.f32 %v2472, 0.0
  %v3418 = vmax.f32 %v2775, 0.0
  %v3419 = vmax.f32 %v2777, 0.0
  %v3420 = vmax.f32 %v3080, 0.0
  %v3421 = vmax.f32 %v3082, 0.0
  %v3422 = vmax.f32 %v341, 0.0
  %v3423 = vmax.f32 %v343, 0.0
  %v3424 = vmax.f32 %v646, 0.0
  %v3425 = vmax.f32 %v648, 0.0
  %v3426 = vmax.f32 %v951, 0.0
  %v3427 = vmax.f32 %v953, 0.0
  %v3428 = vmax.f32 %v1256, 0.0
  %v3429 = vmax.f32 %v1258, 0.0
  %v3430 = vmax.f32 %v1561, 0.0
  %v3431 = vmax.f32 %v1563, 0.0
  %v3432 = vmax.f32 %v1866, 0.0
  %v3433 = vmax.f32 %v1868, 0.0
  %v3434 = vmax.f32 %v2171, 0.0
  %v3435 = vmax.f32 %v2173, 0.0
  %v3436 = vmax.f32 %v2476, 0.0
  %v3437 = vmax.f32 %v2478, 0.0
  %v3438 = vmax.f32 %v2781, 0.0
  %v3439 = vmax.f32 %v2783, 0.0
  %v3440 = vmax.f32 %v3086, 0.0
  %v3441 = vmax.f32 %v3088, 0.0
  %v3442 = vmax.f32 %v347, 0.0
  %v3443 = vmax.f32 %v349, 0.0
  %v3444 = vmax.f32 %v652, 0.0
  %v3445 = vmax.f32 %v654, 0.0
  %v3446 = vmax.f32 %v957, 0.0
  %v3447 = vmax.f32 %v959, 0.0
  %v3448 = vmax.f32 %v1262, 0.0
  %v3449 = vmax.f32 %v1264, 0.0
  %v3450 = vmax.f32 %v1567, 0.0
  %v3451 = vmax.f32 %v1569, 0.0
  %v3452 = vmax.f32 %v1872, 0.0
  %v3453 = vmax.f32 %v1874, 0.0
  %v3454 = vmax.f32 %v2177, 0.0
  %v3455 = vmax.f32 %v2179, 0.0
  %v3456 = vmax.f32 %v2482, 0.0
  %v3457 = vmax.f32 %v2484, 0.0
  %v3458 = vmax.f32 %v2787, 0.0
  %v3459 = vmax.f32 %v2789, 0.0
  %v3460 = vmax.f32 %v3092, 0.0
  %v3461 = vmax.f32 %v3094, 0.0
  %v3462 = vmax.f32 %v353, 0.0
  %v3463 = vmax.f32 %v355, 0.0
  %v3464 = vmax.f32 %v658, 0.0
  %v3465 = vmax.f32 %v660, 0.0
  %v3466 = vmax.f32 %v963, 0.0
  %v3467 = vmax.f32 %v965, 0.0
  %v3468 = vmax.f32 %v1268, 0.0
  %v3469 = vmax.f32 %v1270, 0.0
  %v3470 = vmax.f32 %v1573, 0.0
  %v3471 = vmax.f32 %v1575, 0.0
  %v3472 = vmax.f32 %v1878, 0.0
  %v3473 = vmax.f32 %v1880, 0.0
  %v3474 = vmax.f32 %v2183, 0.0
  %v3475 = vmax.f32 %v2185, 0.0
  %v3476 = vmax.f32 %v2488, 0.0
  %v3477 = vmax.f32 %v2490, 0.0
  %v3478 = vmax.f32 %v2793, 0.0
  %v3479 = vmax.f32 %v2795, 0.0
  %v3480 = vmax.f32 %v3098, 0.0
  %v3481 = vmax.f32 %v3100, 0.0
  %v3482 = vmax.f32 %v359, 0.0
  %v3483 = vmax.f32 %v361, 0.0
  %v3484 = vmax.f32 %v664, 0.0
  %v3485 = vmax.f32 %v666, 0.0
  %v3486 = vmax.f32 %v969, 0.0
  %v3487 = vmax.f32 %v971, 0.0
  %v3488 = vmax.f32 %v1274, 0.0
  %v3489 = vmax.f32 %v1276, 0.0
  %v3490 = vmax.f32 %v1579, 0.0
  %v3491 = vmax.f32 %v1581, 0.0
  %v3492 = vmax.f32 %v1884, 0.0
  %v3493 = vmax.f32 %v1886, 0.0
  %v3494 = vmax.f32 %v2189, 0.0
  %v3495 = vmax.f32 %v2191, 0.0
  %v3496 = vmax.f32 %v2494, 0.0
  %v3497 = vmax.f32 %v2496, 0.0
  %v3498 = vmax.f32 %v2799, 0.0
  %v3499 = vmax.f32 %v2801, 0.0
  %v3500 = vmax.f32 %v3104, 0.0
  %v3501 = vmax.f32 %v3106, 0.0
  %v3502 = vmax.f32 %v365, 0.0
  %v3503 = vmax.f32 %v367, 0.0
  %v3504 = vmax.f32 %v670, 0.0
  %v3505 = vmax.f32 %v672, 0.0
  %v3506 = vmax.f32 %v975, 0.0
  %v3507 = vmax.f32 %v977, 0.0
  %v3508 = vmax.f32 %v1280, 0.0
  %v3509 = vmax.f32 %v1282, 0.0
  %v3510 = vmax.f32 %v1585, 0.0
  %v3511 = vmax.f32 %v1587, 0.0
  %v3512 = vmax.f32 %v1890, 0.0
  %v3513 = vmax.f32 %v1892, 0.0
  %v3514 = vmax.f32 %v2195, 0.0
  %v3515 = vmax.f32 %v2197, 0.0
  %v3516 = vmax.f32 %v2500, 0.0
  %v3517 = vmax.f32 %v2502, 0.0
  %v3518 = vmax.f32 %v2805, 0.0
  %v3519 = vmax.f32 %v2807, 0.0
  %v3520 = vmax.f32 %v3110, 0.0
  %v3521 = vmax.f32 %v3112, 0.0
  %v3522 = vmax.f32 %v371, 0.0
  %v3523 = vmax.f32 %v373, 0.0
  %v3524 = vmax.f32 %v676, 0.0
  %v3525 = vmax.f32 %v678, 0.0
  %v3526 = vmax.f32 %v981, 0.0
  %v3527 = vmax.f32 %v983, 0.0
  %v3528 = vmax.f32 %v1286, 0.0
  %v3529 = vmax.f32 %v1288, 0.0
  %v3530 = vmax.f32 %v1591, 0.0
  %v3531 = vmax.f32 %v1593, 0.0
  %v3532 = vmax.f32 %v1896, 0.0
  %v3533 = vmax.f32 %v1898, 0.0
  %v3534 = vmax.f32 %v2201, 0.0
  %v3535 = vmax.f32 %v2203, 0.0
  %v3536 = vmax.f32 %v2506, 0.0
  %v3537 = vmax.f32 %v2508, 0.0
  %v3538 = vmax.f32 %v2811, 0.0
  %v3539 = vmax.f32 %v2813, 0.0
  %v3540 = vmax.f32 %v3116, 0.0
  %v3541 = vmax.f32 %v3118, 0.0
  %v3542 = vmax.f32 %v377, 0.0
  %v3543 = vmax.f32 %v379, 0.0
  %v3544 = vmax.f32 %v682, 0.0
  %v3545 = vmax.f32 %v684, 0.0
  %v3546 = vmax.f32 %v987, 0.0
  %v3547 = vmax.f32 %v989, 0.0
  %v3548 = vmax.f32 %v1292, 0.0
  %v3549 = vmax.f32 %v1294, 0.0
  %v3550 = vmax.f32 %v1597, 0.0
  %v3551 = vmax.f32 %v1599, 0.0
  %v3552 = vmax.f32 %v1902, 0.0
  %v3553 = vmax.f32 %v1904, 0.0
  %v3554 = vmax.f32 %v2207, 0.0
  %v3555 = vmax.f32 %v2209, 0.0
  %v3556 = vmax.f32 %v2512, 0.0
  %v3557 = vmax.f32 %v2514, 0.0
  %v3558 = vmax.f32 %v2817, 0.0
  %v3559 = vmax.f32 %v2819, 0.0
  %v3560 = vmax.f32 %v3122, 0.0
  %v3561 = vmax.f32 %v3124, 0.0
  %v3562 = vmax.f32 %v383, 0.0
  %v3563 = vmax.f32 %v385, 0.0
  %v3564 = vmax.f32 %v688, 0.0
  %v3565 = vmax.f32 %v690, 0.0
  %v3566 = vmax.f32 %v993, 0.0
  %v3567 = vmax.f32 %v995, 0.0
  %v3568 = vmax.f32 %v1298, 0.0
  %v3569 = vmax.f32 %v1300, 0.0
  %v3570 = vmax.f32 %v1603, 0.0
  %v3571 = vmax.f32 %v1605, 0.0
  %v3572 = vmax.f32 %v1908, 0.0
  %v3573 = vmax.f32 %v1910, 0.0
  %v3574 = vmax.f32 %v2213, 0.0
  %v3575 = vmax.f32 %v2215, 0.0
  %v3576 = vmax.f32 %v2518, 0.0
  %v3577 = vmax.f32 %v2520, 0.0
  %v3578 = vmax.f32 %v2823, 0.0
  %v3579 = vmax.f32 %v2825, 0.0
  %v3580 = vmax.f32 %v3128, 0.0
  %v3581 = vmax.f32 %v3130, 0.0
  %v3582 = vmax.f32 %v389, 0.0
  %v3583 = vmax.f32 %v391, 0.0
  %v3584 = vmax.f32 %v694, 0.0
  %v3585 = vmax.f32 %v696, 0.0
  %v3586 = vmax.f32 %v999, 0.0
  %v3587 = vmax.f32 %v1001, 0.0
  %v3588 = vmax.f32 %v1304, 0.0
  %v3589 = vmax.f32 %v1306, 0.0
  %v3590 = vmax.f32 %v1609, 0.0
  %v3591 = vmax.f32 %v1611, 0.0
  %v3592 = vmax.f32 %v1914, 0.0
  %v3593 = vmax.f32 %v1916, 0.0
  %v3594 = vmax.f32 %v2219, 0.0
  %v3595 = vmax.f32 %v2221, 0.0
  %v3596 = vmax.f32 %v2524, 0.0
  %v3597 = vmax.f32 %v2526, 0.0
  %v3598 = vmax.f32 %v2829, 0.0
  %v3599 = vmax.f32 %v2831, 0.0
  %v3600 = vmax.f32 %v3134, 0.0
  %v3601 = vmax.f32 %v3136, 0.0
  %v3602 = vmax.f32 %v395, 0.0
  %v3603 = vmax.f32 %v397, 0.0
  %v3604 = vmax.f32 %v700, 0.0
  %v3605 = vmax.f32 %v702, 0.0
  %v3606 = vmax.f32 %v1005, 0.0
  %v3607 = vmax.f32 %v1007, 0.0
  %v3608 = vmax.f32 %v1310, 0.0
  %v3609 = vmax.f32 %v1312, 0.0
  %v3610 = vmax.f32 %v1615, 0.0
  %v3611 = vmax.f32 %v1617, 0.0
  %v3612 = vmax.f32 %v1920, 0.0
  %v3613 = vmax.f32 %v1922, 0.0
  %v3614 = vmax.f32 %v2225, 0.0
  %v3615 = vmax.f32 %v2227, 0.0
  %v3616 = vmax.f32 %v2530, 0.0
  %v3617 = vmax.f32 %v2532, 0.0
  %v3618 = vmax.f32 %v2835, 0.0
  %v3619 = vmax.f32 %v2837, 0.0
  %v3620 = vmax.f32 %v3140, 0.0
  %v3621 = vmax.f32 %v3142, 0.0
  %v3622 = vmax.f32 %v401, 0.0
  %v3623 = vmax.f32 %v403, 0.0
  %v3624 = vmax.f32 %v706, 0.0
  %v3625 = vmax.f32 %v708, 0.0
  %v3626 = vmax.f32 %v1011, 0.0
  %v3627 = vmax.f32 %v1013, 0.0
  %v3628 = vmax.f32 %v1316, 0.0
  %v3629 = vmax.f32 %v1318, 0.0
  %v3630 = vmax.f32 %v1621, 0.0
  %v3631 = vmax.f32 %v1623, 0.0
  %v3632 = vmax.f32 %v1926, 0.0
  %v3633 = vmax.f32 %v1928, 0.0
  %v3634 = vmax.f32 %v2231, 0.0
  %v3635 = vmax.f32 %v2233, 0.0
  %v3636 = vmax.f32 %v2536, 0.0
  %v3637 = vmax.f32 %v2538, 0.0
  %v3638 = vmax.f32 %v2841, 0.0
  %v3639 = vmax.f32 %v2843, 0.0
  %v3640 = vmax.f32 %v3146, 0.0
  %v3641 = vmax.f32 %v3148, 0.0
  %v3642 = vmax.f32 %v407, 0.0
  %v3643 = vmax.f32 %v409, 0.0
  %v3644 = vmax.f32 %v712, 0.0
  %v3645 = vmax.f32 %v714, 0.0
  %v3646 = vmax.f32 %v1017, 0.0
  %v3647 = vmax.f32 %v1019, 0.0
  %v3648 = vmax.f32 %v1322, 0.0
  %v3649 = vmax.f32 %v1324, 0.0
  %v3650 = vmax.f32 %v1627, 0.0
  %v3651 = vmax.f32 %v1629, 0.0
  %v3652 = vmax.f32 %v1932, 0.0
  %v3653 = vmax.f32 %v1934, 0.0
  %v3654 = vmax.f32 %v2237, 0.0
  %v3655 = vmax.f32 %v2239, 0.0
  %v3656 = vmax.f32 %v2542, 0.0
  %v3657 = vmax.f32 %v2544, 0.0
  %v3658 = vmax.f32 %v2847, 0.0
  %v3659 = vmax.f32 %v2849, 0.0
  %v3660 = vmax.f32 %v3152, 0.0
  %v3661 = vmax.f32 %v3154, 0.0
  %v3662 = vmax.f32 %v413, 0.0
  %v3663 = vmax.f32 %v415, 0.0
  %v3664 = vmax.f32 %v718, 0.0
  %v3665 = vmax.f32 %v720, 0.0
  %v3666 = vmax.f32 %v1023, 0.0
  %v3667 = vmax.f32 %v1025, 0.0
  %v3668 = vmax.f32 %v1328, 0.0
  %v3669 = vmax.f32 %v1330, 0.0
  %v3670 = vmax.f32 %v1633, 0.0
  %v3671 = vmax.f32 %v1635, 0.0
  %v3672 = vmax.f32 %v1938, 0.0
  %v3673 = vmax.f32 %v1940, 0.0
  %v3674 = vmax.f32 %v2243, 0.0
  %v3675 = vmax.f32 %v2245, 0.0
  %v3676 = vmax.f32 %v2548, 0.0
  %v3677 = vmax.f32 %v2550, 0.0
  %v3678 = vmax.f32 %v2853, 0.0
  %v3679 = vmax.f32 %v2855, 0.0
  %v3680 = vmax.f32 %v3158, 0.0
  %v3681 = vmax.f32 %v3160, 0.0
  %v3682 = vmax.f32 %v419, 0.0
  %v3683 = vmax.f32 %v421, 0.0
  %v3684 = vmax.f32 %v724, 0.0
  %v3685 = vmax.f32 %v726, 0.0
  %v3686 = vmax.f32 %v1029, 0.0
  %v3687 = vmax.f32 %v1031, 0.0
  %v3688 = vmax.f32 %v1334, 0.0
  %v3689 = vmax.f32 %v1336, 0.0
  %v3690 = vmax.f32 %v1639, 0.0
  %v3691 = vmax.f32 %v1641, 0.0
  %v3692 = vmax.f32 %v1944, 0.0
  %v3693 = vmax.f32 %v1946, 0.0
  %v3694 = vmax.f32 %v2249, 0.0
  %v3695 = vmax.f32 %v2251, 0.0
  %v3696 = vmax.f32 %v2554, 0.0
  %v3697 = vmax.f32 %v2556, 0.0
  %v3698 = vmax.f32 %v2859, 0.0
  %v3699 = vmax.f32 %v2861, 0.0
  %v3700 = vmax.f32 %v3164, 0.0
  %v3701 = vmax.f32 %v3166, 0.0
  %v3702 = vmax.f32 %v425, 0.0
  %v3703 = vmax.f32 %v427, 0.0
  %v3704 = vmax.f32 %v730, 0.0
  %v3705 = vmax.f32 %v732, 0.0
  %v3706 = vmax.f32 %v1035, 0.0
  %v3707 = vmax.f32 %v1037, 0.0
  %v3708 = vmax.f32 %v1340, 0.0
  %v3709 = vmax.f32 %v1342, 0.0
  %v3710 = vmax.f32 %v1645, 0.0
  %v3711 = vmax.f32 %v1647, 0.0
  %v3712 = vmax.f32 %v1950, 0.0
  %v3713 = vmax.f32 %v1952, 0.0
  %v3714 = vmax.f32 %v2255, 0.0
  %v3715 = vmax.f32 %v2257, 0.0
  %v3716 = vmax.f32 %v2560, 0.0
  %v3717 = vmax.f32 %v2562, 0.0
  %v3718 = vmax.f32 %v2865, 0.0
  %v3719 = vmax.f32 %v2867, 0.0
  %v3720 = vmax.f32 %v3170, 0.0
  %v3721 = vmax.f32 %v3172, 0.0
  %v3722 = vmax.f32 %v431, 0.0
  %v3723 = vmax.f32 %v433, 0.0
  %v3724 = vmax.f32 %v736, 0.0
  %v3725 = vmax.f32 %v738, 0.0
  %v3726 = vmax.f32 %v1041, 0.0
  %v3727 = vmax.f32 %v1043, 0.0
  %v3728 = vmax.f32 %v1346, 0.0
  %v3729 = vmax.f32 %v1348, 0.0
  %v3730 = vmax.f32 %v1651, 0.0
  %v3731 = vmax.f32 %v1653, 0.0
  %v3732 = vmax.f32 %v1956, 0.0
  %v3733 = vmax.f32 %v1958, 0.0
  %v3734 = vmax.f32 %v2261, 0.0
  %v3735 = vmax.f32 %v2263, 0.0
  %v3736 = vmax.f32 %v2566, 0.0
  %v3737 = vmax.f32 %v2568, 0.0
  %v3738 = vmax.f32 %v2871, 0.0
  %v3739 = vmax.f32 %v2873, 0.0
  %v3740 = vmax.f32 %v3176, 0.0
  %v3741 = vmax.f32 %v3178, 0.0
  %v3742 = vmax.f32 %v437, 0.0
  %v3743 = vmax.f32 %v439, 0.0
  %v3744 = vmax.f32 %v742, 0.0
  %v3745 = vmax.f32 %v744, 0.0
  %v3746 = vmax.f32 %v1047, 0.0
  %v3747 = vmax.f32 %v1049, 0.0
  %v3748 = vmax.f32 %v1352, 0.0
  %v3749 = vmax.f32 %v1354, 0.0
  %v3750 = vmax.f32 %v1657, 0.0
  %v3751 = vmax.f32 %v1659, 0.0
  %v3752 = vmax.f32 %v1962, 0.0
  %v3753 = vmax.f32 %v1964, 0.0
  %v3754 = vmax.f32 %v2267, 0.0
  %v3755 = vmax.f32 %v2269, 0.0
  %v3756 = vmax.f32 %v2572, 0.0
  %v3757 = vmax.f32 %v2574, 0.0
  %v3758 = vmax.f32 %v2877, 0.0
  %v3759 = vmax.f32 %v2879, 0.0
  %v3760 = vmax.f32 %v3182, 0.0
  %v3761 = vmax.f32 %v3184, 0.0
  %v3762 = vmax.f32 %v443, 0.0
  %v3763 = vmax.f32 %v445, 0.0
  %v3764 = vmax.f32 %v748, 0.0
  %v3765 = vmax.f32 %v750, 0.0
  %v3766 = vmax.f32 %v1053, 0.0
  %v3767 = vmax.f32 %v1055, 0.0
  %v3768 = vmax.f32 %v1358, 0.0
  %v3769 = vmax.f32 %v1360, 0.0
  %v3770 = vmax.f32 %v1663, 0.0
  %v3771 = vmax.f32 %v1665, 0.0
  %v3772 = vmax.f32 %v1968, 0.0
  %v3773 = vmax.f32 %v1970, 0.0
  %v3774 = vmax.f32 %v2273, 0.0
  %v3775 = vmax.f32 %v2275, 0.0
  %v3776 = vmax.f32 %v2578, 0.0
  %v3777 = vmax.f32 %v2580, 0.0
  %v3778 = vmax.f32 %v2883, 0.0
  %v3779 = vmax.f32 %v2885, 0.0
  %v3780 = vmax.f32 %v3188, 0.0
  %v3781 = vmax.f32 %v3190, 0.0
  %v3782 = vmax.f32 %v449, 0.0
  %v3783 = vmax.f32 %v451, 0.0
  %v3784 = vmax.f32 %v754, 0.0
  %v3785 = vmax.f32 %v756, 0.0
  %v3786 = vmax.f32 %v1059, 0.0
  %v3787 = vmax.f32 %v1061, 0.0
  %v3788 = vmax.f32 %v1364, 0.0
  %v3789 = vmax.f32 %v1366, 0.0
  %v3790 = vmax.f32 %v1669, 0.0
  %v3791 = vmax.f32 %v1671, 0.0
  %v3792 = vmax.f32 %v1974, 0.0
  %v3793 = vmax.f32 %v1976, 0.0
  %v3794 = vmax.f32 %v2279, 0.0
  %v3795 = vmax.f32 %v2281, 0.0
  %v3796 = vmax.f32 %v2584, 0.0
  %v3797 = vmax.f32 %v2586, 0.0
  %v3798 = vmax.f32 %v2889, 0.0
  %v3799 = vmax.f32 %v2891, 0.0
  %v3800 = vmax.f32 %v3194, 0.0
  %v3801 = vmax.f32 %v3196, 0.0
  %v3802 = vmax.f32 %v455, 0.0
  %v3803 = vmax.f32 %v457, 0.0
  %v3804 = vmax.f32 %v760, 0.0
  %v3805 = vmax.f32 %v762, 0.0
  %v3806 = vmax.f32 %v1065, 0.0
  %v3807 = vmax.f32 %v1067, 0.0
  %v3808 = vmax.f32 %v1370, 0.0
  %v3809 = vmax.f32 %v1372, 0.0
  %v3810 = vmax.f32 %v1675, 0.0
  %v3811 = vmax.f32 %v1677, 0.0
  %v3812 = vmax.f32 %v1980, 0.0
  %v3813 = vmax.f32 %v1982, 0.0
  %v3814 = vmax.f32 %v2285, 0.0
  %v3815 = vmax.f32 %v2287, 0.0
  %v3816 = vmax.f32 %v2590, 0.0
  %v3817 = vmax.f32 %v2592, 0.0
  %v3818 = vmax.f32 %v2895, 0.0
  %v3819 = vmax.f32 %v2897, 0.0
  %v3820 = vmax.f32 %v3200, 0.0
  %v3821 = vmax.f32 %v3202, 0.0
  %v3822 = vmax.f32 %v461, 0.0
  %v3823 = vmax.f32 %v463, 0.0
  %v3824 = vmax.f32 %v766, 0.0
  %v3825 = vmax.f32 %v768, 0.0
  %v3826 = vmax.f32 %v1071, 0.0
  %v3827 = vmax.f32 %v1073, 0.0
  %v3828 = vmax.f32 %v1376, 0.0
  %v3829 = vmax.f32 %v1378, 0.0
  %v3830 = vmax.f32 %v1681, 0.0
  %v3831 = vmax.f32 %v1683, 0.0
  %v3832 = vmax.f32 %v1986, 0.0
  %v3833 = vmax.f32 %v1988, 0.0
  %v3834 = vmax.f32 %v2291, 0.0
  %v3835 = vmax.f32 %v2293, 0.0
  %v3836 = vmax.f32 %v2596, 0.0
  %v3837 = vmax.f32 %v2598, 0.0
  %v3838 = vmax.f32 %v2901, 0.0
  %v3839 = vmax.f32 %v2903, 0.0
  %v3840 = vmax.f32 %v3206, 0.0
  %v3841 = vmax.f32 %v3208, 0.0
  %v3842 = vmax.f32 %v467, 0.0
  %v3843 = vmax.f32 %v469, 0.0
  %v3844 = vmax.f32 %v772, 0.0
  %v3845 = vmax.f32 %v774, 0.0
  %v3846 = vmax.f32 %v1077, 0.0
  %v3847 = vmax.f32 %v1079, 0.0
  %v3848 = vmax.f32 %v1382, 0.0
  %v3849 = vmax.f32 %v1384, 0.0
  %v3850 = vmax.f32 %v1687, 0.0
  %v3851 = vmax.f32 %v1689, 0.0
  %v3852 = vmax.f32 %v1992, 0.0
  %v3853 = vmax.f32 %v1994, 0.0
  %v3854 = vmax.f32 %v2297, 0.0
  %v3855 = vmax.f32 %v2299, 0.0
  %v3856 = vmax.f32 %v2602, 0.0
  %v3857 = vmax.f32 %v2604, 0.0
  %v3858 = vmax.f32 %v2907, 0.0
  %v3859 = vmax.f32 %v2909, 0.0
  %v3860 = vmax.f32 %v3212, 0.0
  %v3861 = vmax.f32 %v3214, 0.0
  %v3862 = vmax.f32 %v473, 0.0
  %v3863 = vmax.f32 %v475, 0.0
  %v3864 = vmax.f32 %v778, 0.0
  %v3865 = vmax.f32 %v780, 0.0
  %v3866 = vmax.f32 %v1083, 0.0
  %v3867 = vmax.f32 %v1085, 0.0
  %v3868 = vmax.f32 %v1388, 0.0
  %v3869 = vmax.f32 %v1390, 0.0
  %v3870 = vmax.f32 %v1693, 0.0
  %v3871 = vmax.f32 %v1695, 0.0
  %v3872 = vmax.f32 %v1998, 0.0
  %v3873 = vmax.f32 %v2000, 0.0
  %v3874 = vmax.f32 %v2303, 0.0
  %v3875 = vmax.f32 %v2305, 0.0
  %v3876 = vmax.f32 %v2608, 0.0
  %v3877 = vmax.f32 %v2610, 0.0
  %v3878 = vmax.f32 %v2913, 0.0
  %v3879 = vmax.f32 %v2915, 0.0
  %v3880 = vmax.f32 %v3218, 0.0
  %v3881 = vmax.f32 %v3220, 0.0
  %v3882 = vmax.f32 %v479, 0.0
  %v3883 = vmax.f32 %v481, 0.0
  %v3884 = vmax.f32 %v784, 0.0
  %v3885 = vmax.f32 %v786, 0.0
  %v3886 = vmax.f32 %v1089, 0.0
  %v3887 = vmax.f32 %v1091, 0.0
  %v3888 = vmax.f32 %v1394, 0.0
  %v3889 = vmax.f32 %v1396, 0.0
  %v3890 = vmax.f32 %v1699, 0.0
  %v3891 = vmax.f32 %v1701, 0.0
  %v3892 = vmax.f32 %v2004, 0.0
  %v3893 = vmax.f32 %v2006, 0.0
  %v3894 = vmax.f32 %v2309, 0.0
  %v3895 = vmax.f32 %v2311, 0.0
  %v3896 = vmax.f32 %v2614, 0.0
  %v3897 = vmax.f32 %v2616, 0.0
  %v3898 = vmax.f32 %v2919, 0.0
  %v3899 = vmax.f32 %v2921, 0.0
  %v3900 = vmax.f32 %v3224, 0.0
  %v3901 = vmax.f32 %v3226, 0.0
  %v3902 = vmax.f32 %v485, 0.0
  %v3903 = vmax.f32 %v487, 0.0
  %v3904 = vmax.f32 %v790, 0.0
  %v3905 = vmax.f32 %v792, 0.0
  %v3906 = vmax.f32 %v1095, 0.0
  %v3907 = vmax.f32 %v1097, 0.0
  %v3908 = vmax.f32 %v1400, 0.0
  %v3909 = vmax.f32 %v1402, 0.0
  %v3910 = vmax.f32 %v1705, 0.0
  %v3911 = vmax.f32 %v1707, 0.0
  %v3912 = vmax.f32 %v2010, 0.0
  %v3913 = vmax.f32 %v2012, 0.0
  %v3914 = vmax.f32 %v2315, 0.0
  %v3915 = vmax.f32 %v2317, 0.0
  %v3916 = vmax.f32 %v2620, 0.0
  %v3917 = vmax.f32 %v2622, 0.0
  %v3918 = vmax.f32 %v2925, 0.0
  %v3919 = vmax.f32 %v2927, 0.0
  %v3920 = vmax.f32 %v3230, 0.0
  %v3921 = vmax.f32 %v3232, 0.0
  %v3922 = vmax.f32 %v491, 0.0
  %v3923 = vmax.f32 %v493, 0.0
  %v3924 = vmax.f32 %v796, 0.0
  %v3925 = vmax.f32 %v798, 0.0
  %v3926 = vmax.f32 %v1101, 0.0
  %v3927 = vmax.f32 %v1103, 0.0
  %v3928 = vmax.f32 %v1406, 0.0
  %v3929 = vmax.f32 %v1408, 0.0
  %v3930 = vmax.f32 %v1711, 0.0
  %v3931 = vmax.f32 %v1713, 0.0
  %v3932 = vmax.f32 %v2016, 0.0
  %v3933 = vmax.f32 %v2018, 0.0
  %v3934 = vmax.f32 %v2321, 0.0
  %v3935 = vmax.f32 %v2323, 0.0
  %v3936 = vmax.f32 %v2626, 0.0
  %v3937 = vmax.f32 %v2628, 0.0
  %v3938 = vmax.f32 %v2931, 0.0
  %v3939 = vmax.f32 %v2933, 0.0
  %v3940 = vmax.f32 %v3236, 0.0
  %v3941 = vmax.f32 %v3238, 0.0
  %v3942 = vmax.f32 %v497, 0.0
  %v3943 = vmax.f32 %v499, 0.0
  %v3944 = vmax.f32 %v802, 0.0
  %v3945 = vmax.f32 %v804, 0.0
  %v3946 = vmax.f32 %v1107, 0.0
  %v3947 = vmax.f32 %v1109, 0.0
  %v3948 = vmax.f32 %v1412, 0.0
  %v3949 = vmax.f32 %v1414, 0.0
  %v3950 = vmax.f32 %v1717, 0.0
  %v3951 = vmax.f32 %v1719, 0.0
  %v3952 = vmax.f32 %v2022, 0.0
  %v3953 = vmax.f32 %v2024, 0.0
  %v3954 = vmax.f32 %v2327, 0.0
  %v3955 = vmax.f32 %v2329, 0.0
  %v3956 = vmax.f32 %v2632, 0.0
  %v3957 = vmax.f32 %v2634, 0.0
  %v3958 = vmax.f32 %v2937, 0.0
  %v3959 = vmax.f32 %v2939, 0.0
  %v3960 = vmax.f32 %v3242, 0.0
  %v3961 = vmax.f32 %v3244, 0.0
  %v3962 = vmax.f32 %v503, 0.0
  %v3963 = vmax.f32 %v505, 0.0
  %v3964 = vmax.f32 %v808, 0.0
  %v3965 = vmax.f32 %v810, 0.0
  %v3966 = vmax.f32 %v1113, 0.0
  %v3967 = vmax.f32 %v1115, 0.0
  %v3968 = vmax.f32 %v1418, 0.0
  %v3969 = vmax.f32 %v1420, 0.0
  %v3970 = vmax.f32 %v1723, 0.0
  %v3971 = vmax.f32 %v1725, 0.0
  %v3972 = vmax.f32 %v2028, 0.0
  %v3973 = vmax.f32 %v2030, 0.0
  %v3974 = vmax.f32 %v2333, 0.0
  %v3975 = vmax.f32 %v2335, 0.0
  %v3976 = vmax.f32 %v2638, 0.0
  %v3977 = vmax.f32 %v2640, 0.0
  %v3978 = vmax.f32 %v2943, 0.0
  %v3979 = vmax.f32 %v2945, 0.0
  %v3980 = vmax.f32 %v3248, 0.0
  %v3981 = vmax.f32 %v3250, 0.0
  %v3982 = vmax.f32 %v509, 0.0
  %v3983 = vmax.f32 %v511, 0.0
  %v3984 = vmax.f32 %v814, 0.0
  %v3985 = vmax.f32 %v816, 0.0
  %v3986 = vmax.f32 %v1119, 0.0
  %v3987 = vmax.f32 %v1121, 0.0
  %v3988 = vmax.f32 %v1424, 0.0
  %v3989 = vmax.f32 %v1426, 0.0
  %v3990 = vmax.f32 %v1729, 0.0
  %v3991 = vmax.f32 %v1731, 0.0
  %v3992 = vmax.f32 %v2034, 0.0
  %v3993 = vmax.f32 %v2036, 0.0
  %v3994 = vmax.f32 %v2339, 0.0
  %v3995 = vmax.f32 %v2341, 0.0
  %v3996 = vmax.f32 %v2644, 0.0
  %v3997 = vmax.f32 %v2646, 0.0
  %v3998 = vmax.f32 %v2949, 0.0
  %v3999 = vmax.f32 %v2951, 0.0
  %v4000 = vmax.f32 %v3254, 0.0
  %v4001 = vmax.f32 %v3256, 0.0
  %v4002 = vmax.f32 %v515, 0.0
  %v4003 = vmax.f32 %v517, 0.0
  %v4004 = vmax.f32 %v820, 0.0
  %v4005 = vmax.f32 %v822, 0.0
  %v4006 = vmax.f32 %v1125, 0.0
  %v4007 = vmax.f32 %v1127, 0.0
  %v4008 = vmax.f32 %v1430, 0.0
  %v4009 = vmax.f32 %v1432, 0.0
  %v4010 = vmax.f32 %v1735, 0.0
  %v4011 = vmax.f32 %v1737, 0.0
  %v4012 = vmax.f32 %v2040, 0.0
  %v4013 = vmax.f32 %v2042, 0.0
  %v4014 = vmax.f32 %v2345, 0.0
  %v4015 = vmax.f32 %v2347, 0.0
  %v4016 = vmax.f32 %v2650, 0.0
  %v4017 = vmax.f32 %v2652, 0.0
  %v4018 = vmax.f32 %v2955, 0.0
  %v4019 = vmax.f32 %v2957, 0.0
  %v4020 = vmax.f32 %v3260, 0.0
  %v4021 = vmax.f32 %v3262, 0.0
  %v4022 = vmax.f32 %v521, 0.0
  %v4023 = vmax.f32 %v523, 0.0
  %v4024 = vmax.f32 %v826, 0.0
  %v4025 = vmax.f32 %v828, 0.0
  %v4026 = vmax.f32 %v1131, 0.0
  %v4027 = vmax.f32 %v1133, 0.0
  %v4028 = vmax.f32 %v1436, 0.0
  %v4029 = vmax.f32 %v1438, 0.0
  %v4030 = vmax.f32 %v1741, 0.0
  %v4031 = vmax.f32 %v1743, 0.0
  %v4032 = vmax.f32 %v2046, 0.0
  %v4033 = vmax.f32 %v2048, 0.0
  %v4034 = vmax.f32 %v2351, 0.0
  %v4035 = vmax.f32 %v2353, 0.0
  %v4036 = vmax.f32 %v2656, 0.0
  %v4037 = vmax.f32 %v2658, 0.0
  %v4038 = vmax.f32 %v2961, 0.0
  %v4039 = vmax.f32 %v2963, 0.0
  %v4040 = vmax.f32 %v3266, 0.0
  %v4041 = vmax.f32 %v3268, 0.0
  %v4042 = vmax.f32 %v527, 0.0
  %v4043 = vmax.f32 %v529, 0.0
  %v4044 = vmax.f32 %v832, 0.0
  %v4045 = vmax.f32 %v834, 0.0
  %v4046 = vmax.f32 %v1137, 0.0
  %v4047 = vmax.f32 %v1139, 0.0
  %v4048 = vmax.f32 %v1442, 0.0
  %v4049 = vmax.f32 %v1444, 0.0
  %v4050 = vmax.f32 %v1747, 0.0
  %v4051 = vmax.f32 %v1749, 0.0
  %v4052 = vmax.f32 %v2052, 0.0
  %v4053 = vmax.f32 %v2054, 0.0
  %v4054 = vmax.f32 %v2357, 0.0
  %v4055 = vmax.f32 %v2359, 0.0
  %v4056 = vmax.f32 %v2662, 0.0
  %v4057 = vmax.f32 %v2664, 0.0
  %v4058 = vmax.f32 %v2967, 0.0
  %v4059 = vmax.f32 %v2969, 0.0
  %v4060 = vmax.f32 %v3272, 0.0
  %v4061 = vmax.f32 %v3274, 0.0
  %v4062 = vmax.f32 %v533, 0.0
  %v4063 = vmax.f32 %v535, 0.0
  %v4064 = vmax.f32 %v838, 0.0
  %v4065 = vmax.f32 %v840, 0.0
  %v4066 = vmax.f32 %v1143, 0.0
  %v4067 = vmax.f32 %v1145, 0.0
  %v4068 = vmax.f32 %v1448, 0.0
  %v4069 = vmax.f32 %v1450, 0.0
  %v4070 = vmax.f32 %v1753, 0.0
  %v4071 = vmax.f32 %v1755, 0.0
  %v4072 = vmax.f32 %v2058, 0.0
  %v4073 = vmax.f32 %v2060, 0.0
  %v4074 = vmax.f32 %v2363, 0.0
  %v4075 = vmax.f32 %v2365, 0.0
  %v4076 = vmax.f32 %v2668, 0.0
  %v4077 = vmax.f32 %v2670, 0.0
  %v4078 = vmax.f32 %v2973, 0.0
  %v4079 = vmax.f32 %v2975, 0.0
  %v4080 = vmax.f32 %v3278, 0.0
  %v4081 = vmax.f32 %v3280, 0.0
  %v4082 = vld [vmem:[%s2] sm:$0xff]
  %v4083 = vld [vmem:[%s2 + $0x8] sm:$0xff]
  %v4084 = vld [vmem:[%s2 + $0x10] sm:$0xff]
  %v4085 = vld [vmem:[%s2 + $0x18] sm:$0xff]
  %v4086 = vld [vmem:[%s2 + $0x20] sm:$0xff]
  %v4087 = vld [vmem:[%s2 + $0x28] sm:$0xff]
  %v4088 = vld [vmem:[%s2 + $0x30] sm:$0xff]
  %v4089 = vld [vmem:[%s2 + $0x38] sm:$0xff]
  %v4090 = vld [vmem:[%s2 + $0x40] sm:$0xff]
  %v4091 = vld [vmem:[%s2 + $0x48] sm:$0xff]
  %v4092 = vld [vmem:[%s2 + $0x50] sm:$0xff]
  %v4093 = vld [vmem:[%s2 + $0x58] sm:$0xff]
  %v4094 = vld [vmem:[%s2 + $0x60] sm:$0xff]
  %v4095 = vld [vmem:[%s2 + $0x68] sm:$0xff]
  %v4096 = vld [vmem:[%s2 + $0x70] sm:$0xff]
  %v4097 = vld [vmem:[%s2 + $0x78] sm:$0xff]
  %v4098 = vld [vmem:[%s2 + $0x80] sm:$0xff]
  %v4099 = vld [vmem:[%s2 + $0x88] sm:$0xff]
  %v4100 = vld [vmem:[%s2 + $0x90] sm:$0xff]
  %v4101 = vld [vmem:[%s2 + $0x98] sm:$0xff]
  %v4102 = vld [vmem:[%s2 + $0xa0] sm:$0xff]
  %v4103 = vld [vmem:[%s2 + $0xa8] sm:$0xff]
  %v4104 = vld [vmem:[%s2 + $0xb0] sm:$0xff]
  %v4105 = vld [vmem:[%s2 + $0xb8] sm:$0xff]
  %v4106 = vld [vmem:[%s2 + $0xc0] sm:$0xff]
  %v4107 = vld [vmem:[%s2 + $0xc8] sm:$0xff]
  %v4108 = vld [vmem:[%s2 + $0xd0] sm:$0xff]
  %v4109 = vld [vmem:[%s2 + $0xd8] sm:$0xff]
  %v4110 = vld [vmem:[%s2 + $0xe0] sm:$0xff]
  %v4111 = vld [vmem:[%s2 + $0xe8] sm:$0xff]
  %v4112 = vld [vmem:[%s2 + $0xf0] sm:$0xff]
  %v4113 = vld [vmem:[%s2 + $0xf8] sm:$0xff]
  %v4114 = vld [vmem:[%s2 + $0x100] sm:$0xff]
  %v4115 = vld [vmem:[%s2 + $0x108] sm:$0xff]
  %v4116 = vld [vmem:[%s2 + $0x110] sm:$0xff]
  %v4117 = vld [vmem:[%s2 + $0x118] sm:$0xff]
  %v4118 = vld [vmem:[%s2 + $0x120] sm:$0xff]
  %v4119 = vld [vmem:[%s2 + $0x128] sm:$0xff]
  %v4120 = vld [vmem:[%s2 + $0x130] sm:$0xff]
  %v4121 = vld [vmem:[%s2 + $0x138] sm:$0xff]
  %v4122 = vld [vmem:[%s2 + $0x140] sm:$0xff]
  %v4123 = vld [vmem:[%s2 + $0x148] sm:$0xff]
  %v4124 = vld [vmem:[%s2 + $0x150] sm:$0xff]
  %v4125 = vld [vmem:[%s2 + $0x158] sm:$0xff]
  %v4126 = vld [vmem:[%s2 + $0x160] sm:$0xff]
  %v4127 = vld [vmem:[%s2 + $0x168] sm:$0xff]
  %v4128 = vld [vmem:[%s2 + $0x170] sm:$0xff]
  %v4129 = vld [vmem:[%s2 + $0x178] sm:$0xff]
  %v4130 = vld [vmem:[%s2 + $0x180] sm:$0xff]
  %v4131 = vld [vmem:[%s2 + $0x188] sm:$0xff]
  %v4132 = vld [vmem:[%s2 + $0x190] sm:$0xff]
  %v4133 = vld [vmem:[%s2 + $0x198] sm:$0xff]
  %v4134 = vld [vmem:[%s2 + $0x1a0] sm:$0xff]
  %v4135 = vld [vmem:[%s2 + $0x1a8] sm:$0xff]
  %v4136 = vld [vmem:[%s2 + $0x1b0] sm:$0xff]
  %v4137 = vld [vmem:[%s2 + $0x1b8] sm:$0xff]
  %v4138 = vld [vmem:[%s2 + $0x1c0] sm:$0xff]
  %v4139 = vld [vmem:[%s2 + $0x1c8] sm:$0xff]
  %v4140 = vld [vmem:[%s2 + $0x1d0] sm:$0xff]
  %v4141 = vld [vmem:[%s2 + $0x1d8] sm:$0xff]
  %v4142 = vld [vmem:[%s3] sm:$0xff]
  %v4143 = vld [vmem:[%s3 + $0x8] sm:$0xff]
  %v4144 = vld [vmem:[%s3 + $0x10] sm:$0xff]
  %v4145 = vld [vmem:[%s3 + $0x18] sm:$0xff]
  %v4146 = vld [vmem:[%s3 + $0x20] sm:$0xff]
  %v4147 = vld [vmem:[%s3 + $0x28] sm:$0xff]
  %v4148 = vld [vmem:[%s3 + $0x30] sm:$0xff]
  %v4149 = vld [vmem:[%s3 + $0x38] sm:$0xff]
  %v4150 = vld [vmem:[%s3 + $0x40] sm:$0xff]
  %v4151 = vld [vmem:[%s3 + $0x48] sm:$0xff]
  %v4152 = vld [vmem:[%s3 + $0x50] sm:$0xff]
  %v4153 = vld [vmem:[%s3 + $0x58] sm:$0xff]
  %v4154 = vld [vmem:[%s3 + $0x60] sm:$0xff]
  %v4155 = vld [vmem:[%s3 + $0x68] sm:$0xff]
  %v4156 = vld [vmem:[%s3 + $0x70] sm:$0xff]
  %v4157 = vld [vmem:[%s3 + $0x78] sm:$0xff]
  %v4158 = vld [vmem:[%s3 + $0x80] sm:$0xff]
  %v4159 = vld [vmem:[%s3 + $0x88] sm:$0xff]
  %v4160 = vld [vmem:[%s3 + $0x90] sm:$0xff]
  %v4161 = vld [vmem:[%s3 + $0x98] sm:$0xff]
  %4163 = vset.pattern.permute.xlu0 0
  %4164 = vperm.xlu0 %4163, %v4142
  %v4165 = vpop.permute.xlu0 %4164
  %4168 = vset.pattern.permute.xlu0 0
  %4169 = vperm.xlu0 %4168, %v4143
  %v4170 = vpop.permute.xlu0 %4169
  %4173 = vset.pattern.permute.xlu0 0
  %4174 = vperm.xlu0 %4173, %v4144
  %v4175 = vpop.permute.xlu0 %4174
  %4178 = vset.pattern.permute.xlu0 0
  %4179 = vperm.xlu0 %4178, %v4145
  %v4180 = vpop.permute.xlu0 %4179
  %4183 = vset.pattern.permute.xlu0 0
  %4184 = vperm.xlu0 %4183, %v4146
  %v4185 = vpop.permute.xlu0 %4184
  %4188 = vset.pattern.permute.xlu0 0
  %4189 = vperm.xlu0 %4188, %v4147
  %v4190 = vpop.permute.xlu0 %4189
  %4193 = vset.pattern.permute.xlu0 0
  %4194 = vperm.xlu0 %4193, %v4148
  %v4195 = vpop.permute.xlu0 %4194
  %4198 = vset.pattern.permute.xlu0 0
  %4199 = vperm.xlu0 %4198, %v4149
  %v4200 = vpop.permute.xlu0 %4199
  %4203 = vset.pattern.permute.xlu0 0
  %4204 = vperm.xlu0 %4203, %v4150
  %v4205 = vpop.permute.xlu0 %4204
  %4208 = vset.pattern.permute.xlu0 0
  %4209 = vperm.xlu0 %4208, %v4151
  %v4210 = vpop.permute.xlu0 %4209
  %4213 = vset.pattern.permute.xlu0 0
  %4214 = vperm.xlu0 %4213, %v4152
  %v4215 = vpop.permute.xlu0 %4214
  %4218 = vset.pattern.permute.xlu0 0
  %4219 = vperm.xlu0 %4218, %v4153
  %v4220 = vpop.permute.xlu0 %4219
  %4223 = vset.pattern.permute.xlu0 0
  %4224 = vperm.xlu0 %4223, %v4154
  %v4225 = vpop.permute.xlu0 %4224
  %4228 = vset.pattern.permute.xlu0 0
  %4229 = vperm.xlu0 %4228, %v4155
  %v4230 = vpop.permute.xlu0 %4229
  %4233 = vset.pattern.permute.xlu0 0
  %4234 = vperm.xlu0 %4233, %v4156
  %v4235 = vpop.permute.xlu0 %4234
  %4238 = vset.pattern.permute.xlu0 0
  %4239 = vperm.xlu0 %4238, %v4157
  %v4240 = vpop.permute.xlu0 %4239
  %4243 = vset.pattern.permute.xlu0 0
  %4244 = vperm.xlu0 %4243, %v4158
  %v4245 = vpop.permute.xlu0 %4244
  %4248 = vset.pattern.permute.xlu0 0
  %4249 = vperm.xlu0 %4248, %v4159
  %v4250 = vpop.permute.xlu0 %4249
  %4253 = vset.pattern.permute.xlu0 0
  %4254 = vperm.xlu0 %4253, %v4160
  %v4255 = vpop.permute.xlu0 %4254
  %4258 = vset.pattern.permute.xlu0 0
  %4259 = vperm.xlu0 %4258, %v4161
  %v4260 = vpop.permute.xlu0 %4259
  %vm4262 = vcmask 523264
  %v4264 = vsel %vm4262, %v4084, 0
  %v4267 = vsel %vm4262, %v4087, 0
  %v4270 = vsel %vm4262, %v4090, 0
  %v4273 = vsel %vm4262, %v4093, 0
  %v4276 = vsel %vm4262, %v4096, 0
  %v4279 = vsel %vm4262, %v4099, 0
  %v4282 = vsel %vm4262, %v4102, 0
  %v4285 = vsel %vm4262, %v4105, 0
  %v4288 = vsel %vm4262, %v4108, 0
  %v4291 = vsel %vm4262, %v4111, 0
  %v4294 = vsel %vm4262, %v4114, 0
  %v4297 = vsel %vm4262, %v4117, 0
  %v4300 = vsel %vm4262, %v4120, 0
  %v4303 = vsel %vm4262, %v4123, 0
  %v4306 = vsel %vm4262, %v4126, 0
  %v4309 = vsel %vm4262, %v4129, 0
  %v4312 = vsel %vm4262, %v4132, 0
  %v4315 = vsel %vm4262, %v4135, 0
  %v4318 = vsel %vm4262, %v4138, 0
  %v4321 = vsel %vm4262, %v4141, 0
  %4323 = vmatprep.subr.mxu0 %v3583
  %4324 = vmatpush1.msra.mxu0 %v3582
  %4325 = vmatprep.subr.mxu0 %v3563
  %4326 = vmatpush1.msra.mxu0 %v3562
  %4327 = vmatprep.subr.mxu0 %v3543
  %4328 = vmatpush1.msra.mxu0 %v3542
  %4329 = vmatprep.subr.mxu0 %v3523
  %4330 = vmatpush1.msra.mxu0 %v3522
  %4331 = vmatprep.subr.mxu0 %v3503
  %4332 = vmatpush1.msra.mxu0 %v3502
  %4333 = vmatprep.subr.mxu0 %v3483
  %4334 = vmatpush1.msra.mxu0 %v3482
  %4335 = vmatprep.subr.mxu0 %v3463
  %4336 = vmatpush1.msra.mxu0 %v3462
  %4337 = vmatprep.subr.mxu0 %v3443
  %4338 = vmatpush1.msra.mxu0 %v3442
  %4339 = vmatprep.subr.mxu0 %v3423
  %4340 = vmatpush1.msra.mxu0 %v3422
  %4341 = vmatprep.subr.mxu0 %v3403
  %4342 = vmatpush1.msra.mxu0 %v3402
  %4343 = vmatprep.subr.mxu0 %v3383
  %4344 = vmatpush1.msra.mxu0 %v3382
  %4345 = vmatprep.subr.mxu0 %v3363
  %4346 = vmatpush1.msra.mxu0 %v3362
  %4347 = vmatprep.subr.mxu0 %v3343
  %4348 = vmatpush1.msra.mxu0 %v3342
  %4349 = vmatprep.subr.mxu0 %v3323
  %4350 = vmatpush1.msra.mxu0 %v3322
  %4351 = vmatprep.subr.mxu0 %v3303
  %4352 = vmatpush1.msra.mxu0 %v3302
  %4353 = vmatprep.subr.mxu0 %v3283
  %4354 = vmatpush1.msra.mxu0 %v3282
  %4355 = vmatprep.subr.mxu0 %v3903
  %4356 = vmatpush2.msra.mxu0 %v3902
  %4357 = vmatprep.subr.mxu0 %v3883
  %4358 = vmatpush2.msra.mxu0 %v3882
  %4359 = vmatprep.subr.mxu0 %v3863
  %4360 = vmatpush2.msra.mxu0 %v3862
  %4361 = vmatprep.subr.mxu0 %v3843
  %4362 = vmatpush2.msra.mxu0 %v3842
  %4363 = vmatprep.subr.mxu0 %v3823
  %4364 = vmatpush2.msra.mxu0 %v3822
  %4365 = vmatprep.subr.mxu0 %v3803
  %4366 = vmatpush2.msra.mxu0 %v3802
  %4367 = vmatprep.subr.mxu0 %v3783
  %4368 = vmatpush2.msra.mxu0 %v3782
  %4369 = vmatprep.subr.mxu0 %v3763
  %4370 = vmatpush2.msra.mxu0 %v3762
  %4371 = vmatprep.subr.mxu0 %v3743
  %4372 = vmatpush2.msra.mxu0 %v3742
  %4373 = vmatprep.subr.mxu0 %v3723
  %4374 = vmatpush2.msra.mxu0 %v3722
  %4375 = vmatprep.subr.mxu0 %v3703
  %4376 = vmatpush2.msra.mxu0 %v3702
  %4377 = vmatprep.subr.mxu0 %v3683
  %4378 = vmatpush2.msra.mxu0 %v3682
  %4379 = vmatprep.subr.mxu0 %v3663
  %4380 = vmatpush2.msra.mxu0 %v3662
  %4381 = vmatprep.subr.mxu0 %v3643
  %4382 = vmatpush2.msra.mxu0 %v3642
  %4383 = vmatprep.subr.mxu0 %v3623
  %4384 = vmatpush2.msra.mxu0 %v3622
  %4385 = vmatprep.subr.mxu0 %v3603
  %4386 = vmatpush2.msra.mxu0 %v3602
  %4387 = vmatprep.mubr.f32.mxu0 %v4083
  %4388 = vmatmul.mubr.f32.gmra.mxu0 %v4082
  %v4389 = vpop.f32.mrf.mxu0
  %v4390 = vadd.f32 %v4165, %v4389
  %v4391 = vpop.f32.mrf.mxu0
  %v4392 = vadd.f32 %v4165, %v4391
  %4393 = vmatprep.mubr.f32.mxu0 %v4086
  %4394 = vmatmul.mubr.f32.gmra.mxu0 %v4085
  %v4395 = vpop.f32.mrf.mxu0
  %v4396 = vadd.f32 %v4170, %v4395
  %v4397 = vpop.f32.mrf.mxu0
  %v4398 = vadd.f32 %v4170, %v4397
  %4399 = vmatprep.mubr.f32.mxu0 %v4089
  %4400 = vmatmul.mubr.f32.gmra.mxu0 %v4088
  %v4401 = vpop.f32.mrf.mxu0
  %v4402 = vadd.f32 %v4175, %v4401
  %v4403 = vpop.f32.mrf.mxu0
  %v4404 = vadd.f32 %v4175, %v4403
  %4405 = vmatprep.mubr.f32.mxu0 %v4092
  %4406 = vmatmul.mubr.f32.gmra.mxu0 %v4091
  %v4407 = vpop.f32.mrf.mxu0
  %v4408 = vadd.f32 %v4180, %v4407
  %v4409 = vpop.f32.mrf.mxu0
  %v4410 = vadd.f32 %v4180, %v4409
  %4411 = vmatprep.mubr.f32.mxu0 %v4095
  %4412 = vmatmul.mubr.f32.gmra.mxu0 %v4094
  %v4413 = vpop.f32.mrf.mxu0
  %v4414 = vadd.f32 %v4185, %v4413
  %v4415 = vpop.f32.mrf.mxu0
  %v4416 = vadd.f32 %v4185, %v4415
  %4417 = vmatprep.mubr.f32.mxu0 %v4098
  %4418 = vmatmul.mubr.f32.gmra.mxu0 %v4097
  %v4419 = vpop.f32.mrf.mxu0
  %v4420 = vadd.f32 %v4190, %v4419
  %v4421 = vpop.f32.mrf.mxu0
  %v4422 = vadd.f32 %v4190, %v4421
  %4423 = vmatprep.mubr.f32.mxu0 %v4101
  %4424 = vmatmul.mubr.f32.gmra.mxu0 %v4100
  %v4425 = vpop.f32.mrf.mxu0
  %v4426 = vadd.f32 %v4195, %v4425
  %v4427 = vpop.f32.mrf.mxu0
  %v4428 = vadd.f32 %v4195, %v4427
  %4429 = vmatprep.mubr.f32.mxu0 %v4104
  %4430 = vmatmul.mubr.f32.gmra.mxu0 %v4103
  %v4431 = vpop.f32.mrf.mxu0
  %v4432 = vadd.f32 %v4200, %v4431
  %v4433 = vpop.f32.mrf.mxu0
  %v4434 = vadd.f32 %v4200, %v4433
  %4435 = vmatprep.mubr.f32.mxu0 %v4107
  %4436 = vmatmul.mubr.f32.gmra.mxu0 %v4106
  %v4437 = vpop.f32.mrf.mxu0
  %v4438 = vadd.f32 %v4205, %v4437
  %v4439 = vpop.f32.mrf.mxu0
  %v4440 = vadd.f32 %v4205, %v4439
  %4441 = vmatprep.mubr.f32.mxu0 %v4110
  %4442 = vmatmul.mubr.f32.gmra.mxu0 %v4109
  %v4443 = vpop.f32.mrf.mxu0
  %v4444 = vadd.f32 %v4210, %v4443
  %v4445 = vpop.f32.mrf.mxu0
  %v4446 = vadd.f32 %v4210, %v4445
  %4447 = vmatprep.mubr.f32.mxu0 %v4113
  %4448 = vmatmul.mubr.f32.gmra.mxu0 %v4112
  %v4449 = vpop.f32.mrf.mxu0
  %v4450 = vadd.f32 %v4215, %v4449
  %v4451 = vpop.f32.mrf.mxu0
  %v4452 = vadd.f32 %v4215, %v4451
  %4453 = vmatprep.mubr.f32.mxu0 %v4116
  %4454 = vmatmul.mubr.f32.gmra.mxu0 %v4115
  %v4455 = vpop.f32.mrf.mxu0
  %v4456 = vadd.f32 %v4220, %v4455
  %v4457 = vpop.f32.mrf.mxu0
  %v4458 = vadd.f32 %v4220, %v4457
  %4459 = vmatprep.mubr.f32.mxu0 %v4119
  %4460 = vmatmul.mubr.f32.gmra.mxu0 %v4118
  %v4461 = vpop.f32.mrf.mxu0
  %v4462 = vadd.f32 %v4225, %v4461
  %v4463 = vpop.f32.mrf.mxu0
  %v4464 = vadd.f32 %v4225, %v4463
  %4465 = vmatprep.mubr.f32.mxu0 %v4122
  %4466 = vmatmul.mubr.f32.gmra.mxu0 %v4121
  %v4467 = vpop.f32.mrf.mxu0
  %v4468 = vadd.f32 %v4230, %v4467
  %v4469 = vpop.f32.mrf.mxu0
  %v4470 = vadd.f32 %v4230, %v4469
  %4471 = vmatprep.mubr.f32.mxu0 %v4125
  %4472 = vmatmul.mubr.f32.gmra.mxu0 %v4124
  %v4473 = vpop.f32.mrf.mxu0
  %v4474 = vadd.f32 %v4235, %v4473
  %v4475 = vpop.f32.mrf.mxu0
  %v4476 = vadd.f32 %v4235, %v4475
  %4477 = vmatprep.mubr.f32.mxu0 %v4128
  %4478 = vmatmul.mubr.f32.gmra.mxu0 %v4127
  %v4479 = vpop.f32.mrf.mxu0
  %v4480 = vadd.f32 %v4240, %v4479
  %v4481 = vpop.f32.mrf.mxu0
  %v4482 = vadd.f32 %v4240, %v4481
  %4483 = vmatprep.mubr.f32.mxu0 %v4131
  %4484 = vmatmul.mubr.f32.gmra.mxu0 %v4130
  %v4485 = vpop.f32.mrf.mxu0
  %v4486 = vadd.f32 %v4245, %v4485
  %v4487 = vpop.f32.mrf.mxu0
  %v4488 = vadd.f32 %v4245, %v4487
  %4489 = vmatprep.mubr.f32.mxu0 %v4134
  %4490 = vmatmul.mubr.f32.gmra.mxu0 %v4133
  %v4491 = vpop.f32.mrf.mxu0
  %v4492 = vadd.f32 %v4250, %v4491
  %v4493 = vpop.f32.mrf.mxu0
  %v4494 = vadd.f32 %v4250, %v4493
  %4495 = vmatprep.mubr.f32.mxu0 %v4137
  %4496 = vmatmul.mubr.f32.gmra.mxu0 %v4136
  %v4497 = vpop.f32.mrf.mxu0
  %v4498 = vadd.f32 %v4255, %v4497
  %v4499 = vpop.f32.mrf.mxu0
  %v4500 = vadd.f32 %v4255, %v4499
  %4501 = vmatprep.mubr.f32.mxu0 %v4140
  %4502 = vmatmul.mubr.f32.gmra.mxu0 %v4139
  %v4503 = vpop.f32.mrf.mxu0
  %v4504 = vadd.f32 %v4260, %v4503
  %v4505 = vpop.f32.mrf.mxu0
  %v4506 = vadd.f32 %v4260, %v4505
  %4507 = vdwg.mxu0
  %4508 = vmatprep.subr.mxu0 0.0
  %4509 = vmatpush1.msra.mxu0 0.0
  %4510 = vmatprep.subr.mxu0 0.0
  %4511 = vmatpush1.msra.mxu0 0.0
  %4512 = vmatprep.subr.mxu0 0.0
  %4513 = vmatpush1.msra.mxu0 0.0
  %4514 = vmatprep.subr.mxu0 0.0
  %4515 = vmatpush1.msra.mxu0 0.0
  %4516 = vmatprep.subr.mxu0 0.0
  %4517 = vmatpush1.msra.mxu0 0.0
  %4518 = vmatprep.subr.mxu0 0.0
  %4519 = vmatpush1.msra.mxu0 0.0
  %4520 = vmatprep.subr.mxu0 0.0
  %4521 = vmatpush1.msra.mxu0 0.0
  %4522 = vmatprep.subr.mxu0 0.0
  %4523 = vmatpush1.msra.mxu0 0.0
  %4524 = vmatprep.subr.mxu0 %v4063
  %4525 = vmatpush1.msra.mxu0 %v4062
  %4526 = vmatprep.subr.mxu0 %v4043
  %4527 = vmatpush1.msra.mxu0 %v4042
  %4528 = vmatprep.subr.mxu0 %v4023
  %4529 = vmatpush1.msra.mxu0 %v4022
  %4530 = vmatprep.subr.mxu0 %v4003
  %4531 = vmatpush1.msra.mxu0 %v4002
  %4532 = vmatprep.subr.mxu0 %v3983
  %4533 = vmatpush1.msra.mxu0 %v3982
  %4534 = vmatprep.subr.mxu0 %v3963
  %4535 = vmatpush1.msra.mxu0 %v3962
  %4536 = vmatprep.subr.mxu0 %v3943
  %4537 = vmatpush1.msra.mxu0 %v3942
  %4538 = vmatprep.subr.mxu0 %v3923
  %4539 = vmatpush1.msra.mxu0 %v3922
  %4540 = vmatprep.subr.mxu0 0.0
  %4541 = vmatpush2.msra.mxu0 0.0
  %4542 = vmatprep.subr.mxu0 0.0
  %4543 = vmatpush2.msra.mxu0 0.0
  %4544 = vmatprep.subr.mxu0 0.0
  %4545 = vmatpush2.msra.mxu0 0.0
  %4546 = vmatprep.subr.mxu0 0.0
  %4547 = vmatpush2.msra.mxu0 0.0
  %4548 = vmatprep.subr.mxu0 0.0
  %4549 = vmatpush2.msra.mxu0 0.0
  %4550 = vmatprep.subr.mxu0 0.0
  %4551 = vmatpush2.msra.mxu0 0.0
  %4552 = vmatprep.subr.mxu0 0.0
  %4553 = vmatpush2.msra.mxu0 0.0
  %4554 = vmatprep.subr.mxu0 0.0
  %4555 = vmatpush2.msra.mxu0 0.0
  %4556 = vmatprep.subr.mxu0 0.0
  %4557 = vmatpush2.msra.mxu0 0.0
  %4558 = vmatprep.subr.mxu0 0.0
  %4559 = vmatpush2.msra.mxu0 0.0
  %4560 = vmatprep.subr.mxu0 0.0
  %4561 = vmatpush2.msra.mxu0 0.0
  %4562 = vmatprep.subr.mxu0 0.0
  %4563 = vmatpush2.msra.mxu0 0.0
  %4564 = vmatprep.subr.mxu0 0.0
  %4565 = vmatpush2.msra.mxu0 0.0
  %4566 = vmatprep.subr.mxu0 0.0
  %4567 = vmatpush2.msra.mxu0 0.0
  %4568 = vmatprep.subr.mxu0 0.0
  %4569 = vmatpush2.msra.mxu0 0.0
  %4570 = vmatprep.subr.mxu0 0.0
  %4571 = vmatpush2.msra.mxu0 0.0
  %4572 = vmatprep.mubr.f32.mxu0 0.0
  %4573 = vmatmul.mubr.f32.gmra.mxu0 %v4264
  %v4574 = vpop.f32.mrf.mxu0
  %v4575 = vadd.f32 %v4390, %v4574
  %v4576 = vpop.f32.mrf.mxu0
  %v4577 = vadd.f32 %v4392, %v4576
  %4578 = vmatprep.mubr.f32.mxu0 0.0
  %4579 = vmatmul.mubr.f32.gmra.mxu0 %v4267
  %v4580 = vpop.f32.mrf.mxu0
  %v4581 = vadd.f32 %v4396, %v4580
  %v4582 = vpop.f32.mrf.mxu0
  %v4583 = vadd.f32 %v4398, %v4582
  %4584 = vmatprep.mubr.f32.mxu0 0.0
  %4585 = vmatmul.mubr.f32.gmra.mxu0 %v4270
  %v4586 = vpop.f32.mrf.mxu0
  %v4587 = vadd.f32 %v4402, %v4586
  %v4588 = vpop.f32.mrf.mxu0
  %v4589 = vadd.f32 %v4404, %v4588
  %4590 = vmatprep.mubr.f32.mxu0 0.0
  %4591 = vmatmul.mubr.f32.gmra.mxu0 %v4273
  %v4592 = vpop.f32.mrf.mxu0
  %v4593 = vadd.f32 %v4408, %v4592
  %v4594 = vpop.f32.mrf.mxu0
  %v4595 = vadd.f32 %v4410, %v4594
  %4596 = vmatprep.mubr.f32.mxu0 0.0
  %4597 = vmatmul.mubr.f32.gmra.mxu0 %v4276
  %v4598 = vpop.f32.mrf.mxu0
  %v4599 = vadd.f32 %v4414, %v4598
  %v4600 = vpop.f32.mrf.mxu0
  %v4601 = vadd.f32 %v4416, %v4600
  %4602 = vmatprep.mubr.f32.mxu0 0.0
  %4603 = vmatmul.mubr.f32.gmra.mxu0 %v4279
  %v4604 = vpop.f32.mrf.mxu0
  %v4605 = vadd.f32 %v4420, %v4604
  %v4606 = vpop.f32.mrf.mxu0
  %v4607 = vadd.f32 %v4422, %v4606
  %4608 = vmatprep.mubr.f32.mxu0 0.0
  %4609 = vmatmul.mubr.f32.gmra.mxu0 %v4282
  %v4610 = vpop.f32.mrf.mxu0
  %v4611 = vadd.f32 %v4426, %v4610
  %v4612 = vpop.f32.mrf.mxu0
  %v4613 = vadd.f32 %v4428, %v4612
  %4614 = vmatprep.mubr.f32.mxu0 0.0
  %4615 = vmatmul.mubr.f32.gmra.mxu0 %v4285
  %v4616 = vpop.f32.mrf.mxu0
  %v4617 = vadd.f32 %v4432, %v4616
  %v4618 = vpop.f32.mrf.mxu0
  %v4619 = vadd.f32 %v4434, %v4618
  %4620 = vmatprep.mubr.f32.mxu0 0.0
  %4621 = vmatmul.mubr.f32.gmra.mxu0 %v4288
  %v4622 = vpop.f32.mrf.mxu0
  %v4623 = vadd.f32 %v4438, %v4622
  %v4624 = vpop.f32.mrf.mxu0
  %v4625 = vadd.f32 %v4440, %v4624
  %4626 = vmatprep.mubr.f32.mxu0 0.0
  %4627 = vmatmul.mubr.f32.gmra.mxu0 %v4291
  %v4628 = vpop.f32.mrf.mxu0
  %v4629 = vadd.f32 %v4444, %v4628
  %v4630 = vpop.f32.mrf.mxu0
  %v4631 = vadd.f32 %v4446, %v4630
  %4632 = vmatprep.mubr.f32.mxu0 0.0
  %4633 = vmatmul.mubr.f32.gmra.mxu0 %v4294
  %v4634 = vpop.f32.mrf.mxu0
  %v4635 = vadd.f32 %v4450, %v4634
  %v4636 = vpop.f32.mrf.mxu0
  %v4637 = vadd.f32 %v4452, %v4636
  %4638 = vmatprep.mubr.f32.mxu0 0.0
  %4639 = vmatmul.mubr.f32.gmra.mxu0 %v4297
  %v4640 = vpop.f32.mrf.mxu0
  %v4641 = vadd.f32 %v4456, %v4640
  %v4642 = vpop.f32.mrf.mxu0
  %v4643 = vadd.f32 %v4458, %v4642
  %4644 = vmatprep.mubr.f32.mxu0 0.0
  %4645 = vmatmul.mubr.f32.gmra.mxu0 %v4300
  %v4646 = vpop.f32.mrf.mxu0
  %v4647 = vadd.f32 %v4462, %v4646
  %v4648 = vpop.f32.mrf.mxu0
  %v4649 = vadd.f32 %v4464, %v4648
  %4650 = vmatprep.mubr.f32.mxu0 0.0
  %4651 = vmatmul.mubr.f32.gmra.mxu0 %v4303
  %v4652 = vpop.f32.mrf.mxu0
  %v4653 = vadd.f32 %v4468, %v4652
  %v4654 = vpop.f32.mrf.mxu0
  %v4655 = vadd.f32 %v4470, %v4654
  %4656 = vmatprep.mubr.f32.mxu0 0.0
  %4657 = vmatmul.mubr.f32.gmra.mxu0 %v4306
  %v4658 = vpop.f32.mrf.mxu0
  %v4659 = vadd.f32 %v4474, %v4658
  %v4660 = vpop.f32.mrf.mxu0
  %v4661 = vadd.f32 %v4476, %v4660
  %4662 = vmatprep.mubr.f32.mxu0 0.0
  %4663 = vmatmul.mubr.f32.gmra.mxu0 %v4309
  %v4664 = vpop.f32.mrf.mxu0
  %v4665 = vadd.f32 %v4480, %v4664
  %v4666 = vpop.f32.mrf.mxu0
  %v4667 = vadd.f32 %v4482, %v4666
  %4668 = vmatprep.mubr.f32.mxu0 0.0
  %4669 = vmatmul.mubr.f32.gmra.mxu0 %v4312
  %v4670 = vpop.f32.mrf.mxu0
  %v4671 = vadd.f32 %v4486, %v4670
  %v4672 = vpop.f32.mrf.mxu0
  %v4673 = vadd.f32 %v4488, %v4672
  %4674 = vmatprep.mubr.f32.mxu0 0.0
  %4675 = vmatmul.mubr.f32.gmra.mxu0 %v4315
  %v4676 = vpop.f32.mrf.mxu0
  %v4677 = vadd.f32 %v4492, %v4676
  %v4678 = vpop.f32.mrf.mxu0
  %v4679 = vadd.f32 %v4494, %v4678
  %4680 = vmatprep.mubr.f32.mxu0 0.0
  %4681 = vmatmul.mubr.f32.gmra.mxu0 %v4318
  %v4682 = vpop.f32.mrf.mxu0
  %v4683 = vadd.f32 %v4498, %v4682
  %v4684 = vpop.f32.mrf.mxu0
  %v4685 = vadd.f32 %v4500, %v4684
  %4686 = vmatprep.mubr.f32.mxu0 0.0
  %4687 = vmatmul.mubr.f32.gmra.mxu0 %v4321
  %v4688 = vpop.f32.mrf.mxu0
  %v4689 = vadd.f32 %v4504, %v4688
  %v4690 = vpop.f32.mrf.mxu0
  %v4691 = vadd.f32 %v4506, %v4690
  %4692 = vdwg.mxu0
  %4693 = vmatprep.subr.mxu0 %v3585
  %4694 = vmatpush1.msra.mxu0 %v3584
  %4695 = vmatprep.subr.mxu0 %v3565
  %4696 = vmatpush1.msra.mxu0 %v3564
  %4697 = vmatprep.subr.mxu0 %v3545
  %4698 = vmatpush1.msra.mxu0 %v3544
  %4699 = vmatprep.subr.mxu0 %v3525
  %4700 = vmatpush1.msra.mxu0 %v3524
  %4701 = vmatprep.subr.mxu0 %v3505
  %4702 = vmatpush1.msra.mxu0 %v3504
  %4703 = vmatprep.subr.mxu0 %v3485
  %4704 = vmatpush1.msra.mxu0 %v3484
  %4705 = vmatprep.subr.mxu0 %v3465
  %4706 = vmatpush1.msra.mxu0 %v3464
  %4707 = vmatprep.subr.mxu0 %v3445
  %4708 = vmatpush1.msra.mxu0 %v3444
  %4709 = vmatprep.subr.mxu0 %v3425
  %4710 = vmatpush1.msra.mxu0 %v3424
  %4711 = vmatprep.subr.mxu0 %v3405
  %4712 = vmatpush1.msra.mxu0 %v3404
  %4713 = vmatprep.subr.mxu0 %v3385
  %4714 = vmatpush1.msra.mxu0 %v3384
  %4715 = vmatprep.subr.mxu0 %v3365
  %4716 = vmatpush1.msra.mxu0 %v3364
  %4717 = vmatprep.subr.mxu0 %v3345
  %4718 = vmatpush1.msra.mxu0 %v3344
  %4719 = vmatprep.subr.mxu0 %v3325
  %4720 = vmatpush1.msra.mxu0 %v3324
  %4721 = vmatprep.subr.mxu0 %v3305
  %4722 = vmatpush1.msra.mxu0 %v3304
  %4723 = vmatprep.subr.mxu0 %v3285
  %4724 = vmatpush1.msra.mxu0 %v3284
  %4725 = vmatprep.subr.mxu0 %v3905
  %4726 = vmatpush2.msra.mxu0 %v3904
  %4727 = vmatprep.subr.mxu0 %v3885
  %4728 = vmatpush2.msra.mxu0 %v3884
  %4729 = vmatprep.subr.mxu0 %v3865
  %4730 = vmatpush2.msra.mxu0 %v3864
  %4731 = vmatprep.subr.mxu0 %v3845
  %4732 = vmatpush2.msra.mxu0 %v3844
  %4733 = vmatprep.subr.mxu0 %v3825
  %4734 = vmatpush2.msra.mxu0 %v3824
  %4735 = vmatprep.subr.mxu0 %v3805
  %4736 = vmatpush2.msra.mxu0 %v3804
  %4737 = vmatprep.subr.mxu0 %v3785
  %4738 = vmatpush2.msra.mxu0 %v3784
  %4739 = vmatprep.subr.mxu0 %v3765
  %4740 = vmatpush2.msra.mxu0 %v3764
  %4741 = vmatprep.subr.mxu0 %v3745
  %4742 = vmatpush2.msra.mxu0 %v3744
  %4743 = vmatprep.subr.mxu0 %v3725
  %4744 = vmatpush2.msra.mxu0 %v3724
  %4745 = vmatprep.subr.mxu0 %v3705
  %4746 = vmatpush2.msra.mxu0 %v3704
  %4747 = vmatprep.subr.mxu0 %v3685
  %4748 = vmatpush2.msra.mxu0 %v3684
  %4749 = vmatprep.subr.mxu0 %v3665
  %4750 = vmatpush2.msra.mxu0 %v3664
  %4751 = vmatprep.subr.mxu0 %v3645
  %4752 = vmatpush2.msra.mxu0 %v3644
  %4753 = vmatprep.subr.mxu0 %v3625
  %4754 = vmatpush2.msra.mxu0 %v3624
  %4755 = vmatprep.subr.mxu0 %v3605
  %4756 = vmatpush2.msra.mxu0 %v3604
  %4757 = vmatprep.mubr.f32.mxu0 %v4083
  %4758 = vmatmul.mubr.f32.gmra.mxu0 %v4082
  %v4759 = vpop.f32.mrf.mxu0
  %v4760 = vadd.f32 %v4165, %v4759
  %v4761 = vpop.f32.mrf.mxu0
  %v4762 = vadd.f32 %v4165, %v4761
  %4763 = vmatprep.mubr.f32.mxu0 %v4086
  %4764 = vmatmul.mubr.f32.gmra.mxu0 %v4085
  %v4765 = vpop.f32.mrf.mxu0
  %v4766 = vadd.f32 %v4170, %v4765
  %v4767 = vpop.f32.mrf.mxu0
  %v4768 = vadd.f32 %v4170, %v4767
  %4769 = vmatprep.mubr.f32.mxu0 %v4089
  %4770 = vmatmul.mubr.f32.gmra.mxu0 %v4088
  %v4771 = vpop.f32.mrf.mxu0
  %v4772 = vadd.f32 %v4175, %v4771
  %v4773 = vpop.f32.mrf.mxu0
  %v4774 = vadd.f32 %v4175, %v4773
  %4775 = vmatprep.mubr.f32.mxu0 %v4092
  %4776 = vmatmul.mubr.f32.gmra.mxu0 %v4091
  %v4777 = vpop.f32.mrf.mxu0
  %v4778 = vadd.f32 %v4180, %v4777
  %v4779 = vpop.f32.mrf.mxu0
  %v4780 = vadd.f32 %v4180, %v4779
  %4781 = vmatprep.mubr.f32.mxu0 %v4095
  %4782 = vmatmul.mubr.f32.gmra.mxu0 %v4094
  %v4783 = vpop.f32.mrf.mxu0
  %v4784 = vadd.f32 %v4185, %v4783
  %v4785 = vpop.f32.mrf.mxu0
  %v4786 = vadd.f32 %v4185, %v4785
  %4787 = vmatprep.mubr.f32.mxu0 %v4098
  %4788 = vmatmul.mubr.f32.gmra.mxu0 %v4097
  %v4789 = vpop.f32.mrf.mxu0
  %v4790 = vadd.f32 %v4190, %v4789
  %v4791 = vpop.f32.mrf.mxu0
  %v4792 = vadd.f32 %v4190, %v4791
  %4793 = vmatprep.mubr.f32.mxu0 %v4101
  %4794 = vmatmul.mubr.f32.gmra.mxu0 %v4100
  %v4795 = vpop.f32.mrf.mxu0
  %v4796 = vadd.f32 %v4195, %v4795
  %v4797 = vpop.f32.mrf.mxu0
  %v4798 = vadd.f32 %v4195, %v4797
  %4799 = vmatprep.mubr.f32.mxu0 %v4104
  %4800 = vmatmul.mubr.f32.gmra.mxu0 %v4103
  %v4801 = vpop.f32.mrf.mxu0
  %v4802 = vadd.f32 %v4200, %v4801
  %v4803 = vpop.f32.mrf.mxu0
  %v4804 = vadd.f32 %v4200, %v4803
  %4805 = vmatprep.mubr.f32.mxu0 %v4107
  %4806 = vmatmul.mubr.f32.gmra.mxu0 %v4106
  %v4807 = vpop.f32.mrf.mxu0
  %v4808 = vadd.f32 %v4205, %v4807
  %v4809 = vpop.f32.mrf.mxu0
  %v4810 = vadd.f32 %v4205, %v4809
  %4811 = vmatprep.mubr.f32.mxu0 %v4110
  %4812 = vmatmul.mubr.f32.gmra.mxu0 %v4109
  %v4813 = vpop.f32.mrf.mxu0
  %v4814 = vadd.f32 %v4210, %v4813
  %v4815 = vpop.f32.mrf.mxu0
  %v4816 = vadd.f32 %v4210, %v4815
  %4817 = vmatprep.mubr.f32.mxu0 %v4113
  %4818 = vmatmul.mubr.f32.gmra.mxu0 %v4112
  %v4819 = vpop.f32.mrf.mxu0
  %v4820 = vadd.f32 %v4215, %v4819
  %v4821 = vpop.f32.mrf.mxu0
  %v4822 = vadd.f32 %v4215, %v4821
  %4823 = vmatprep.mubr.f32.mxu0 %v4116
  %4824 = vmatmul.mubr.f32.gmra.mxu0 %v4115
  %v4825 = vpop.f32.mrf.mxu0
  %v4826 = vadd.f32 %v4220, %v4825
  %v4827 = vpop.f32.mrf.mxu0
  %v4828 = vadd.f32 %v4220, %v4827
  %4829 = vmatprep.mubr.f32.mxu0 %v4119
  %4830 = vmatmul.mubr.f32.gmra.mxu0 %v4118
  %v4831 = vpop.f32.mrf.mxu0
  %v4832 = vadd.f32 %v4225, %v4831
  %v4833 = vpop.f32.mrf.mxu0
  %v4834 = vadd.f32 %v4225, %v4833
  %4835 = vmatprep.mubr.f32.mxu0 %v4122
  %4836 = vmatmul.mubr.f32.gmra.mxu0 %v4121
  %v4837 = vpop.f32.mrf.mxu0
  %v4838 = vadd.f32 %v4230, %v4837
  %v4839 = vpop.f32.mrf.mxu0
  %v4840 = vadd.f32 %v4230, %v4839
  %4841 = vmatprep.mubr.f32.mxu0 %v4125
  %4842 = vmatmul.mubr.f32.gmra.mxu0 %v4124
  %v4843 = vpop.f32.mrf.mxu0
  %v4844 = vadd.f32 %v4235, %v4843
  %v4845 = vpop.f32.mrf.mxu0
  %v4846 = vadd.f32 %v4235, %v4845
  %4847 = vmatprep.mubr.f32.mxu0 %v4128
  %4848 = vmatmul.mubr.f32.gmra.mxu0 %v4127
  %v4849 = vpop.f32.mrf.mxu0
  %v4850 = vadd.f32 %v4240, %v4849
  %v4851 = vpop.f32.mrf.mxu0
  %v4852 = vadd.f32 %v4240, %v4851
  %4853 = vmatprep.mubr.f32.mxu0 %v4131
  %4854 = vmatmul.mubr.f32.gmra.mxu0 %v4130
  %v4855 = vpop.f32.mrf.mxu0
  %v4856 = vadd.f32 %v4245, %v4855
  %v4857 = vpop.f32.mrf.mxu0
  %v4858 = vadd.f32 %v4245, %v4857
  %4859 = vmatprep.mubr.f32.mxu0 %v4134
  %4860 = vmatmul.mubr.f32.gmra.mxu0 %v4133
  %v4861 = vpop.f32.mrf.mxu0
  %v4862 = vadd.f32 %v4250, %v4861
  %v4863 = vpop.f32.mrf.mxu0
  %v4864 = vadd.f32 %v4250, %v4863
  %4865 = vmatprep.mubr.f32.mxu0 %v4137
  %4866 = vmatmul.mubr.f32.gmra.mxu0 %v4136
  %v4867 = vpop.f32.mrf.mxu0
  %v4868 = vadd.f32 %v4255, %v4867
  %v4869 = vpop.f32.mrf.mxu0
  %v4870 = vadd.f32 %v4255, %v4869
  %4871 = vmatprep.mubr.f32.mxu0 %v4140
  %4872 = vmatmul.mubr.f32.gmra.mxu0 %v4139
  %v4873 = vpop.f32.mrf.mxu0
  %v4874 = vadd.f32 %v4260, %v4873
  %v4875 = vpop.f32.mrf.mxu0
  %v4876 = vadd.f32 %v4260, %v4875
  %4877 = vdwg.mxu0
  %4878 = vmatprep.subr.mxu0 0.0
  %4879 = vmatpush1.msra.mxu0 0.0
  %4880 = vmatprep.subr.mxu0 0.0
  %4881 = vmatpush1.msra.mxu0 0.0
  %4882 = vmatprep.subr.mxu0 0.0
  %4883 = vmatpush1.msra.mxu0 0.0
  %4884 = vmatprep.subr.mxu0 0.0
  %4885 = vmatpush1.msra.mxu0 0.0
  %4886 = vmatprep.subr.mxu0 0.0
  %4887 = vmatpush1.msra.mxu0 0.0
  %4888 = vmatprep.subr.mxu0 0.0
  %4889 = vmatpush1.msra.mxu0 0.0
  %4890 = vmatprep.subr.mxu0 0.0
  %4891 = vmatpush1.msra.mxu0 0.0
  %4892 = vmatprep.subr.mxu0 0.0
  %4893 = vmatpush1.msra.mxu0 0.0
  %4894 = vmatprep.subr.mxu0 %v4065
  %4895 = vmatpush1.msra.mxu0 %v4064
  %4896 = vmatprep.subr.mxu0 %v4045
  %4897 = vmatpush1.msra.mxu0 %v4044
  %4898 = vmatprep.subr.mxu0 %v4025
  %4899 = vmatpush1.msra.mxu0 %v4024
  %4900 = vmatprep.subr.mxu0 %v4005
  %4901 = vmatpush1.msra.mxu0 %v4004
  %4902 = vmatprep.subr.mxu0 %v3985
  %4903 = vmatpush1.msra.mxu0 %v3984
  %4904 = vmatprep.subr.mxu0 %v3965
  %4905 = vmatpush1.msra.mxu0 %v3964
  %4906 = vmatprep.subr.mxu0 %v3945
  %4907 = vmatpush1.msra.mxu0 %v3944
  %4908 = vmatprep.subr.mxu0 %v3925
  %4909 = vmatpush1.msra.mxu0 %v3924
  %4910 = vmatprep.subr.mxu0 0.0
  %4911 = vmatpush2.msra.mxu0 0.0
  %4912 = vmatprep.subr.mxu0 0.0
  %4913 = vmatpush2.msra.mxu0 0.0
  %4914 = vmatprep.subr.mxu0 0.0
  %4915 = vmatpush2.msra.mxu0 0.0
  %4916 = vmatprep.subr.mxu0 0.0
  %4917 = vmatpush2.msra.mxu0 0.0
  %4918 = vmatprep.subr.mxu0 0.0
  %4919 = vmatpush2.msra.mxu0 0.0
  %4920 = vmatprep.subr.mxu0 0.0
  %4921 = vmatpush2.msra.mxu0 0.0
  %4922 = vmatprep.subr.mxu0 0.0
  %4923 = vmatpush2.msra.mxu0 0.0
  %4924 = vmatprep.subr.mxu0 0.0
  %4925 = vmatpush2.msra.mxu0 0.0
  %4926 = vmatprep.subr.mxu0 0.0
  %4927 = vmatpush2.msra.mxu0 0.0
  %4928 = vmatprep.subr.mxu0 0.0
  %4929 = vmatpush2.msra.mxu0 0.0
  %4930 = vmatprep.subr.mxu0 0.0
  %4931 = vmatpush2.msra.mxu0 0.0
  %4932 = vmatprep.subr.mxu0 0.0
  %4933 = vmatpush2.msra.mxu0 0.0
  %4934 = vmatprep.subr.mxu0 0.0
  %4935 = vmatpush2.msra.mxu0 0.0
  %4936 = vmatprep.subr.mxu0 0.0
  %4937 = vmatpush2.msra.mxu0 0.0
  %4938 = vmatprep.subr.mxu0 0.0
  %4939 = vmatpush2.msra.mxu0 0.0
  %4940 = vmatprep.subr.mxu0 0.0
  %4941 = vmatpush2.msra.mxu0 0.0
  %4942 = vmatprep.mubr.f32.mxu0 0.0
  %4943 = vmatmul.mubr.f32.gmra.mxu0 %v4264
  %v4944 = vpop.f32.mrf.mxu0
  %v4945 = vadd.f32 %v4760, %v4944
  %v4946 = vpop.f32.mrf.mxu0
  %v4947 = vadd.f32 %v4762, %v4946
  %4948 = vmatprep.mubr.f32.mxu0 0.0
  %4949 = vmatmul.mubr.f32.gmra.mxu0 %v4267
  %v4950 = vpop.f32.mrf.mxu0
  %v4951 = vadd.f32 %v4766, %v4950
  %v4952 = vpop.f32.mrf.mxu0
  %v4953 = vadd.f32 %v4768, %v4952
  %4954 = vmatprep.mubr.f32.mxu0 0.0
  %4955 = vmatmul.mubr.f32.gmra.mxu0 %v4270
  %v4956 = vpop.f32.mrf.mxu0
  %v4957 = vadd.f32 %v4772, %v4956
  %v4958 = vpop.f32.mrf.mxu0
  %v4959 = vadd.f32 %v4774, %v4958
  %4960 = vmatprep.mubr.f32.mxu0 0.0
  %4961 = vmatmul.mubr.f32.gmra.mxu0 %v4273
  %v4962 = vpop.f32.mrf.mxu0
  %v4963 = vadd.f32 %v4778, %v4962
  %v4964 = vpop.f32.mrf.mxu0
  %v4965 = vadd.f32 %v4780, %v4964
  %4966 = vmatprep.mubr.f32.mxu0 0.0
  %4967 = vmatmul.mubr.f32.gmra.mxu0 %v4276
  %v4968 = vpop.f32.mrf.mxu0
  %v4969 = vadd.f32 %v4784, %v4968
  %v4970 = vpop.f32.mrf.mxu0
  %v4971 = vadd.f32 %v4786, %v4970
  %4972 = vmatprep.mubr.f32.mxu0 0.0
  %4973 = vmatmul.mubr.f32.gmra.mxu0 %v4279
  %v4974 = vpop.f32.mrf.mxu0
  %v4975 = vadd.f32 %v4790, %v4974
  %v4976 = vpop.f32.mrf.mxu0
  %v4977 = vadd.f32 %v4792, %v4976
  %4978 = vmatprep.mubr.f32.mxu0 0.0
  %4979 = vmatmul.mubr.f32.gmra.mxu0 %v4282
  %v4980 = vpop.f32.mrf.mxu0
  %v4981 = vadd.f32 %v4796, %v4980
  %v4982 = vpop.f32.mrf.mxu0
  %v4983 = vadd.f32 %v4798, %v4982
  %4984 = vmatprep.mubr.f32.mxu0 0.0
  %4985 = vmatmul.mubr.f32.gmra.mxu0 %v4285
  %v4986 = vpop.f32.mrf.mxu0
  %v4987 = vadd.f32 %v4802, %v4986
  %v4988 = vpop.f32.mrf.mxu0
  %v4989 = vadd.f32 %v4804, %v4988
  %4990 = vmatprep.mubr.f32.mxu0 0.0
  %4991 = vmatmul.mubr.f32.gmra.mxu0 %v4288
  %v4992 = vpop.f32.mrf.mxu0
  %v4993 = vadd.f32 %v4808, %v4992
  %v4994 = vpop.f32.mrf.mxu0
  %v4995 = vadd.f32 %v4810, %v4994
  %4996 = vmatprep.mubr.f32.mxu0 0.0
  %4997 = vmatmul.mubr.f32.gmra.mxu0 %v4291
  %v4998 = vpop.f32.mrf.mxu0
  %v4999 = vadd.f32 %v4814, %v4998
  %v5000 = vpop.f32.mrf.mxu0
  %v5001 = vadd.f32 %v4816, %v5000
  %5002 = vmatprep.mubr.f32.mxu0 0.0
  %5003 = vmatmul.mubr.f32.gmra.mxu0 %v4294
  %v5004 = vpop.f32.mrf.mxu0
  %v5005 = vadd.f32 %v4820, %v5004
  %v5006 = vpop.f32.mrf.mxu0
  %v5007 = vadd.f32 %v4822, %v5006
  %5008 = vmatprep.mubr.f32.mxu0 0.0
  %5009 = vmatmul.mubr.f32.gmra.mxu0 %v4297
  %v5010 = vpop.f32.mrf.mxu0
  %v5011 = vadd.f32 %v4826, %v5010
  %v5012 = vpop.f32.mrf.mxu0
  %v5013 = vadd.f32 %v4828, %v5012
  %5014 = vmatprep.mubr.f32.mxu0 0.0
  %5015 = vmatmul.mubr.f32.gmra.mxu0 %v4300
  %v5016 = vpop.f32.mrf.mxu0
  %v5017 = vadd.f32 %v4832, %v5016
  %v5018 = vpop.f32.mrf.mxu0
  %v5019 = vadd.f32 %v4834, %v5018
  %5020 = vmatprep.mubr.f32.mxu0 0.0
  %5021 = vmatmul.mubr.f32.gmra.mxu0 %v4303
  %v5022 = vpop.f32.mrf.mxu0
  %v5023 = vadd.f32 %v4838, %v5022
  %v5024 = vpop.f32.mrf.mxu0
  %v5025 = vadd.f32 %v4840, %v5024
  %5026 = vmatprep.mubr.f32.mxu0 0.0
  %5027 = vmatmul.mubr.f32.gmra.mxu0 %v4306
  %v5028 = vpop.f32.mrf.mxu0
  %v5029 = vadd.f32 %v4844, %v5028
  %v5030 = vpop.f32.mrf.mxu0
  %v5031 = vadd.f32 %v4846, %v5030
  %5032 = vmatprep.mubr.f32.mxu0 0.0
  %5033 = vmatmul.mubr.f32.gmra.mxu0 %v4309
  %v5034 = vpop.f32.mrf.mxu0
  %v5035 = vadd.f32 %v4850, %v5034
  %v5036 = vpop.f32.mrf.mxu0
  %v5037 = vadd.f32 %v4852, %v5036
  %5038 = vmatprep.mubr.f32.mxu0 0.0
  %5039 = vmatmul.mubr.f32.gmra.mxu0 %v4312
  %v5040 = vpop.f32.mrf.mxu0
  %v5041 = vadd.f32 %v4856, %v5040
  %v5042 = vpop.f32.mrf.mxu0
  %v5043 = vadd.f32 %v4858, %v5042
  %5044 = vmatprep.mubr.f32.mxu0 0.0
  %5045 = vmatmul.mubr.f32.gmra.mxu0 %v4315
  %v5046 = vpop.f32.mrf.mxu0
  %v5047 = vadd.f32 %v4862, %v5046
  %v5048 = vpop.f32.mrf.mxu0
  %v5049 = vadd.f32 %v4864, %v5048
  %5050 = vmatprep.mubr.f32.mxu0 0.0
  %5051 = vmatmul.mubr.f32.gmra.mxu0 %v4318
  %v5052 = vpop.f32.mrf.mxu0
  %v5053 = vadd.f32 %v4868, %v5052
  %v5054 = vpop.f32.mrf.mxu0
  %v5055 = vadd.f32 %v4870, %v5054
  %5056 = vmatprep.mubr.f32.mxu0 0.0
  %5057 = vmatmul.mubr.f32.gmra.mxu0 %v4321
  %v5058 = vpop.f32.mrf.mxu0
  %v5059 = vadd.f32 %v4874, %v5058
  %v5060 = vpop.f32.mrf.mxu0
  %v5061 = vadd.f32 %v4876, %v5060
  %5062 = vdwg.mxu0
  %5063 = vmatprep.subr.mxu0 %v3587
  %5064 = vmatpush1.msra.mxu0 %v3586
  %5065 = vmatprep.subr.mxu0 %v3567
  %5066 = vmatpush1.msra.mxu0 %v3566
  %5067 = vmatprep.subr.mxu0 %v3547
  %5068 = vmatpush1.msra.mxu0 %v3546
  %5069 = vmatprep.subr.mxu0 %v3527
  %5070 = vmatpush1.msra.mxu0 %v3526
  %5071 = vmatprep.subr.mxu0 %v3507
  %5072 = vmatpush1.msra.mxu0 %v3506
  %5073 = vmatprep.subr.mxu0 %v3487
  %5074 = vmatpush1.msra.mxu0 %v3486
  %5075 = vmatprep.subr.mxu0 %v3467
  %5076 = vmatpush1.msra.mxu0 %v3466
  %5077 = vmatprep.subr.mxu0 %v3447
  %5078 = vmatpush1.msra.mxu0 %v3446
  %5079 = vmatprep.subr.mxu0 %v3427
  %5080 = vmatpush1.msra.mxu0 %v3426
  %5081 = vmatprep.subr.mxu0 %v3407
  %5082 = vmatpush1.msra.mxu0 %v3406
  %5083 = vmatprep.subr.mxu0 %v3387
  %5084 = vmatpush1.msra.mxu0 %v3386
  %5085 = vmatprep.subr.mxu0 %v3367
  %5086 = vmatpush1.msra.mxu0 %v3366
  %5087 = vmatprep.subr.mxu0 %v3347
  %5088 = vmatpush1.msra.mxu0 %v3346
  %5089 = vmatprep.subr.mxu0 %v3327
  %5090 = vmatpush1.msra.mxu0 %v3326
  %5091 = vmatprep.subr.mxu0 %v3307
  %5092 = vmatpush1.msra.mxu0 %v3306
  %5093 = vmatprep.subr.mxu0 %v3287
  %5094 = vmatpush1.msra.mxu0 %v3286
  %5095 = vmatprep.subr.mxu0 %v3907
  %5096 = vmatpush2.msra.mxu0 %v3906
  %5097 = vmatprep.subr.mxu0 %v3887
  %5098 = vmatpush2.msra.mxu0 %v3886
  %5099 = vmatprep.subr.mxu0 %v3867
  %5100 = vmatpush2.msra.mxu0 %v3866
  %5101 = vmatprep.subr.mxu0 %v3847
  %5102 = vmatpush2.msra.mxu0 %v3846
  %5103 = vmatprep.subr.mxu0 %v3827
  %5104 = vmatpush2.msra.mxu0 %v3826
  %5105 = vmatprep.subr.mxu0 %v3807
  %5106 = vmatpush2.msra.mxu0 %v3806
  %5107 = vmatprep.subr.mxu0 %v3787
  %5108 = vmatpush2.msra.mxu0 %v3786
  %5109 = vmatprep.subr.mxu0 %v3767
  %5110 = vmatpush2.msra.mxu0 %v3766
  %5111 = vmatprep.subr.mxu0 %v3747
  %5112 = vmatpush2.msra.mxu0 %v3746
  %5113 = vmatprep.subr.mxu0 %v3727
  %5114 = vmatpush2.msra.mxu0 %v3726
  %5115 = vmatprep.subr.mxu0 %v3707
  %5116 = vmatpush2.msra.mxu0 %v3706
  %5117 = vmatprep.subr.mxu0 %v3687
  %5118 = vmatpush2.msra.mxu0 %v3686
  %5119 = vmatprep.subr.mxu0 %v3667
  %5120 = vmatpush2.msra.mxu0 %v3666
  %5121 = vmatprep.subr.mxu0 %v3647
  %5122 = vmatpush2.msra.mxu0 %v3646
  %5123 = vmatprep.subr.mxu0 %v3627
  %5124 = vmatpush2.msra.mxu0 %v3626
  %5125 = vmatprep.subr.mxu0 %v3607
  %5126 = vmatpush2.msra.mxu0 %v3606
  %5127 = vmatprep.mubr.f32.mxu0 %v4083
  %5128 = vmatmul.mubr.f32.gmra.mxu0 %v4082
  %v5129 = vpop.f32.mrf.mxu0
  %v5130 = vadd.f32 %v4165, %v5129
  %v5131 = vpop.f32.mrf.mxu0
  %v5132 = vadd.f32 %v4165, %v5131
  %5133 = vmatprep.mubr.f32.mxu0 %v4086
  %5134 = vmatmul.mubr.f32.gmra.mxu0 %v4085
  %v5135 = vpop.f32.mrf.mxu0
  %v5136 = vadd.f32 %v4170, %v5135
  %v5137 = vpop.f32.mrf.mxu0
  %v5138 = vadd.f32 %v4170, %v5137
  %5139 = vmatprep.mubr.f32.mxu0 %v4089
  %5140 = vmatmul.mubr.f32.gmra.mxu0 %v4088
  %v5141 = vpop.f32.mrf.mxu0
  %v5142 = vadd.f32 %v4175, %v5141
  %v5143 = vpop.f32.mrf.mxu0
  %v5144 = vadd.f32 %v4175, %v5143
  %5145 = vmatprep.mubr.f32.mxu0 %v4092
  %5146 = vmatmul.mubr.f32.gmra.mxu0 %v4091
  %v5147 = vpop.f32.mrf.mxu0
  %v5148 = vadd.f32 %v4180, %v5147
  %v5149 = vpop.f32.mrf.mxu0
  %v5150 = vadd.f32 %v4180, %v5149
  %5151 = vmatprep.mubr.f32.mxu0 %v4095
  %5152 = vmatmul.mubr.f32.gmra.mxu0 %v4094
  %v5153 = vpop.f32.mrf.mxu0
  %v5154 = vadd.f32 %v4185, %v5153
  %v5155 = vpop.f32.mrf.mxu0
  %v5156 = vadd.f32 %v4185, %v5155
  %5157 = vmatprep.mubr.f32.mxu0 %v4098
  %5158 = vmatmul.mubr.f32.gmra.mxu0 %v4097
  %v5159 = vpop.f32.mrf.mxu0
  %v5160 = vadd.f32 %v4190, %v5159
  %v5161 = vpop.f32.mrf.mxu0
  %v5162 = vadd.f32 %v4190, %v5161
  %5163 = vmatprep.mubr.f32.mxu0 %v4101
  %5164 = vmatmul.mubr.f32.gmra.mxu0 %v4100
  %v5165 = vpop.f32.mrf.mxu0
  %v5166 = vadd.f32 %v4195, %v5165
  %v5167 = vpop.f32.mrf.mxu0
  %v5168 = vadd.f32 %v4195, %v5167
  %5169 = vmatprep.mubr.f32.mxu0 %v4104
  %5170 = vmatmul.mubr.f32.gmra.mxu0 %v4103
  %v5171 = vpop.f32.mrf.mxu0
  %v5172 = vadd.f32 %v4200, %v5171
  %v5173 = vpop.f32.mrf.mxu0
  %v5174 = vadd.f32 %v4200, %v5173
  %5175 = vmatprep.mubr.f32.mxu0 %v4107
  %5176 = vmatmul.mubr.f32.gmra.mxu0 %v4106
  %v5177 = vpop.f32.mrf.mxu0
  %v5178 = vadd.f32 %v4205, %v5177
  %v5179 = vpop.f32.mrf.mxu0
  %v5180 = vadd.f32 %v4205, %v5179
  %5181 = vmatprep.mubr.f32.mxu0 %v4110
  %5182 = vmatmul.mubr.f32.gmra.mxu0 %v4109
  %v5183 = vpop.f32.mrf.mxu0
  %v5184 = vadd.f32 %v4210, %v5183
  %v5185 = vpop.f32.mrf.mxu0
  %v5186 = vadd.f32 %v4210, %v5185
  %5187 = vmatprep.mubr.f32.mxu0 %v4113
  %5188 = vmatmul.mubr.f32.gmra.mxu0 %v4112
  %v5189 = vpop.f32.mrf.mxu0
  %v5190 = vadd.f32 %v4215, %v5189
  %v5191 = vpop.f32.mrf.mxu0
  %v5192 = vadd.f32 %v4215, %v5191
  %5193 = vmatprep.mubr.f32.mxu0 %v4116
  %5194 = vmatmul.mubr.f32.gmra.mxu0 %v4115
  %v5195 = vpop.f32.mrf.mxu0
  %v5196 = vadd.f32 %v4220, %v5195
  %v5197 = vpop.f32.mrf.mxu0
  %v5198 = vadd.f32 %v4220, %v5197
  %5199 = vmatprep.mubr.f32.mxu0 %v4119
  %5200 = vmatmul.mubr.f32.gmra.mxu0 %v4118
  %v5201 = vpop.f32.mrf.mxu0
  %v5202 = vadd.f32 %v4225, %v5201
  %v5203 = vpop.f32.mrf.mxu0
  %v5204 = vadd.f32 %v4225, %v5203
  %5205 = vmatprep.mubr.f32.mxu0 %v4122
  %5206 = vmatmul.mubr.f32.gmra.mxu0 %v4121
  %v5207 = vpop.f32.mrf.mxu0
  %v5208 = vadd.f32 %v4230, %v5207
  %v5209 = vpop.f32.mrf.mxu0
  %v5210 = vadd.f32 %v4230, %v5209
  %5211 = vmatprep.mubr.f32.mxu0 %v4125
  %5212 = vmatmul.mubr.f32.gmra.mxu0 %v4124
  %v5213 = vpop.f32.mrf.mxu0
  %v5214 = vadd.f32 %v4235, %v5213
  %v5215 = vpop.f32.mrf.mxu0
  %v5216 = vadd.f32 %v4235, %v5215
  %5217 = vmatprep.mubr.f32.mxu0 %v4128
  %5218 = vmatmul.mubr.f32.gmra.mxu0 %v4127
  %v5219 = vpop.f32.mrf.mxu0
  %v5220 = vadd.f32 %v4240, %v5219
  %v5221 = vpop.f32.mrf.mxu0
  %v5222 = vadd.f32 %v4240, %v5221
  %5223 = vmatprep.mubr.f32.mxu0 %v4131
  %5224 = vmatmul.mubr.f32.gmra.mxu0 %v4130
  %v5225 = vpop.f32.mrf.mxu0
  %v5226 = vadd.f32 %v4245, %v5225
  %v5227 = vpop.f32.mrf.mxu0
  %v5228 = vadd.f32 %v4245, %v5227
  %5229 = vmatprep.mubr.f32.mxu0 %v4134
  %5230 = vmatmul.mubr.f32.gmra.mxu0 %v4133
  %v5231 = vpop.f32.mrf.mxu0
  %v5232 = vadd.f32 %v4250, %v5231
  %v5233 = vpop.f32.mrf.mxu0
  %v5234 = vadd.f32 %v4250, %v5233
  %5235 = vmatprep.mubr.f32.mxu0 %v4137
  %5236 = vmatmul.mubr.f32.gmra.mxu0 %v4136
  %v5237 = vpop.f32.mrf.mxu0
  %v5238 = vadd.f32 %v4255, %v5237
  %v5239 = vpop.f32.mrf.mxu0
  %v5240 = vadd.f32 %v4255, %v5239
  %5241 = vmatprep.mubr.f32.mxu0 %v4140
  %5242 = vmatmul.mubr.f32.gmra.mxu0 %v4139
  %v5243 = vpop.f32.mrf.mxu0
  %v5244 = vadd.f32 %v4260, %v5243
  %v5245 = vpop.f32.mrf.mxu0
  %v5246 = vadd.f32 %v4260, %v5245
  %5247 = vdwg.mxu0
  %5248 = vmatprep.subr.mxu0 0.0
  %5249 = vmatpush1.msra.mxu0 0.0
  %5250 = vmatprep.subr.mxu0 0.0
  %5251 = vmatpush1.msra.mxu0 0.0
  %5252 = vmatprep.subr.mxu0 0.0
  %5253 = vmatpush1.msra.mxu0 0.0
  %5254 = vmatprep.subr.mxu0 0.0
  %5255 = vmatpush1.msra.mxu0 0.0
  %5256 = vmatprep.subr.mxu0 0.0
  %5257 = vmatpush1.msra.mxu0 0.0
  %5258 = vmatprep.subr.mxu0 0.0
  %5259 = vmatpush1.msra.mxu0 0.0
  %5260 = vmatprep.subr.mxu0 0.0
  %5261 = vmatpush1.msra.mxu0 0.0
  %5262 = vmatprep.subr.mxu0 0.0
  %5263 = vmatpush1.msra.mxu0 0.0
  %5264 = vmatprep.subr.mxu0 %v4067
  %5265 = vmatpush1.msra.mxu0 %v4066
  %5266 = vmatprep.subr.mxu0 %v4047
  %5267 = vmatpush1.msra.mxu0 %v4046
  %5268 = vmatprep.subr.mxu0 %v4027
  %5269 = vmatpush1.msra.mxu0 %v4026
  %5270 = vmatprep.subr.mxu0 %v4007
  %5271 = vmatpush1.msra.mxu0 %v4006
  %5272 = vmatprep.subr.mxu0 %v3987
  %5273 = vmatpush1.msra.mxu0 %v3986
  %5274 = vmatprep.subr.mxu0 %v3967
  %5275 = vmatpush1.msra.mxu0 %v3966
  %5276 = vmatprep.subr.mxu0 %v3947
  %5277 = vmatpush1.msra.mxu0 %v3946
  %5278 = vmatprep.subr.mxu0 %v3927
  %5279 = vmatpush1.msra.mxu0 %v3926
  %5280 = vmatprep.subr.mxu0 0.0
  %5281 = vmatpush2.msra.mxu0 0.0
  %5282 = vmatprep.subr.mxu0 0.0
  %5283 = vmatpush2.msra.mxu0 0.0
  %5284 = vmatprep.subr.mxu0 0.0
  %5285 = vmatpush2.msra.mxu0 0.0
  %5286 = vmatprep.subr.mxu0 0.0
  %5287 = vmatpush2.msra.mxu0 0.0
  %5288 = vmatprep.subr.mxu0 0.0
  %5289 = vmatpush2.msra.mxu0 0.0
  %5290 = vmatprep.subr.mxu0 0.0
  %5291 = vmatpush2.msra.mxu0 0.0
  %5292 = vmatprep.subr.mxu0 0.0
  %5293 = vmatpush2.msra.mxu0 0.0
  %5294 = vmatprep.subr.mxu0 0.0
  %5295 = vmatpush2.msra.mxu0 0.0
  %5296 = vmatprep.subr.mxu0 0.0
  %5297 = vmatpush2.msra.mxu0 0.0
  %5298 = vmatprep.subr.mxu0 0.0
  %5299 = vmatpush2.msra.mxu0 0.0
  %5300 = vmatprep.subr.mxu0 0.0
  %5301 = vmatpush2.msra.mxu0 0.0
  %5302 = vmatprep.subr.mxu0 0.0
  %5303 = vmatpush2.msra.mxu0 0.0
  %5304 = vmatprep.subr.mxu0 0.0
  %5305 = vmatpush2.msra.mxu0 0.0
  %5306 = vmatprep.subr.mxu0 0.0
  %5307 = vmatpush2.msra.mxu0 0.0
  %5308 = vmatprep.subr.mxu0 0.0
  %5309 = vmatpush2.msra.mxu0 0.0
  %5310 = vmatprep.subr.mxu0 0.0
  %5311 = vmatpush2.msra.mxu0 0.0
  %5312 = vmatprep.mubr.f32.mxu0 0.0
  %5313 = vmatmul.mubr.f32.gmra.mxu0 %v4264
  %v5314 = vpop.f32.mrf.mxu0
  %v5315 = vadd.f32 %v5130, %v5314
  %v5316 = vpop.f32.mrf.mxu0
  %v5317 = vadd.f32 %v5132, %v5316
  %5318 = vmatprep.mubr.f32.mxu0 0.0
  %5319 = vmatmul.mubr.f32.gmra.mxu0 %v4267
  %v5320 = vpop.f32.mrf.mxu0
  %v5321 = vadd.f32 %v5136, %v5320
  %v5322 = vpop.f32.mrf.mxu0
  %v5323 = vadd.f32 %v5138, %v5322
  %5324 = vmatprep.mubr.f32.mxu0 0.0
  %5325 = vmatmul.mubr.f32.gmra.mxu0 %v4270
  %v5326 = vpop.f32.mrf.mxu0
  %v5327 = vadd.f32 %v5142, %v5326
  %v5328 = vpop.f32.mrf.mxu0
  %v5329 = vadd.f32 %v5144, %v5328
  %5330 = vmatprep.mubr.f32.mxu0 0.0
  %5331 = vmatmul.mubr.f32.gmra.mxu0 %v4273
  %v5332 = vpop.f32.mrf.mxu0
  %v5333 = vadd.f32 %v5148, %v5332
  %v5334 = vpop.f32.mrf.mxu0
  %v5335 = vadd.f32 %v5150, %v5334
  %5336 = vmatprep.mubr.f32.mxu0 0.0
  %5337 = vmatmul.mubr.f32.gmra.mxu0 %v4276
  %v5338 = vpop.f32.mrf.mxu0
  %v5339 = vadd.f32 %v5154, %v5338
  %v5340 = vpop.f32.mrf.mxu0
  %v5341 = vadd.f32 %v5156, %v5340
  %5342 = vmatprep.mubr.f32.mxu0 0.0
  %5343 = vmatmul.mubr.f32.gmra.mxu0 %v4279
  %v5344 = vpop.f32.mrf.mxu0
  %v5345 = vadd.f32 %v5160, %v5344
  %v5346 = vpop.f32.mrf.mxu0
  %v5347 = vadd.f32 %v5162, %v5346
  %5348 = vmatprep.mubr.f32.mxu0 0.0
  %5349 = vmatmul.mubr.f32.gmra.mxu0 %v4282
  %v5350 = vpop.f32.mrf.mxu0
  %v5351 = vadd.f32 %v5166, %v5350
  %v5352 = vpop.f32.mrf.mxu0
  %v5353 = vadd.f32 %v5168, %v5352
  %5354 = vmatprep.mubr.f32.mxu0 0.0
  %5355 = vmatmul.mubr.f32.gmra.mxu0 %v4285
  %v5356 = vpop.f32.mrf.mxu0
  %v5357 = vadd.f32 %v5172, %v5356
  %v5358 = vpop.f32.mrf.mxu0
  %v5359 = vadd.f32 %v5174, %v5358
  %5360 = vmatprep.mubr.f32.mxu0 0.0
  %5361 = vmatmul.mubr.f32.gmra.mxu0 %v4288
  %v5362 = vpop.f32.mrf.mxu0
  %v5363 = vadd.f32 %v5178, %v5362
  %v5364 = vpop.f32.mrf.mxu0
  %v5365 = vadd.f32 %v5180, %v5364
  %5366 = vmatprep.mubr.f32.mxu0 0.0
  %5367 = vmatmul.mubr.f32.gmra.mxu0 %v4291
  %v5368 = vpop.f32.mrf.mxu0
  %v5369 = vadd.f32 %v5184, %v5368
  %v5370 = vpop.f32.mrf.mxu0
  %v5371 = vadd.f32 %v5186, %v5370
  %5372 = vmatprep.mubr.f32.mxu0 0.0
  %5373 = vmatmul.mubr.f32.gmra.mxu0 %v4294
  %v5374 = vpop.f32.mrf.mxu0
  %v5375 = vadd.f32 %v5190, %v5374
  %v5376 = vpop.f32.mrf.mxu0
  %v5377 = vadd.f32 %v5192, %v5376
  %5378 = vmatprep.mubr.f32.mxu0 0.0
  %5379 = vmatmul.mubr.f32.gmra.mxu0 %v4297
  %v5380 = vpop.f32.mrf.mxu0
  %v5381 = vadd.f32 %v5196, %v5380
  %v5382 = vpop.f32.mrf.mxu0
  %v5383 = vadd.f32 %v5198, %v5382
  %5384 = vmatprep.mubr.f32.mxu0 0.0
  %5385 = vmatmul.mubr.f32.gmra.mxu0 %v4300
  %v5386 = vpop.f32.mrf.mxu0
  %v5387 = vadd.f32 %v5202, %v5386
  %v5388 = vpop.f32.mrf.mxu0
  %v5389 = vadd.f32 %v5204, %v5388
  %5390 = vmatprep.mubr.f32.mxu0 0.0
  %5391 = vmatmul.mubr.f32.gmra.mxu0 %v4303
  %v5392 = vpop.f32.mrf.mxu0
  %v5393 = vadd.f32 %v5208, %v5392
  %v5394 = vpop.f32.mrf.mxu0
  %v5395 = vadd.f32 %v5210, %v5394
  %5396 = vmatprep.mubr.f32.mxu0 0.0
  %5397 = vmatmul.mubr.f32.gmra.mxu0 %v4306
  %v5398 = vpop.f32.mrf.mxu0
  %v5399 = vadd.f32 %v5214, %v5398
  %v5400 = vpop.f32.mrf.mxu0
  %v5401 = vadd.f32 %v5216, %v5400
  %5402 = vmatprep.mubr.f32.mxu0 0.0
  %5403 = vmatmul.mubr.f32.gmra.mxu0 %v4309
  %v5404 = vpop.f32.mrf.mxu0
  %v5405 = vadd.f32 %v5220, %v5404
  %v5406 = vpop.f32.mrf.mxu0
  %v5407 = vadd.f32 %v5222, %v5406
  %5408 = vmatprep.mubr.f32.mxu0 0.0
  %5409 = vmatmul.mubr.f32.gmra.mxu0 %v4312
  %v5410 = vpop.f32.mrf.mxu0
  %v5411 = vadd.f32 %v5226, %v5410
  %v5412 = vpop.f32.mrf.mxu0
  %v5413 = vadd.f32 %v5228, %v5412
  %5414 = vmatprep.mubr.f32.mxu0 0.0
  %5415 = vmatmul.mubr.f32.gmra.mxu0 %v4315
  %v5416 = vpop.f32.mrf.mxu0
  %v5417 = vadd.f32 %v5232, %v5416
  %v5418 = vpop.f32.mrf.mxu0
  %v5419 = vadd.f32 %v5234, %v5418
  %5420 = vmatprep.mubr.f32.mxu0 0.0
  %5421 = vmatmul.mubr.f32.gmra.mxu0 %v4318
  %v5422 = vpop.f32.mrf.mxu0
  %v5423 = vadd.f32 %v5238, %v5422
  %v5424 = vpop.f32.mrf.mxu0
  %v5425 = vadd.f32 %v5240, %v5424
  %5426 = vmatprep.mubr.f32.mxu0 0.0
  %5427 = vmatmul.mubr.f32.gmra.mxu0 %v4321
  %v5428 = vpop.f32.mrf.mxu0
  %v5429 = vadd.f32 %v5244, %v5428
  %v5430 = vpop.f32.mrf.mxu0
  %v5431 = vadd.f32 %v5246, %v5430
  %5432 = vdwg.mxu0
  %5433 = vmatprep.subr.mxu0 %v3589
  %5434 = vmatpush1.msra.mxu0 %v3588
  %5435 = vmatprep.subr.mxu0 %v3569
  %5436 = vmatpush1.msra.mxu0 %v3568
  %5437 = vmatprep.subr.mxu0 %v3549
  %5438 = vmatpush1.msra.mxu0 %v3548
  %5439 = vmatprep.subr.mxu0 %v3529
  %5440 = vmatpush1.msra.mxu0 %v3528
  %5441 = vmatprep.subr.mxu0 %v3509
  %5442 = vmatpush1.msra.mxu0 %v3508
  %5443 = vmatprep.subr.mxu0 %v3489
  %5444 = vmatpush1.msra.mxu0 %v3488
  %5445 = vmatprep.subr.mxu0 %v3469
  %5446 = vmatpush1.msra.mxu0 %v3468
  %5447 = vmatprep.subr.mxu0 %v3449
  %5448 = vmatpush1.msra.mxu0 %v3448
  %5449 = vmatprep.subr.mxu0 %v3429
  %5450 = vmatpush1.msra.mxu0 %v3428
  %5451 = vmatprep.subr.mxu0 %v3409
  %5452 = vmatpush1.msra.mxu0 %v3408
  %5453 = vmatprep.subr.mxu0 %v3389
  %5454 = vmatpush1.msra.mxu0 %v3388
  %5455 = vmatprep.subr.mxu0 %v3369
  %5456 = vmatpush1.msra.mxu0 %v3368
  %5457 = vmatprep.subr.mxu0 %v3349
  %5458 = vmatpush1.msra.mxu0 %v3348
  %5459 = vmatprep.subr.mxu0 %v3329
  %5460 = vmatpush1.msra.mxu0 %v3328
  %5461 = vmatprep.subr.mxu0 %v3309
  %5462 = vmatpush1.msra.mxu0 %v3308
  %5463 = vmatprep.subr.mxu0 %v3289
  %5464 = vmatpush1.msra.mxu0 %v3288
  %5465 = vmatprep.subr.mxu0 %v3909
  %5466 = vmatpush2.msra.mxu0 %v3908
  %5467 = vmatprep.subr.mxu0 %v3889
  %5468 = vmatpush2.msra.mxu0 %v3888
  %5469 = vmatprep.subr.mxu0 %v3869
  %5470 = vmatpush2.msra.mxu0 %v3868
  %5471 = vmatprep.subr.mxu0 %v3849
  %5472 = vmatpush2.msra.mxu0 %v3848
  %5473 = vmatprep.subr.mxu0 %v3829
  %5474 = vmatpush2.msra.mxu0 %v3828
  %5475 = vmatprep.subr.mxu0 %v3809
  %5476 = vmatpush2.msra.mxu0 %v3808
  %5477 = vmatprep.subr.mxu0 %v3789
  %5478 = vmatpush2.msra.mxu0 %v3788
  %5479 = vmatprep.subr.mxu0 %v3769
  %5480 = vmatpush2.msra.mxu0 %v3768
  %5481 = vmatprep.subr.mxu0 %v3749
  %5482 = vmatpush2.msra.mxu0 %v3748
  %5483 = vmatprep.subr.mxu0 %v3729
  %5484 = vmatpush2.msra.mxu0 %v3728
  %5485 = vmatprep.subr.mxu0 %v3709
  %5486 = vmatpush2.msra.mxu0 %v3708
  %5487 = vmatprep.subr.mxu0 %v3689
  %5488 = vmatpush2.msra.mxu0 %v3688
  %5489 = vmatprep.subr.mxu0 %v3669
  %5490 = vmatpush2.msra.mxu0 %v3668
  %5491 = vmatprep.subr.mxu0 %v3649
  %5492 = vmatpush2.msra.mxu0 %v3648
  %5493 = vmatprep.subr.mxu0 %v3629
  %5494 = vmatpush2.msra.mxu0 %v3628
  %5495 = vmatprep.subr.mxu0 %v3609
  %5496 = vmatpush2.msra.mxu0 %v3608
  %5497 = vmatprep.mubr.f32.mxu0 %v4083
  %5498 = vmatmul.mubr.f32.gmra.mxu0 %v4082
  %v5499 = vpop.f32.mrf.mxu0
  %v5500 = vadd.f32 %v4165, %v5499
  %v5501 = vpop.f32.mrf.mxu0
  %v5502 = vadd.f32 %v4165, %v5501
  %5503 = vmatprep.mubr.f32.mxu0 %v4086
  %5504 = vmatmul.mubr.f32.gmra.mxu0 %v4085
  %v5505 = vpop.f32.mrf.mxu0
  %v5506 = vadd.f32 %v4170, %v5505
  %v5507 = vpop.f32.mrf.mxu0
  %v5508 = vadd.f32 %v4170, %v5507
  %5509 = vmatprep.mubr.f32.mxu0 %v4089
  %5510 = vmatmul.mubr.f32.gmra.mxu0 %v4088
  %v5511 = vpop.f32.mrf.mxu0
  %v5512 = vadd.f32 %v4175, %v5511
  %v5513 = vpop.f32.mrf.mxu0
  %v5514 = vadd.f32 %v4175, %v5513
  %5515 = vmatprep.mubr.f32.mxu0 %v4092
  %5516 = vmatmul.mubr.f32.gmra.mxu0 %v4091
  %v5517 = vpop.f32.mrf.mxu0
  %v5518 = vadd.f32 %v4180, %v5517
  %v5519 = vpop.f32.mrf.mxu0
  %v5520 = vadd.f32 %v4180, %v5519
  %5521 = vmatprep.mubr.f32.mxu0 %v4095
  %5522 = vmatmul.mubr.f32.gmra.mxu0 %v4094
  %v5523 = vpop.f32.mrf.mxu0
  %v5524 = vadd.f32 %v4185, %v5523
  %v5525 = vpop.f32.mrf.mxu0
  %v5526 = vadd.f32 %v4185, %v5525
  %5527 = vmatprep.mubr.f32.mxu0 %v4098
  %5528 = vmatmul.mubr.f32.gmra.mxu0 %v4097
  %v5529 = vpop.f32.mrf.mxu0
  %v5530 = vadd.f32 %v4190, %v5529
  %v5531 = vpop.f32.mrf.mxu0
  %v5532 = vadd.f32 %v4190, %v5531
  %5533 = vmatprep.mubr.f32.mxu0 %v4101
  %5534 = vmatmul.mubr.f32.gmra.mxu0 %v4100
  %v5535 = vpop.f32.mrf.mxu0
  %v5536 = vadd.f32 %v4195, %v5535
  %v5537 = vpop.f32.mrf.mxu0
  %v5538 = vadd.f32 %v4195, %v5537
  %5539 = vmatprep.mubr.f32.mxu0 %v4104
  %5540 = vmatmul.mubr.f32.gmra.mxu0 %v4103
  %v5541 = vpop.f32.mrf.mxu0
  %v5542 = vadd.f32 %v4200, %v5541
  %v5543 = vpop.f32.mrf.mxu0
  %v5544 = vadd.f32 %v4200, %v5543
  %5545 = vmatprep.mubr.f32.mxu0 %v4107
  %5546 = vmatmul.mubr.f32.gmra.mxu0 %v4106
  %v5547 = vpop.f32.mrf.mxu0
  %v5548 = vadd.f32 %v4205, %v5547
  %v5549 = vpop.f32.mrf.mxu0
  %v5550 = vadd.f32 %v4205, %v5549
  %5551 = vmatprep.mubr.f32.mxu0 %v4110
  %5552 = vmatmul.mubr.f32.gmra.mxu0 %v4109
  %v5553 = vpop.f32.mrf.mxu0
  %v5554 = vadd.f32 %v4210, %v5553
  %v5555 = vpop.f32.mrf.mxu0
  %v5556 = vadd.f32 %v4210, %v5555
  %5557 = vmatprep.mubr.f32.mxu0 %v4113
  %5558 = vmatmul.mubr.f32.gmra.mxu0 %v4112
  %v5559 = vpop.f32.mrf.mxu0
  %v5560 = vadd.f32 %v4215, %v5559
  %v5561 = vpop.f32.mrf.mxu0
  %v5562 = vadd.f32 %v4215, %v5561
  %5563 = vmatprep.mubr.f32.mxu0 %v4116
  %5564 = vmatmul.mubr.f32.gmra.mxu0 %v4115
  %v5565 = vpop.f32.mrf.mxu0
  %v5566 = vadd.f32 %v4220, %v5565
  %v5567 = vpop.f32.mrf.mxu0
  %v5568 = vadd.f32 %v4220, %v5567
  %5569 = vmatprep.mubr.f32.mxu0 %v4119
  %5570 = vmatmul.mubr.f32.gmra.mxu0 %v4118
  %v5571 = vpop.f32.mrf.mxu0
  %v5572 = vadd.f32 %v4225, %v5571
  %v5573 = vpop.f32.mrf.mxu0
  %v5574 = vadd.f32 %v4225, %v5573
  %5575 = vmatprep.mubr.f32.mxu0 %v4122
  %5576 = vmatmul.mubr.f32.gmra.mxu0 %v4121
  %v5577 = vpop.f32.mrf.mxu0
  %v5578 = vadd.f32 %v4230, %v5577
  %v5579 = vpop.f32.mrf.mxu0
  %v5580 = vadd.f32 %v4230, %v5579
  %5581 = vmatprep.mubr.f32.mxu0 %v4125
  %5582 = vmatmul.mubr.f32.gmra.mxu0 %v4124
  %v5583 = vpop.f32.mrf.mxu0
  %v5584 = vadd.f32 %v4235, %v5583
  %v5585 = vpop.f32.mrf.mxu0
  %v5586 = vadd.f32 %v4235, %v5585
  %5587 = vmatprep.mubr.f32.mxu0 %v4128
  %5588 = vmatmul.mubr.f32.gmra.mxu0 %v4127
  %v5589 = vpop.f32.mrf.mxu0
  %v5590 = vadd.f32 %v4240, %v5589
  %v5591 = vpop.f32.mrf.mxu0
  %v5592 = vadd.f32 %v4240, %v5591
  %5593 = vmatprep.mubr.f32.mxu0 %v4131
  %5594 = vmatmul.mubr.f32.gmra.mxu0 %v4130
  %v5595 = vpop.f32.mrf.mxu0
  %v5596 = vadd.f32 %v4245, %v5595
  %v5597 = vpop.f32.mrf.mxu0
  %v5598 = vadd.f32 %v4245, %v5597
  %5599 = vmatprep.mubr.f32.mxu0 %v4134
  %5600 = vmatmul.mubr.f32.gmra.mxu0 %v4133
  %v5601 = vpop.f32.mrf.mxu0
  %v5602 = vadd.f32 %v4250, %v5601
  %v5603 = vpop.f32.mrf.mxu0
  %v5604 = vadd.f32 %v4250, %v5603
  %5605 = vmatprep.mubr.f32.mxu0 %v4137
  %5606 = vmatmul.mubr.f32.gmra.mxu0 %v4136
  %v5607 = vpop.f32.mrf.mxu0
  %v5608 = vadd.f32 %v4255, %v5607
  %v5609 = vpop.f32.mrf.mxu0
  %v5610 = vadd.f32 %v4255, %v5609
  %5611 = vmatprep.mubr.f32.mxu0 %v4140
  %5612 = vmatmul.mubr.f32.gmra.mxu0 %v4139
  %v5613 = vpop.f32.mrf.mxu0
  %v5614 = vadd.f32 %v4260, %v5613
  %v5615 = vpop.f32.mrf.mxu0
  %v5616 = vadd.f32 %v4260, %v5615
  %5617 = vdwg.mxu0
  %5618 = vmatprep.subr.mxu0 0.0
  %5619 = vmatpush1.msra.mxu0 0.0
  %5620 = vmatprep.subr.mxu0 0.0
  %5621 = vmatpush1.msra.mxu0 0.0
  %5622 = vmatprep.subr.mxu0 0.0
  %5623 = vmatpush1.msra.mxu0 0.0
  %5624 = vmatprep.subr.mxu0 0.0
  %5625 = vmatpush1.msra.mxu0 0.0
  %5626 = vmatprep.subr.mxu0 0.0
  %5627 = vmatpush1.msra.mxu0 0.0
  %5628 = vmatprep.subr.mxu0 0.0
  %5629 = vmatpush1.msra.mxu0 0.0
  %5630 = vmatprep.subr.mxu0 0.0
  %5631 = vmatpush1.msra.mxu0 0.0
  %5632 = vmatprep.subr.mxu0 0.0
  %5633 = vmatpush1.msra.mxu0 0.0
  %5634 = vmatprep.subr.mxu0 %v4069
  %5635 = vmatpush1.msra.mxu0 %v4068
  %5636 = vmatprep.subr.mxu0 %v4049
  %5637 = vmatpush1.msra.mxu0 %v4048
  %5638 = vmatprep.subr.mxu0 %v4029
  %5639 = vmatpush1.msra.mxu0 %v4028
  %5640 = vmatprep.subr.mxu0 %v4009
  %5641 = vmatpush1.msra.mxu0 %v4008
  %5642 = vmatprep.subr.mxu0 %v3989
  %5643 = vmatpush1.msra.mxu0 %v3988
  %5644 = vmatprep.subr.mxu0 %v3969
  %5645 = vmatpush1.msra.mxu0 %v3968
  %5646 = vmatprep.subr.mxu0 %v3949
  %5647 = vmatpush1.msra.mxu0 %v3948
  %5648 = vmatprep.subr.mxu0 %v3929
  %5649 = vmatpush1.msra.mxu0 %v3928
  %5650 = vmatprep.subr.mxu0 0.0
  %5651 = vmatpush2.msra.mxu0 0.0
  %5652 = vmatprep.subr.mxu0 0.0
  %5653 = vmatpush2.msra.mxu0 0.0
  %5654 = vmatprep.subr.mxu0 0.0
  %5655 = vmatpush2.msra.mxu0 0.0
  %5656 = vmatprep.subr.mxu0 0.0
  %5657 = vmatpush2.msra.mxu0 0.0
  %5658 = vmatprep.subr.mxu0 0.0
  %5659 = vmatpush2.msra.mxu0 0.0
  %5660 = vmatprep.subr.mxu0 0.0
  %5661 = vmatpush2.msra.mxu0 0.0
  %5662 = vmatprep.subr.mxu0 0.0
  %5663 = vmatpush2.msra.mxu0 0.0
  %5664 = vmatprep.subr.mxu0 0.0
  %5665 = vmatpush2.msra.mxu0 0.0
  %5666 = vmatprep.subr.mxu0 0.0
  %5667 = vmatpush2.msra.mxu0 0.0
  %5668 = vmatprep.subr.mxu0 0.0
  %5669 = vmatpush2.msra.mxu0 0.0
  %5670 = vmatprep.subr.mxu0 0.0
  %5671 = vmatpush2.msra.mxu0 0.0
  %5672 = vmatprep.subr.mxu0 0.0
  %5673 = vmatpush2.msra.mxu0 0.0
  %5674 = vmatprep.subr.mxu0 0.0
  %5675 = vmatpush2.msra.mxu0 0.0
  %5676 = vmatprep.subr.mxu0 0.0
  %5677 = vmatpush2.msra.mxu0 0.0
  %5678 = vmatprep.subr.mxu0 0.0
  %5679 = vmatpush2.msra.mxu0 0.0
  %5680 = vmatprep.subr.mxu0 0.0
  %5681 = vmatpush2.msra.mxu0 0.0
  %5682 = vmatprep.mubr.f32.mxu0 0.0
  %5683 = vmatmul.mubr.f32.gmra.mxu0 %v4264
  %v5684 = vpop.f32.mrf.mxu0
  %v5685 = vadd.f32 %v5500, %v5684
  %v5686 = vpop.f32.mrf.mxu0
  %v5687 = vadd.f32 %v5502, %v5686
  %5688 = vmatprep.mubr.f32.mxu0 0.0
  %5689 = vmatmul.mubr.f32.gmra.mxu0 %v4267
  %v5690 = vpop.f32.mrf.mxu0
  %v5691 = vadd.f32 %v5506, %v5690
  %v5692 = vpop.f32.mrf.mxu0
  %v5693 = vadd.f32 %v5508, %v5692
  %5694 = vmatprep.mubr.f32.mxu0 0.0
  %5695 = vmatmul.mubr.f32.gmra.mxu0 %v4270
  %v5696 = vpop.f32.mrf.mxu0
  %v5697 = vadd.f32 %v5512, %v5696
  %v5698 = vpop.f32.mrf.mxu0
  %v5699 = vadd.f32 %v5514, %v5698
  %5700 = vmatprep.mubr.f32.mxu0 0.0
  %5701 = vmatmul.mubr.f32.gmra.mxu0 %v4273
  %v5702 = vpop.f32.mrf.mxu0
  %v5703 = vadd.f32 %v5518, %v5702
  %v5704 = vpop.f32.mrf.mxu0
  %v5705 = vadd.f32 %v5520, %v5704
  %5706 = vmatprep.mubr.f32.mxu0 0.0
  %5707 = vmatmul.mubr.f32.gmra.mxu0 %v4276
  %v5708 = vpop.f32.mrf.mxu0
  %v5709 = vadd.f32 %v5524, %v5708
  %v5710 = vpop.f32.mrf.mxu0
  %v5711 = vadd.f32 %v5526, %v5710
  %5712 = vmatprep.mubr.f32.mxu0 0.0
  %5713 = vmatmul.mubr.f32.gmra.mxu0 %v4279
  %v5714 = vpop.f32.mrf.mxu0
  %v5715 = vadd.f32 %v5530, %v5714
  %v5716 = vpop.f32.mrf.mxu0
  %v5717 = vadd.f32 %v5532, %v5716
  %5718 = vmatprep.mubr.f32.mxu0 0.0
  %5719 = vmatmul.mubr.f32.gmra.mxu0 %v4282
  %v5720 = vpop.f32.mrf.mxu0
  %v5721 = vadd.f32 %v5536, %v5720
  %v5722 = vpop.f32.mrf.mxu0
  %v5723 = vadd.f32 %v5538, %v5722
  %5724 = vmatprep.mubr.f32.mxu0 0.0
  %5725 = vmatmul.mubr.f32.gmra.mxu0 %v4285
  %v5726 = vpop.f32.mrf.mxu0
  %v5727 = vadd.f32 %v5542, %v5726
  %v5728 = vpop.f32.mrf.mxu0
  %v5729 = vadd.f32 %v5544, %v5728
  %5730 = vmatprep.mubr.f32.mxu0 0.0
  %5731 = vmatmul.mubr.f32.gmra.mxu0 %v4288
  %v5732 = vpop.f32.mrf.mxu0
  %v5733 = vadd.f32 %v5548, %v5732
  %v5734 = vpop.f32.mrf.mxu0
  %v5735 = vadd.f32 %v5550, %v5734
  %5736 = vmatprep.mubr.f32.mxu0 0.0
  %5737 = vmatmul.mubr.f32.gmra.mxu0 %v4291
  %v5738 = vpop.f32.mrf.mxu0
  %v5739 = vadd.f32 %v5554, %v5738
  %v5740 = vpop.f32.mrf.mxu0
  %v5741 = vadd.f32 %v5556, %v5740
  %5742 = vmatprep.mubr.f32.mxu0 0.0
  %5743 = vmatmul.mubr.f32.gmra.mxu0 %v4294
  %v5744 = vpop.f32.mrf.mxu0
  %v5745 = vadd.f32 %v5560, %v5744
  %v5746 = vpop.f32.mrf.mxu0
  %v5747 = vadd.f32 %v5562, %v5746
  %5748 = vmatprep.mubr.f32.mxu0 0.0
  %5749 = vmatmul.mubr.f32.gmra.mxu0 %v4297
  %v5750 = vpop.f32.mrf.mxu0
  %v5751 = vadd.f32 %v5566, %v5750
  %v5752 = vpop.f32.mrf.mxu0
  %v5753 = vadd.f32 %v5568, %v5752
  %5754 = vmatprep.mubr.f32.mxu0 0.0
  %5755 = vmatmul.mubr.f32.gmra.mxu0 %v4300
  %v5756 = vpop.f32.mrf.mxu0
  %v5757 = vadd.f32 %v5572, %v5756
  %v5758 = vpop.f32.mrf.mxu0
  %v5759 = vadd.f32 %v5574, %v5758
  %5760 = vmatprep.mubr.f32.mxu0 0.0
  %5761 = vmatmul.mubr.f32.gmra.mxu0 %v4303
  %v5762 = vpop.f32.mrf.mxu0
  %v5763 = vadd.f32 %v5578, %v5762
  %v5764 = vpop.f32.mrf.mxu0
  %v5765 = vadd.f32 %v5580, %v5764
  %5766 = vmatprep.mubr.f32.mxu0 0.0
  %5767 = vmatmul.mubr.f32.gmra.mxu0 %v4306
  %v5768 = vpop.f32.mrf.mxu0
  %v5769 = vadd.f32 %v5584, %v5768
  %v5770 = vpop.f32.mrf.mxu0
  %v5771 = vadd.f32 %v5586, %v5770
  %5772 = vmatprep.mubr.f32.mxu0 0.0
  %5773 = vmatmul.mubr.f32.gmra.mxu0 %v4309
  %v5774 = vpop.f32.mrf.mxu0
  %v5775 = vadd.f32 %v5590, %v5774
  %v5776 = vpop.f32.mrf.mxu0
  %v5777 = vadd.f32 %v5592, %v5776
  %5778 = vmatprep.mubr.f32.mxu0 0.0
  %5779 = vmatmul.mubr.f32.gmra.mxu0 %v4312
  %v5780 = vpop.f32.mrf.mxu0
  %v5781 = vadd.f32 %v5596, %v5780
  %v5782 = vpop.f32.mrf.mxu0
  %v5783 = vadd.f32 %v5598, %v5782
  %5784 = vmatprep.mubr.f32.mxu0 0.0
  %5785 = vmatmul.mubr.f32.gmra.mxu0 %v4315
  %v5786 = vpop.f32.mrf.mxu0
  %v5787 = vadd.f32 %v5602, %v5786
  %v5788 = vpop.f32.mrf.mxu0
  %v5789 = vadd.f32 %v5604, %v5788
  %5790 = vmatprep.mubr.f32.mxu0 0.0
  %5791 = vmatmul.mubr.f32.gmra.mxu0 %v4318
  %v5792 = vpop.f32.mrf.mxu0
  %v5793 = vadd.f32 %v5608, %v5792
  %v5794 = vpop.f32.mrf.mxu0
  %v5795 = vadd.f32 %v5610, %v5794
  %5796 = vmatprep.mubr.f32.mxu0 0.0
  %5797 = vmatmul.mubr.f32.gmra.mxu0 %v4321
  %v5798 = vpop.f32.mrf.mxu0
  %v5799 = vadd.f32 %v5614, %v5798
  %v5800 = vpop.f32.mrf.mxu0
  %v5801 = vadd.f32 %v5616, %v5800
  %5802 = vdwg.mxu0
  %5803 = vmatprep.subr.mxu0 %v3591
  %5804 = vmatpush1.msra.mxu0 %v3590
  %5805 = vmatprep.subr.mxu0 %v3571
  %5806 = vmatpush1.msra.mxu0 %v3570
  %5807 = vmatprep.subr.mxu0 %v3551
  %5808 = vmatpush1.msra.mxu0 %v3550
  %5809 = vmatprep.subr.mxu0 %v3531
  %5810 = vmatpush1.msra.mxu0 %v3530
  %5811 = vmatprep.subr.mxu0 %v3511
  %5812 = vmatpush1.msra.mxu0 %v3510
  %5813 = vmatprep.subr.mxu0 %v3491
  %5814 = vmatpush1.msra.mxu0 %v3490
  %5815 = vmatprep.subr.mxu0 %v3471
  %5816 = vmatpush1.msra.mxu0 %v3470
  %5817 = vmatprep.subr.mxu0 %v3451
  %5818 = vmatpush1.msra.mxu0 %v3450
  %5819 = vmatprep.subr.mxu0 %v3431
  %5820 = vmatpush1.msra.mxu0 %v3430
  %5821 = vmatprep.subr.mxu0 %v3411
  %5822 = vmatpush1.msra.mxu0 %v3410
  %5823 = vmatprep.subr.mxu0 %v3391
  %5824 = vmatpush1.msra.mxu0 %v3390
  %5825 = vmatprep.subr.mxu0 %v3371
  %5826 = vmatpush1.msra.mxu0 %v3370
  %5827 = vmatprep.subr.mxu0 %v3351
  %5828 = vmatpush1.msra.mxu0 %v3350
  %5829 = vmatprep.subr.mxu0 %v3331
  %5830 = vmatpush1.msra.mxu0 %v3330
  %5831 = vmatprep.subr.mxu0 %v3311
  %5832 = vmatpush1.msra.mxu0 %v3310
  %5833 = vmatprep.subr.mxu0 %v3291
  %5834 = vmatpush1.msra.mxu0 %v3290
  %5835 = vmatprep.subr.mxu0 %v3911
  %5836 = vmatpush2.msra.mxu0 %v3910
  %5837 = vmatprep.subr.mxu0 %v3891
  %5838 = vmatpush2.msra.mxu0 %v3890
  %5839 = vmatprep.subr.mxu0 %v3871
  %5840 = vmatpush2.msra.mxu0 %v3870
  %5841 = vmatprep.subr.mxu0 %v3851
  %5842 = vmatpush2.msra.mxu0 %v3850
  %5843 = vmatprep.subr.mxu0 %v3831
  %5844 = vmatpush2.msra.mxu0 %v3830
  %5845 = vmatprep.subr.mxu0 %v3811
  %5846 = vmatpush2.msra.mxu0 %v3810
  %5847 = vmatprep.subr.mxu0 %v3791
  %5848 = vmatpush2.msra.mxu0 %v3790
  %5849 = vmatprep.subr.mxu0 %v3771
  %5850 = vmatpush2.msra.mxu0 %v3770
  %5851 = vmatprep.subr.mxu0 %v3751
  %5852 = vmatpush2.msra.mxu0 %v3750
  %5853 = vmatprep.subr.mxu0 %v3731
  %5854 = vmatpush2.msra.mxu0 %v3730
  %5855 = vmatprep.subr.mxu0 %v3711
  %5856 = vmatpush2.msra.mxu0 %v3710
  %5857 = vmatprep.subr.mxu0 %v3691
  %5858 = vmatpush2.msra.mxu0 %v3690
  %5859 = vmatprep.subr.mxu0 %v3671
  %5860 = vmatpush2.msra.mxu0 %v3670
  %5861 = vmatprep.subr.mxu0 %v3651
  %5862 = vmatpush2.msra.mxu0 %v3650
  %5863 = vmatprep.subr.mxu0 %v3631
  %5864 = vmatpush2.msra.mxu0 %v3630
  %5865 = vmatprep.subr.mxu0 %v3611
  %5866 = vmatpush2.msra.mxu0 %v3610
  %5867 = vmatprep.mubr.f32.mxu0 %v4083
  %5868 = vmatmul.mubr.f32.gmra.mxu0 %v4082
  %v5869 = vpop.f32.mrf.mxu0
  %v5870 = vadd.f32 %v4165, %v5869
  %v5871 = vpop.f32.mrf.mxu0
  %v5872 = vadd.f32 %v4165, %v5871
  %5873 = vmatprep.mubr.f32.mxu0 %v4086
  %5874 = vmatmul.mubr.f32.gmra.mxu0 %v4085
  %v5875 = vpop.f32.mrf.mxu0
  %v5876 = vadd.f32 %v4170, %v5875
  %v5877 = vpop.f32.mrf.mxu0
  %v5878 = vadd.f32 %v4170, %v5877
  %5879 = vmatprep.mubr.f32.mxu0 %v4089
  %5880 = vmatmul.mubr.f32.gmra.mxu0 %v4088
  %v5881 = vpop.f32.mrf.mxu0
  %v5882 = vadd.f32 %v4175, %v5881
  %v5883 = vpop.f32.mrf.mxu0
  %v5884 = vadd.f32 %v4175, %v5883
  %5885 = vmatprep.mubr.f32.mxu0 %v4092
  %5886 = vmatmul.mubr.f32.gmra.mxu0 %v4091
  %v5887 = vpop.f32.mrf.mxu0
  %v5888 = vadd.f32 %v4180, %v5887
  %v5889 = vpop.f32.mrf.mxu0
  %v5890 = vadd.f32 %v4180, %v5889
  %5891 = vmatprep.mubr.f32.mxu0 %v4095
  %5892 = vmatmul.mubr.f32.gmra.mxu0 %v4094
  %v5893 = vpop.f32.mrf.mxu0
  %v5894 = vadd.f32 %v4185, %v5893
  %v5895 = vpop.f32.mrf.mxu0
  %v5896 = vadd.f32 %v4185, %v5895
  %5897 = vmatprep.mubr.f32.mxu0 %v4098
  %5898 = vmatmul.mubr.f32.gmra.mxu0 %v4097
  %v5899 = vpop.f32.mrf.mxu0
  %v5900 = vadd.f32 %v4190, %v5899
  %v5901 = vpop.f32.mrf.mxu0
  %v5902 = vadd.f32 %v4190, %v5901
  %5903 = vmatprep.mubr.f32.mxu0 %v4101
  %5904 = vmatmul.mubr.f32.gmra.mxu0 %v4100
  %v5905 = vpop.f32.mrf.mxu0
  %v5906 = vadd.f32 %v4195, %v5905
  %v5907 = vpop.f32.mrf.mxu0
  %v5908 = vadd.f32 %v4195, %v5907
  %5909 = vmatprep.mubr.f32.mxu0 %v4104
  %5910 = vmatmul.mubr.f32.gmra.mxu0 %v4103
  %v5911 = vpop.f32.mrf.mxu0
  %v5912 = vadd.f32 %v4200, %v5911
  %v5913 = vpop.f32.mrf.mxu0
  %v5914 = vadd.f32 %v4200, %v5913
  %5915 = vmatprep.mubr.f32.mxu0 %v4107
  %5916 = vmatmul.mubr.f32.gmra.mxu0 %v4106
  %v5917 = vpop.f32.mrf.mxu0
  %v5918 = vadd.f32 %v4205, %v5917
  %v5919 = vpop.f32.mrf.mxu0
  %v5920 = vadd.f32 %v4205, %v5919
  %5921 = vmatprep.mubr.f32.mxu0 %v4110
  %5922 = vmatmul.mubr.f32.gmra.mxu0 %v4109
  %v5923 = vpop.f32.mrf.mxu0
  %v5924 = vadd.f32 %v4210, %v5923
  %v5925 = vpop.f32.mrf.mxu0
  %v5926 = vadd.f32 %v4210, %v5925
  %5927 = vmatprep.mubr.f32.mxu0 %v4113
  %5928 = vmatmul.mubr.f32.gmra.mxu0 %v4112
  %v5929 = vpop.f32.mrf.mxu0
  %v5930 = vadd.f32 %v4215, %v5929
  %v5931 = vpop.f32.mrf.mxu0
  %v5932 = vadd.f32 %v4215, %v5931
  %5933 = vmatprep.mubr.f32.mxu0 %v4116
  %5934 = vmatmul.mubr.f32.gmra.mxu0 %v4115
  %v5935 = vpop.f32.mrf.mxu0
  %v5936 = vadd.f32 %v4220, %v5935
  %v5937 = vpop.f32.mrf.mxu0
  %v5938 = vadd.f32 %v4220, %v5937
  %5939 = vmatprep.mubr.f32.mxu0 %v4119
  %5940 = vmatmul.mubr.f32.gmra.mxu0 %v4118
  %v5941 = vpop.f32.mrf.mxu0
  %v5942 = vadd.f32 %v4225, %v5941
  %v5943 = vpop.f32.mrf.mxu0
  %v5944 = vadd.f32 %v4225, %v5943
  %5945 = vmatprep.mubr.f32.mxu0 %v4122
  %5946 = vmatmul.mubr.f32.gmra.mxu0 %v4121
  %v5947 = vpop.f32.mrf.mxu0
  %v5948 = vadd.f32 %v4230, %v5947
  %v5949 = vpop.f32.mrf.mxu0
  %v5950 = vadd.f32 %v4230, %v5949
  %5951 = vmatprep.mubr.f32.mxu0 %v4125
  %5952 = vmatmul.mubr.f32.gmra.mxu0 %v4124
  %v5953 = vpop.f32.mrf.mxu0
  %v5954 = vadd.f32 %v4235, %v5953
  %v5955 = vpop.f32.mrf.mxu0
  %v5956 = vadd.f32 %v4235, %v5955
  %5957 = vmatprep.mubr.f32.mxu0 %v4128
  %5958 = vmatmul.mubr.f32.gmra.mxu0 %v4127
  %v5959 = vpop.f32.mrf.mxu0
  %v5960 = vadd.f32 %v4240, %v5959
  %v5961 = vpop.f32.mrf.mxu0
  %v5962 = vadd.f32 %v4240, %v5961
  %5963 = vmatprep.mubr.f32.mxu0 %v4131
  %5964 = vmatmul.mubr.f32.gmra.mxu0 %v4130
  %v5965 = vpop.f32.mrf.mxu0
  %v5966 = vadd.f32 %v4245, %v5965
  %v5967 = vpop.f32.mrf.mxu0
  %v5968 = vadd.f32 %v4245, %v5967
  %5969 = vmatprep.mubr.f32.mxu0 %v4134
  %5970 = vmatmul.mubr.f32.gmra.mxu0 %v4133
  %v5971 = vpop.f32.mrf.mxu0
  %v5972 = vadd.f32 %v4250, %v5971
  %v5973 = vpop.f32.mrf.mxu0
  %v5974 = vadd.f32 %v4250, %v5973
  %5975 = vmatprep.mubr.f32.mxu0 %v4137
  %5976 = vmatmul.mubr.f32.gmra.mxu0 %v4136
  %v5977 = vpop.f32.mrf.mxu0
  %v5978 = vadd.f32 %v4255, %v5977
  %v5979 = vpop.f32.mrf.mxu0
  %v5980 = vadd.f32 %v4255, %v5979
  %5981 = vmatprep.mubr.f32.mxu0 %v4140
  %5982 = vmatmul.mubr.f32.gmra.mxu0 %v4139
  %v5983 = vpop.f32.mrf.mxu0
  %v5984 = vadd.f32 %v4260, %v5983
  %v5985 = vpop.f32.mrf.mxu0
  %v5986 = vadd.f32 %v4260, %v5985
  %5987 = vdwg.mxu0
  %5988 = vmatprep.subr.mxu0 0.0
  %5989 = vmatpush1.msra.mxu0 0.0
  %5990 = vmatprep.subr.mxu0 0.0
  %5991 = vmatpush1.msra.mxu0 0.0
  %5992 = vmatprep.subr.mxu0 0.0
  %5993 = vmatpush1.msra.mxu0 0.0
  %5994 = vmatprep.subr.mxu0 0.0
  %5995 = vmatpush1.msra.mxu0 0.0
  %5996 = vmatprep.subr.mxu0 0.0
  %5997 = vmatpush1.msra.mxu0 0.0
  %5998 = vmatprep.subr.mxu0 0.0
  %5999 = vmatpush1.msra.mxu0 0.0
  %6000 = vmatprep.subr.mxu0 0.0
  %6001 = vmatpush1.msra.mxu0 0.0
  %6002 = vmatprep.subr.mxu0 0.0
  %6003 = vmatpush1.msra.mxu0 0.0
  %6004 = vmatprep.subr.mxu0 %v4071
  %6005 = vmatpush1.msra.mxu0 %v4070
  %6006 = vmatprep.subr.mxu0 %v4051
  %6007 = vmatpush1.msra.mxu0 %v4050
  %6008 = vmatprep.subr.mxu0 %v4031
  %6009 = vmatpush1.msra.mxu0 %v4030
  %6010 = vmatprep.subr.mxu0 %v4011
  %6011 = vmatpush1.msra.mxu0 %v4010
  %6012 = vmatprep.subr.mxu0 %v3991
  %6013 = vmatpush1.msra.mxu0 %v3990
  %6014 = vmatprep.subr.mxu0 %v3971
  %6015 = vmatpush1.msra.mxu0 %v3970
  %6016 = vmatprep.subr.mxu0 %v3951
  %6017 = vmatpush1.msra.mxu0 %v3950
  %6018 = vmatprep.subr.mxu0 %v3931
  %6019 = vmatpush1.msra.mxu0 %v3930
  %6020 = vmatprep.subr.mxu0 0.0
  %6021 = vmatpush2.msra.mxu0 0.0
  %6022 = vmatprep.subr.mxu0 0.0
  %6023 = vmatpush2.msra.mxu0 0.0
  %6024 = vmatprep.subr.mxu0 0.0
  %6025 = vmatpush2.msra.mxu0 0.0
  %6026 = vmatprep.subr.mxu0 0.0
  %6027 = vmatpush2.msra.mxu0 0.0
  %6028 = vmatprep.subr.mxu0 0.0
  %6029 = vmatpush2.msra.mxu0 0.0
  %6030 = vmatprep.subr.mxu0 0.0
  %6031 = vmatpush2.msra.mxu0 0.0
  %6032 = vmatprep.subr.mxu0 0.0
  %6033 = vmatpush2.msra.mxu0 0.0
  %6034 = vmatprep.subr.mxu0 0.0
  %6035 = vmatpush2.msra.mxu0 0.0
  %6036 = vmatprep.subr.mxu0 0.0
  %6037 = vmatpush2.msra.mxu0 0.0
  %6038 = vmatprep.subr.mxu0 0.0
  %6039 = vmatpush2.msra.mxu0 0.0
  %6040 = vmatprep.subr.mxu0 0.0
  %6041 = vmatpush2.msra.mxu0 0.0
  %6042 = vmatprep.subr.mxu0 0.0
  %6043 = vmatpush2.msra.mxu0 0.0
  %6044 = vmatprep.subr.mxu0 0.0
  %6045 = vmatpush2.msra.mxu0 0.0
  %6046 = vmatprep.subr.mxu0 0.0
  %6047 = vmatpush2.msra.mxu0 0.0
  %6048 = vmatprep.subr.mxu0 0.0
  %6049 = vmatpush2.msra.mxu0 0.0
  %6050 = vmatprep.subr.mxu0 0.0
  %6051 = vmatpush2.msra.mxu0 0.0
  %6052 = vmatprep.mubr.f32.mxu0 0.0
  %6053 = vmatmul.mubr.f32.gmra.mxu0 %v4264
  %v6054 = vpop.f32.mrf.mxu0
  %v6055 = vadd.f32 %v5870, %v6054
  %v6056 = vpop.f32.mrf.mxu0
  %v6057 = vadd.f32 %v5872, %v6056
  %6058 = vmatprep.mubr.f32.mxu0 0.0
  %6059 = vmatmul.mubr.f32.gmra.mxu0 %v4267
  %v6060 = vpop.f32.mrf.mxu0
  %v6061 = vadd.f32 %v5876, %v6060
  %v6062 = vpop.f32.mrf.mxu0
  %v6063 = vadd.f32 %v5878, %v6062
  %6064 = vmatprep.mubr.f32.mxu0 0.0
  %6065 = vmatmul.mubr.f32.gmra.mxu0 %v4270
  %v6066 = vpop.f32.mrf.mxu0
  %v6067 = vadd.f32 %v5882, %v6066
  %v6068 = vpop.f32.mrf.mxu0
  %v6069 = vadd.f32 %v5884, %v6068
  %6070 = vmatprep.mubr.f32.mxu0 0.0
  %6071 = vmatmul.mubr.f32.gmra.mxu0 %v4273
  %v6072 = vpop.f32.mrf.mxu0
  %v6073 = vadd.f32 %v5888, %v6072
  %v6074 = vpop.f32.mrf.mxu0
  %v6075 = vadd.f32 %v5890, %v6074
  %6076 = vmatprep.mubr.f32.mxu0 0.0
  %6077 = vmatmul.mubr.f32.gmra.mxu0 %v4276
  %v6078 = vpop.f32.mrf.mxu0
  %v6079 = vadd.f32 %v5894, %v6078
  %v6080 = vpop.f32.mrf.mxu0
  %v6081 = vadd.f32 %v5896, %v6080
  %6082 = vmatprep.mubr.f32.mxu0 0.0
  %6083 = vmatmul.mubr.f32.gmra.mxu0 %v4279
  %v6084 = vpop.f32.mrf.mxu0
  %v6085 = vadd.f32 %v5900, %v6084
  %v6086 = vpop.f32.mrf.mxu0
  %v6087 = vadd.f32 %v5902, %v6086
  %6088 = vmatprep.mubr.f32.mxu0 0.0
  %6089 = vmatmul.mubr.f32.gmra.mxu0 %v4282
  %v6090 = vpop.f32.mrf.mxu0
  %v6091 = vadd.f32 %v5906, %v6090
  %v6092 = vpop.f32.mrf.mxu0
  %v6093 = vadd.f32 %v5908, %v6092
  %6094 = vmatprep.mubr.f32.mxu0 0.0
  %6095 = vmatmul.mubr.f32.gmra.mxu0 %v4285
  %v6096 = vpop.f32.mrf.mxu0
  %v6097 = vadd.f32 %v5912, %v6096
  %v6098 = vpop.f32.mrf.mxu0
  %v6099 = vadd.f32 %v5914, %v6098
  %6100 = vmatprep.mubr.f32.mxu0 0.0
  %6101 = vmatmul.mubr.f32.gmra.mxu0 %v4288
  %v6102 = vpop.f32.mrf.mxu0
  %v6103 = vadd.f32 %v5918, %v6102
  %v6104 = vpop.f32.mrf.mxu0
  %v6105 = vadd.f32 %v5920, %v6104
  %6106 = vmatprep.mubr.f32.mxu0 0.0
  %6107 = vmatmul.mubr.f32.gmra.mxu0 %v4291
  %v6108 = vpop.f32.mrf.mxu0
  %v6109 = vadd.f32 %v5924, %v6108
  %v6110 = vpop.f32.mrf.mxu0
  %v6111 = vadd.f32 %v5926, %v6110
  %6112 = vmatprep.mubr.f32.mxu0 0.0
  %6113 = vmatmul.mubr.f32.gmra.mxu0 %v4294
  %v6114 = vpop.f32.mrf.mxu0
  %v6115 = vadd.f32 %v5930, %v6114
  %v6116 = vpop.f32.mrf.mxu0
  %v6117 = vadd.f32 %v5932, %v6116
  %6118 = vmatprep.mubr.f32.mxu0 0.0
  %6119 = vmatmul.mubr.f32.gmra.mxu0 %v4297
  %v6120 = vpop.f32.mrf.mxu0
  %v6121 = vadd.f32 %v5936, %v6120
  %v6122 = vpop.f32.mrf.mxu0
  %v6123 = vadd.f32 %v5938, %v6122
  %6124 = vmatprep.mubr.f32.mxu0 0.0
  %6125 = vmatmul.mubr.f32.gmra.mxu0 %v4300
  %v6126 = vpop.f32.mrf.mxu0
  %v6127 = vadd.f32 %v5942, %v6126
  %v6128 = vpop.f32.mrf.mxu0
  %v6129 = vadd.f32 %v5944, %v6128
  %6130 = vmatprep.mubr.f32.mxu0 0.0
  %6131 = vmatmul.mubr.f32.gmra.mxu0 %v4303
  %v6132 = vpop.f32.mrf.mxu0
  %v6133 = vadd.f32 %v5948, %v6132
  %v6134 = vpop.f32.mrf.mxu0
  %v6135 = vadd.f32 %v5950, %v6134
  %6136 = vmatprep.mubr.f32.mxu0 0.0
  %6137 = vmatmul.mubr.f32.gmra.mxu0 %v4306
  %v6138 = vpop.f32.mrf.mxu0
  %v6139 = vadd.f32 %v5954, %v6138
  %v6140 = vpop.f32.mrf.mxu0
  %v6141 = vadd.f32 %v5956, %v6140
  %6142 = vmatprep.mubr.f32.mxu0 0.0
  %6143 = vmatmul.mubr.f32.gmra.mxu0 %v4309
  %v6144 = vpop.f32.mrf.mxu0
  %v6145 = vadd.f32 %v5960, %v6144
  %v6146 = vpop.f32.mrf.mxu0
  %v6147 = vadd.f32 %v5962, %v6146
  %6148 = vmatprep.mubr.f32.mxu0 0.0
  %6149 = vmatmul.mubr.f32.gmra.mxu0 %v4312
  %v6150 = vpop.f32.mrf.mxu0
  %v6151 = vadd.f32 %v5966, %v6150
  %v6152 = vpop.f32.mrf.mxu0
  %v6153 = vadd.f32 %v5968, %v6152
  %6154 = vmatprep.mubr.f32.mxu0 0.0
  %6155 = vmatmul.mubr.f32.gmra.mxu0 %v4315
  %v6156 = vpop.f32.mrf.mxu0
  %v6157 = vadd.f32 %v5972, %v6156
  %v6158 = vpop.f32.mrf.mxu0
  %v6159 = vadd.f32 %v5974, %v6158
  %6160 = vmatprep.mubr.f32.mxu0 0.0
  %6161 = vmatmul.mubr.f32.gmra.mxu0 %v4318
  %v6162 = vpop.f32.mrf.mxu0
  %v6163 = vadd.f32 %v5978, %v6162
  %v6164 = vpop.f32.mrf.mxu0
  %v6165 = vadd.f32 %v5980, %v6164
  %6166 = vmatprep.mubr.f32.mxu0 0.0
  %6167 = vmatmul.mubr.f32.gmra.mxu0 %v4321
  %v6168 = vpop.f32.mrf.mxu0
  %v6169 = vadd.f32 %v5984, %v6168
  %v6170 = vpop.f32.mrf.mxu0
  %v6171 = vadd.f32 %v5986, %v6170
  %6172 = vdwg.mxu0
  %6173 = vmatprep.subr.mxu0 %v3593
  %6174 = vmatpush1.msra.mxu0 %v3592
  %6175 = vmatprep.subr.mxu0 %v3573
  %6176 = vmatpush1.msra.mxu0 %v3572
  %6177 = vmatprep.subr.mxu0 %v3553
  %6178 = vmatpush1.msra.mxu0 %v3552
  %6179 = vmatprep.subr.mxu0 %v3533
  %6180 = vmatpush1.msra.mxu0 %v3532
  %6181 = vmatprep.subr.mxu0 %v3513
  %6182 = vmatpush1.msra.mxu0 %v3512
  %6183 = vmatprep.subr.mxu0 %v3493
  %6184 = vmatpush1.msra.mxu0 %v3492
  %6185 = vmatprep.subr.mxu0 %v3473
  %6186 = vmatpush1.msra.mxu0 %v3472
  %6187 = vmatprep.subr.mxu0 %v3453
  %6188 = vmatpush1.msra.mxu0 %v3452
  %6189 = vmatprep.subr.mxu0 %v3433
  %6190 = vmatpush1.msra.mxu0 %v3432
  %6191 = vmatprep.subr.mxu0 %v3413
  %6192 = vmatpush1.msra.mxu0 %v3412
  %6193 = vmatprep.subr.mxu0 %v3393
  %6194 = vmatpush1.msra.mxu0 %v3392
  %6195 = vmatprep.subr.mxu0 %v3373
  %6196 = vmatpush1.msra.mxu0 %v3372
  %6197 = vmatprep.subr.mxu0 %v3353
  %6198 = vmatpush1.msra.mxu0 %v3352
  %6199 = vmatprep.subr.mxu0 %v3333
  %6200 = vmatpush1.msra.mxu0 %v3332
  %6201 = vmatprep.subr.mxu0 %v3313
  %6202 = vmatpush1.msra.mxu0 %v3312
  %6203 = vmatprep.subr.mxu0 %v3293
  %6204 = vmatpush1.msra.mxu0 %v3292
  %6205 = vmatprep.subr.mxu0 %v3913
  %6206 = vmatpush2.msra.mxu0 %v3912
  %6207 = vmatprep.subr.mxu0 %v3893
  %6208 = vmatpush2.msra.mxu0 %v3892
  %6209 = vmatprep.subr.mxu0 %v3873
  %6210 = vmatpush2.msra.mxu0 %v3872
  %6211 = vmatprep.subr.mxu0 %v3853
  %6212 = vmatpush2.msra.mxu0 %v3852
  %6213 = vmatprep.subr.mxu0 %v3833
  %6214 = vmatpush2.msra.mxu0 %v3832
  %6215 = vmatprep.subr.mxu0 %v3813
  %6216 = vmatpush2.msra.mxu0 %v3812
  %6217 = vmatprep.subr.mxu0 %v3793
  %6218 = vmatpush2.msra.mxu0 %v3792
  %6219 = vmatprep.subr.mxu0 %v3773
  %6220 = vmatpush2.msra.mxu0 %v3772
  %6221 = vmatprep.subr.mxu0 %v3753
  %6222 = vmatpush2.msra.mxu0 %v3752
  %6223 = vmatprep.subr.mxu0 %v3733
  %6224 = vmatpush2.msra.mxu0 %v3732
  %6225 = vmatprep.subr.mxu0 %v3713
  %6226 = vmatpush2.msra.mxu0 %v3712
  %6227 = vmatprep.subr.mxu0 %v3693
  %6228 = vmatpush2.msra.mxu0 %v3692
  %6229 = vmatprep.subr.mxu0 %v3673
  %6230 = vmatpush2.msra.mxu0 %v3672
  %6231 = vmatprep.subr.mxu0 %v3653
  %6232 = vmatpush2.msra.mxu0 %v3652
  %6233 = vmatprep.subr.mxu0 %v3633
  %6234 = vmatpush2.msra.mxu0 %v3632
  %6235 = vmatprep.subr.mxu0 %v3613
  %6236 = vmatpush2.msra.mxu0 %v3612
  %6237 = vmatprep.mubr.f32.mxu0 %v4083
  %6238 = vmatmul.mubr.f32.gmra.mxu0 %v4082
  %v6239 = vpop.f32.mrf.mxu0
  %v6240 = vadd.f32 %v4165, %v6239
  %v6241 = vpop.f32.mrf.mxu0
  %v6242 = vadd.f32 %v4165, %v6241
  %6243 = vmatprep.mubr.f32.mxu0 %v4086
  %6244 = vmatmul.mubr.f32.gmra.mxu0 %v4085
  %v6245 = vpop.f32.mrf.mxu0
  %v6246 = vadd.f32 %v4170, %v6245
  %v6247 = vpop.f32.mrf.mxu0
  %v6248 = vadd.f32 %v4170, %v6247
  %6249 = vmatprep.mubr.f32.mxu0 %v4089
  %6250 = vmatmul.mubr.f32.gmra.mxu0 %v4088
  %v6251 = vpop.f32.mrf.mxu0
  %v6252 = vadd.f32 %v4175, %v6251
  %v6253 = vpop.f32.mrf.mxu0
  %v6254 = vadd.f32 %v4175, %v6253
  %6255 = vmatprep.mubr.f32.mxu0 %v4092
  %6256 = vmatmul.mubr.f32.gmra.mxu0 %v4091
  %v6257 = vpop.f32.mrf.mxu0
  %v6258 = vadd.f32 %v4180, %v6257
  %v6259 = vpop.f32.mrf.mxu0
  %v6260 = vadd.f32 %v4180, %v6259
  %6261 = vmatprep.mubr.f32.mxu0 %v4095
  %6262 = vmatmul.mubr.f32.gmra.mxu0 %v4094
  %v6263 = vpop.f32.mrf.mxu0
  %v6264 = vadd.f32 %v4185, %v6263
  %v6265 = vpop.f32.mrf.mxu0
  %v6266 = vadd.f32 %v4185, %v6265
  %6267 = vmatprep.mubr.f32.mxu0 %v4098
  %6268 = vmatmul.mubr.f32.gmra.mxu0 %v4097
  %v6269 = vpop.f32.mrf.mxu0
  %v6270 = vadd.f32 %v4190, %v6269
  %v6271 = vpop.f32.mrf.mxu0
  %v6272 = vadd.f32 %v4190, %v6271
  %6273 = vmatprep.mubr.f32.mxu0 %v4101
  %6274 = vmatmul.mubr.f32.gmra.mxu0 %v4100
  %v6275 = vpop.f32.mrf.mxu0
  %v6276 = vadd.f32 %v4195, %v6275
  %v6277 = vpop.f32.mrf.mxu0
  %v6278 = vadd.f32 %v4195, %v6277
  %6279 = vmatprep.mubr.f32.mxu0 %v4104
  %6280 = vmatmul.mubr.f32.gmra.mxu0 %v4103
  %v6281 = vpop.f32.mrf.mxu0
  %v6282 = vadd.f32 %v4200, %v6281
  %v6283 = vpop.f32.mrf.mxu0
  %v6284 = vadd.f32 %v4200, %v6283
  %6285 = vmatprep.mubr.f32.mxu0 %v4107
  %6286 = vmatmul.mubr.f32.gmra.mxu0 %v4106
  %v6287 = vpop.f32.mrf.mxu0
  %v6288 = vadd.f32 %v4205, %v6287
  %v6289 = vpop.f32.mrf.mxu0
  %v6290 = vadd.f32 %v4205, %v6289
  %6291 = vmatprep.mubr.f32.mxu0 %v4110
  %6292 = vmatmul.mubr.f32.gmra.mxu0 %v4109
  %v6293 = vpop.f32.mrf.mxu0
  %v6294 = vadd.f32 %v4210, %v6293
  %v6295 = vpop.f32.mrf.mxu0
  %v6296 = vadd.f32 %v4210, %v6295
  %6297 = vmatprep.mubr.f32.mxu0 %v4113
  %6298 = vmatmul.mubr.f32.gmra.mxu0 %v4112
  %v6299 = vpop.f32.mrf.mxu0
  %v6300 = vadd.f32 %v4215, %v6299
  %v6301 = vpop.f32.mrf.mxu0
  %v6302 = vadd.f32 %v4215, %v6301
  %6303 = vmatprep.mubr.f32.mxu0 %v4116
  %6304 = vmatmul.mubr.f32.gmra.mxu0 %v4115
  %v6305 = vpop.f32.mrf.mxu0
  %v6306 = vadd.f32 %v4220, %v6305
  %v6307 = vpop.f32.mrf.mxu0
  %v6308 = vadd.f32 %v4220, %v6307
  %6309 = vmatprep.mubr.f32.mxu0 %v4119
  %6310 = vmatmul.mubr.f32.gmra.mxu0 %v4118
  %v6311 = vpop.f32.mrf.mxu0
  %v6312 = vadd.f32 %v4225, %v6311
  %v6313 = vpop.f32.mrf.mxu0
  %v6314 = vadd.f32 %v4225, %v6313
  %6315 = vmatprep.mubr.f32.mxu0 %v4122
  %6316 = vmatmul.mubr.f32.gmra.mxu0 %v4121
  %v6317 = vpop.f32.mrf.mxu0
  %v6318 = vadd.f32 %v4230, %v6317
  %v6319 = vpop.f32.mrf.mxu0
  %v6320 = vadd.f32 %v4230, %v6319
  %6321 = vmatprep.mubr.f32.mxu0 %v4125
  %6322 = vmatmul.mubr.f32.gmra.mxu0 %v4124
  %v6323 = vpop.f32.mrf.mxu0
  %v6324 = vadd.f32 %v4235, %v6323
  %v6325 = vpop.f32.mrf.mxu0
  %v6326 = vadd.f32 %v4235, %v6325
  %6327 = vmatprep.mubr.f32.mxu0 %v4128
  %6328 = vmatmul.mubr.f32.gmra.mxu0 %v4127
  %v6329 = vpop.f32.mrf.mxu0
  %v6330 = vadd.f32 %v4240, %v6329
  %v6331 = vpop.f32.mrf.mxu0
  %v6332 = vadd.f32 %v4240, %v6331
  %6333 = vmatprep.mubr.f32.mxu0 %v4131
  %6334 = vmatmul.mubr.f32.gmra.mxu0 %v4130
  %v6335 = vpop.f32.mrf.mxu0
  %v6336 = vadd.f32 %v4245, %v6335
  %v6337 = vpop.f32.mrf.mxu0
  %v6338 = vadd.f32 %v4245, %v6337
  %6339 = vmatprep.mubr.f32.mxu0 %v4134
  %6340 = vmatmul.mubr.f32.gmra.mxu0 %v4133
  %v6341 = vpop.f32.mrf.mxu0
  %v6342 = vadd.f32 %v4250, %v6341
  %v6343 = vpop.f32.mrf.mxu0
  %v6344 = vadd.f32 %v4250, %v6343
  %6345 = vmatprep.mubr.f32.mxu0 %v4137
  %6346 = vmatmul.mubr.f32.gmra.mxu0 %v4136
  %v6347 = vpop.f32.mrf.mxu0
  %v6348 = vadd.f32 %v4255, %v6347
  %v6349 = vpop.f32.mrf.mxu0
  %v6350 = vadd.f32 %v4255, %v6349
  %6351 = vmatprep.mubr.f32.mxu0 %v4140
  %6352 = vmatmul.mubr.f32.gmra.mxu0 %v4139
  %v6353 = vpop.f32.mrf.mxu0
  %v6354 = vadd.f32 %v4260, %v6353
  %v6355 = vpop.f32.mrf.mxu0
  %v6356 = vadd.f32 %v4260, %v6355
  %6357 = vdwg.mxu0
  %6358 = vmatprep.subr.mxu0 0.0
  %6359 = vmatpush1.msra.mxu0 0.0
  %6360 = vmatprep.subr.mxu0 0.0
  %6361 = vmatpush1.msra.mxu0 0.0
  %6362 = vmatprep.subr.mxu0 0.0
  %6363 = vmatpush1.msra.mxu0 0.0
  %6364 = vmatprep.subr.mxu0 0.0
  %6365 = vmatpush1.msra.mxu0 0.0
  %6366 = vmatprep.subr.mxu0 0.0
  %6367 = vmatpush1.msra.mxu0 0.0
  %6368 = vmatprep.subr.mxu0 0.0
  %6369 = vmatpush1.msra.mxu0 0.0
  %6370 = vmatprep.subr.mxu0 0.0
  %6371 = vmatpush1.msra.mxu0 0.0
  %6372 = vmatprep.subr.mxu0 0.0
  %6373 = vmatpush1.msra.mxu0 0.0
  %6374 = vmatprep.subr.mxu0 %v4073
  %6375 = vmatpush1.msra.mxu0 %v4072
  %6376 = vmatprep.subr.mxu0 %v4053
  %6377 = vmatpush1.msra.mxu0 %v4052
  %6378 = vmatprep.subr.mxu0 %v4033
  %6379 = vmatpush1.msra.mxu0 %v4032
  %6380 = vmatprep.subr.mxu0 %v4013
  %6381 = vmatpush1.msra.mxu0 %v4012
  %6382 = vmatprep.subr.mxu0 %v3993
  %6383 = vmatpush1.msra.mxu0 %v3992
  %6384 = vmatprep.subr.mxu0 %v3973
  %6385 = vmatpush1.msra.mxu0 %v3972
  %6386 = vmatprep.subr.mxu0 %v3953
  %6387 = vmatpush1.msra.mxu0 %v3952
  %6388 = vmatprep.subr.mxu0 %v3933
  %6389 = vmatpush1.msra.mxu0 %v3932
  %6390 = vmatprep.subr.mxu0 0.0
  %6391 = vmatpush2.msra.mxu0 0.0
  %6392 = vmatprep.subr.mxu0 0.0
  %6393 = vmatpush2.msra.mxu0 0.0
  %6394 = vmatprep.subr.mxu0 0.0
  %6395 = vmatpush2.msra.mxu0 0.0
  %6396 = vmatprep.subr.mxu0 0.0
  %6397 = vmatpush2.msra.mxu0 0.0
  %6398 = vmatprep.subr.mxu0 0.0
  %6399 = vmatpush2.msra.mxu0 0.0
  %6400 = vmatprep.subr.mxu0 0.0
  %6401 = vmatpush2.msra.mxu0 0.0
  %6402 = vmatprep.subr.mxu0 0.0
  %6403 = vmatpush2.msra.mxu0 0.0
  %6404 = vmatprep.subr.mxu0 0.0
  %6405 = vmatpush2.msra.mxu0 0.0
  %6406 = vmatprep.subr.mxu0 0.0
  %6407 = vmatpush2.msra.mxu0 0.0
  %6408 = vmatprep.subr.mxu0 0.0
  %6409 = vmatpush2.msra.mxu0 0.0
  %6410 = vmatprep.subr.mxu0 0.0
  %6411 = vmatpush2.msra.mxu0 0.0
  %6412 = vmatprep.subr.mxu0 0.0
  %6413 = vmatpush2.msra.mxu0 0.0
  %6414 = vmatprep.subr.mxu0 0.0
  %6415 = vmatpush2.msra.mxu0 0.0
  %6416 = vmatprep.subr.mxu0 0.0
  %6417 = vmatpush2.msra.mxu0 0.0
  %6418 = vmatprep.subr.mxu0 0.0
  %6419 = vmatpush2.msra.mxu0 0.0
  %6420 = vmatprep.subr.mxu0 0.0
  %6421 = vmatpush2.msra.mxu0 0.0
  %6422 = vmatprep.mubr.f32.mxu0 0.0
  %6423 = vmatmul.mubr.f32.gmra.mxu0 %v4264
  %v6424 = vpop.f32.mrf.mxu0
  %v6425 = vadd.f32 %v6240, %v6424
  %v6426 = vpop.f32.mrf.mxu0
  %v6427 = vadd.f32 %v6242, %v6426
  %6428 = vmatprep.mubr.f32.mxu0 0.0
  %6429 = vmatmul.mubr.f32.gmra.mxu0 %v4267
  %v6430 = vpop.f32.mrf.mxu0
  %v6431 = vadd.f32 %v6246, %v6430
  %v6432 = vpop.f32.mrf.mxu0
  %v6433 = vadd.f32 %v6248, %v6432
  %6434 = vmatprep.mubr.f32.mxu0 0.0
  %6435 = vmatmul.mubr.f32.gmra.mxu0 %v4270
  %v6436 = vpop.f32.mrf.mxu0
  %v6437 = vadd.f32 %v6252, %v6436
  %v6438 = vpop.f32.mrf.mxu0
  %v6439 = vadd.f32 %v6254, %v6438
  %6440 = vmatprep.mubr.f32.mxu0 0.0
  %6441 = vmatmul.mubr.f32.gmra.mxu0 %v4273
  %v6442 = vpop.f32.mrf.mxu0
  %v6443 = vadd.f32 %v6258, %v6442
  %v6444 = vpop.f32.mrf.mxu0
  %v6445 = vadd.f32 %v6260, %v6444
  %6446 = vmatprep.mubr.f32.mxu0 0.0
  %6447 = vmatmul.mubr.f32.gmra.mxu0 %v4276
  %v6448 = vpop.f32.mrf.mxu0
  %v6449 = vadd.f32 %v6264, %v6448
  %v6450 = vpop.f32.mrf.mxu0
  %v6451 = vadd.f32 %v6266, %v6450
  %6452 = vmatprep.mubr.f32.mxu0 0.0
  %6453 = vmatmul.mubr.f32.gmra.mxu0 %v4279
  %v6454 = vpop.f32.mrf.mxu0
  %v6455 = vadd.f32 %v6270, %v6454
  %v6456 = vpop.f32.mrf.mxu0
  %v6457 = vadd.f32 %v6272, %v6456
  %6458 = vmatprep.mubr.f32.mxu0 0.0
  %6459 = vmatmul.mubr.f32.gmra.mxu0 %v4282
  %v6460 = vpop.f32.mrf.mxu0
  %v6461 = vadd.f32 %v6276, %v6460
  %v6462 = vpop.f32.mrf.mxu0
  %v6463 = vadd.f32 %v6278, %v6462
  %6464 = vmatprep.mubr.f32.mxu0 0.0
  %6465 = vmatmul.mubr.f32.gmra.mxu0 %v4285
  %v6466 = vpop.f32.mrf.mxu0
  %v6467 = vadd.f32 %v6282, %v6466
  %v6468 = vpop.f32.mrf.mxu0
  %v6469 = vadd.f32 %v6284, %v6468
  %6470 = vmatprep.mubr.f32.mxu0 0.0
  %6471 = vmatmul.mubr.f32.gmra.mxu0 %v4288
  %v6472 = vpop.f32.mrf.mxu0
  %v6473 = vadd.f32 %v6288, %v6472
  %v6474 = vpop.f32.mrf.mxu0
  %v6475 = vadd.f32 %v6290, %v6474
  %6476 = vmatprep.mubr.f32.mxu0 0.0
  %6477 = vmatmul.mubr.f32.gmra.mxu0 %v4291
  %v6478 = vpop.f32.mrf.mxu0
  %v6479 = vadd.f32 %v6294, %v6478
  %v6480 = vpop.f32.mrf.mxu0
  %v6481 = vadd.f32 %v6296, %v6480
  %6482 = vmatprep.mubr.f32.mxu0 0.0
  %6483 = vmatmul.mubr.f32.gmra.mxu0 %v4294
  %v6484 = vpop.f32.mrf.mxu0
  %v6485 = vadd.f32 %v6300, %v6484
  %v6486 = vpop.f32.mrf.mxu0
  %v6487 = vadd.f32 %v6302, %v6486
  %6488 = vmatprep.mubr.f32.mxu0 0.0
  %6489 = vmatmul.mubr.f32.gmra.mxu0 %v4297
  %v6490 = vpop.f32.mrf.mxu0
  %v6491 = vadd.f32 %v6306, %v6490
  %v6492 = vpop.f32.mrf.mxu0
  %v6493 = vadd.f32 %v6308, %v6492
  %6494 = vmatprep.mubr.f32.mxu0 0.0
  %6495 = vmatmul.mubr.f32.gmra.mxu0 %v4300
  %v6496 = vpop.f32.mrf.mxu0
  %v6497 = vadd.f32 %v6312, %v6496
  %v6498 = vpop.f32.mrf.mxu0
  %v6499 = vadd.f32 %v6314, %v6498
  %6500 = vmatprep.mubr.f32.mxu0 0.0
  %6501 = vmatmul.mubr.f32.gmra.mxu0 %v4303
  %v6502 = vpop.f32.mrf.mxu0
  %v6503 = vadd.f32 %v6318, %v6502
  %v6504 = vpop.f32.mrf.mxu0
  %v6505 = vadd.f32 %v6320, %v6504
  %6506 = vmatprep.mubr.f32.mxu0 0.0
  %6507 = vmatmul.mubr.f32.gmra.mxu0 %v4306
  %v6508 = vpop.f32.mrf.mxu0
  %v6509 = vadd.f32 %v6324, %v6508
  %v6510 = vpop.f32.mrf.mxu0
  %v6511 = vadd.f32 %v6326, %v6510
  %6512 = vmatprep.mubr.f32.mxu0 0.0
  %6513 = vmatmul.mubr.f32.gmra.mxu0 %v4309
  %v6514 = vpop.f32.mrf.mxu0
  %v6515 = vadd.f32 %v6330, %v6514
  %v6516 = vpop.f32.mrf.mxu0
  %v6517 = vadd.f32 %v6332, %v6516
  %6518 = vmatprep.mubr.f32.mxu0 0.0
  %6519 = vmatmul.mubr.f32.gmra.mxu0 %v4312
  %v6520 = vpop.f32.mrf.mxu0
  %v6521 = vadd.f32 %v6336, %v6520
  %v6522 = vpop.f32.mrf.mxu0
  %v6523 = vadd.f32 %v6338, %v6522
  %6524 = vmatprep.mubr.f32.mxu0 0.0
  %6525 = vmatmul.mubr.f32.gmra.mxu0 %v4315
  %v6526 = vpop.f32.mrf.mxu0
  %v6527 = vadd.f32 %v6342, %v6526
  %v6528 = vpop.f32.mrf.mxu0
  %v6529 = vadd.f32 %v6344, %v6528
  %6530 = vmatprep.mubr.f32.mxu0 0.0
  %6531 = vmatmul.mubr.f32.gmra.mxu0 %v4318
  %v6532 = vpop.f32.mrf.mxu0
  %v6533 = vadd.f32 %v6348, %v6532
  %v6534 = vpop.f32.mrf.mxu0
  %v6535 = vadd.f32 %v6350, %v6534
  %6536 = vmatprep.mubr.f32.mxu0 0.0
  %6537 = vmatmul.mubr.f32.gmra.mxu0 %v4321
  %v6538 = vpop.f32.mrf.mxu0
  %v6539 = vadd.f32 %v6354, %v6538
  %v6540 = vpop.f32.mrf.mxu0
  %v6541 = vadd.f32 %v6356, %v6540
  %6542 = vdwg.mxu0
  %6543 = vmatprep.subr.mxu0 %v3595
  %6544 = vmatpush1.msra.mxu0 %v3594
  %6545 = vmatprep.subr.mxu0 %v3575
  %6546 = vmatpush1.msra.mxu0 %v3574
  %6547 = vmatprep.subr.mxu0 %v3555
  %6548 = vmatpush1.msra.mxu0 %v3554
  %6549 = vmatprep.subr.mxu0 %v3535
  %6550 = vmatpush1.msra.mxu0 %v3534
  %6551 = vmatprep.subr.mxu0 %v3515
  %6552 = vmatpush1.msra.mxu0 %v3514
  %6553 = vmatprep.subr.mxu0 %v3495
  %6554 = vmatpush1.msra.mxu0 %v3494
  %6555 = vmatprep.subr.mxu0 %v3475
  %6556 = vmatpush1.msra.mxu0 %v3474
  %6557 = vmatprep.subr.mxu0 %v3455
  %6558 = vmatpush1.msra.mxu0 %v3454
  %6559 = vmatprep.subr.mxu0 %v3435
  %6560 = vmatpush1.msra.mxu0 %v3434
  %6561 = vmatprep.subr.mxu0 %v3415
  %6562 = vmatpush1.msra.mxu0 %v3414
  %6563 = vmatprep.subr.mxu0 %v3395
  %6564 = vmatpush1.msra.mxu0 %v3394
  %6565 = vmatprep.subr.mxu0 %v3375
  %6566 = vmatpush1.msra.mxu0 %v3374
  %6567 = vmatprep.subr.mxu0 %v3355
  %6568 = vmatpush1.msra.mxu0 %v3354
  %6569 = vmatprep.subr.mxu0 %v3335
  %6570 = vmatpush1.msra.mxu0 %v3334
  %6571 = vmatprep.subr.mxu0 %v3315
  %6572 = vmatpush1.msra.mxu0 %v3314
  %6573 = vmatprep.subr.mxu0 %v3295
  %6574 = vmatpush1.msra.mxu0 %v3294
  %6575 = vmatprep.subr.mxu0 %v3915
  %6576 = vmatpush2.msra.mxu0 %v3914
  %6577 = vmatprep.subr.mxu0 %v3895
  %6578 = vmatpush2.msra.mxu0 %v3894
  %6579 = vmatprep.subr.mxu0 %v3875
  %6580 = vmatpush2.msra.mxu0 %v3874
  %6581 = vmatprep.subr.mxu0 %v3855
  %6582 = vmatpush2.msra.mxu0 %v3854
  %6583 = vmatprep.subr.mxu0 %v3835
  %6584 = vmatpush2.msra.mxu0 %v3834
  %6585 = vmatprep.subr.mxu0 %v3815
  %6586 = vmatpush2.msra.mxu0 %v3814
  %6587 = vmatprep.subr.mxu0 %v3795
  %6588 = vmatpush2.msra.mxu0 %v3794
  %6589 = vmatprep.subr.mxu0 %v3775
  %6590 = vmatpush2.msra.mxu0 %v3774
  %6591 = vmatprep.subr.mxu0 %v3755
  %6592 = vmatpush2.msra.mxu0 %v3754
  %6593 = vmatprep.subr.mxu0 %v3735
  %6594 = vmatpush2.msra.mxu0 %v3734
  %6595 = vmatprep.subr.mxu0 %v3715
  %6596 = vmatpush2.msra.mxu0 %v3714
  %6597 = vmatprep.subr.mxu0 %v3695
  %6598 = vmatpush2.msra.mxu0 %v3694
  %6599 = vmatprep.subr.mxu0 %v3675
  %6600 = vmatpush2.msra.mxu0 %v3674
  %6601 = vmatprep.subr.mxu0 %v3655
  %6602 = vmatpush2.msra.mxu0 %v3654
  %6603 = vmatprep.subr.mxu0 %v3635
  %6604 = vmatpush2.msra.mxu0 %v3634
  %6605 = vmatprep.subr.mxu0 %v3615
  %6606 = vmatpush2.msra.mxu0 %v3614
  %6607 = vmatprep.mubr.f32.mxu0 %v4083
  %6608 = vmatmul.mubr.f32.gmra.mxu0 %v4082
  %v6609 = vpop.f32.mrf.mxu0
  %v6610 = vadd.f32 %v4165, %v6609
  %v6611 = vpop.f32.mrf.mxu0
  %v6612 = vadd.f32 %v4165, %v6611
  %6613 = vmatprep.mubr.f32.mxu0 %v4086
  %6614 = vmatmul.mubr.f32.gmra.mxu0 %v4085
  %v6615 = vpop.f32.mrf.mxu0
  %v6616 = vadd.f32 %v4170, %v6615
  %v6617 = vpop.f32.mrf.mxu0
  %v6618 = vadd.f32 %v4170, %v6617
  %6619 = vmatprep.mubr.f32.mxu0 %v4089
  %6620 = vmatmul.mubr.f32.gmra.mxu0 %v4088
  %v6621 = vpop.f32.mrf.mxu0
  %v6622 = vadd.f32 %v4175, %v6621
  %v6623 = vpop.f32.mrf.mxu0
  %v6624 = vadd.f32 %v4175, %v6623
  %6625 = vmatprep.mubr.f32.mxu0 %v4092
  %6626 = vmatmul.mubr.f32.gmra.mxu0 %v4091
  %v6627 = vpop.f32.mrf.mxu0
  %v6628 = vadd.f32 %v4180, %v6627
  %v6629 = vpop.f32.mrf.mxu0
  %v6630 = vadd.f32 %v4180, %v6629
  %6631 = vmatprep.mubr.f32.mxu0 %v4095
  %6632 = vmatmul.mubr.f32.gmra.mxu0 %v4094
  %v6633 = vpop.f32.mrf.mxu0
  %v6634 = vadd.f32 %v4185, %v6633
  %v6635 = vpop.f32.mrf.mxu0
  %v6636 = vadd.f32 %v4185, %v6635
  %6637 = vmatprep.mubr.f32.mxu0 %v4098
  %6638 = vmatmul.mubr.f32.gmra.mxu0 %v4097
  %v6639 = vpop.f32.mrf.mxu0
  %v6640 = vadd.f32 %v4190, %v6639
  %v6641 = vpop.f32.mrf.mxu0
  %v6642 = vadd.f32 %v4190, %v6641
  %6643 = vmatprep.mubr.f32.mxu0 %v4101
  %6644 = vmatmul.mubr.f32.gmra.mxu0 %v4100
  %v6645 = vpop.f32.mrf.mxu0
  %v6646 = vadd.f32 %v4195, %v6645
  %v6647 = vpop.f32.mrf.mxu0
  %v6648 = vadd.f32 %v4195, %v6647
  %6649 = vmatprep.mubr.f32.mxu0 %v4104
  %6650 = vmatmul.mubr.f32.gmra.mxu0 %v4103
  %v6651 = vpop.f32.mrf.mxu0
  %v6652 = vadd.f32 %v4200, %v6651
  %v6653 = vpop.f32.mrf.mxu0
  %v6654 = vadd.f32 %v4200, %v6653
  %6655 = vmatprep.mubr.f32.mxu0 %v4107
  %6656 = vmatmul.mubr.f32.gmra.mxu0 %v4106
  %v6657 = vpop.f32.mrf.mxu0
  %v6658 = vadd.f32 %v4205, %v6657
  %v6659 = vpop.f32.mrf.mxu0
  %v6660 = vadd.f32 %v4205, %v6659
  %6661 = vmatprep.mubr.f32.mxu0 %v4110
  %6662 = vmatmul.mubr.f32.gmra.mxu0 %v4109
  %v6663 = vpop.f32.mrf.mxu0
  %v6664 = vadd.f32 %v4210, %v6663
  %v6665 = vpop.f32.mrf.mxu0
  %v6666 = vadd.f32 %v4210, %v6665
  %6667 = vmatprep.mubr.f32.mxu0 %v4113
  %6668 = vmatmul.mubr.f32.gmra.mxu0 %v4112
  %v6669 = vpop.f32.mrf.mxu0
  %v6670 = vadd.f32 %v4215, %v6669
  %v6671 = vpop.f32.mrf.mxu0
  %v6672 = vadd.f32 %v4215, %v6671
  %6673 = vmatprep.mubr.f32.mxu0 %v4116
  %6674 = vmatmul.mubr.f32.gmra.mxu0 %v4115
  %v6675 = vpop.f32.mrf.mxu0
  %v6676 = vadd.f32 %v4220, %v6675
  %v6677 = vpop.f32.mrf.mxu0
  %v6678 = vadd.f32 %v4220, %v6677
  %6679 = vmatprep.mubr.f32.mxu0 %v4119
  %6680 = vmatmul.mubr.f32.gmra.mxu0 %v4118
  %v6681 = vpop.f32.mrf.mxu0
  %v6682 = vadd.f32 %v4225, %v6681
  %v6683 = vpop.f32.mrf.mxu0
  %v6684 = vadd.f32 %v4225, %v6683
  %6685 = vmatprep.mubr.f32.mxu0 %v4122
  %6686 = vmatmul.mubr.f32.gmra.mxu0 %v4121
  %v6687 = vpop.f32.mrf.mxu0
  %v6688 = vadd.f32 %v4230, %v6687
  %v6689 = vpop.f32.mrf.mxu0
  %v6690 = vadd.f32 %v4230, %v6689
  %6691 = vmatprep.mubr.f32.mxu0 %v4125
  %6692 = vmatmul.mubr.f32.gmra.mxu0 %v4124
  %v6693 = vpop.f32.mrf.mxu0
  %v6694 = vadd.f32 %v4235, %v6693
  %v6695 = vpop.f32.mrf.mxu0
  %v6696 = vadd.f32 %v4235, %v6695
  %6697 = vmatprep.mubr.f32.mxu0 %v4128
  %6698 = vmatmul.mubr.f32.gmra.mxu0 %v4127
  %v6699 = vpop.f32.mrf.mxu0
  %v6700 = vadd.f32 %v4240, %v6699
  %v6701 = vpop.f32.mrf.mxu0
  %v6702 = vadd.f32 %v4240, %v6701
  %6703 = vmatprep.mubr.f32.mxu0 %v4131
  %6704 = vmatmul.mubr.f32.gmra.mxu0 %v4130
  %v6705 = vpop.f32.mrf.mxu0
  %v6706 = vadd.f32 %v4245, %v6705
  %v6707 = vpop.f32.mrf.mxu0
  %v6708 = vadd.f32 %v4245, %v6707
  %6709 = vmatprep.mubr.f32.mxu0 %v4134
  %6710 = vmatmul.mubr.f32.gmra.mxu0 %v4133
  %v6711 = vpop.f32.mrf.mxu0
  %v6712 = vadd.f32 %v4250, %v6711
  %v6713 = vpop.f32.mrf.mxu0
  %v6714 = vadd.f32 %v4250, %v6713
  %6715 = vmatprep.mubr.f32.mxu0 %v4137
  %6716 = vmatmul.mubr.f32.gmra.mxu0 %v4136
  %v6717 = vpop.f32.mrf.mxu0
  %v6718 = vadd.f32 %v4255, %v6717
  %v6719 = vpop.f32.mrf.mxu0
  %v6720 = vadd.f32 %v4255, %v6719
  %6721 = vmatprep.mubr.f32.mxu0 %v4140
  %6722 = vmatmul.mubr.f32.gmra.mxu0 %v4139
  %v6723 = vpop.f32.mrf.mxu0
  %v6724 = vadd.f32 %v4260, %v6723
  %v6725 = vpop.f32.mrf.mxu0
  %v6726 = vadd.f32 %v4260, %v6725
  %6727 = vdwg.mxu0
  %6728 = vmatprep.subr.mxu0 0.0
  %6729 = vmatpush1.msra.mxu0 0.0
  %6730 = vmatprep.subr.mxu0 0.0
  %6731 = vmatpush1.msra.mxu0 0.0
  %6732 = vmatprep.subr.mxu0 0.0
  %6733 = vmatpush1.msra.mxu0 0.0
  %6734 = vmatprep.subr.mxu0 0.0
  %6735 = vmatpush1.msra.mxu0 0.0
  %6736 = vmatprep.subr.mxu0 0.0
  %6737 = vmatpush1.msra.mxu0 0.0
  %6738 = vmatprep.subr.mxu0 0.0
  %6739 = vmatpush1.msra.mxu0 0.0
  %6740 = vmatprep.subr.mxu0 0.0
  %6741 = vmatpush1.msra.mxu0 0.0
  %6742 = vmatprep.subr.mxu0 0.0
  %6743 = vmatpush1.msra.mxu0 0.0
  %6744 = vmatprep.subr.mxu0 %v4075
  %6745 = vmatpush1.msra.mxu0 %v4074
  %6746 = vmatprep.subr.mxu0 %v4055
  %6747 = vmatpush1.msra.mxu0 %v4054
  %6748 = vmatprep.subr.mxu0 %v4035
  %6749 = vmatpush1.msra.mxu0 %v4034
  %6750 = vmatprep.subr.mxu0 %v4015
  %6751 = vmatpush1.msra.mxu0 %v4014
  %6752 = vmatprep.subr.mxu0 %v3995
  %6753 = vmatpush1.msra.mxu0 %v3994
  %6754 = vmatprep.subr.mxu0 %v3975
  %6755 = vmatpush1.msra.mxu0 %v3974
  %6756 = vmatprep.subr.mxu0 %v3955
  %6757 = vmatpush1.msra.mxu0 %v3954
  %6758 = vmatprep.subr.mxu0 %v3935
  %6759 = vmatpush1.msra.mxu0 %v3934
  %6760 = vmatprep.subr.mxu0 0.0
  %6761 = vmatpush2.msra.mxu0 0.0
  %6762 = vmatprep.subr.mxu0 0.0
  %6763 = vmatpush2.msra.mxu0 0.0
  %6764 = vmatprep.subr.mxu0 0.0
  %6765 = vmatpush2.msra.mxu0 0.0
  %6766 = vmatprep.subr.mxu0 0.0
  %6767 = vmatpush2.msra.mxu0 0.0
  %6768 = vmatprep.subr.mxu0 0.0
  %6769 = vmatpush2.msra.mxu0 0.0
  %6770 = vmatprep.subr.mxu0 0.0
  %6771 = vmatpush2.msra.mxu0 0.0
  %6772 = vmatprep.subr.mxu0 0.0
  %6773 = vmatpush2.msra.mxu0 0.0
  %6774 = vmatprep.subr.mxu0 0.0
  %6775 = vmatpush2.msra.mxu0 0.0
  %6776 = vmatprep.subr.mxu0 0.0
  %6777 = vmatpush2.msra.mxu0 0.0
  %6778 = vmatprep.subr.mxu0 0.0
  %6779 = vmatpush2.msra.mxu0 0.0
  %6780 = vmatprep.subr.mxu0 0.0
  %6781 = vmatpush2.msra.mxu0 0.0
  %6782 = vmatprep.subr.mxu0 0.0
  %6783 = vmatpush2.msra.mxu0 0.0
  %6784 = vmatprep.subr.mxu0 0.0
  %6785 = vmatpush2.msra.mxu0 0.0
  %6786 = vmatprep.subr.mxu0 0.0
  %6787 = vmatpush2.msra.mxu0 0.0
  %6788 = vmatprep.subr.mxu0 0.0
  %6789 = vmatpush2.msra.mxu0 0.0
  %6790 = vmatprep.subr.mxu0 0.0
  %6791 = vmatpush2.msra.mxu0 0.0
  %6792 = vmatprep.mubr.f32.mxu0 0.0
  %6793 = vmatmul.mubr.f32.gmra.mxu0 %v4264
  %v6794 = vpop.f32.mrf.mxu0
  %v6795 = vadd.f32 %v6610, %v6794
  %v6796 = vpop.f32.mrf.mxu0
  %v6797 = vadd.f32 %v6612, %v6796
  %6798 = vmatprep.mubr.f32.mxu0 0.0
  %6799 = vmatmul.mubr.f32.gmra.mxu0 %v4267
  %v6800 = vpop.f32.mrf.mxu0
  %v6801 = vadd.f32 %v6616, %v6800
  %v6802 = vpop.f32.mrf.mxu0
  %v6803 = vadd.f32 %v6618, %v6802
  %6804 = vmatprep.mubr.f32.mxu0 0.0
  %6805 = vmatmul.mubr.f32.gmra.mxu0 %v4270
  %v6806 = vpop.f32.mrf.mxu0
  %v6807 = vadd.f32 %v6622, %v6806
  %v6808 = vpop.f32.mrf.mxu0
  %v6809 = vadd.f32 %v6624, %v6808
  %6810 = vmatprep.mubr.f32.mxu0 0.0
  %6811 = vmatmul.mubr.f32.gmra.mxu0 %v4273
  %v6812 = vpop.f32.mrf.mxu0
  %v6813 = vadd.f32 %v6628, %v6812
  %v6814 = vpop.f32.mrf.mxu0
  %v6815 = vadd.f32 %v6630, %v6814
  %6816 = vmatprep.mubr.f32.mxu0 0.0
  %6817 = vmatmul.mubr.f32.gmra.mxu0 %v4276
  %v6818 = vpop.f32.mrf.mxu0
  %v6819 = vadd.f32 %v6634, %v6818
  %v6820 = vpop.f32.mrf.mxu0
  %v6821 = vadd.f32 %v6636, %v6820
  %6822 = vmatprep.mubr.f32.mxu0 0.0
  %6823 = vmatmul.mubr.f32.gmra.mxu0 %v4279
  %v6824 = vpop.f32.mrf.mxu0
  %v6825 = vadd.f32 %v6640, %v6824
  %v6826 = vpop.f32.mrf.mxu0
  %v6827 = vadd.f32 %v6642, %v6826
  %6828 = vmatprep.mubr.f32.mxu0 0.0
  %6829 = vmatmul.mubr.f32.gmra.mxu0 %v4282
  %v6830 = vpop.f32.mrf.mxu0
  %v6831 = vadd.f32 %v6646, %v6830
  %v6832 = vpop.f32.mrf.mxu0
  %v6833 = vadd.f32 %v6648, %v6832
  %6834 = vmatprep.mubr.f32.mxu0 0.0
  %6835 = vmatmul.mubr.f32.gmra.mxu0 %v4285
  %v6836 = vpop.f32.mrf.mxu0
  %v6837 = vadd.f32 %v6652, %v6836
  %v6838 = vpop.f32.mrf.mxu0
  %v6839 = vadd.f32 %v6654, %v6838
  %6840 = vmatprep.mubr.f32.mxu0 0.0
  %6841 = vmatmul.mubr.f32.gmra.mxu0 %v4288
  %v6842 = vpop.f32.mrf.mxu0
  %v6843 = vadd.f32 %v6658, %v6842
  %v6844 = vpop.f32.mrf.mxu0
  %v6845 = vadd.f32 %v6660, %v6844
  %6846 = vmatprep.mubr.f32.mxu0 0.0
  %6847 = vmatmul.mubr.f32.gmra.mxu0 %v4291
  %v6848 = vpop.f32.mrf.mxu0
  %v6849 = vadd.f32 %v6664, %v6848
  %v6850 = vpop.f32.mrf.mxu0
  %v6851 = vadd.f32 %v6666, %v6850
  %6852 = vmatprep.mubr.f32.mxu0 0.0
  %6853 = vmatmul.mubr.f32.gmra.mxu0 %v4294
  %v6854 = vpop.f32.mrf.mxu0
  %v6855 = vadd.f32 %v6670, %v6854
  %v6856 = vpop.f32.mrf.mxu0
  %v6857 = vadd.f32 %v6672, %v6856
  %6858 = vmatprep.mubr.f32.mxu0 0.0
  %6859 = vmatmul.mubr.f32.gmra.mxu0 %v4297
  %v6860 = vpop.f32.mrf.mxu0
  %v6861 = vadd.f32 %v6676, %v6860
  %v6862 = vpop.f32.mrf.mxu0
  %v6863 = vadd.f32 %v6678, %v6862
  %6864 = vmatprep.mubr.f32.mxu0 0.0
  %6865 = vmatmul.mubr.f32.gmra.mxu0 %v4300
  %v6866 = vpop.f32.mrf.mxu0
  %v6867 = vadd.f32 %v6682, %v6866
  %v6868 = vpop.f32.mrf.mxu0
  %v6869 = vadd.f32 %v6684, %v6868
  %6870 = vmatprep.mubr.f32.mxu0 0.0
  %6871 = vmatmul.mubr.f32.gmra.mxu0 %v4303
  %v6872 = vpop.f32.mrf.mxu0
  %v6873 = vadd.f32 %v6688, %v6872
  %v6874 = vpop.f32.mrf.mxu0
  %v6875 = vadd.f32 %v6690, %v6874
  %6876 = vmatprep.mubr.f32.mxu0 0.0
  %6877 = vmatmul.mubr.f32.gmra.mxu0 %v4306
  %v6878 = vpop.f32.mrf.mxu0
  %v6879 = vadd.f32 %v6694, %v6878
  %v6880 = vpop.f32.mrf.mxu0
  %v6881 = vadd.f32 %v6696, %v6880
  %6882 = vmatprep.mubr.f32.mxu0 0.0
  %6883 = vmatmul.mubr.f32.gmra.mxu0 %v4309
  %v6884 = vpop.f32.mrf.mxu0
  %v6885 = vadd.f32 %v6700, %v6884
  %v6886 = vpop.f32.mrf.mxu0
  %v6887 = vadd.f32 %v6702, %v6886
  %6888 = vmatprep.mubr.f32.mxu0 0.0
  %6889 = vmatmul.mubr.f32.gmra.mxu0 %v4312
  %v6890 = vpop.f32.mrf.mxu0
  %v6891 = vadd.f32 %v6706, %v6890
  %v6892 = vpop.f32.mrf.mxu0
  %v6893 = vadd.f32 %v6708, %v6892
  %6894 = vmatprep.mubr.f32.mxu0 0.0
  %6895 = vmatmul.mubr.f32.gmra.mxu0 %v4315
  %v6896 = vpop.f32.mrf.mxu0
  %v6897 = vadd.f32 %v6712, %v6896
  %v6898 = vpop.f32.mrf.mxu0
  %v6899 = vadd.f32 %v6714, %v6898
  %6900 = vmatprep.mubr.f32.mxu0 0.0
  %6901 = vmatmul.mubr.f32.gmra.mxu0 %v4318
  %v6902 = vpop.f32.mrf.mxu0
  %v6903 = vadd.f32 %v6718, %v6902
  %v6904 = vpop.f32.mrf.mxu0
  %v6905 = vadd.f32 %v6720, %v6904
  %6906 = vmatprep.mubr.f32.mxu0 0.0
  %6907 = vmatmul.mubr.f32.gmra.mxu0 %v4321
  %v6908 = vpop.f32.mrf.mxu0
  %v6909 = vadd.f32 %v6724, %v6908
  %v6910 = vpop.f32.mrf.mxu0
  %v6911 = vadd.f32 %v6726, %v6910
  %6912 = vdwg.mxu0
  %6913 = vmatprep.subr.mxu0 %v3597
  %6914 = vmatpush1.msra.mxu0 %v3596
  %6915 = vmatprep.subr.mxu0 %v3577
  %6916 = vmatpush1.msra.mxu0 %v3576
  %6917 = vmatprep.subr.mxu0 %v3557
  %6918 = vmatpush1.msra.mxu0 %v3556
  %6919 = vmatprep.subr.mxu0 %v3537
  %6920 = vmatpush1.msra.mxu0 %v3536
  %6921 = vmatprep.subr.mxu0 %v3517
  %6922 = vmatpush1.msra.mxu0 %v3516
  %6923 = vmatprep.subr.mxu0 %v3497
  %6924 = vmatpush1.msra.mxu0 %v3496
  %6925 = vmatprep.subr.mxu0 %v3477
  %6926 = vmatpush1.msra.mxu0 %v3476
  %6927 = vmatprep.subr.mxu0 %v3457
  %6928 = vmatpush1.msra.mxu0 %v3456
  %6929 = vmatprep.subr.mxu0 %v3437
  %6930 = vmatpush1.msra.mxu0 %v3436
  %6931 = vmatprep.subr.mxu0 %v3417
  %6932 = vmatpush1.msra.mxu0 %v3416
  %6933 = vmatprep.subr.mxu0 %v3397
  %6934 = vmatpush1.msra.mxu0 %v3396
  %6935 = vmatprep.subr.mxu0 %v3377
  %6936 = vmatpush1.msra.mxu0 %v3376
  %6937 = vmatprep.subr.mxu0 %v3357
  %6938 = vmatpush1.msra.mxu0 %v3356
  %6939 = vmatprep.subr.mxu0 %v3337
  %6940 = vmatpush1.msra.mxu0 %v3336
  %6941 = vmatprep.subr.mxu0 %v3317
  %6942 = vmatpush1.msra.mxu0 %v3316
  %6943 = vmatprep.subr.mxu0 %v3297
  %6944 = vmatpush1.msra.mxu0 %v3296
  %6945 = vmatprep.subr.mxu0 %v3917
  %6946 = vmatpush2.msra.mxu0 %v3916
  %6947 = vmatprep.subr.mxu0 %v3897
  %6948 = vmatpush2.msra.mxu0 %v3896
  %6949 = vmatprep.subr.mxu0 %v3877
  %6950 = vmatpush2.msra.mxu0 %v3876
  %6951 = vmatprep.subr.mxu0 %v3857
  %6952 = vmatpush2.msra.mxu0 %v3856
  %6953 = vmatprep.subr.mxu0 %v3837
  %6954 = vmatpush2.msra.mxu0 %v3836
  %6955 = vmatprep.subr.mxu0 %v3817
  %6956 = vmatpush2.msra.mxu0 %v3816
  %6957 = vmatprep.subr.mxu0 %v3797
  %6958 = vmatpush2.msra.mxu0 %v3796
  %6959 = vmatprep.subr.mxu0 %v3777
  %6960 = vmatpush2.msra.mxu0 %v3776
  %6961 = vmatprep.subr.mxu0 %v3757
  %6962 = vmatpush2.msra.mxu0 %v3756
  %6963 = vmatprep.subr.mxu0 %v3737
  %6964 = vmatpush2.msra.mxu0 %v3736
  %6965 = vmatprep.subr.mxu0 %v3717
  %6966 = vmatpush2.msra.mxu0 %v3716
  %6967 = vmatprep.subr.mxu0 %v3697
  %6968 = vmatpush2.msra.mxu0 %v3696
  %6969 = vmatprep.subr.mxu0 %v3677
  %6970 = vmatpush2.msra.mxu0 %v3676
  %6971 = vmatprep.subr.mxu0 %v3657
  %6972 = vmatpush2.msra.mxu0 %v3656
  %6973 = vmatprep.subr.mxu0 %v3637
  %6974 = vmatpush2.msra.mxu0 %v3636
  %6975 = vmatprep.subr.mxu0 %v3617
  %6976 = vmatpush2.msra.mxu0 %v3616
  %6977 = vmatprep.mubr.f32.mxu0 %v4083
  %6978 = vmatmul.mubr.f32.gmra.mxu0 %v4082
  %v6979 = vpop.f32.mrf.mxu0
  %v6980 = vadd.f32 %v4165, %v6979
  %v6981 = vpop.f32.mrf.mxu0
  %v6982 = vadd.f32 %v4165, %v6981
  %6983 = vmatprep.mubr.f32.mxu0 %v4086
  %6984 = vmatmul.mubr.f32.gmra.mxu0 %v4085
  %v6985 = vpop.f32.mrf.mxu0
  %v6986 = vadd.f32 %v4170, %v6985
  %v6987 = vpop.f32.mrf.mxu0
  %v6988 = vadd.f32 %v4170, %v6987
  %6989 = vmatprep.mubr.f32.mxu0 %v4089
  %6990 = vmatmul.mubr.f32.gmra.mxu0 %v4088
  %v6991 = vpop.f32.mrf.mxu0
  %v6992 = vadd.f32 %v4175, %v6991
  %v6993 = vpop.f32.mrf.mxu0
  %v6994 = vadd.f32 %v4175, %v6993
  %6995 = vmatprep.mubr.f32.mxu0 %v4092
  %6996 = vmatmul.mubr.f32.gmra.mxu0 %v4091
  %v6997 = vpop.f32.mrf.mxu0
  %v6998 = vadd.f32 %v4180, %v6997
  %v6999 = vpop.f32.mrf.mxu0
  %v7000 = vadd.f32 %v4180, %v6999
  %7001 = vmatprep.mubr.f32.mxu0 %v4095
  %7002 = vmatmul.mubr.f32.gmra.mxu0 %v4094
  %v7003 = vpop.f32.mrf.mxu0
  %v7004 = vadd.f32 %v4185, %v7003
  %v7005 = vpop.f32.mrf.mxu0
  %v7006 = vadd.f32 %v4185, %v7005
  %7007 = vmatprep.mubr.f32.mxu0 %v4098
  %7008 = vmatmul.mubr.f32.gmra.mxu0 %v4097
  %v7009 = vpop.f32.mrf.mxu0
  %v7010 = vadd.f32 %v4190, %v7009
  %v7011 = vpop.f32.mrf.mxu0
  %v7012 = vadd.f32 %v4190, %v7011
  %7013 = vmatprep.mubr.f32.mxu0 %v4101
  %7014 = vmatmul.mubr.f32.gmra.mxu0 %v4100
  %v7015 = vpop.f32.mrf.mxu0
  %v7016 = vadd.f32 %v4195, %v7015
  %v7017 = vpop.f32.mrf.mxu0
  %v7018 = vadd.f32 %v4195, %v7017
  %7019 = vmatprep.mubr.f32.mxu0 %v4104
  %7020 = vmatmul.mubr.f32.gmra.mxu0 %v4103
  %v7021 = vpop.f32.mrf.mxu0
  %v7022 = vadd.f32 %v4200, %v7021
  %v7023 = vpop.f32.mrf.mxu0
  %v7024 = vadd.f32 %v4200, %v7023
  %7025 = vmatprep.mubr.f32.mxu0 %v4107
  %7026 = vmatmul.mubr.f32.gmra.mxu0 %v4106
  %v7027 = vpop.f32.mrf.mxu0
  %v7028 = vadd.f32 %v4205, %v7027
  %v7029 = vpop.f32.mrf.mxu0
  %v7030 = vadd.f32 %v4205, %v7029
  %7031 = vmatprep.mubr.f32.mxu0 %v4110
  %7032 = vmatmul.mubr.f32.gmra.mxu0 %v4109
  %v7033 = vpop.f32.mrf.mxu0
  %v7034 = vadd.f32 %v4210, %v7033
  %v7035 = vpop.f32.mrf.mxu0
  %v7036 = vadd.f32 %v4210, %v7035
  %7037 = vmatprep.mubr.f32.mxu0 %v4113
  %7038 = vmatmul.mubr.f32.gmra.mxu0 %v4112
  %v7039 = vpop.f32.mrf.mxu0
  %v7040 = vadd.f32 %v4215, %v7039
  %v7041 = vpop.f32.mrf.mxu0
  %v7042 = vadd.f32 %v4215, %v7041
  %7043 = vmatprep.mubr.f32.mxu0 %v4116
  %7044 = vmatmul.mubr.f32.gmra.mxu0 %v4115
  %v7045 = vpop.f32.mrf.mxu0
  %v7046 = vadd.f32 %v4220, %v7045
  %v7047 = vpop.f32.mrf.mxu0
  %v7048 = vadd.f32 %v4220, %v7047
  %7049 = vmatprep.mubr.f32.mxu0 %v4119
  %7050 = vmatmul.mubr.f32.gmra.mxu0 %v4118
  %v7051 = vpop.f32.mrf.mxu0
  %v7052 = vadd.f32 %v4225, %v7051
  %v7053 = vpop.f32.mrf.mxu0
  %v7054 = vadd.f32 %v4225, %v7053
  %7055 = vmatprep.mubr.f32.mxu0 %v4122
  %7056 = vmatmul.mubr.f32.gmra.mxu0 %v4121
  %v7057 = vpop.f32.mrf.mxu0
  %v7058 = vadd.f32 %v4230, %v7057
  %v7059 = vpop.f32.mrf.mxu0
  %v7060 = vadd.f32 %v4230, %v7059
  %7061 = vmatprep.mubr.f32.mxu0 %v4125
  %7062 = vmatmul.mubr.f32.gmra.mxu0 %v4124
  %v7063 = vpop.f32.mrf.mxu0
  %v7064 = vadd.f32 %v4235, %v7063
  %v7065 = vpop.f32.mrf.mxu0
  %v7066 = vadd.f32 %v4235, %v7065
  %7067 = vmatprep.mubr.f32.mxu0 %v4128
  %7068 = vmatmul.mubr.f32.gmra.mxu0 %v4127
  %v7069 = vpop.f32.mrf.mxu0
  %v7070 = vadd.f32 %v4240, %v7069
  %v7071 = vpop.f32.mrf.mxu0
  %v7072 = vadd.f32 %v4240, %v7071
  %7073 = vmatprep.mubr.f32.mxu0 %v4131
  %7074 = vmatmul.mubr.f32.gmra.mxu0 %v4130
  %v7075 = vpop.f32.mrf.mxu0
  %v7076 = vadd.f32 %v4245, %v7075
  %v7077 = vpop.f32.mrf.mxu0
  %v7078 = vadd.f32 %v4245, %v7077
  %7079 = vmatprep.mubr.f32.mxu0 %v4134
  %7080 = vmatmul.mubr.f32.gmra.mxu0 %v4133
  %v7081 = vpop.f32.mrf.mxu0
  %v7082 = vadd.f32 %v4250, %v7081
  %v7083 = vpop.f32.mrf.mxu0
  %v7084 = vadd.f32 %v4250, %v7083
  %7085 = vmatprep.mubr.f32.mxu0 %v4137
  %7086 = vmatmul.mubr.f32.gmra.mxu0 %v4136
  %v7087 = vpop.f32.mrf.mxu0
  %v7088 = vadd.f32 %v4255, %v7087
  %v7089 = vpop.f32.mrf.mxu0
  %v7090 = vadd.f32 %v4255, %v7089
  %7091 = vmatprep.mubr.f32.mxu0 %v4140
  %7092 = vmatmul.mubr.f32.gmra.mxu0 %v4139
  %v7093 = vpop.f32.mrf.mxu0
  %v7094 = vadd.f32 %v4260, %v7093
  %v7095 = vpop.f32.mrf.mxu0
  %v7096 = vadd.f32 %v4260, %v7095
  %7097 = vdwg.mxu0
  %7098 = vmatprep.subr.mxu0 0.0
  %7099 = vmatpush1.msra.mxu0 0.0
  %7100 = vmatprep.subr.mxu0 0.0
  %7101 = vmatpush1.msra.mxu0 0.0
  %7102 = vmatprep.subr.mxu0 0.0
  %7103 = vmatpush1.msra.mxu0 0.0
  %7104 = vmatprep.subr.mxu0 0.0
  %7105 = vmatpush1.msra.mxu0 0.0
  %7106 = vmatprep.subr.mxu0 0.0
  %7107 = vmatpush1.msra.mxu0 0.0
  %7108 = vmatprep.subr.mxu0 0.0
  %7109 = vmatpush1.msra.mxu0 0.0
  %7110 = vmatprep.subr.mxu0 0.0
  %7111 = vmatpush1.msra.mxu0 0.0
  %7112 = vmatprep.subr.mxu0 0.0
  %7113 = vmatpush1.msra.mxu0 0.0
  %7114 = vmatprep.subr.mxu0 %v4077
  %7115 = vmatpush1.msra.mxu0 %v4076
  %7116 = vmatprep.subr.mxu0 %v4057
  %7117 = vmatpush1.msra.mxu0 %v4056
  %7118 = vmatprep.subr.mxu0 %v4037
  %7119 = vmatpush1.msra.mxu0 %v4036
  %7120 = vmatprep.subr.mxu0 %v4017
  %7121 = vmatpush1.msra.mxu0 %v4016
  %7122 = vmatprep.subr.mxu0 %v3997
  %7123 = vmatpush1.msra.mxu0 %v3996
  %7124 = vmatprep.subr.mxu0 %v3977
  %7125 = vmatpush1.msra.mxu0 %v3976
  %7126 = vmatprep.subr.mxu0 %v3957
  %7127 = vmatpush1.msra.mxu0 %v3956
  %7128 = vmatprep.subr.mxu0 %v3937
  %7129 = vmatpush1.msra.mxu0 %v3936
  %7130 = vmatprep.subr.mxu0 0.0
  %7131 = vmatpush2.msra.mxu0 0.0
  %7132 = vmatprep.subr.mxu0 0.0
  %7133 = vmatpush2.msra.mxu0 0.0
  %7134 = vmatprep.subr.mxu0 0.0
  %7135 = vmatpush2.msra.mxu0 0.0
  %7136 = vmatprep.subr.mxu0 0.0
  %7137 = vmatpush2.msra.mxu0 0.0
  %7138 = vmatprep.subr.mxu0 0.0
  %7139 = vmatpush2.msra.mxu0 0.0
  %7140 = vmatprep.subr.mxu0 0.0
  %7141 = vmatpush2.msra.mxu0 0.0
  %7142 = vmatprep.subr.mxu0 0.0
  %7143 = vmatpush2.msra.mxu0 0.0
  %7144 = vmatprep.subr.mxu0 0.0
  %7145 = vmatpush2.msra.mxu0 0.0
  %7146 = vmatprep.subr.mxu0 0.0
  %7147 = vmatpush2.msra.mxu0 0.0
  %7148 = vmatprep.subr.mxu0 0.0
  %7149 = vmatpush2.msra.mxu0 0.0
  %7150 = vmatprep.subr.mxu0 0.0
  %7151 = vmatpush2.msra.mxu0 0.0
  %7152 = vmatprep.subr.mxu0 0.0
  %7153 = vmatpush2.msra.mxu0 0.0
  %7154 = vmatprep.subr.mxu0 0.0
  %7155 = vmatpush2.msra.mxu0 0.0
  %7156 = vmatprep.subr.mxu0 0.0
  %7157 = vmatpush2.msra.mxu0 0.0
  %7158 = vmatprep.subr.mxu0 0.0
  %7159 = vmatpush2.msra.mxu0 0.0
  %7160 = vmatprep.subr.mxu0 0.0
  %7161 = vmatpush2.msra.mxu0 0.0
  %7162 = vmatprep.mubr.f32.mxu0 0.0
  %7163 = vmatmul.mubr.f32.gmra.mxu0 %v4264
  %v7164 = vpop.f32.mrf.mxu0
  %v7165 = vadd.f32 %v6980, %v7164
  %v7166 = vpop.f32.mrf.mxu0
  %v7167 = vadd.f32 %v6982, %v7166
  %7168 = vmatprep.mubr.f32.mxu0 0.0
  %7169 = vmatmul.mubr.f32.gmra.mxu0 %v4267
  %v7170 = vpop.f32.mrf.mxu0
  %v7171 = vadd.f32 %v6986, %v7170
  %v7172 = vpop.f32.mrf.mxu0
  %v7173 = vadd.f32 %v6988, %v7172
  %7174 = vmatprep.mubr.f32.mxu0 0.0
  %7175 = vmatmul.mubr.f32.gmra.mxu0 %v4270
  %v7176 = vpop.f32.mrf.mxu0
  %v7177 = vadd.f32 %v6992, %v7176
  %v7178 = vpop.f32.mrf.mxu0
  %v7179 = vadd.f32 %v6994, %v7178
  %7180 = vmatprep.mubr.f32.mxu0 0.0
  %7181 = vmatmul.mubr.f32.gmra.mxu0 %v4273
  %v7182 = vpop.f32.mrf.mxu0
  %v7183 = vadd.f32 %v6998, %v7182
  %v7184 = vpop.f32.mrf.mxu0
  %v7185 = vadd.f32 %v7000, %v7184
  %7186 = vmatprep.mubr.f32.mxu0 0.0
  %7187 = vmatmul.mubr.f32.gmra.mxu0 %v4276
  %v7188 = vpop.f32.mrf.mxu0
  %v7189 = vadd.f32 %v7004, %v7188
  %v7190 = vpop.f32.mrf.mxu0
  %v7191 = vadd.f32 %v7006, %v7190
  %7192 = vmatprep.mubr.f32.mxu0 0.0
  %7193 = vmatmul.mubr.f32.gmra.mxu0 %v4279
  %v7194 = vpop.f32.mrf.mxu0
  %v7195 = vadd.f32 %v7010, %v7194
  %v7196 = vpop.f32.mrf.mxu0
  %v7197 = vadd.f32 %v7012, %v7196
  %7198 = vmatprep.mubr.f32.mxu0 0.0
  %7199 = vmatmul.mubr.f32.gmra.mxu0 %v4282
  %v7200 = vpop.f32.mrf.mxu0
  %v7201 = vadd.f32 %v7016, %v7200
  %v7202 = vpop.f32.mrf.mxu0
  %v7203 = vadd.f32 %v7018, %v7202
  %7204 = vmatprep.mubr.f32.mxu0 0.0
  %7205 = vmatmul.mubr.f32.gmra.mxu0 %v4285
  %v7206 = vpop.f32.mrf.mxu0
  %v7207 = vadd.f32 %v7022, %v7206
  %v7208 = vpop.f32.mrf.mxu0
  %v7209 = vadd.f32 %v7024, %v7208
  %7210 = vmatprep.mubr.f32.mxu0 0.0
  %7211 = vmatmul.mubr.f32.gmra.mxu0 %v4288
  %v7212 = vpop.f32.mrf.mxu0
  %v7213 = vadd.f32 %v7028, %v7212
  %v7214 = vpop.f32.mrf.mxu0
  %v7215 = vadd.f32 %v7030, %v7214
  %7216 = vmatprep.mubr.f32.mxu0 0.0
  %7217 = vmatmul.mubr.f32.gmra.mxu0 %v4291
  %v7218 = vpop.f32.mrf.mxu0
  %v7219 = vadd.f32 %v7034, %v7218
  %v7220 = vpop.f32.mrf.mxu0
  %v7221 = vadd.f32 %v7036, %v7220
  %7222 = vmatprep.mubr.f32.mxu0 0.0
  %7223 = vmatmul.mubr.f32.gmra.mxu0 %v4294
  %v7224 = vpop.f32.mrf.mxu0
  %v7225 = vadd.f32 %v7040, %v7224
  %v7226 = vpop.f32.mrf.mxu0
  %v7227 = vadd.f32 %v7042, %v7226
  %7228 = vmatprep.mubr.f32.mxu0 0.0
  %7229 = vmatmul.mubr.f32.gmra.mxu0 %v4297
  %v7230 = vpop.f32.mrf.mxu0
  %v7231 = vadd.f32 %v7046, %v7230
  %v7232 = vpop.f32.mrf.mxu0
  %v7233 = vadd.f32 %v7048, %v7232
  %7234 = vmatprep.mubr.f32.mxu0 0.0
  %7235 = vmatmul.mubr.f32.gmra.mxu0 %v4300
  %v7236 = vpop.f32.mrf.mxu0
  %v7237 = vadd.f32 %v7052, %v7236
  %v7238 = vpop.f32.mrf.mxu0
  %v7239 = vadd.f32 %v7054, %v7238
  %7240 = vmatprep.mubr.f32.mxu0 0.0
  %7241 = vmatmul.mubr.f32.gmra.mxu0 %v4303
  %v7242 = vpop.f32.mrf.mxu0
  %v7243 = vadd.f32 %v7058, %v7242
  %v7244 = vpop.f32.mrf.mxu0
  %v7245 = vadd.f32 %v7060, %v7244
  %7246 = vmatprep.mubr.f32.mxu0 0.0
  %7247 = vmatmul.mubr.f32.gmra.mxu0 %v4306
  %v7248 = vpop.f32.mrf.mxu0
  %v7249 = vadd.f32 %v7064, %v7248
  %v7250 = vpop.f32.mrf.mxu0
  %v7251 = vadd.f32 %v7066, %v7250
  %7252 = vmatprep.mubr.f32.mxu0 0.0
  %7253 = vmatmul.mubr.f32.gmra.mxu0 %v4309
  %v7254 = vpop.f32.mrf.mxu0
  %v7255 = vadd.f32 %v7070, %v7254
  %v7256 = vpop.f32.mrf.mxu0
  %v7257 = vadd.f32 %v7072, %v7256
  %7258 = vmatprep.mubr.f32.mxu0 0.0
  %7259 = vmatmul.mubr.f32.gmra.mxu0 %v4312
  %v7260 = vpop.f32.mrf.mxu0
  %v7261 = vadd.f32 %v7076, %v7260
  %v7262 = vpop.f32.mrf.mxu0
  %v7263 = vadd.f32 %v7078, %v7262
  %7264 = vmatprep.mubr.f32.mxu0 0.0
  %7265 = vmatmul.mubr.f32.gmra.mxu0 %v4315
  %v7266 = vpop.f32.mrf.mxu0
  %v7267 = vadd.f32 %v7082, %v7266
  %v7268 = vpop.f32.mrf.mxu0
  %v7269 = vadd.f32 %v7084, %v7268
  %7270 = vmatprep.mubr.f32.mxu0 0.0
  %7271 = vmatmul.mubr.f32.gmra.mxu0 %v4318
  %v7272 = vpop.f32.mrf.mxu0
  %v7273 = vadd.f32 %v7088, %v7272
  %v7274 = vpop.f32.mrf.mxu0
  %v7275 = vadd.f32 %v7090, %v7274
  %7276 = vmatprep.mubr.f32.mxu0 0.0
  %7277 = vmatmul.mubr.f32.gmra.mxu0 %v4321
  %v7278 = vpop.f32.mrf.mxu0
  %v7279 = vadd.f32 %v7094, %v7278
  %v7280 = vpop.f32.mrf.mxu0
  %v7281 = vadd.f32 %v7096, %v7280
  %7282 = vdwg.mxu0
  %7283 = vmatprep.subr.mxu0 %v3599
  %7284 = vmatpush1.msra.mxu0 %v3598
  %7285 = vmatprep.subr.mxu0 %v3579
  %7286 = vmatpush1.msra.mxu0 %v3578
  %7287 = vmatprep.subr.mxu0 %v3559
  %7288 = vmatpush1.msra.mxu0 %v3558
  %7289 = vmatprep.subr.mxu0 %v3539
  %7290 = vmatpush1.msra.mxu0 %v3538
  %7291 = vmatprep.subr.mxu0 %v3519
  %7292 = vmatpush1.msra.mxu0 %v3518
  %7293 = vmatprep.subr.mxu0 %v3499
  %7294 = vmatpush1.msra.mxu0 %v3498
  %7295 = vmatprep.subr.mxu0 %v3479
  %7296 = vmatpush1.msra.mxu0 %v3478
  %7297 = vmatprep.subr.mxu0 %v3459
  %7298 = vmatpush1.msra.mxu0 %v3458
  %7299 = vmatprep.subr.mxu0 %v3439
  %7300 = vmatpush1.msra.mxu0 %v3438
  %7301 = vmatprep.subr.mxu0 %v3419
  %7302 = vmatpush1.msra.mxu0 %v3418
  %7303 = vmatprep.subr.mxu0 %v3399
  %7304 = vmatpush1.msra.mxu0 %v3398
  %7305 = vmatprep.subr.mxu0 %v3379
  %7306 = vmatpush1.msra.mxu0 %v3378
  %7307 = vmatprep.subr.mxu0 %v3359
  %7308 = vmatpush1.msra.mxu0 %v3358
  %7309 = vmatprep.subr.mxu0 %v3339
  %7310 = vmatpush1.msra.mxu0 %v3338
  %7311 = vmatprep.subr.mxu0 %v3319
  %7312 = vmatpush1.msra.mxu0 %v3318
  %7313 = vmatprep.subr.mxu0 %v3299
  %7314 = vmatpush1.msra.mxu0 %v3298
  %7315 = vmatprep.subr.mxu0 %v3919
  %7316 = vmatpush2.msra.mxu0 %v3918
  %7317 = vmatprep.subr.mxu0 %v3899
  %7318 = vmatpush2.msra.mxu0 %v3898
  %7319 = vmatprep.subr.mxu0 %v3879
  %7320 = vmatpush2.msra.mxu0 %v3878
  %7321 = vmatprep.subr.mxu0 %v3859
  %7322 = vmatpush2.msra.mxu0 %v3858
  %7323 = vmatprep.subr.mxu0 %v3839
  %7324 = vmatpush2.msra.mxu0 %v3838
  %7325 = vmatprep.subr.mxu0 %v3819
  %7326 = vmatpush2.msra.mxu0 %v3818
  %7327 = vmatprep.subr.mxu0 %v3799
  %7328 = vmatpush2.msra.mxu0 %v3798
  %7329 = vmatprep.subr.mxu0 %v3779
  %7330 = vmatpush2.msra.mxu0 %v3778
  %7331 = vmatprep.subr.mxu0 %v3759
  %7332 = vmatpush2.msra.mxu0 %v3758
  %7333 = vmatprep.subr.mxu0 %v3739
  %7334 = vmatpush2.msra.mxu0 %v3738
  %7335 = vmatprep.subr.mxu0 %v3719
  %7336 = vmatpush2.msra.mxu0 %v3718
  %7337 = vmatprep.subr.mxu0 %v3699
  %7338 = vmatpush2.msra.mxu0 %v3698
  %7339 = vmatprep.subr.mxu0 %v3679
  %7340 = vmatpush2.msra.mxu0 %v3678
  %7341 = vmatprep.subr.mxu0 %v3659
  %7342 = vmatpush2.msra.mxu0 %v3658
  %7343 = vmatprep.subr.mxu0 %v3639
  %7344 = vmatpush2.msra.mxu0 %v3638
  %7345 = vmatprep.subr.mxu0 %v3619
  %7346 = vmatpush2.msra.mxu0 %v3618
  %7347 = vmatprep.mubr.f32.mxu0 %v4083
  %7348 = vmatmul.mubr.f32.gmra.mxu0 %v4082
  %v7349 = vpop.f32.mrf.mxu0
  %v7350 = vadd.f32 %v4165, %v7349
  %v7351 = vpop.f32.mrf.mxu0
  %v7352 = vadd.f32 %v4165, %v7351
  %7353 = vmatprep.mubr.f32.mxu0 %v4086
  %7354 = vmatmul.mubr.f32.gmra.mxu0 %v4085
  %v7355 = vpop.f32.mrf.mxu0
  %v7356 = vadd.f32 %v4170, %v7355
  %v7357 = vpop.f32.mrf.mxu0
  %v7358 = vadd.f32 %v4170, %v7357
  %7359 = vmatprep.mubr.f32.mxu0 %v4089
  %7360 = vmatmul.mubr.f32.gmra.mxu0 %v4088
  %v7361 = vpop.f32.mrf.mxu0
  %v7362 = vadd.f32 %v4175, %v7361
  %v7363 = vpop.f32.mrf.mxu0
  %v7364 = vadd.f32 %v4175, %v7363
  %7365 = vmatprep.mubr.f32.mxu0 %v4092
  %7366 = vmatmul.mubr.f32.gmra.mxu0 %v4091
  %v7367 = vpop.f32.mrf.mxu0
  %v7368 = vadd.f32 %v4180, %v7367
  %v7369 = vpop.f32.mrf.mxu0
  %v7370 = vadd.f32 %v4180, %v7369
  %7371 = vmatprep.mubr.f32.mxu0 %v4095
  %7372 = vmatmul.mubr.f32.gmra.mxu0 %v4094
  %v7373 = vpop.f32.mrf.mxu0
  %v7374 = vadd.f32 %v4185, %v7373
  %v7375 = vpop.f32.mrf.mxu0
  %v7376 = vadd.f32 %v4185, %v7375
  %7377 = vmatprep.mubr.f32.mxu0 %v4098
  %7378 = vmatmul.mubr.f32.gmra.mxu0 %v4097
  %v7379 = vpop.f32.mrf.mxu0
  %v7380 = vadd.f32 %v4190, %v7379
  %v7381 = vpop.f32.mrf.mxu0
  %v7382 = vadd.f32 %v4190, %v7381
  %7383 = vmatprep.mubr.f32.mxu0 %v4101
  %7384 = vmatmul.mubr.f32.gmra.mxu0 %v4100
  %v7385 = vpop.f32.mrf.mxu0
  %v7386 = vadd.f32 %v4195, %v7385
  %v7387 = vpop.f32.mrf.mxu0
  %v7388 = vadd.f32 %v4195, %v7387
  %7389 = vmatprep.mubr.f32.mxu0 %v4104
  %7390 = vmatmul.mubr.f32.gmra.mxu0 %v4103
  %v7391 = vpop.f32.mrf.mxu0
  %v7392 = vadd.f32 %v4200, %v7391
  %v7393 = vpop.f32.mrf.mxu0
  %v7394 = vadd.f32 %v4200, %v7393
  %7395 = vmatprep.mubr.f32.mxu0 %v4107
  %7396 = vmatmul.mubr.f32.gmra.mxu0 %v4106
  %v7397 = vpop.f32.mrf.mxu0
  %v7398 = vadd.f32 %v4205, %v7397
  %v7399 = vpop.f32.mrf.mxu0
  %v7400 = vadd.f32 %v4205, %v7399
  %7401 = vmatprep.mubr.f32.mxu0 %v4110
  %7402 = vmatmul.mubr.f32.gmra.mxu0 %v4109
  %v7403 = vpop.f32.mrf.mxu0
  %v7404 = vadd.f32 %v4210, %v7403
  %v7405 = vpop.f32.mrf.mxu0
  %v7406 = vadd.f32 %v4210, %v7405
  %7407 = vmatprep.mubr.f32.mxu0 %v4113
  %7408 = vmatmul.mubr.f32.gmra.mxu0 %v4112
  %v7409 = vpop.f32.mrf.mxu0
  %v7410 = vadd.f32 %v4215, %v7409
  %v7411 = vpop.f32.mrf.mxu0
  %v7412 = vadd.f32 %v4215, %v7411
  %7413 = vmatprep.mubr.f32.mxu0 %v4116
  %7414 = vmatmul.mubr.f32.gmra.mxu0 %v4115
  %v7415 = vpop.f32.mrf.mxu0
  %v7416 = vadd.f32 %v4220, %v7415
  %v7417 = vpop.f32.mrf.mxu0
  %v7418 = vadd.f32 %v4220, %v7417
  %7419 = vmatprep.mubr.f32.mxu0 %v4119
  %7420 = vmatmul.mubr.f32.gmra.mxu0 %v4118
  %v7421 = vpop.f32.mrf.mxu0
  %v7422 = vadd.f32 %v4225, %v7421
  %v7423 = vpop.f32.mrf.mxu0
  %v7424 = vadd.f32 %v4225, %v7423
  %7425 = vmatprep.mubr.f32.mxu0 %v4122
  %7426 = vmatmul.mubr.f32.gmra.mxu0 %v4121
  %v7427 = vpop.f32.mrf.mxu0
  %v7428 = vadd.f32 %v4230, %v7427
  %v7429 = vpop.f32.mrf.mxu0
  %v7430 = vadd.f32 %v4230, %v7429
  %7431 = vmatprep.mubr.f32.mxu0 %v4125
  %7432 = vmatmul.mubr.f32.gmra.mxu0 %v4124
  %v7433 = vpop.f32.mrf.mxu0
  %v7434 = vadd.f32 %v4235, %v7433
  %v7435 = vpop.f32.mrf.mxu0
  %v7436 = vadd.f32 %v4235, %v7435
  %7437 = vmatprep.mubr.f32.mxu0 %v4128
  %7438 = vmatmul.mubr.f32.gmra.mxu0 %v4127
  %v7439 = vpop.f32.mrf.mxu0
  %v7440 = vadd.f32 %v4240, %v7439
  %v7441 = vpop.f32.mrf.mxu0
  %v7442 = vadd.f32 %v4240, %v7441
  %7443 = vmatprep.mubr.f32.mxu0 %v4131
  %7444 = vmatmul.mubr.f32.gmra.mxu0 %v4130
  %v7445 = vpop.f32.mrf.mxu0
  %v7446 = vadd.f32 %v4245, %v7445
  %v7447 = vpop.f32.mrf.mxu0
  %v7448 = vadd.f32 %v4245, %v7447
  %7449 = vmatprep.mubr.f32.mxu0 %v4134
  %7450 = vmatmul.mubr.f32.gmra.mxu0 %v4133
  %v7451 = vpop.f32.mrf.mxu0
  %v7452 = vadd.f32 %v4250, %v7451
  %v7453 = vpop.f32.mrf.mxu0
  %v7454 = vadd.f32 %v4250, %v7453
  %7455 = vmatprep.mubr.f32.mxu0 %v4137
  %7456 = vmatmul.mubr.f32.gmra.mxu0 %v4136
  %v7457 = vpop.f32.mrf.mxu0
  %v7458 = vadd.f32 %v4255, %v7457
  %v7459 = vpop.f32.mrf.mxu0
  %v7460 = vadd.f32 %v4255, %v7459
  %7461 = vmatprep.mubr.f32.mxu0 %v4140
  %7462 = vmatmul.mubr.f32.gmra.mxu0 %v4139
  %v7463 = vpop.f32.mrf.mxu0
  %v7464 = vadd.f32 %v4260, %v7463
  %v7465 = vpop.f32.mrf.mxu0
  %v7466 = vadd.f32 %v4260, %v7465
  %7467 = vdwg.mxu0
  %7468 = vmatprep.subr.mxu0 0.0
  %7469 = vmatpush1.msra.mxu0 0.0
  %7470 = vmatprep.subr.mxu0 0.0
  %7471 = vmatpush1.msra.mxu0 0.0
  %7472 = vmatprep.subr.mxu0 0.0
  %7473 = vmatpush1.msra.mxu0 0.0
  %7474 = vmatprep.subr.mxu0 0.0
  %7475 = vmatpush1.msra.mxu0 0.0
  %7476 = vmatprep.subr.mxu0 0.0
  %7477 = vmatpush1.msra.mxu0 0.0
  %7478 = vmatprep.subr.mxu0 0.0
  %7479 = vmatpush1.msra.mxu0 0.0
  %7480 = vmatprep.subr.mxu0 0.0
  %7481 = vmatpush1.msra.mxu0 0.0
  %7482 = vmatprep.subr.mxu0 0.0
  %7483 = vmatpush1.msra.mxu0 0.0
  %7484 = vmatprep.subr.mxu0 %v4079
  %7485 = vmatpush1.msra.mxu0 %v4078
  %7486 = vmatprep.subr.mxu0 %v4059
  %7487 = vmatpush1.msra.mxu0 %v4058
  %7488 = vmatprep.subr.mxu0 %v4039
  %7489 = vmatpush1.msra.mxu0 %v4038
  %7490 = vmatprep.subr.mxu0 %v4019
  %7491 = vmatpush1.msra.mxu0 %v4018
  %7492 = vmatprep.subr.mxu0 %v3999
  %7493 = vmatpush1.msra.mxu0 %v3998
  %7494 = vmatprep.subr.mxu0 %v3979
  %7495 = vmatpush1.msra.mxu0 %v3978
  %7496 = vmatprep.subr.mxu0 %v3959
  %7497 = vmatpush1.msra.mxu0 %v3958
  %7498 = vmatprep.subr.mxu0 %v3939
  %7499 = vmatpush1.msra.mxu0 %v3938
  %7500 = vmatprep.subr.mxu0 0.0
  %7501 = vmatpush2.msra.mxu0 0.0
  %7502 = vmatprep.subr.mxu0 0.0
  %7503 = vmatpush2.msra.mxu0 0.0
  %7504 = vmatprep.subr.mxu0 0.0
  %7505 = vmatpush2.msra.mxu0 0.0
  %7506 = vmatprep.subr.mxu0 0.0
  %7507 = vmatpush2.msra.mxu0 0.0
  %7508 = vmatprep.subr.mxu0 0.0
  %7509 = vmatpush2.msra.mxu0 0.0
  %7510 = vmatprep.subr.mxu0 0.0
  %7511 = vmatpush2.msra.mxu0 0.0
  %7512 = vmatprep.subr.mxu0 0.0
  %7513 = vmatpush2.msra.mxu0 0.0
  %7514 = vmatprep.subr.mxu0 0.0
  %7515 = vmatpush2.msra.mxu0 0.0
  %7516 = vmatprep.subr.mxu0 0.0
  %7517 = vmatpush2.msra.mxu0 0.0
  %7518 = vmatprep.subr.mxu0 0.0
  %7519 = vmatpush2.msra.mxu0 0.0
  %7520 = vmatprep.subr.mxu0 0.0
  %7521 = vmatpush2.msra.mxu0 0.0
  %7522 = vmatprep.subr.mxu0 0.0
  %7523 = vmatpush2.msra.mxu0 0.0
  %7524 = vmatprep.subr.mxu0 0.0
  %7525 = vmatpush2.msra.mxu0 0.0
  %7526 = vmatprep.subr.mxu0 0.0
  %7527 = vmatpush2.msra.mxu0 0.0
  %7528 = vmatprep.subr.mxu0 0.0
  %7529 = vmatpush2.msra.mxu0 0.0
  %7530 = vmatprep.subr.mxu0 0.0
  %7531 = vmatpush2.msra.mxu0 0.0
  %7532 = vmatprep.mubr.f32.mxu0 0.0
  %7533 = vmatmul.mubr.f32.gmra.mxu0 %v4264
  %v7534 = vpop.f32.mrf.mxu0
  %v7535 = vadd.f32 %v7350, %v7534
  %v7536 = vpop.f32.mrf.mxu0
  %v7537 = vadd.f32 %v7352, %v7536
  %7538 = vmatprep.mubr.f32.mxu0 0.0
  %7539 = vmatmul.mubr.f32.gmra.mxu0 %v4267
  %v7540 = vpop.f32.mrf.mxu0
  %v7541 = vadd.f32 %v7356, %v7540
  %v7542 = vpop.f32.mrf.mxu0
  %v7543 = vadd.f32 %v7358, %v7542
  %7544 = vmatprep.mubr.f32.mxu0 0.0
  %7545 = vmatmul.mubr.f32.gmra.mxu0 %v4270
  %v7546 = vpop.f32.mrf.mxu0
  %v7547 = vadd.f32 %v7362, %v7546
  %v7548 = vpop.f32.mrf.mxu0
  %v7549 = vadd.f32 %v7364, %v7548
  %7550 = vmatprep.mubr.f32.mxu0 0.0
  %7551 = vmatmul.mubr.f32.gmra.mxu0 %v4273
  %v7552 = vpop.f32.mrf.mxu0
  %v7553 = vadd.f32 %v7368, %v7552
  %v7554 = vpop.f32.mrf.mxu0
  %v7555 = vadd.f32 %v7370, %v7554
  %7556 = vmatprep.mubr.f32.mxu0 0.0
  %7557 = vmatmul.mubr.f32.gmra.mxu0 %v4276
  %v7558 = vpop.f32.mrf.mxu0
  %v7559 = vadd.f32 %v7374, %v7558
  %v7560 = vpop.f32.mrf.mxu0
  %v7561 = vadd.f32 %v7376, %v7560
  %7562 = vmatprep.mubr.f32.mxu0 0.0
  %7563 = vmatmul.mubr.f32.gmra.mxu0 %v4279
  %v7564 = vpop.f32.mrf.mxu0
  %v7565 = vadd.f32 %v7380, %v7564
  %v7566 = vpop.f32.mrf.mxu0
  %v7567 = vadd.f32 %v7382, %v7566
  %7568 = vmatprep.mubr.f32.mxu0 0.0
  %7569 = vmatmul.mubr.f32.gmra.mxu0 %v4282
  %v7570 = vpop.f32.mrf.mxu0
  %v7571 = vadd.f32 %v7386, %v7570
  %v7572 = vpop.f32.mrf.mxu0
  %v7573 = vadd.f32 %v7388, %v7572
  %7574 = vmatprep.mubr.f32.mxu0 0.0
  %7575 = vmatmul.mubr.f32.gmra.mxu0 %v4285
  %v7576 = vpop.f32.mrf.mxu0
  %v7577 = vadd.f32 %v7392, %v7576
  %v7578 = vpop.f32.mrf.mxu0
  %v7579 = vadd.f32 %v7394, %v7578
  %7580 = vmatprep.mubr.f32.mxu0 0.0
  %7581 = vmatmul.mubr.f32.gmra.mxu0 %v4288
  %v7582 = vpop.f32.mrf.mxu0
  %v7583 = vadd.f32 %v7398, %v7582
  %v7584 = vpop.f32.mrf.mxu0
  %v7585 = vadd.f32 %v7400, %v7584
  %7586 = vmatprep.mubr.f32.mxu0 0.0
  %7587 = vmatmul.mubr.f32.gmra.mxu0 %v4291
  %v7588 = vpop.f32.mrf.mxu0
  %v7589 = vadd.f32 %v7404, %v7588
  %v7590 = vpop.f32.mrf.mxu0
  %v7591 = vadd.f32 %v7406, %v7590
  %7592 = vmatprep.mubr.f32.mxu0 0.0
  %7593 = vmatmul.mubr.f32.gmra.mxu0 %v4294
  %v7594 = vpop.f32.mrf.mxu0
  %v7595 = vadd.f32 %v7410, %v7594
  %v7596 = vpop.f32.mrf.mxu0
  %v7597 = vadd.f32 %v7412, %v7596
  %7598 = vmatprep.mubr.f32.mxu0 0.0
  %7599 = vmatmul.mubr.f32.gmra.mxu0 %v4297
  %v7600 = vpop.f32.mrf.mxu0
  %v7601 = vadd.f32 %v7416, %v7600
  %v7602 = vpop.f32.mrf.mxu0
  %v7603 = vadd.f32 %v7418, %v7602
  %7604 = vmatprep.mubr.f32.mxu0 0.0
  %7605 = vmatmul.mubr.f32.gmra.mxu0 %v4300
  %v7606 = vpop.f32.mrf.mxu0
  %v7607 = vadd.f32 %v7422, %v7606
  %v7608 = vpop.f32.mrf.mxu0
  %v7609 = vadd.f32 %v7424, %v7608
  %7610 = vmatprep.mubr.f32.mxu0 0.0
  %7611 = vmatmul.mubr.f32.gmra.mxu0 %v4303
  %v7612 = vpop.f32.mrf.mxu0
  %v7613 = vadd.f32 %v7428, %v7612
  %v7614 = vpop.f32.mrf.mxu0
  %v7615 = vadd.f32 %v7430, %v7614
  %7616 = vmatprep.mubr.f32.mxu0 0.0
  %7617 = vmatmul.mubr.f32.gmra.mxu0 %v4306
  %v7618 = vpop.f32.mrf.mxu0
  %v7619 = vadd.f32 %v7434, %v7618
  %v7620 = vpop.f32.mrf.mxu0
  %v7621 = vadd.f32 %v7436, %v7620
  %7622 = vmatprep.mubr.f32.mxu0 0.0
  %7623 = vmatmul.mubr.f32.gmra.mxu0 %v4309
  %v7624 = vpop.f32.mrf.mxu0
  %v7625 = vadd.f32 %v7440, %v7624
  %v7626 = vpop.f32.mrf.mxu0
  %v7627 = vadd.f32 %v7442, %v7626
  %7628 = vmatprep.mubr.f32.mxu0 0.0
  %7629 = vmatmul.mubr.f32.gmra.mxu0 %v4312
  %v7630 = vpop.f32.mrf.mxu0
  %v7631 = vadd.f32 %v7446, %v7630
  %v7632 = vpop.f32.mrf.mxu0
  %v7633 = vadd.f32 %v7448, %v7632
  %7634 = vmatprep.mubr.f32.mxu0 0.0
  %7635 = vmatmul.mubr.f32.gmra.mxu0 %v4315
  %v7636 = vpop.f32.mrf.mxu0
  %v7637 = vadd.f32 %v7452, %v7636
  %v7638 = vpop.f32.mrf.mxu0
  %v7639 = vadd.f32 %v7454, %v7638
  %7640 = vmatprep.mubr.f32.mxu0 0.0
  %7641 = vmatmul.mubr.f32.gmra.mxu0 %v4318
  %v7642 = vpop.f32.mrf.mxu0
  %v7643 = vadd.f32 %v7458, %v7642
  %v7644 = vpop.f32.mrf.mxu0
  %v7645 = vadd.f32 %v7460, %v7644
  %7646 = vmatprep.mubr.f32.mxu0 0.0
  %7647 = vmatmul.mubr.f32.gmra.mxu0 %v4321
  %v7648 = vpop.f32.mrf.mxu0
  %v7649 = vadd.f32 %v7464, %v7648
  %v7650 = vpop.f32.mrf.mxu0
  %v7651 = vadd.f32 %v7466, %v7650
  %7652 = vdwg.mxu0
  %7653 = vmatprep.subr.mxu0 %v3601
  %7654 = vmatpush1.msra.mxu0 %v3600
  %7655 = vmatprep.subr.mxu0 %v3581
  %7656 = vmatpush1.msra.mxu0 %v3580
  %7657 = vmatprep.subr.mxu0 %v3561
  %7658 = vmatpush1.msra.mxu0 %v3560
  %7659 = vmatprep.subr.mxu0 %v3541
  %7660 = vmatpush1.msra.mxu0 %v3540
  %7661 = vmatprep.subr.mxu0 %v3521
  %7662 = vmatpush1.msra.mxu0 %v3520
  %7663 = vmatprep.subr.mxu0 %v3501
  %7664 = vmatpush1.msra.mxu0 %v3500
  %7665 = vmatprep.subr.mxu0 %v3481
  %7666 = vmatpush1.msra.mxu0 %v3480
  %7667 = vmatprep.subr.mxu0 %v3461
  %7668 = vmatpush1.msra.mxu0 %v3460
  %7669 = vmatprep.subr.mxu0 %v3441
  %7670 = vmatpush1.msra.mxu0 %v3440
  %7671 = vmatprep.subr.mxu0 %v3421
  %7672 = vmatpush1.msra.mxu0 %v3420
  %7673 = vmatprep.subr.mxu0 %v3401
  %7674 = vmatpush1.msra.mxu0 %v3400
  %7675 = vmatprep.subr.mxu0 %v3381
  %7676 = vmatpush1.msra.mxu0 %v3380
  %7677 = vmatprep.subr.mxu0 %v3361
  %7678 = vmatpush1.msra.mxu0 %v3360
  %7679 = vmatprep.subr.mxu0 %v3341
  %7680 = vmatpush1.msra.mxu0 %v3340
  %7681 = vmatprep.subr.mxu0 %v3321
  %7682 = vmatpush1.msra.mxu0 %v3320
  %7683 = vmatprep.subr.mxu0 %v3301
  %7684 = vmatpush1.msra.mxu0 %v3300
  %7685 = vmatprep.subr.mxu0 %v3921
  %7686 = vmatpush2.msra.mxu0 %v3920
  %7687 = vmatprep.subr.mxu0 %v3901
  %7688 = vmatpush2.msra.mxu0 %v3900
  %7689 = vmatprep.subr.mxu0 %v3881
  %7690 = vmatpush2.msra.mxu0 %v3880
  %7691 = vmatprep.subr.mxu0 %v3861
  %7692 = vmatpush2.msra.mxu0 %v3860
  %7693 = vmatprep.subr.mxu0 %v3841
  %7694 = vmatpush2.msra.mxu0 %v3840
  %7695 = vmatprep.subr.mxu0 %v3821
  %7696 = vmatpush2.msra.mxu0 %v3820
  %7697 = vmatprep.subr.mxu0 %v3801
  %7698 = vmatpush2.msra.mxu0 %v3800
  %7699 = vmatprep.subr.mxu0 %v3781
  %7700 = vmatpush2.msra.mxu0 %v3780
  %7701 = vmatprep.subr.mxu0 %v3761
  %7702 = vmatpush2.msra.mxu0 %v3760
  %7703 = vmatprep.subr.mxu0 %v3741
  %7704 = vmatpush2.msra.mxu0 %v3740
  %7705 = vmatprep.subr.mxu0 %v3721
  %7706 = vmatpush2.msra.mxu0 %v3720
  %7707 = vmatprep.subr.mxu0 %v3701
  %7708 = vmatpush2.msra.mxu0 %v3700
  %7709 = vmatprep.subr.mxu0 %v3681
  %7710 = vmatpush2.msra.mxu0 %v3680
  %7711 = vmatprep.subr.mxu0 %v3661
  %7712 = vmatpush2.msra.mxu0 %v3660
  %7713 = vmatprep.subr.mxu0 %v3641
  %7714 = vmatpush2.msra.mxu0 %v3640
  %7715 = vmatprep.subr.mxu0 %v3621
  %7716 = vmatpush2.msra.mxu0 %v3620
  %7717 = vmatprep.mubr.f32.mxu0 %v4083
  %7718 = vmatmul.mubr.f32.gmra.mxu0 %v4082
  %v7719 = vpop.f32.mrf.mxu0
  %v7720 = vadd.f32 %v4165, %v7719
  %v7721 = vpop.f32.mrf.mxu0
  %v7722 = vadd.f32 %v4165, %v7721
  %7723 = vmatprep.mubr.f32.mxu0 %v4086
  %7724 = vmatmul.mubr.f32.gmra.mxu0 %v4085
  %v7725 = vpop.f32.mrf.mxu0
  %v7726 = vadd.f32 %v4170, %v7725
  %v7727 = vpop.f32.mrf.mxu0
  %v7728 = vadd.f32 %v4170, %v7727
  %7729 = vmatprep.mubr.f32.mxu0 %v4089
  %7730 = vmatmul.mubr.f32.gmra.mxu0 %v4088
  %v7731 = vpop.f32.mrf.mxu0
  %v7732 = vadd.f32 %v4175, %v7731
  %v7733 = vpop.f32.mrf.mxu0
  %v7734 = vadd.f32 %v4175, %v7733
  %7735 = vmatprep.mubr.f32.mxu0 %v4092
  %7736 = vmatmul.mubr.f32.gmra.mxu0 %v4091
  %v7737 = vpop.f32.mrf.mxu0
  %v7738 = vadd.f32 %v4180, %v7737
  %v7739 = vpop.f32.mrf.mxu0
  %v7740 = vadd.f32 %v4180, %v7739
  %7741 = vmatprep.mubr.f32.mxu0 %v4095
  %7742 = vmatmul.mubr.f32.gmra.mxu0 %v4094
  %v7743 = vpop.f32.mrf.mxu0
  %v7744 = vadd.f32 %v4185, %v7743
  %v7745 = vpop.f32.mrf.mxu0
  %v7746 = vadd.f32 %v4185, %v7745
  %7747 = vmatprep.mubr.f32.mxu0 %v4098
  %7748 = vmatmul.mubr.f32.gmra.mxu0 %v4097
  %v7749 = vpop.f32.mrf.mxu0
  %v7750 = vadd.f32 %v4190, %v7749
  %v7751 = vpop.f32.mrf.mxu0
  %v7752 = vadd.f32 %v4190, %v7751
  %7753 = vmatprep.mubr.f32.mxu0 %v4101
  %7754 = vmatmul.mubr.f32.gmra.mxu0 %v4100
  %v7755 = vpop.f32.mrf.mxu0
  %v7756 = vadd.f32 %v4195, %v7755
  %v7757 = vpop.f32.mrf.mxu0
  %v7758 = vadd.f32 %v4195, %v7757
  %7759 = vmatprep.mubr.f32.mxu0 %v4104
  %7760 = vmatmul.mubr.f32.gmra.mxu0 %v4103
  %v7761 = vpop.f32.mrf.mxu0
  %v7762 = vadd.f32 %v4200, %v7761
  %v7763 = vpop.f32.mrf.mxu0
  %v7764 = vadd.f32 %v4200, %v7763
  %7765 = vmatprep.mubr.f32.mxu0 %v4107
  %7766 = vmatmul.mubr.f32.gmra.mxu0 %v4106
  %v7767 = vpop.f32.mrf.mxu0
  %v7768 = vadd.f32 %v4205, %v7767
  %v7769 = vpop.f32.mrf.mxu0
  %v7770 = vadd.f32 %v4205, %v7769
  %7771 = vmatprep.mubr.f32.mxu0 %v4110
  %7772 = vmatmul.mubr.f32.gmra.mxu0 %v4109
  %v7773 = vpop.f32.mrf.mxu0
  %v7774 = vadd.f32 %v4210, %v7773
  %v7775 = vpop.f32.mrf.mxu0
  %v7776 = vadd.f32 %v4210, %v7775
  %7777 = vmatprep.mubr.f32.mxu0 %v4113
  %7778 = vmatmul.mubr.f32.gmra.mxu0 %v4112
  %v7779 = vpop.f32.mrf.mxu0
  %v7780 = vadd.f32 %v4215, %v7779
  %v7781 = vpop.f32.mrf.mxu0
  %v7782 = vadd.f32 %v4215, %v7781
  %7783 = vmatprep.mubr.f32.mxu0 %v4116
  %7784 = vmatmul.mubr.f32.gmra.mxu0 %v4115
  %v7785 = vpop.f32.mrf.mxu0
  %v7786 = vadd.f32 %v4220, %v7785
  %v7787 = vpop.f32.mrf.mxu0
  %v7788 = vadd.f32 %v4220, %v7787
  %7789 = vmatprep.mubr.f32.mxu0 %v4119
  %7790 = vmatmul.mubr.f32.gmra.mxu0 %v4118
  %v7791 = vpop.f32.mrf.mxu0
  %v7792 = vadd.f32 %v4225, %v7791
  %v7793 = vpop.f32.mrf.mxu0
  %v7794 = vadd.f32 %v4225, %v7793
  %7795 = vmatprep.mubr.f32.mxu0 %v4122
  %7796 = vmatmul.mubr.f32.gmra.mxu0 %v4121
  %v7797 = vpop.f32.mrf.mxu0
  %v7798 = vadd.f32 %v4230, %v7797
  %v7799 = vpop.f32.mrf.mxu0
  %v7800 = vadd.f32 %v4230, %v7799
  %7801 = vmatprep.mubr.f32.mxu0 %v4125
  %7802 = vmatmul.mubr.f32.gmra.mxu0 %v4124
  %v7803 = vpop.f32.mrf.mxu0
  %v7804 = vadd.f32 %v4235, %v7803
  %v7805 = vpop.f32.mrf.mxu0
  %v7806 = vadd.f32 %v4235, %v7805
  %7807 = vmatprep.mubr.f32.mxu0 %v4128
  %7808 = vmatmul.mubr.f32.gmra.mxu0 %v4127
  %v7809 = vpop.f32.mrf.mxu0
  %v7810 = vadd.f32 %v4240, %v7809
  %v7811 = vpop.f32.mrf.mxu0
  %v7812 = vadd.f32 %v4240, %v7811
  %7813 = vmatprep.mubr.f32.mxu0 %v4131
  %7814 = vmatmul.mubr.f32.gmra.mxu0 %v4130
  %v7815 = vpop.f32.mrf.mxu0
  %v7816 = vadd.f32 %v4245, %v7815
  %v7817 = vpop.f32.mrf.mxu0
  %v7818 = vadd.f32 %v4245, %v7817
  %7819 = vmatprep.mubr.f32.mxu0 %v4134
  %7820 = vmatmul.mubr.f32.gmra.mxu0 %v4133
  %v7821 = vpop.f32.mrf.mxu0
  %v7822 = vadd.f32 %v4250, %v7821
  %v7823 = vpop.f32.mrf.mxu0
  %v7824 = vadd.f32 %v4250, %v7823
  %7825 = vmatprep.mubr.f32.mxu0 %v4137
  %7826 = vmatmul.mubr.f32.gmra.mxu0 %v4136
  %v7827 = vpop.f32.mrf.mxu0
  %v7828 = vadd.f32 %v4255, %v7827
  %v7829 = vpop.f32.mrf.mxu0
  %v7830 = vadd.f32 %v4255, %v7829
  %7831 = vmatprep.mubr.f32.mxu0 %v4140
  %7832 = vmatmul.mubr.f32.gmra.mxu0 %v4139
  %v7833 = vpop.f32.mrf.mxu0
  %v7834 = vadd.f32 %v4260, %v7833
  %v7835 = vpop.f32.mrf.mxu0
  %v7836 = vadd.f32 %v4260, %v7835
  %7837 = vdwg.mxu0
  %7838 = vmatprep.subr.mxu0 0.0
  %7839 = vmatpush1.msra.mxu0 0.0
  %7840 = vmatprep.subr.mxu0 0.0
  %7841 = vmatpush1.msra.mxu0 0.0
  %7842 = vmatprep.subr.mxu0 0.0
  %7843 = vmatpush1.msra.mxu0 0.0
  %7844 = vmatprep.subr.mxu0 0.0
  %7845 = vmatpush1.msra.mxu0 0.0
  %7846 = vmatprep.subr.mxu0 0.0
  %7847 = vmatpush1.msra.mxu0 0.0
  %7848 = vmatprep.subr.mxu0 0.0
  %7849 = vmatpush1.msra.mxu0 0.0
  %7850 = vmatprep.subr.mxu0 0.0
  %7851 = vmatpush1.msra.mxu0 0.0
  %7852 = vmatprep.subr.mxu0 0.0
  %7853 = vmatpush1.msra.mxu0 0.0
  %7854 = vmatprep.subr.mxu0 %v4081
  %7855 = vmatpush1.msra.mxu0 %v4080
  %7856 = vmatprep.subr.mxu0 %v4061
  %7857 = vmatpush1.msra.mxu0 %v4060
  %7858 = vmatprep.subr.mxu0 %v4041
  %7859 = vmatpush1.msra.mxu0 %v4040
  %7860 = vmatprep.subr.mxu0 %v4021
  %7861 = vmatpush1.msra.mxu0 %v4020
  %7862 = vmatprep.subr.mxu0 %v4001
  %7863 = vmatpush1.msra.mxu0 %v4000
  %7864 = vmatprep.subr.mxu0 %v3981
  %7865 = vmatpush1.msra.mxu0 %v3980
  %7866 = vmatprep.subr.mxu0 %v3961
  %7867 = vmatpush1.msra.mxu0 %v3960
  %7868 = vmatprep.subr.mxu0 %v3941
  %7869 = vmatpush1.msra.mxu0 %v3940
  %7870 = vmatprep.subr.mxu0 0.0
  %7871 = vmatpush2.msra.mxu0 0.0
  %7872 = vmatprep.subr.mxu0 0.0
  %7873 = vmatpush2.msra.mxu0 0.0
  %7874 = vmatprep.subr.mxu0 0.0
  %7875 = vmatpush2.msra.mxu0 0.0
  %7876 = vmatprep.subr.mxu0 0.0
  %7877 = vmatpush2.msra.mxu0 0.0
  %7878 = vmatprep.subr.mxu0 0.0
  %7879 = vmatpush2.msra.mxu0 0.0
  %7880 = vmatprep.subr.mxu0 0.0
  %7881 = vmatpush2.msra.mxu0 0.0
  %7882 = vmatprep.subr.mxu0 0.0
  %7883 = vmatpush2.msra.mxu0 0.0
  %7884 = vmatprep.subr.mxu0 0.0
  %7885 = vmatpush2.msra.mxu0 0.0
  %7886 = vmatprep.subr.mxu0 0.0
  %7887 = vmatpush2.msra.mxu0 0.0
  %7888 = vmatprep.subr.mxu0 0.0
  %7889 = vmatpush2.msra.mxu0 0.0
  %7890 = vmatprep.subr.mxu0 0.0
  %7891 = vmatpush2.msra.mxu0 0.0
  %7892 = vmatprep.subr.mxu0 0.0
  %7893 = vmatpush2.msra.mxu0 0.0
  %7894 = vmatprep.subr.mxu0 0.0
  %7895 = vmatpush2.msra.mxu0 0.0
  %7896 = vmatprep.subr.mxu0 0.0
  %7897 = vmatpush2.msra.mxu0 0.0
  %7898 = vmatprep.subr.mxu0 0.0
  %7899 = vmatpush2.msra.mxu0 0.0
  %7900 = vmatprep.subr.mxu0 0.0
  %7901 = vmatpush2.msra.mxu0 0.0
  %7902 = vmatprep.mubr.f32.mxu0 0.0
  %7903 = vmatmul.mubr.f32.gmra.mxu0 %v4264
  %v7904 = vpop.f32.mrf.mxu0
  %v7905 = vadd.f32 %v7720, %v7904
  %v7906 = vpop.f32.mrf.mxu0
  %v7907 = vadd.f32 %v7722, %v7906
  %7908 = vmatprep.mubr.f32.mxu0 0.0
  %7909 = vmatmul.mubr.f32.gmra.mxu0 %v4267
  %v7910 = vpop.f32.mrf.mxu0
  %v7911 = vadd.f32 %v7726, %v7910
  %v7912 = vpop.f32.mrf.mxu0
  %v7913 = vadd.f32 %v7728, %v7912
  %7914 = vmatprep.mubr.f32.mxu0 0.0
  %7915 = vmatmul.mubr.f32.gmra.mxu0 %v4270
  %v7916 = vpop.f32.mrf.mxu0
  %v7917 = vadd.f32 %v7732, %v7916
  %v7918 = vpop.f32.mrf.mxu0
  %v7919 = vadd.f32 %v7734, %v7918
  %7920 = vmatprep.mubr.f32.mxu0 0.0
  %7921 = vmatmul.mubr.f32.gmra.mxu0 %v4273
  %v7922 = vpop.f32.mrf.mxu0
  %v7923 = vadd.f32 %v7738, %v7922
  %v7924 = vpop.f32.mrf.mxu0
  %v7925 = vadd.f32 %v7740, %v7924
  %7926 = vmatprep.mubr.f32.mxu0 0.0
  %7927 = vmatmul.mubr.f32.gmra.mxu0 %v4276
  %v7928 = vpop.f32.mrf.mxu0
  %v7929 = vadd.f32 %v7744, %v7928
  %v7930 = vpop.f32.mrf.mxu0
  %v7931 = vadd.f32 %v7746, %v7930
  %7932 = vmatprep.mubr.f32.mxu0 0.0
  %7933 = vmatmul.mubr.f32.gmra.mxu0 %v4279
  %v7934 = vpop.f32.mrf.mxu0
  %v7935 = vadd.f32 %v7750, %v7934
  %v7936 = vpop.f32.mrf.mxu0
  %v7937 = vadd.f32 %v7752, %v7936
  %7938 = vmatprep.mubr.f32.mxu0 0.0
  %7939 = vmatmul.mubr.f32.gmra.mxu0 %v4282
  %v7940 = vpop.f32.mrf.mxu0
  %v7941 = vadd.f32 %v7756, %v7940
  %v7942 = vpop.f32.mrf.mxu0
  %v7943 = vadd.f32 %v7758, %v7942
  %7944 = vmatprep.mubr.f32.mxu0 0.0
  %7945 = vmatmul.mubr.f32.gmra.mxu0 %v4285
  %v7946 = vpop.f32.mrf.mxu0
  %v7947 = vadd.f32 %v7762, %v7946
  %v7948 = vpop.f32.mrf.mxu0
  %v7949 = vadd.f32 %v7764, %v7948
  %7950 = vmatprep.mubr.f32.mxu0 0.0
  %7951 = vmatmul.mubr.f32.gmra.mxu0 %v4288
  %v7952 = vpop.f32.mrf.mxu0
  %v7953 = vadd.f32 %v7768, %v7952
  %v7954 = vpop.f32.mrf.mxu0
  %v7955 = vadd.f32 %v7770, %v7954
  %7956 = vmatprep.mubr.f32.mxu0 0.0
  %7957 = vmatmul.mubr.f32.gmra.mxu0 %v4291
  %v7958 = vpop.f32.mrf.mxu0
  %v7959 = vadd.f32 %v7774, %v7958
  %v7960 = vpop.f32.mrf.mxu0
  %v7961 = vadd.f32 %v7776, %v7960
  %7962 = vmatprep.mubr.f32.mxu0 0.0
  %7963 = vmatmul.mubr.f32.gmra.mxu0 %v4294
  %v7964 = vpop.f32.mrf.mxu0
  %v7965 = vadd.f32 %v7780, %v7964
  %v7966 = vpop.f32.mrf.mxu0
  %v7967 = vadd.f32 %v7782, %v7966
  %7968 = vmatprep.mubr.f32.mxu0 0.0
  %7969 = vmatmul.mubr.f32.gmra.mxu0 %v4297
  %v7970 = vpop.f32.mrf.mxu0
  %v7971 = vadd.f32 %v7786, %v7970
  %v7972 = vpop.f32.mrf.mxu0
  %v7973 = vadd.f32 %v7788, %v7972
  %7974 = vmatprep.mubr.f32.mxu0 0.0
  %7975 = vmatmul.mubr.f32.gmra.mxu0 %v4300
  %v7976 = vpop.f32.mrf.mxu0
  %v7977 = vadd.f32 %v7792, %v7976
  %v7978 = vpop.f32.mrf.mxu0
  %v7979 = vadd.f32 %v7794, %v7978
  %7980 = vmatprep.mubr.f32.mxu0 0.0
  %7981 = vmatmul.mubr.f32.gmra.mxu0 %v4303
  %v7982 = vpop.f32.mrf.mxu0
  %v7983 = vadd.f32 %v7798, %v7982
  %v7984 = vpop.f32.mrf.mxu0
  %v7985 = vadd.f32 %v7800, %v7984
  %7986 = vmatprep.mubr.f32.mxu0 0.0
  %7987 = vmatmul.mubr.f32.gmra.mxu0 %v4306
  %v7988 = vpop.f32.mrf.mxu0
  %v7989 = vadd.f32 %v7804, %v7988
  %v7990 = vpop.f32.mrf.mxu0
  %v7991 = vadd.f32 %v7806, %v7990
  %7992 = vmatprep.mubr.f32.mxu0 0.0
  %7993 = vmatmul.mubr.f32.gmra.mxu0 %v4309
  %v7994 = vpop.f32.mrf.mxu0
  %v7995 = vadd.f32 %v7810, %v7994
  %v7996 = vpop.f32.mrf.mxu0
  %v7997 = vadd.f32 %v7812, %v7996
  %7998 = vmatprep.mubr.f32.mxu0 0.0
  %7999 = vmatmul.mubr.f32.gmra.mxu0 %v4312
  %v8000 = vpop.f32.mrf.mxu0
  %v8001 = vadd.f32 %v7816, %v8000
  %v8002 = vpop.f32.mrf.mxu0
  %v8003 = vadd.f32 %v7818, %v8002
  %8004 = vmatprep.mubr.f32.mxu0 0.0
  %8005 = vmatmul.mubr.f32.gmra.mxu0 %v4315
  %v8006 = vpop.f32.mrf.mxu0
  %v8007 = vadd.f32 %v7822, %v8006
  %v8008 = vpop.f32.mrf.mxu0
  %v8009 = vadd.f32 %v7824, %v8008
  %8010 = vmatprep.mubr.f32.mxu0 0.0
  %8011 = vmatmul.mubr.f32.gmra.mxu0 %v4318
  %v8012 = vpop.f32.mrf.mxu0
  %v8013 = vadd.f32 %v7828, %v8012
  %v8014 = vpop.f32.mrf.mxu0
  %v8015 = vadd.f32 %v7830, %v8014
  %8016 = vmatprep.mubr.f32.mxu0 0.0
  %8017 = vmatmul.mubr.f32.gmra.mxu0 %v4321
  %v8018 = vpop.f32.mrf.mxu0
  %v8019 = vadd.f32 %v7834, %v8018
  %v8020 = vpop.f32.mrf.mxu0
  %v8021 = vadd.f32 %v7836, %v8020
  %8022 = vdwg.mxu0
  %v8023 = vmax.f32 %v4575, 0.0
  %v8024 = vmax.f32 %v4577, 0.0
  %v8025 = vmax.f32 %v4945, 0.0
  %v8026 = vmax.f32 %v4947, 0.0
  %v8027 = vmax.f32 %v5315, 0.0
  %v8028 = vmax.f32 %v5317, 0.0
  %v8029 = vmax.f32 %v5685, 0.0
  %v8030 = vmax.f32 %v5687, 0.0
  %v8031 = vmax.f32 %v6055, 0.0
  %v8032 = vmax.f32 %v6057, 0.0
  %v8033 = vmax.f32 %v6425, 0.0
  %v8034 = vmax.f32 %v6427, 0.0
  %v8035 = vmax.f32 %v6795, 0.0
  %v8036 = vmax.f32 %v6797, 0.0
  %v8037 = vmax.f32 %v7165, 0.0
  %v8038 = vmax.f32 %v7167, 0.0
  %v8039 = vmax.f32 %v7535, 0.0
  %v8040 = vmax.f32 %v7537, 0.0
  %v8041 = vmax.f32 %v7905, 0.0
  %v8042 = vmax.f32 %v7907, 0.0
  %v8043 = vmax.f32 %v4581, 0.0
  %v8044 = vmax.f32 %v4583, 0.0
  %v8045 = vmax.f32 %v4951, 0.0
  %v8046 = vmax.f32 %v4953, 0.0
  %v8047 = vmax.f32 %v5321, 0.0
  %v8048 = vmax.f32 %v5323, 0.0
  %v8049 = vmax.f32 %v5691, 0.0
  %v8050 = vmax.f32 %v5693, 0.0
  %v8051 = vmax.f32 %v6061, 0.0
  %v8052 = vmax.f32 %v6063, 0.0
  %v8053 = vmax.f32 %v6431, 0.0
  %v8054 = vmax.f32 %v6433, 0.0
  %v8055 = vmax.f32 %v6801, 0.0
  %v8056 = vmax.f32 %v6803, 0.0
  %v8057 = vmax.f32 %v7171, 0.0
  %v8058 = vmax.f32 %v7173, 0.0
  %v8059 = vmax.f32 %v7541, 0.0
  %v8060 = vmax.f32 %v7543, 0.0
  %v8061 = vmax.f32 %v7911, 0.0
  %v8062 = vmax.f32 %v7913, 0.0
  %v8063 = vmax.f32 %v4587, 0.0
  %v8064 = vmax.f32 %v4589, 0.0
  %v8065 = vmax.f32 %v4957, 0.0
  %v8066 = vmax.f32 %v4959, 0.0
  %v8067 = vmax.f32 %v5327, 0.0
  %v8068 = vmax.f32 %v5329, 0.0
  %v8069 = vmax.f32 %v5697, 0.0
  %v8070 = vmax.f32 %v5699, 0.0
  %v8071 = vmax.f32 %v6067, 0.0
  %v8072 = vmax.f32 %v6069, 0.0
  %v8073 = vmax.f32 %v6437, 0.0
  %v8074 = vmax.f32 %v6439, 0.0
  %v8075 = vmax.f32 %v6807, 0.0
  %v8076 = vmax.f32 %v6809, 0.0
  %v8077 = vmax.f32 %v7177, 0.0
  %v8078 = vmax.f32 %v7179, 0.0
  %v8079 = vmax.f32 %v7547, 0.0
  %v8080 = vmax.f32 %v7549, 0.0
  %v8081 = vmax.f32 %v7917, 0.0
  %v8082 = vmax.f32 %v7919, 0.0
  %v8083 = vmax.f32 %v4593, 0.0
  %v8084 = vmax.f32 %v4595, 0.0
  %v8085 = vmax.f32 %v4963, 0.0
  %v8086 = vmax.f32 %v4965, 0.0
  %v8087 = vmax.f32 %v5333, 0.0
  %v8088 = vmax.f32 %v5335, 0.0
  %v8089 = vmax.f32 %v5703, 0.0
  %v8090 = vmax.f32 %v5705, 0.0
  %v8091 = vmax.f32 %v6073, 0.0
  %v8092 = vmax.f32 %v6075, 0.0
  %v8093 = vmax.f32 %v6443, 0.0
  %v8094 = vmax.f32 %v6445, 0.0
  %v8095 = vmax.f32 %v6813, 0.0
  %v8096 = vmax.f32 %v6815, 0.0
  %v8097 = vmax.f32 %v7183, 0.0
  %v8098 = vmax.f32 %v7185, 0.0
  %v8099 = vmax.f32 %v7553, 0.0
  %v8100 = vmax.f32 %v7555, 0.0
  %v8101 = vmax.f32 %v7923, 0.0
  %v8102 = vmax.f32 %v7925, 0.0
  %v8103 = vmax.f32 %v4599, 0.0
  %v8104 = vmax.f32 %v4601, 0.0
  %v8105 = vmax.f32 %v4969, 0.0
  %v8106 = vmax.f32 %v4971, 0.0
  %v8107 = vmax.f32 %v5339, 0.0
  %v8108 = vmax.f32 %v5341, 0.0
  %v8109 = vmax.f32 %v5709, 0.0
  %v8110 = vmax.f32 %v5711, 0.0
  %v8111 = vmax.f32 %v6079, 0.0
  %v8112 = vmax.f32 %v6081, 0.0
  %v8113 = vmax.f32 %v6449, 0.0
  %v8114 = vmax.f32 %v6451, 0.0
  %v8115 = vmax.f32 %v6819, 0.0
  %v8116 = vmax.f32 %v6821, 0.0
  %v8117 = vmax.f32 %v7189, 0.0
  %v8118 = vmax.f32 %v7191, 0.0
  %v8119 = vmax.f32 %v7559, 0.0
  %v8120 = vmax.f32 %v7561, 0.0
  %v8121 = vmax.f32 %v7929, 0.0
  %v8122 = vmax.f32 %v7931, 0.0
  %v8123 = vmax.f32 %v4605, 0.0
  %v8124 = vmax.f32 %v4607, 0.0
  %v8125 = vmax.f32 %v4975, 0.0
  %v8126 = vmax.f32 %v4977, 0.0
  %v8127 = vmax.f32 %v5345, 0.0
  %v8128 = vmax.f32 %v5347, 0.0
  %v8129 = vmax.f32 %v5715, 0.0
  %v8130 = vmax.f32 %v5717, 0.0
  %v8131 = vmax.f32 %v6085, 0.0
  %v8132 = vmax.f32 %v6087, 0.0
  %v8133 = vmax.f32 %v6455, 0.0
  %v8134 = vmax.f32 %v6457, 0.0
  %v8135 = vmax.f32 %v6825, 0.0
  %v8136 = vmax.f32 %v6827, 0.0
  %v8137 = vmax.f32 %v7195, 0.0
  %v8138 = vmax.f32 %v7197, 0.0
  %v8139 = vmax.f32 %v7565, 0.0
  %v8140 = vmax.f32 %v7567, 0.0
  %v8141 = vmax.f32 %v7935, 0.0
  %v8142 = vmax.f32 %v7937, 0.0
  %v8143 = vmax.f32 %v4611, 0.0
  %v8144 = vmax.f32 %v4613, 0.0
  %v8145 = vmax.f32 %v4981, 0.0
  %v8146 = vmax.f32 %v4983, 0.0
  %v8147 = vmax.f32 %v5351, 0.0
  %v8148 = vmax.f32 %v5353, 0.0
  %v8149 = vmax.f32 %v5721, 0.0
  %v8150 = vmax.f32 %v5723, 0.0
  %v8151 = vmax.f32 %v6091, 0.0
  %v8152 = vmax.f32 %v6093, 0.0
  %v8153 = vmax.f32 %v6461, 0.0
  %v8154 = vmax.f32 %v6463, 0.0
  %v8155 = vmax.f32 %v6831, 0.0
  %v8156 = vmax.f32 %v6833, 0.0
  %v8157 = vmax.f32 %v7201, 0.0
  %v8158 = vmax.f32 %v7203, 0.0
  %v8159 = vmax.f32 %v7571, 0.0
  %v8160 = vmax.f32 %v7573, 0.0
  %v8161 = vmax.f32 %v7941, 0.0
  %v8162 = vmax.f32 %v7943, 0.0
  %v8163 = vmax.f32 %v4617, 0.0
  %v8164 = vmax.f32 %v4619, 0.0
  %v8165 = vmax.f32 %v4987, 0.0
  %v8166 = vmax.f32 %v4989, 0.0
  %v8167 = vmax.f32 %v5357, 0.0
  %v8168 = vmax.f32 %v5359, 0.0
  %v8169 = vmax.f32 %v5727, 0.0
  %v8170 = vmax.f32 %v5729, 0.0
  %v8171 = vmax.f32 %v6097, 0.0
  %v8172 = vmax.f32 %v6099, 0.0
  %v8173 = vmax.f32 %v6467, 0.0
  %v8174 = vmax.f32 %v6469, 0.0
  %v8175 = vmax.f32 %v6837, 0.0
  %v8176 = vmax.f32 %v6839, 0.0
  %v8177 = vmax.f32 %v7207, 0.0
  %v8178 = vmax.f32 %v7209, 0.0
  %v8179 = vmax.f32 %v7577, 0.0
  %v8180 = vmax.f32 %v7579, 0.0
  %v8181 = vmax.f32 %v7947, 0.0
  %v8182 = vmax.f32 %v7949, 0.0
  %v8183 = vmax.f32 %v4623, 0.0
  %v8184 = vmax.f32 %v4625, 0.0
  %v8185 = vmax.f32 %v4993, 0.0
  %v8186 = vmax.f32 %v4995, 0.0
  %v8187 = vmax.f32 %v5363, 0.0
  %v8188 = vmax.f32 %v5365, 0.0
  %v8189 = vmax.f32 %v5733, 0.0
  %v8190 = vmax.f32 %v5735, 0.0
  %v8191 = vmax.f32 %v6103, 0.0
  %v8192 = vmax.f32 %v6105, 0.0
  %v8193 = vmax.f32 %v6473, 0.0
  %v8194 = vmax.f32 %v6475, 0.0
  %v8195 = vmax.f32 %v6843, 0.0
  %v8196 = vmax.f32 %v6845, 0.0
  %v8197 = vmax.f32 %v7213, 0.0
  %v8198 = vmax.f32 %v7215, 0.0
  %v8199 = vmax.f32 %v7583, 0.0
  %v8200 = vmax.f32 %v7585, 0.0
  %v8201 = vmax.f32 %v7953, 0.0
  %v8202 = vmax.f32 %v7955, 0.0
  %v8203 = vmax.f32 %v4629, 0.0
  %v8204 = vmax.f32 %v4631, 0.0
  %v8205 = vmax.f32 %v4999, 0.0
  %v8206 = vmax.f32 %v5001, 0.0
  %v8207 = vmax.f32 %v5369, 0.0
  %v8208 = vmax.f32 %v5371, 0.0
  %v8209 = vmax.f32 %v5739, 0.0
  %v8210 = vmax.f32 %v5741, 0.0
  %v8211 = vmax.f32 %v6109, 0.0
  %v8212 = vmax.f32 %v6111, 0.0
  %v8213 = vmax.f32 %v6479, 0.0
  %v8214 = vmax.f32 %v6481, 0.0
  %v8215 = vmax.f32 %v6849, 0.0
  %v8216 = vmax.f32 %v6851, 0.0
  %v8217 = vmax.f32 %v7219, 0.0
  %v8218 = vmax.f32 %v7221, 0.0
  %v8219 = vmax.f32 %v7589, 0.0
  %v8220 = vmax.f32 %v7591, 0.0
  %v8221 = vmax.f32 %v7959, 0.0
  %v8222 = vmax.f32 %v7961, 0.0
  %v8223 = vmax.f32 %v4635, 0.0
  %v8224 = vmax.f32 %v4637, 0.0
  %v8225 = vmax.f32 %v5005, 0.0
  %v8226 = vmax.f32 %v5007, 0.0
  %v8227 = vmax.f32 %v5375, 0.0
  %v8228 = vmax.f32 %v5377, 0.0
  %v8229 = vmax.f32 %v5745, 0.0
  %v8230 = vmax.f32 %v5747, 0.0
  %v8231 = vmax.f32 %v6115, 0.0
  %v8232 = vmax.f32 %v6117, 0.0
  %v8233 = vmax.f32 %v6485, 0.0
  %v8234 = vmax.f32 %v6487, 0.0
  %v8235 = vmax.f32 %v6855, 0.0
  %v8236 = vmax.f32 %v6857, 0.0
  %v8237 = vmax.f32 %v7225, 0.0
  %v8238 = vmax.f32 %v7227, 0.0
  %v8239 = vmax.f32 %v7595, 0.0
  %v8240 = vmax.f32 %v7597, 0.0
  %v8241 = vmax.f32 %v7965, 0.0
  %v8242 = vmax.f32 %v7967, 0.0
  %v8243 = vmax.f32 %v4641, 0.0
  %v8244 = vmax.f32 %v4643, 0.0
  %v8245 = vmax.f32 %v5011, 0.0
  %v8246 = vmax.f32 %v5013, 0.0
  %v8247 = vmax.f32 %v5381, 0.0
  %v8248 = vmax.f32 %v5383, 0.0
  %v8249 = vmax.f32 %v5751, 0.0
  %v8250 = vmax.f32 %v5753, 0.0
  %v8251 = vmax.f32 %v6121, 0.0
  %v8252 = vmax.f32 %v6123, 0.0
  %v8253 = vmax.f32 %v6491, 0.0
  %v8254 = vmax.f32 %v6493, 0.0
  %v8255 = vmax.f32 %v6861, 0.0
  %v8256 = vmax.f32 %v6863, 0.0
  %v8257 = vmax.f32 %v7231, 0.0
  %v8258 = vmax.f32 %v7233, 0.0
  %v8259 = vmax.f32 %v7601, 0.0
  %v8260 = vmax.f32 %v7603, 0.0
  %v8261 = vmax.f32 %v7971, 0.0
  %v8262 = vmax.f32 %v7973, 0.0
  %v8263 = vmax.f32 %v4647, 0.0
  %v8264 = vmax.f32 %v4649, 0.0
  %v8265 = vmax.f32 %v5017, 0.0
  %v8266 = vmax.f32 %v5019, 0.0
  %v8267 = vmax.f32 %v5387, 0.0
  %v8268 = vmax.f32 %v5389, 0.0
  %v8269 = vmax.f32 %v5757, 0.0
  %v8270 = vmax.f32 %v5759, 0.0
  %v8271 = vmax.f32 %v6127, 0.0
  %v8272 = vmax.f32 %v6129, 0.0
  %v8273 = vmax.f32 %v6497, 0.0
  %v8274 = vmax.f32 %v6499, 0.0
  %v8275 = vmax.f32 %v6867, 0.0
  %v8276 = vmax.f32 %v6869, 0.0
  %v8277 = vmax.f32 %v7237, 0.0
  %v8278 = vmax.f32 %v7239, 0.0
  %v8279 = vmax.f32 %v7607, 0.0
  %v8280 = vmax.f32 %v7609, 0.0
  %v8281 = vmax.f32 %v7977, 0.0
  %v8282 = vmax.f32 %v7979, 0.0
  %v8283 = vmax.f32 %v4653, 0.0
  %v8284 = vmax.f32 %v4655, 0.0
  %v8285 = vmax.f32 %v5023, 0.0
  %v8286 = vmax.f32 %v5025, 0.0
  %v8287 = vmax.f32 %v5393, 0.0
  %v8288 = vmax.f32 %v5395, 0.0
  %v8289 = vmax.f32 %v5763, 0.0
  %v8290 = vmax.f32 %v5765, 0.0
  %v8291 = vmax.f32 %v6133, 0.0
  %v8292 = vmax.f32 %v6135, 0.0
  %v8293 = vmax.f32 %v6503, 0.0
  %v8294 = vmax.f32 %v6505, 0.0
  %v8295 = vmax.f32 %v6873, 0.0
  %v8296 = vmax.f32 %v6875, 0.0
  %v8297 = vmax.f32 %v7243, 0.0
  %v8298 = vmax.f32 %v7245, 0.0
  %v8299 = vmax.f32 %v7613, 0.0
  %v8300 = vmax.f32 %v7615, 0.0
  %v8301 = vmax.f32 %v7983, 0.0
  %v8302 = vmax.f32 %v7985, 0.0
  %v8303 = vmax.f32 %v4659, 0.0
  %v8304 = vmax.f32 %v4661, 0.0
  %v8305 = vmax.f32 %v5029, 0.0
  %v8306 = vmax.f32 %v5031, 0.0
  %v8307 = vmax.f32 %v5399, 0.0
  %v8308 = vmax.f32 %v5401, 0.0
  %v8309 = vmax.f32 %v5769, 0.0
  %v8310 = vmax.f32 %v5771, 0.0
  %v8311 = vmax.f32 %v6139, 0.0
  %v8312 = vmax.f32 %v6141, 0.0
  %v8313 = vmax.f32 %v6509, 0.0
  %v8314 = vmax.f32 %v6511, 0.0
  %v8315 = vmax.f32 %v6879, 0.0
  %v8316 = vmax.f32 %v6881, 0.0
  %v8317 = vmax.f32 %v7249, 0.0
  %v8318 = vmax.f32 %v7251, 0.0
  %v8319 = vmax.f32 %v7619, 0.0
  %v8320 = vmax.f32 %v7621, 0.0
  %v8321 = vmax.f32 %v7989, 0.0
  %v8322 = vmax.f32 %v7991, 0.0
  %v8323 = vmax.f32 %v4665, 0.0
  %v8324 = vmax.f32 %v4667, 0.0
  %v8325 = vmax.f32 %v5035, 0.0
  %v8326 = vmax.f32 %v5037, 0.0
  %v8327 = vmax.f32 %v5405, 0.0
  %v8328 = vmax.f32 %v5407, 0.0
  %v8329 = vmax.f32 %v5775, 0.0
  %v8330 = vmax.f32 %v5777, 0.0
  %v8331 = vmax.f32 %v6145, 0.0
  %v8332 = vmax.f32 %v6147, 0.0
  %v8333 = vmax.f32 %v6515, 0.0
  %v8334 = vmax.f32 %v6517, 0.0
  %v8335 = vmax.f32 %v6885, 0.0
  %v8336 = vmax.f32 %v6887, 0.0
  %v8337 = vmax.f32 %v7255, 0.0
  %v8338 = vmax.f32 %v7257, 0.0
  %v8339 = vmax.f32 %v7625, 0.0
  %v8340 = vmax.f32 %v7627, 0.0
  %v8341 = vmax.f32 %v7995, 0.0
  %v8342 = vmax.f32 %v7997, 0.0
  %v8343 = vmax.f32 %v4671, 0.0
  %v8344 = vmax.f32 %v4673, 0.0
  %v8345 = vmax.f32 %v5041, 0.0
  %v8346 = vmax.f32 %v5043, 0.0
  %v8347 = vmax.f32 %v5411, 0.0
  %v8348 = vmax.f32 %v5413, 0.0
  %v8349 = vmax.f32 %v5781, 0.0
  %v8350 = vmax.f32 %v5783, 0.0
  %v8351 = vmax.f32 %v6151, 0.0
  %v8352 = vmax.f32 %v6153, 0.0
  %v8353 = vmax.f32 %v6521, 0.0
  %v8354 = vmax.f32 %v6523, 0.0
  %v8355 = vmax.f32 %v6891, 0.0
  %v8356 = vmax.f32 %v6893, 0.0
  %v8357 = vmax.f32 %v7261, 0.0
  %v8358 = vmax.f32 %v7263, 0.0
  %v8359 = vmax.f32 %v7631, 0.0
  %v8360 = vmax.f32 %v7633, 0.0
  %v8361 = vmax.f32 %v8001, 0.0
  %v8362 = vmax.f32 %v8003, 0.0
  %v8363 = vmax.f32 %v4677, 0.0
  %v8364 = vmax.f32 %v4679, 0.0
  %v8365 = vmax.f32 %v5047, 0.0
  %v8366 = vmax.f32 %v5049, 0.0
  %v8367 = vmax.f32 %v5417, 0.0
  %v8368 = vmax.f32 %v5419, 0.0
  %v8369 = vmax.f32 %v5787, 0.0
  %v8370 = vmax.f32 %v5789, 0.0
  %v8371 = vmax.f32 %v6157, 0.0
  %v8372 = vmax.f32 %v6159, 0.0
  %v8373 = vmax.f32 %v6527, 0.0
  %v8374 = vmax.f32 %v6529, 0.0
  %v8375 = vmax.f32 %v6897, 0.0
  %v8376 = vmax.f32 %v6899, 0.0
  %v8377 = vmax.f32 %v7267, 0.0
  %v8378 = vmax.f32 %v7269, 0.0
  %v8379 = vmax.f32 %v7637, 0.0
  %v8380 = vmax.f32 %v7639, 0.0
  %v8381 = vmax.f32 %v8007, 0.0
  %v8382 = vmax.f32 %v8009, 0.0
  %v8383 = vmax.f32 %v4683, 0.0
  %v8384 = vmax.f32 %v4685, 0.0
  %v8385 = vmax.f32 %v5053, 0.0
  %v8386 = vmax.f32 %v5055, 0.0
  %v8387 = vmax.f32 %v5423, 0.0
  %v8388 = vmax.f32 %v5425, 0.0
  %v8389 = vmax.f32 %v5793, 0.0
  %v8390 = vmax.f32 %v5795, 0.0
  %v8391 = vmax.f32 %v6163, 0.0
  %v8392 = vmax.f32 %v6165, 0.0
  %v8393 = vmax.f32 %v6533, 0.0
  %v8394 = vmax.f32 %v6535, 0.0
  %v8395 = vmax.f32 %v6903, 0.0
  %v8396 = vmax.f32 %v6905, 0.0
  %v8397 = vmax.f32 %v7273, 0.0
  %v8398 = vmax.f32 %v7275, 0.0
  %v8399 = vmax.f32 %v7643, 0.0
  %v8400 = vmax.f32 %v7645, 0.0
  %v8401 = vmax.f32 %v8013, 0.0
  %v8402 = vmax.f32 %v8015, 0.0
  %v8403 = vmax.f32 %v4689, 0.0
  %v8404 = vmax.f32 %v4691, 0.0
  %v8405 = vmax.f32 %v5059, 0.0
  %v8406 = vmax.f32 %v5061, 0.0
  %v8407 = vmax.f32 %v5429, 0.0
  %v8408 = vmax.f32 %v5431, 0.0
  %v8409 = vmax.f32 %v5799, 0.0
  %v8410 = vmax.f32 %v5801, 0.0
  %v8411 = vmax.f32 %v6169, 0.0
  %v8412 = vmax.f32 %v6171, 0.0
  %v8413 = vmax.f32 %v6539, 0.0
  %v8414 = vmax.f32 %v6541, 0.0
  %v8415 = vmax.f32 %v6909, 0.0
  %v8416 = vmax.f32 %v6911, 0.0
  %v8417 = vmax.f32 %v7279, 0.0
  %v8418 = vmax.f32 %v7281, 0.0
  %v8419 = vmax.f32 %v7649, 0.0
  %v8420 = vmax.f32 %v7651, 0.0
  %v8421 = vmax.f32 %v8019, 0.0
  %v8422 = vmax.f32 %v8021, 0.0
  %v8423 = vld [vmem:[%s4] sm:$0xff]
  %v8424 = vld [vmem:[%s4 + $0x8] sm:$0xff]
  %v8425 = vld [vmem:[%s4 + $0x10] sm:$0xff]
  %v8426 = vld [vmem:[%s4 + $0x18] sm:$0xff]
  %v8427 = vld [vmem:[%s4 + $0x20] sm:$0xff]
  %v8428 = vld [vmem:[%s4 + $0x28] sm:$0xff]
  %v8429 = vld [vmem:[%s4 + $0x30] sm:$0xff]
  %v8430 = vld [vmem:[%s4 + $0x38] sm:$0xff]
  %v8431 = vld [vmem:[%s4 + $0x40] sm:$0xff]
  %v8432 = vld [vmem:[%s4 + $0x48] sm:$0xff]
  %v8433 = vld [vmem:[%s4 + $0x50] sm:$0xff]
  %v8434 = vld [vmem:[%s4 + $0x58] sm:$0xff]
  %v8435 = vld [vmem:[%s4 + $0x60] sm:$0xff]
  %v8436 = vld [vmem:[%s4 + $0x68] sm:$0xff]
  %v8437 = vld [vmem:[%s4 + $0x70] sm:$0xff]
  %v8438 = vld [vmem:[%s4 + $0x78] sm:$0xff]
  %v8439 = vld [vmem:[%s5] sm:$0xff]
  %v8440 = vld [vmem:[%s5 + $0x8] sm:$0xff]
  %v8441 = vld [vmem:[%s5 + $0x10] sm:$0xff]
  %v8442 = vld [vmem:[%s5 + $0x18] sm:$0xff]
  %v8443 = vld [vmem:[%s5 + $0x20] sm:$0xff]
  %v8444 = vld [vmem:[%s5 + $0x28] sm:$0xff]
  %v8445 = vld [vmem:[%s5 + $0x30] sm:$0xff]
  %v8446 = vld [vmem:[%s5 + $0x38] sm:$0xff]
  %8448 = vset.pattern.permute.xlu0 0
  %8449 = vperm.xlu0 %8448, %v8439
  %v8450 = vpop.permute.xlu0 %8449
  %8453 = vset.pattern.permute.xlu0 0
  %8454 = vperm.xlu0 %8453, %v8440
  %v8455 = vpop.permute.xlu0 %8454
  %8458 = vset.pattern.permute.xlu0 0
  %8459 = vperm.xlu0 %8458, %v8441
  %v8460 = vpop.permute.xlu0 %8459
  %8463 = vset.pattern.permute.xlu0 0
  %8464 = vperm.xlu0 %8463, %v8442
  %v8465 = vpop.permute.xlu0 %8464
  %8468 = vset.pattern.permute.xlu0 0
  %8469 = vperm.xlu0 %8468, %v8443
  %v8470 = vpop.permute.xlu0 %8469
  %8473 = vset.pattern.permute.xlu0 0
  %8474 = vperm.xlu0 %8473, %v8444
  %v8475 = vpop.permute.xlu0 %8474
  %8478 = vset.pattern.permute.xlu0 0
  %8479 = vperm.xlu0 %8478, %v8445
  %v8480 = vpop.permute.xlu0 %8479
  %8483 = vset.pattern.permute.xlu0 0
  %8484 = vperm.xlu0 %8483, %v8446
  %v8485 = vpop.permute.xlu0 %8484
  %vm8487 = vcmask 261120
  %v8489 = vsel %vm8487, %v8424, 0
  %v8492 = vsel %vm8487, %v8426, 0
  %v8495 = vsel %vm8487, %v8428, 0
  %v8498 = vsel %vm8487, %v8430, 0
  %v8501 = vsel %vm8487, %v8432, 0
  %v8504 = vsel %vm8487, %v8434, 0
  %v8507 = vsel %vm8487, %v8436, 0
  %v8510 = vsel %vm8487, %v8438, 0
  %8512 = vmatprep.subr.mxu0 %v8324
  %8513 = vmatpush1.msra.mxu0 %v8323
  %8514 = vmatprep.subr.mxu0 %v8304
  %8515 = vmatpush1.msra.mxu0 %v8303
  %8516 = vmatprep.subr.mxu0 %v8284
  %8517 = vmatpush1.msra.mxu0 %v8283
  %8518 = vmatprep.subr.mxu0 %v8264
  %8519 = vmatpush1.msra.mxu0 %v8263
  %8520 = vmatprep.subr.mxu0 %v8244
  %8521 = vmatpush1.msra.mxu0 %v8243
  %8522 = vmatprep.subr.mxu0 %v8224
  %8523 = vmatpush1.msra.mxu0 %v8223
  %8524 = vmatprep.subr.mxu0 %v8204
  %8525 = vmatpush1.msra.mxu0 %v8203
  %8526 = vmatprep.subr.mxu0 %v8184
  %8527 = vmatpush1.msra.mxu0 %v8183
  %8528 = vmatprep.subr.mxu0 %v8164
  %8529 = vmatpush1.msra.mxu0 %v8163
  %8530 = vmatprep.subr.mxu0 %v8144
  %8531 = vmatpush1.msra.mxu0 %v8143
  %8532 = vmatprep.subr.mxu0 %v8124
  %8533 = vmatpush1.msra.mxu0 %v8123
  %8534 = vmatprep.subr.mxu0 %v8104
  %8535 = vmatpush1.msra.mxu0 %v8103
  %8536 = vmatprep.subr.mxu0 %v8084
  %8537 = vmatpush1.msra.mxu0 %v8083
  %8538 = vmatprep.subr.mxu0 %v8064
  %8539 = vmatpush1.msra.mxu0 %v8063
  %8540 = vmatprep.subr.mxu0 %v8044
  %8541 = vmatpush1.msra.mxu0 %v8043
  %8542 = vmatprep.subr.mxu0 %v8024
  %8543 = vmatpush1.msra.mxu0 %v8023
  %8544 = vmatprep.subr.mxu0 0.0
  %8545 = vmatpush2.msra.mxu0 0.0
  %8546 = vmatprep.subr.mxu0 0.0
  %8547 = vmatpush2.msra.mxu0 0.0
  %8548 = vmatprep.subr.mxu0 0.0
  %8549 = vmatpush2.msra.mxu0 0.0
  %8550 = vmatprep.subr.mxu0 0.0
  %8551 = vmatpush2.msra.mxu0 0.0
  %8552 = vmatprep.subr.mxu0 0.0
  %8553 = vmatpush2.msra.mxu0 0.0
  %8554 = vmatprep.subr.mxu0 0.0
  %8555 = vmatpush2.msra.mxu0 0.0
  %8556 = vmatprep.subr.mxu0 0.0
  %8557 = vmatpush2.msra.mxu0 0.0
  %8558 = vmatprep.subr.mxu0 0.0
  %8559 = vmatpush2.msra.mxu0 0.0
  %8560 = vmatprep.subr.mxu0 0.0
  %8561 = vmatpush2.msra.mxu0 0.0
  %8562 = vmatprep.subr.mxu0 0.0
  %8563 = vmatpush2.msra.mxu0 0.0
  %8564 = vmatprep.subr.mxu0 0.0
  %8565 = vmatpush2.msra.mxu0 0.0
  %8566 = vmatprep.subr.mxu0 0.0
  %8567 = vmatpush2.msra.mxu0 0.0
  %8568 = vmatprep.subr.mxu0 %v8404
  %8569 = vmatpush2.msra.mxu0 %v8403
  %8570 = vmatprep.subr.mxu0 %v8384
  %8571 = vmatpush2.msra.mxu0 %v8383
  %8572 = vmatprep.subr.mxu0 %v8364
  %8573 = vmatpush2.msra.mxu0 %v8363
  %8574 = vmatprep.subr.mxu0 %v8344
  %8575 = vmatpush2.msra.mxu0 %v8343
  %8576 = vmatprep.mubr.f32.mxu0 %v8489
  %8577 = vmatmul.mubr.f32.gmra.mxu0 %v8423
  %v8578 = vpop.f32.mrf.mxu0
  %v8579 = vadd.f32 %v8450, %v8578
  %v8580 = vpop.f32.mrf.mxu0
  %v8581 = vadd.f32 %v8450, %v8580
  %8582 = vmatprep.mubr.f32.mxu0 %v8492
  %8583 = vmatmul.mubr.f32.gmra.mxu0 %v8425
  %v8584 = vpop.f32.mrf.mxu0
  %v8585 = vadd.f32 %v8455, %v8584
  %v8586 = vpop.f32.mrf.mxu0
  %v8587 = vadd.f32 %v8455, %v8586
  %8588 = vmatprep.mubr.f32.mxu0 %v8495
  %8589 = vmatmul.mubr.f32.gmra.mxu0 %v8427
  %v8590 = vpop.f32.mrf.mxu0
  %v8591 = vadd.f32 %v8460, %v8590
  %v8592 = vpop.f32.mrf.mxu0
  %v8593 = vadd.f32 %v8460, %v8592
  %8594 = vmatprep.mubr.f32.mxu0 %v8498
  %8595 = vmatmul.mubr.f32.gmra.mxu0 %v8429
  %v8596 = vpop.f32.mrf.mxu0
  %v8597 = vadd.f32 %v8465, %v8596
  %v8598 = vpop.f32.mrf.mxu0
  %v8599 = vadd.f32 %v8465, %v8598
  %8600 = vmatprep.mubr.f32.mxu0 %v8501
  %8601 = vmatmul.mubr.f32.gmra.mxu0 %v8431
  %v8602 = vpop.f32.mrf.mxu0
  %v8603 = vadd.f32 %v8470, %v8602
  %v8604 = vpop.f32.mrf.mxu0
  %v8605 = vadd.f32 %v8470, %v8604
  %8606 = vmatprep.mubr.f32.mxu0 %v8504
  %8607 = vmatmul.mubr.f32.gmra.mxu0 %v8433
  %v8608 = vpop.f32.mrf.mxu0
  %v8609 = vadd.f32 %v8475, %v8608
  %v8610 = vpop.f32.mrf.mxu0
  %v8611 = vadd.f32 %v8475, %v8610
  %8612 = vmatprep.mubr.f32.mxu0 %v8507
  %8613 = vmatmul.mubr.f32.gmra.mxu0 %v8435
  %v8614 = vpop.f32.mrf.mxu0
  %v8615 = vadd.f32 %v8480, %v8614
  %v8616 = vpop.f32.mrf.mxu0
  %v8617 = vadd.f32 %v8480, %v8616
  %8618 = vmatprep.mubr.f32.mxu0 %v8510
  %8619 = vmatmul.mubr.f32.gmra.mxu0 %v8437
  %v8620 = vpop.f32.mrf.mxu0
  %v8621 = vadd.f32 %v8485, %v8620
  %v8622 = vpop.f32.mrf.mxu0
  %v8623 = vadd.f32 %v8485, %v8622
  %8624 = vdwg.mxu0
  %8625 = vmatprep.subr.mxu0 %v8326
  %8626 = vmatpush1.msra.mxu0 %v8325
  %8627 = vmatprep.subr.mxu0 %v8306
  %8628 = vmatpush1.msra.mxu0 %v8305
  %8629 = vmatprep.subr.mxu0 %v8286
  %8630 = vmatpush1.msra.mxu0 %v8285
  %8631 = vmatprep.subr.mxu0 %v8266
  %8632 = vmatpush1.msra.mxu0 %v8265
  %8633 = vmatprep.subr.mxu0 %v8246
  %8634 = vmatpush1.msra.mxu0 %v8245
  %8635 = vmatprep.subr.mxu0 %v8226
  %8636 = vmatpush1.msra.mxu0 %v8225
  %8637 = vmatprep.subr.mxu0 %v8206
  %8638 = vmatpush1.msra.mxu0 %v8205
  %8639 = vmatprep.subr.mxu0 %v8186
  %8640 = vmatpush1.msra.mxu0 %v8185
  %8641 = vmatprep.subr.mxu0 %v8166
  %8642 = vmatpush1.msra.mxu0 %v8165
  %8643 = vmatprep.subr.mxu0 %v8146
  %8644 = vmatpush1.msra.mxu0 %v8145
  %8645 = vmatprep.subr.mxu0 %v8126
  %8646 = vmatpush1.msra.mxu0 %v8125
  %8647 = vmatprep.subr.mxu0 %v8106
  %8648 = vmatpush1.msra.mxu0 %v8105
  %8649 = vmatprep.subr.mxu0 %v8086
  %8650 = vmatpush1.msra.mxu0 %v8085
  %8651 = vmatprep.subr.mxu0 %v8066
  %8652 = vmatpush1.msra.mxu0 %v8065
  %8653 = vmatprep.subr.mxu0 %v8046
  %8654 = vmatpush1.msra.mxu0 %v8045
  %8655 = vmatprep.subr.mxu0 %v8026
  %8656 = vmatpush1.msra.mxu0 %v8025
  %8657 = vmatprep.subr.mxu0 0.0
  %8658 = vmatpush2.msra.mxu0 0.0
  %8659 = vmatprep.subr.mxu0 0.0
  %8660 = vmatpush2.msra.mxu0 0.0
  %8661 = vmatprep.subr.mxu0 0.0
  %8662 = vmatpush2.msra.mxu0 0.0
  %8663 = vmatprep.subr.mxu0 0.0
  %8664 = vmatpush2.msra.mxu0 0.0
  %8665 = vmatprep.subr.mxu0 0.0
  %8666 = vmatpush2.msra.mxu0 0.0
  %8667 = vmatprep.subr.mxu0 0.0
  %8668 = vmatpush2.msra.mxu0 0.0
  %8669 = vmatprep.subr.mxu0 0.0
  %8670 = vmatpush2.msra.mxu0 0.0
  %8671 = vmatprep.subr.mxu0 0.0
  %8672 = vmatpush2.msra.mxu0 0.0
  %8673 = vmatprep.subr.mxu0 0.0
  %8674 = vmatpush2.msra.mxu0 0.0
  %8675 = vmatprep.subr.mxu0 0.0
  %8676 = vmatpush2.msra.mxu0 0.0
  %8677 = vmatprep.subr.mxu0 0.0
  %8678 = vmatpush2.msra.mxu0 0.0
  %8679 = vmatprep.subr.mxu0 0.0
  %8680 = vmatpush2.msra.mxu0 0.0
  %8681 = vmatprep.subr.mxu0 %v8406
  %8682 = vmatpush2.msra.mxu0 %v8405
  %8683 = vmatprep.subr.mxu0 %v8386
  %8684 = vmatpush2.msra.mxu0 %v8385
  %8685 = vmatprep.subr.mxu0 %v8366
  %8686 = vmatpush2.msra.mxu0 %v8365
  %8687 = vmatprep.subr.mxu0 %v8346
  %8688 = vmatpush2.msra.mxu0 %v8345
  %8689 = vmatprep.mubr.f32.mxu0 %v8489
  %8690 = vmatmul.mubr.f32.gmra.mxu0 %v8423
  %v8691 = vpop.f32.mrf.mxu0
  %v8692 = vadd.f32 %v8450, %v8691
  %v8693 = vpop.f32.mrf.mxu0
  %v8694 = vadd.f32 %v8450, %v8693
  %8695 = vmatprep.mubr.f32.mxu0 %v8492
  %8696 = vmatmul.mubr.f32.gmra.mxu0 %v8425
  %v8697 = vpop.f32.mrf.mxu0
  %v8698 = vadd.f32 %v8455, %v8697
  %v8699 = vpop.f32.mrf.mxu0
  %v8700 = vadd.f32 %v8455, %v8699
  %8701 = vmatprep.mubr.f32.mxu0 %v8495
  %8702 = vmatmul.mubr.f32.gmra.mxu0 %v8427
  %v8703 = vpop.f32.mrf.mxu0
  %v8704 = vadd.f32 %v8460, %v8703
  %v8705 = vpop.f32.mrf.mxu0
  %v8706 = vadd.f32 %v8460, %v8705
  %8707 = vmatprep.mubr.f32.mxu0 %v8498
  %8708 = vmatmul.mubr.f32.gmra.mxu0 %v8429
  %v8709 = vpop.f32.mrf.mxu0
  %v8710 = vadd.f32 %v8465, %v8709
  %v8711 = vpop.f32.mrf.mxu0
  %v8712 = vadd.f32 %v8465, %v8711
  %8713 = vmatprep.mubr.f32.mxu0 %v8501
  %8714 = vmatmul.mubr.f32.gmra.mxu0 %v8431
  %v8715 = vpop.f32.mrf.mxu0
  %v8716 = vadd.f32 %v8470, %v8715
  %v8717 = vpop.f32.mrf.mxu0
  %v8718 = vadd.f32 %v8470, %v8717
  %8719 = vmatprep.mubr.f32.mxu0 %v8504
  %8720 = vmatmul.mubr.f32.gmra.mxu0 %v8433
  %v8721 = vpop.f32.mrf.mxu0
  %v8722 = vadd.f32 %v8475, %v8721
  %v8723 = vpop.f32.mrf.mxu0
  %v8724 = vadd.f32 %v8475, %v8723
  %8725 = vmatprep.mubr.f32.mxu0 %v8507
  %8726 = vmatmul.mubr.f32.gmra.mxu0 %v8435
  %v8727 = vpop.f32.mrf.mxu0
  %v8728 = vadd.f32 %v8480, %v8727
  %v8729 = vpop.f32.mrf.mxu0
  %v8730 = vadd.f32 %v8480, %v8729
  %8731 = vmatprep.mubr.f32.mxu0 %v8510
  %8732 = vmatmul.mubr.f32.gmra.mxu0 %v8437
  %v8733 = vpop.f32.mrf.mxu0
  %v8734 = vadd.f32 %v8485, %v8733
  %v8735 = vpop.f32.mrf.mxu0
  %v8736 = vadd.f32 %v8485, %v8735
  %8737 = vdwg.mxu0
  %8738 = vmatprep.subr.mxu0 %v8328
  %8739 = vmatpush1.msra.mxu0 %v8327
  %8740 = vmatprep.subr.mxu0 %v8308
  %8741 = vmatpush1.msra.mxu0 %v8307
  %8742 = vmatprep.subr.mxu0 %v8288
  %8743 = vmatpush1.msra.mxu0 %v8287
  %8744 = vmatprep.subr.mxu0 %v8268
  %8745 = vmatpush1.msra.mxu0 %v8267
  %8746 = vmatprep.subr.mxu0 %v8248
  %8747 = vmatpush1.msra.mxu0 %v8247
  %8748 = vmatprep.subr.mxu0 %v8228
  %8749 = vmatpush1.msra.mxu0 %v8227
  %8750 = vmatprep.subr.mxu0 %v8208
  %8751 = vmatpush1.msra.mxu0 %v8207
  %8752 = vmatprep.subr.mxu0 %v8188
  %8753 = vmatpush1.msra.mxu0 %v8187
  %8754 = vmatprep.subr.mxu0 %v8168
  %8755 = vmatpush1.msra.mxu0 %v8167
  %8756 = vmatprep.subr.mxu0 %v8148
  %8757 = vmatpush1.msra.mxu0 %v8147
  %8758 = vmatprep.subr.mxu0 %v8128
  %8759 = vmatpush1.msra.mxu0 %v8127
  %8760 = vmatprep.subr.mxu0 %v8108
  %8761 = vmatpush1.msra.mxu0 %v8107
  %8762 = vmatprep.subr.mxu0 %v8088
  %8763 = vmatpush1.msra.mxu0 %v8087
  %8764 = vmatprep.subr.mxu0 %v8068
  %8765 = vmatpush1.msra.mxu0 %v8067
  %8766 = vmatprep.subr.mxu0 %v8048
  %8767 = vmatpush1.msra.mxu0 %v8047
  %8768 = vmatprep.subr.mxu0 %v8028
  %8769 = vmatpush1.msra.mxu0 %v8027
  %8770 = vmatprep.subr.mxu0 0.0
  %8771 = vmatpush2.msra.mxu0 0.0
  %8772 = vmatprep.subr.mxu0 0.0
  %8773 = vmatpush2.msra.mxu0 0.0
  %8774 = vmatprep.subr.mxu0 0.0
  %8775 = vmatpush2.msra.mxu0 0.0
  %8776 = vmatprep.subr.mxu0 0.0
  %8777 = vmatpush2.msra.mxu0 0.0
  %8778 = vmatprep.subr.mxu0 0.0
  %8779 = vmatpush2.msra.mxu0 0.0
  %8780 = vmatprep.subr.mxu0 0.0
  %8781 = vmatpush2.msra.mxu0 0.0
  %8782 = vmatprep.subr.mxu0 0.0
  %8783 = vmatpush2.msra.mxu0 0.0
  %8784 = vmatprep.subr.mxu0 0.0
  %8785 = vmatpush2.msra.mxu0 0.0
  %8786 = vmatprep.subr.mxu0 0.0
  %8787 = vmatpush2.msra.mxu0 0.0
  %8788 = vmatprep.subr.mxu0 0.0
  %8789 = vmatpush2.msra.mxu0 0.0
  %8790 = vmatprep.subr.mxu0 0.0
  %8791 = vmatpush2.msra.mxu0 0.0
  %8792 = vmatprep.subr.mxu0 0.0
  %8793 = vmatpush2.msra.mxu0 0.0
  %8794 = vmatprep.subr.mxu0 %v8408
  %8795 = vmatpush2.msra.mxu0 %v8407
  %8796 = vmatprep.subr.mxu0 %v8388
  %8797 = vmatpush2.msra.mxu0 %v8387
  %8798 = vmatprep.subr.mxu0 %v8368
  %8799 = vmatpush2.msra.mxu0 %v8367
  %8800 = vmatprep.subr.mxu0 %v8348
  %8801 = vmatpush2.msra.mxu0 %v8347
  %8802 = vmatprep.mubr.f32.mxu0 %v8489
  %8803 = vmatmul.mubr.f32.gmra.mxu0 %v8423
  %v8804 = vpop.f32.mrf.mxu0
  %v8805 = vadd.f32 %v8450, %v8804
  %v8806 = vpop.f32.mrf.mxu0
  %v8807 = vadd.f32 %v8450, %v8806
  %8808 = vmatprep.mubr.f32.mxu0 %v8492
  %8809 = vmatmul.mubr.f32.gmra.mxu0 %v8425
  %v8810 = vpop.f32.mrf.mxu0
  %v8811 = vadd.f32 %v8455, %v8810
  %v8812 = vpop.f32.mrf.mxu0
  %v8813 = vadd.f32 %v8455, %v8812
  %8814 = vmatprep.mubr.f32.mxu0 %v8495
  %8815 = vmatmul.mubr.f32.gmra.mxu0 %v8427
  %v8816 = vpop.f32.mrf.mxu0
  %v8817 = vadd.f32 %v8460, %v8816
  %v8818 = vpop.f32.mrf.mxu0
  %v8819 = vadd.f32 %v8460, %v8818
  %8820 = vmatprep.mubr.f32.mxu0 %v8498
  %8821 = vmatmul.mubr.f32.gmra.mxu0 %v8429
  %v8822 = vpop.f32.mrf.mxu0
  %v8823 = vadd.f32 %v8465, %v8822
  %v8824 = vpop.f32.mrf.mxu0
  %v8825 = vadd.f32 %v8465, %v8824
  %8826 = vmatprep.mubr.f32.mxu0 %v8501
  %8827 = vmatmul.mubr.f32.gmra.mxu0 %v8431
  %v8828 = vpop.f32.mrf.mxu0
  %v8829 = vadd.f32 %v8470, %v8828
  %v8830 = vpop.f32.mrf.mxu0
  %v8831 = vadd.f32 %v8470, %v8830
  %8832 = vmatprep.mubr.f32.mxu0 %v8504
  %8833 = vmatmul.mubr.f32.gmra.mxu0 %v8433
  %v8834 = vpop.f32.mrf.mxu0
  %v8835 = vadd.f32 %v8475, %v8834
  %v8836 = vpop.f32.mrf.mxu0
  %v8837 = vadd.f32 %v8475, %v8836
  %8838 = vmatprep.mubr.f32.mxu0 %v8507
  %8839 = vmatmul.mubr.f32.gmra.mxu0 %v8435
  %v8840 = vpop.f32.mrf.mxu0
  %v8841 = vadd.f32 %v8480, %v8840
  %v8842 = vpop.f32.mrf.mxu0
  %v8843 = vadd.f32 %v8480, %v8842
  %8844 = vmatprep.mubr.f32.mxu0 %v8510
  %8845 = vmatmul.mubr.f32.gmra.mxu0 %v8437
  %v8846 = vpop.f32.mrf.mxu0
  %v8847 = vadd.f32 %v8485, %v8846
  %v8848 = vpop.f32.mrf.mxu0
  %v8849 = vadd.f32 %v8485, %v8848
  %8850 = vdwg.mxu0
  %8851 = vmatprep.subr.mxu0 %v8330
  %8852 = vmatpush1.msra.mxu0 %v8329
  %8853 = vmatprep.subr.mxu0 %v8310
  %8854 = vmatpush1.msra.mxu0 %v8309
  %8855 = vmatprep.subr.mxu0 %v8290
  %8856 = vmatpush1.msra.mxu0 %v8289
  %8857 = vmatprep.subr.mxu0 %v8270
  %8858 = vmatpush1.msra.mxu0 %v8269
  %8859 = vmatprep.subr.mxu0 %v8250
  %8860 = vmatpush1.msra.mxu0 %v8249
  %8861 = vmatprep.subr.mxu0 %v8230
  %8862 = vmatpush1.msra.mxu0 %v8229
  %8863 = vmatprep.subr.mxu0 %v8210
  %8864 = vmatpush1.msra.mxu0 %v8209
  %8865 = vmatprep.subr.mxu0 %v8190
  %8866 = vmatpush1.msra.mxu0 %v8189
  %8867 = vmatprep.subr.mxu0 %v8170
  %8868 = vmatpush1.msra.mxu0 %v8169
  %8869 = vmatprep.subr.mxu0 %v8150
  %8870 = vmatpush1.msra.mxu0 %v8149
  %8871 = vmatprep.subr.mxu0 %v8130
  %8872 = vmatpush1.msra.mxu0 %v8129
  %8873 = vmatprep.subr.mxu0 %v8110
  %8874 = vmatpush1.msra.mxu0 %v8109
  %8875 = vmatprep.subr.mxu0 %v8090
  %8876 = vmatpush1.msra.mxu0 %v8089
  %8877 = vmatprep.subr.mxu0 %v8070
  %8878 = vmatpush1.msra.mxu0 %v8069
  %8879 = vmatprep.subr.mxu0 %v8050
  %8880 = vmatpush1.msra.mxu0 %v8049
  %8881 = vmatprep.subr.mxu0 %v8030
  %8882 = vmatpush1.msra.mxu0 %v8029
  %8883 = vmatprep.subr.mxu0 0.0
  %8884 = vmatpush2.msra.mxu0 0.0
  %8885 = vmatprep.subr.mxu0 0.0
  %8886 = vmatpush2.msra.mxu0 0.0
  %8887 = vmatprep.subr.mxu0 0.0
  %8888 = vmatpush2.msra.mxu0 0.0
  %8889 = vmatprep.subr.mxu0 0.0
  %8890 = vmatpush2.msra.mxu0 0.0
  %8891 = vmatprep.subr.mxu0 0.0
  %8892 = vmatpush2.msra.mxu0 0.0
  %8893 = vmatprep.subr.mxu0 0.0
  %8894 = vmatpush2.msra.mxu0 0.0
  %8895 = vmatprep.subr.mxu0 0.0
  %8896 = vmatpush2.msra.mxu0 0.0
  %8897 = vmatprep.subr.mxu0 0.0
  %8898 = vmatpush2.msra.mxu0 0.0
  %8899 = vmatprep.subr.mxu0 0.0
  %8900 = vmatpush2.msra.mxu0 0.0
  %8901 = vmatprep.subr.mxu0 0.0
  %8902 = vmatpush2.msra.mxu0 0.0
  %8903 = vmatprep.subr.mxu0 0.0
  %8904 = vmatpush2.msra.mxu0 0.0
  %8905 = vmatprep.subr.mxu0 0.0
  %8906 = vmatpush2.msra.mxu0 0.0
  %8907 = vmatprep.subr.mxu0 %v8410
  %8908 = vmatpush2.msra.mxu0 %v8409
  %8909 = vmatprep.subr.mxu0 %v8390
  %8910 = vmatpush2.msra.mxu0 %v8389
  %8911 = vmatprep.subr.mxu0 %v8370
  %8912 = vmatpush2.msra.mxu0 %v8369
  %8913 = vmatprep.subr.mxu0 %v8350
  %8914 = vmatpush2.msra.mxu0 %v8349
  %8915 = vmatprep.mubr.f32.mxu0 %v8489
  %8916 = vmatmul.mubr.f32.gmra.mxu0 %v8423
  %v8917 = vpop.f32.mrf.mxu0
  %v8918 = vadd.f32 %v8450, %v8917
  %v8919 = vpop.f32.mrf.mxu0
  %v8920 = vadd.f32 %v8450, %v8919
  %8921 = vmatprep.mubr.f32.mxu0 %v8492
  %8922 = vmatmul.mubr.f32.gmra.mxu0 %v8425
  %v8923 = vpop.f32.mrf.mxu0
  %v8924 = vadd.f32 %v8455, %v8923
  %v8925 = vpop.f32.mrf.mxu0
  %v8926 = vadd.f32 %v8455, %v8925
  %8927 = vmatprep.mubr.f32.mxu0 %v8495
  %8928 = vmatmul.mubr.f32.gmra.mxu0 %v8427
  %v8929 = vpop.f32.mrf.mxu0
  %v8930 = vadd.f32 %v8460, %v8929
  %v8931 = vpop.f32.mrf.mxu0
  %v8932 = vadd.f32 %v8460, %v8931
  %8933 = vmatprep.mubr.f32.mxu0 %v8498
  %8934 = vmatmul.mubr.f32.gmra.mxu0 %v8429
  %v8935 = vpop.f32.mrf.mxu0
  %v8936 = vadd.f32 %v8465, %v8935
  %v8937 = vpop.f32.mrf.mxu0
  %v8938 = vadd.f32 %v8465, %v8937
  %8939 = vmatprep.mubr.f32.mxu0 %v8501
  %8940 = vmatmul.mubr.f32.gmra.mxu0 %v8431
  %v8941 = vpop.f32.mrf.mxu0
  %v8942 = vadd.f32 %v8470, %v8941
  %v8943 = vpop.f32.mrf.mxu0
  %v8944 = vadd.f32 %v8470, %v8943
  %8945 = vmatprep.mubr.f32.mxu0 %v8504
  %8946 = vmatmul.mubr.f32.gmra.mxu0 %v8433
  %v8947 = vpop.f32.mrf.mxu0
  %v8948 = vadd.f32 %v8475, %v8947
  %v8949 = vpop.f32.mrf.mxu0
  %v8950 = vadd.f32 %v8475, %v8949
  %8951 = vmatprep.mubr.f32.mxu0 %v8507
  %8952 = vmatmul.mubr.f32.gmra.mxu0 %v8435
  %v8953 = vpop.f32.mrf.mxu0
  %v8954 = vadd.f32 %v8480, %v8953
  %v8955 = vpop.f32.mrf.mxu0
  %v8956 = vadd.f32 %v8480, %v8955
  %8957 = vmatprep.mubr.f32.mxu0 %v8510
  %8958 = vmatmul.mubr.f32.gmra.mxu0 %v8437
  %v8959 = vpop.f32.mrf.mxu0
  %v8960 = vadd.f32 %v8485, %v8959
  %v8961 = vpop.f32.mrf.mxu0
  %v8962 = vadd.f32 %v8485, %v8961
  %8963 = vdwg.mxu0
  %8964 = vmatprep.subr.mxu0 %v8332
  %8965 = vmatpush1.msra.mxu0 %v8331
  %8966 = vmatprep.subr.mxu0 %v8312
  %8967 = vmatpush1.msra.mxu0 %v8311
  %8968 = vmatprep.subr.mxu0 %v8292
  %8969 = vmatpush1.msra.mxu0 %v8291
  %8970 = vmatprep.subr.mxu0 %v8272
  %8971 = vmatpush1.msra.mxu0 %v8271
  %8972 = vmatprep.subr.mxu0 %v8252
  %8973 = vmatpush1.msra.mxu0 %v8251
  %8974 = vmatprep.subr.mxu0 %v8232
  %8975 = vmatpush1.msra.mxu0 %v8231
  %8976 = vmatprep.subr.mxu0 %v8212
  %8977 = vmatpush1.msra.mxu0 %v8211
  %8978 = vmatprep.subr.mxu0 %v8192
  %8979 = vmatpush1.msra.mxu0 %v8191
  %8980 = vmatprep.subr.mxu0 %v8172
  %8981 = vmatpush1.msra.mxu0 %v8171
  %8982 = vmatprep.subr.mxu0 %v8152
  %8983 = vmatpush1.msra.mxu0 %v8151
  %8984 = vmatprep.subr.mxu0 %v8132
  %8985 = vmatpush1.msra.mxu0 %v8131
  %8986 = vmatprep.subr.mxu0 %v8112
  %8987 = vmatpush1.msra.mxu0 %v8111
  %8988 = vmatprep.subr.mxu0 %v8092
  %8989 = vmatpush1.msra.mxu0 %v8091
  %8990 = vmatprep.subr.mxu0 %v8072
  %8991 = vmatpush1.msra.mxu0 %v8071
  %8992 = vmatprep.subr.mxu0 %v8052
  %8993 = vmatpush1.msra.mxu0 %v8051
  %8994 = vmatprep.subr.mxu0 %v8032
  %8995 = vmatpush1.msra.mxu0 %v8031
  %8996 = vmatprep.subr.mxu0 0.0
  %8997 = vmatpush2.msra.mxu0 0.0
  %8998 = vmatprep.subr.mxu0 0.0
  %8999 = vmatpush2.msra.mxu0 0.0
  %9000 = vmatprep.subr.mxu0 0.0
  %9001 = vmatpush2.msra.mxu0 0.0
  %9002 = vmatprep.subr.mxu0 0.0
  %9003 = vmatpush2.msra.mxu0 0.0
  %9004 = vmatprep.subr.mxu0 0.0
  %9005 = vmatpush2.msra.mxu0 0.0
  %9006 = vmatprep.subr.mxu0 0.0
  %9007 = vmatpush2.msra.mxu0 0.0
  %9008 = vmatprep.subr.mxu0 0.0
  %9009 = vmatpush2.msra.mxu0 0.0
  %9010 = vmatprep.subr.mxu0 0.0
  %9011 = vmatpush2.msra.mxu0 0.0
  %9012 = vmatprep.subr.mxu0 0.0
  %9013 = vmatpush2.msra.mxu0 0.0
  %9014 = vmatprep.subr.mxu0 0.0
  %9015 = vmatpush2.msra.mxu0 0.0
  %9016 = vmatprep.subr.mxu0 0.0
  %9017 = vmatpush2.msra.mxu0 0.0
  %9018 = vmatprep.subr.mxu0 0.0
  %9019 = vmatpush2.msra.mxu0 0.0
  %9020 = vmatprep.subr.mxu0 %v8412
  %9021 = vmatpush2.msra.mxu0 %v8411
  %9022 = vmatprep.subr.mxu0 %v8392
  %9023 = vmatpush2.msra.mxu0 %v8391
  %9024 = vmatprep.subr.mxu0 %v8372
  %9025 = vmatpush2.msra.mxu0 %v8371
  %9026 = vmatprep.subr.mxu0 %v8352
  %9027 = vmatpush2.msra.mxu0 %v8351
  %9028 = vmatprep.mubr.f32.mxu0 %v8489
  %9029 = vmatmul.mubr.f32.gmra.mxu0 %v8423
  %v9030 = vpop.f32.mrf.mxu0
  %v9031 = vadd.f32 %v8450, %v9030
  %v9032 = vpop.f32.mrf.mxu0
  %v9033 = vadd.f32 %v8450, %v9032
  %9034 = vmatprep.mubr.f32.mxu0 %v8492
  %9035 = vmatmul.mubr.f32.gmra.mxu0 %v8425
  %v9036 = vpop.f32.mrf.mxu0
  %v9037 = vadd.f32 %v8455, %v9036
  %v9038 = vpop.f32.mrf.mxu0
  %v9039 = vadd.f32 %v8455, %v9038
  %9040 = vmatprep.mubr.f32.mxu0 %v8495
  %9041 = vmatmul.mubr.f32.gmra.mxu0 %v8427
  %v9042 = vpop.f32.mrf.mxu0
  %v9043 = vadd.f32 %v8460, %v9042
  %v9044 = vpop.f32.mrf.mxu0
  %v9045 = vadd.f32 %v8460, %v9044
  %9046 = vmatprep.mubr.f32.mxu0 %v8498
  %9047 = vmatmul.mubr.f32.gmra.mxu0 %v8429
  %v9048 = vpop.f32.mrf.mxu0
  %v9049 = vadd.f32 %v8465, %v9048
  %v9050 = vpop.f32.mrf.mxu0
  %v9051 = vadd.f32 %v8465, %v9050
  %9052 = vmatprep.mubr.f32.mxu0 %v8501
  %9053 = vmatmul.mubr.f32.gmra.mxu0 %v8431
  %v9054 = vpop.f32.mrf.mxu0
  %v9055 = vadd.f32 %v8470, %v9054
  %v9056 = vpop.f32.mrf.mxu0
  %v9057 = vadd.f32 %v8470, %v9056
  %9058 = vmatprep.mubr.f32.mxu0 %v8504
  %9059 = vmatmul.mubr.f32.gmra.mxu0 %v8433
  %v9060 = vpop.f32.mrf.mxu0
  %v9061 = vadd.f32 %v8475, %v9060
  %v9062 = vpop.f32.mrf.mxu0
  %v9063 = vadd.f32 %v8475, %v9062
  %9064 = vmatprep.mubr.f32.mxu0 %v8507
  %9065 = vmatmul.mubr.f32.gmra.mxu0 %v8435
  %v9066 = vpop.f32.mrf.mxu0
  %v9067 = vadd.f32 %v8480, %v9066
  %v9068 = vpop.f32.mrf.mxu0
  %v9069 = vadd.f32 %v8480, %v9068
  %9070 = vmatprep.mubr.f32.mxu0 %v8510
  %9071 = vmatmul.mubr.f32.gmra.mxu0 %v8437
  %v9072 = vpop.f32.mrf.mxu0
  %v9073 = vadd.f32 %v8485, %v9072
  %v9074 = vpop.f32.mrf.mxu0
  %v9075 = vadd.f32 %v8485, %v9074
  %9076 = vdwg.mxu0
  %9077 = vmatprep.subr.mxu0 %v8334
  %9078 = vmatpush1.msra.mxu0 %v8333
  %9079 = vmatprep.subr.mxu0 %v8314
  %9080 = vmatpush1.msra.mxu0 %v8313
  %9081 = vmatprep.subr.mxu0 %v8294
  %9082 = vmatpush1.msra.mxu0 %v8293
  %9083 = vmatprep.subr.mxu0 %v8274
  %9084 = vmatpush1.msra.mxu0 %v8273
  %9085 = vmatprep.subr.mxu0 %v8254
  %9086 = vmatpush1.msra.mxu0 %v8253
  %9087 = vmatprep.subr.mxu0 %v8234
  %9088 = vmatpush1.msra.mxu0 %v8233
  %9089 = vmatprep.subr.mxu0 %v8214
  %9090 = vmatpush1.msra.mxu0 %v8213
  %9091 = vmatprep.subr.mxu0 %v8194
  %9092 = vmatpush1.msra.mxu0 %v8193
  %9093 = vmatprep.subr.mxu0 %v8174
  %9094 = vmatpush1.msra.mxu0 %v8173
  %9095 = vmatprep.subr.mxu0 %v8154
  %9096 = vmatpush1.msra.mxu0 %v8153
  %9097 = vmatprep.subr.mxu0 %v8134
  %9098 = vmatpush1.msra.mxu0 %v8133
  %9099 = vmatprep.subr.mxu0 %v8114
  %9100 = vmatpush1.msra.mxu0 %v8113
  %9101 = vmatprep.subr.mxu0 %v8094
  %9102 = vmatpush1.msra.mxu0 %v8093
  %9103 = vmatprep.subr.mxu0 %v8074
  %9104 = vmatpush1.msra.mxu0 %v8073
  %9105 = vmatprep.subr.mxu0 %v8054
  %9106 = vmatpush1.msra.mxu0 %v8053
  %9107 = vmatprep.subr.mxu0 %v8034
  %9108 = vmatpush1.msra.mxu0 %v8033
  %9109 = vmatprep.subr.mxu0 0.0
  %9110 = vmatpush2.msra.mxu0 0.0
  %9111 = vmatprep.subr.mxu0 0.0
  %9112 = vmatpush2.msra.mxu0 0.0
  %9113 = vmatprep.subr.mxu0 0.0
  %9114 = vmatpush2.msra.mxu0 0.0
  %9115 = vmatprep.subr.mxu0 0.0
  %9116 = vmatpush2.msra.mxu0 0.0
  %9117 = vmatprep.subr.mxu0 0.0
  %9118 = vmatpush2.msra.mxu0 0.0
  %9119 = vmatprep.subr.mxu0 0.0
  %9120 = vmatpush2.msra.mxu0 0.0
  %9121 = vmatprep.subr.mxu0 0.0
  %9122 = vmatpush2.msra.mxu0 0.0
  %9123 = vmatprep.subr.mxu0 0.0
  %9124 = vmatpush2.msra.mxu0 0.0
  %9125 = vmatprep.subr.mxu0 0.0
  %9126 = vmatpush2.msra.mxu0 0.0
  %9127 = vmatprep.subr.mxu0 0.0
  %9128 = vmatpush2.msra.mxu0 0.0
  %9129 = vmatprep.subr.mxu0 0.0
  %9130 = vmatpush2.msra.mxu0 0.0
  %9131 = vmatprep.subr.mxu0 0.0
  %9132 = vmatpush2.msra.mxu0 0.0
  %9133 = vmatprep.subr.mxu0 %v8414
  %9134 = vmatpush2.msra.mxu0 %v8413
  %9135 = vmatprep.subr.mxu0 %v8394
  %9136 = vmatpush2.msra.mxu0 %v8393
  %9137 = vmatprep.subr.mxu0 %v8374
  %9138 = vmatpush2.msra.mxu0 %v8373
  %9139 = vmatprep.subr.mxu0 %v8354
  %9140 = vmatpush2.msra.mxu0 %v8353
  %9141 = vmatprep.mubr.f32.mxu0 %v8489
  %9142 = vmatmul.mubr.f32.gmra.mxu0 %v8423
  %v9143 = vpop.f32.mrf.mxu0
  %v9144 = vadd.f32 %v8450, %v9143
  %v9145 = vpop.f32.mrf.mxu0
  %v9146 = vadd.f32 %v8450, %v9145
  %9147 = vmatprep.mubr.f32.mxu0 %v8492
  %9148 = vmatmul.mubr.f32.gmra.mxu0 %v8425
  %v9149 = vpop.f32.mrf.mxu0
  %v9150 = vadd.f32 %v8455, %v9149
  %v9151 = vpop.f32.mrf.mxu0
  %v9152 = vadd.f32 %v8455, %v9151
  %9153 = vmatprep.mubr.f32.mxu0 %v8495
  %9154 = vmatmul.mubr.f32.gmra.mxu0 %v8427
  %v9155 = vpop.f32.mrf.mxu0
  %v9156 = vadd.f32 %v8460, %v9155
  %v9157 = vpop.f32.mrf.mxu0
  %v9158 = vadd.f32 %v8460, %v9157
  %9159 = vmatprep.mubr.f32.mxu0 %v8498
  %9160 = vmatmul.mubr.f32.gmra.mxu0 %v8429
  %v9161 = vpop.f32.mrf.mxu0
  %v9162 = vadd.f32 %v8465, %v9161
  %v9163 = vpop.f32.mrf.mxu0
  %v9164 = vadd.f32 %v8465, %v9163
  %9165 = vmatprep.mubr.f32.mxu0 %v8501
  %9166 = vmatmul.mubr.f32.gmra.mxu0 %v8431
  %v9167 = vpop.f32.mrf.mxu0
  %v9168 = vadd.f32 %v8470, %v9167
  %v9169 = vpop.f32.mrf.mxu0
  %v9170 = vadd.f32 %v8470, %v9169
  %9171 = vmatprep.mubr.f32.mxu0 %v8504
  %9172 = vmatmul.mubr.f32.gmra.mxu0 %v8433
  %v9173 = vpop.f32.mrf.mxu0
  %v9174 = vadd.f32 %v8475, %v9173
  %v9175 = vpop.f32.mrf.mxu0
  %v9176 = vadd.f32 %v8475, %v9175
  %9177 = vmatprep.mubr.f32.mxu0 %v8507
  %9178 = vmatmul.mubr.f32.gmra.mxu0 %v8435
  %v9179 = vpop.f32.mrf.mxu0
  %v9180 = vadd.f32 %v8480, %v9179
  %v9181 = vpop.f32.mrf.mxu0
  %v9182 = vadd.f32 %v8480, %v9181
  %9183 = vmatprep.mubr.f32.mxu0 %v8510
  %9184 = vmatmul.mubr.f32.gmra.mxu0 %v8437
  %v9185 = vpop.f32.mrf.mxu0
  %v9186 = vadd.f32 %v8485, %v9185
  %v9187 = vpop.f32.mrf.mxu0
  %v9188 = vadd.f32 %v8485, %v9187
  %9189 = vdwg.mxu0
  %9190 = vmatprep.subr.mxu0 %v8336
  %9191 = vmatpush1.msra.mxu0 %v8335
  %9192 = vmatprep.subr.mxu0 %v8316
  %9193 = vmatpush1.msra.mxu0 %v8315
  %9194 = vmatprep.subr.mxu0 %v8296
  %9195 = vmatpush1.msra.mxu0 %v8295
  %9196 = vmatprep.subr.mxu0 %v8276
  %9197 = vmatpush1.msra.mxu0 %v8275
  %9198 = vmatprep.subr.mxu0 %v8256
  %9199 = vmatpush1.msra.mxu0 %v8255
  %9200 = vmatprep.subr.mxu0 %v8236
  %9201 = vmatpush1.msra.mxu0 %v8235
  %9202 = vmatprep.subr.mxu0 %v8216
  %9203 = vmatpush1.msra.mxu0 %v8215
  %9204 = vmatprep.subr.mxu0 %v8196
  %9205 = vmatpush1.msra.mxu0 %v8195
  %9206 = vmatprep.subr.mxu0 %v8176
  %9207 = vmatpush1.msra.mxu0 %v8175
  %9208 = vmatprep.subr.mxu0 %v8156
  %9209 = vmatpush1.msra.mxu0 %v8155
  %9210 = vmatprep.subr.mxu0 %v8136
  %9211 = vmatpush1.msra.mxu0 %v8135
  %9212 = vmatprep.subr.mxu0 %v8116
  %9213 = vmatpush1.msra.mxu0 %v8115
  %9214 = vmatprep.subr.mxu0 %v8096
  %9215 = vmatpush1.msra.mxu0 %v8095
  %9216 = vmatprep.subr.mxu0 %v8076
  %9217 = vmatpush1.msra.mxu0 %v8075
  %9218 = vmatprep.subr.mxu0 %v8056
  %9219 = vmatpush1.msra.mxu0 %v8055
  %9220 = vmatprep.subr.mxu0 %v8036
  %9221 = vmatpush1.msra.mxu0 %v8035
  %9222 = vmatprep.subr.mxu0 0.0
  %9223 = vmatpush2.msra.mxu0 0.0
  %9224 = vmatprep.subr.mxu0 0.0
  %9225 = vmatpush2.msra.mxu0 0.0
  %9226 = vmatprep.subr.mxu0 0.0
  %9227 = vmatpush2.msra.mxu0 0.0
  %9228 = vmatprep.subr.mxu0 0.0
  %9229 = vmatpush2.msra.mxu0 0.0
  %9230 = vmatprep.subr.mxu0 0.0
  %9231 = vmatpush2.msra.mxu0 0.0
  %9232 = vmatprep.subr.mxu0 0.0
  %9233 = vmatpush2.msra.mxu0 0.0
  %9234 = vmatprep.subr.mxu0 0.0
  %9235 = vmatpush2.msra.mxu0 0.0
  %9236 = vmatprep.subr.mxu0 0.0
  %9237 = vmatpush2.msra.mxu0 0.0
  %9238 = vmatprep.subr.mxu0 0.0
  %9239 = vmatpush2.msra.mxu0 0.0
  %9240 = vmatprep.subr.mxu0 0.0
  %9241 = vmatpush2.msra.mxu0 0.0
  %9242 = vmatprep.subr.mxu0 0.0
  %9243 = vmatpush2.msra.mxu0 0.0
  %9244 = vmatprep.subr.mxu0 0.0
  %9245 = vmatpush2.msra.mxu0 0.0
  %9246 = vmatprep.subr.mxu0 %v8416
  %9247 = vmatpush2.msra.mxu0 %v8415
  %9248 = vmatprep.subr.mxu0 %v8396
  %9249 = vmatpush2.msra.mxu0 %v8395
  %9250 = vmatprep.subr.mxu0 %v8376
  %9251 = vmatpush2.msra.mxu0 %v8375
  %9252 = vmatprep.subr.mxu0 %v8356
  %9253 = vmatpush2.msra.mxu0 %v8355
  %9254 = vmatprep.mubr.f32.mxu0 %v8489
  %9255 = vmatmul.mubr.f32.gmra.mxu0 %v8423
  %v9256 = vpop.f32.mrf.mxu0
  %v9257 = vadd.f32 %v8450, %v9256
  %v9258 = vpop.f32.mrf.mxu0
  %v9259 = vadd.f32 %v8450, %v9258
  %9260 = vmatprep.mubr.f32.mxu0 %v8492
  %9261 = vmatmul.mubr.f32.gmra.mxu0 %v8425
  %v9262 = vpop.f32.mrf.mxu0
  %v9263 = vadd.f32 %v8455, %v9262
  %v9264 = vpop.f32.mrf.mxu0
  %v9265 = vadd.f32 %v8455, %v9264
  %9266 = vmatprep.mubr.f32.mxu0 %v8495
  %9267 = vmatmul.mubr.f32.gmra.mxu0 %v8427
  %v9268 = vpop.f32.mrf.mxu0
  %v9269 = vadd.f32 %v8460, %v9268
  %v9270 = vpop.f32.mrf.mxu0
  %v9271 = vadd.f32 %v8460, %v9270
  %9272 = vmatprep.mubr.f32.mxu0 %v8498
  %9273 = vmatmul.mubr.f32.gmra.mxu0 %v8429
  %v9274 = vpop.f32.mrf.mxu0
  %v9275 = vadd.f32 %v8465, %v9274
  %v9276 = vpop.f32.mrf.mxu0
  %v9277 = vadd.f32 %v8465, %v9276
  %9278 = vmatprep.mubr.f32.mxu0 %v8501
  %9279 = vmatmul.mubr.f32.gmra.mxu0 %v8431
  %v9280 = vpop.f32.mrf.mxu0
  %v9281 = vadd.f32 %v8470, %v9280
  %v9282 = vpop.f32.mrf.mxu0
  %v9283 = vadd.f32 %v8470, %v9282
  %9284 = vmatprep.mubr.f32.mxu0 %v8504
  %9285 = vmatmul.mubr.f32.gmra.mxu0 %v8433
  %v9286 = vpop.f32.mrf.mxu0
  %v9287 = vadd.f32 %v8475, %v9286
  %v9288 = vpop.f32.mrf.mxu0
  %v9289 = vadd.f32 %v8475, %v9288
  %9290 = vmatprep.mubr.f32.mxu0 %v8507
  %9291 = vmatmul.mubr.f32.gmra.mxu0 %v8435
  %v9292 = vpop.f32.mrf.mxu0
  %v9293 = vadd.f32 %v8480, %v9292
  %v9294 = vpop.f32.mrf.mxu0
  %v9295 = vadd.f32 %v8480, %v9294
  %9296 = vmatprep.mubr.f32.mxu0 %v8510
  %9297 = vmatmul.mubr.f32.gmra.mxu0 %v8437
  %v9298 = vpop.f32.mrf.mxu0
  %v9299 = vadd.f32 %v8485, %v9298
  %v9300 = vpop.f32.mrf.mxu0
  %v9301 = vadd.f32 %v8485, %v9300
  %9302 = vdwg.mxu0
  %9303 = vmatprep.subr.mxu0 %v8338
  %9304 = vmatpush1.msra.mxu0 %v8337
  %9305 = vmatprep.subr.mxu0 %v8318
  %9306 = vmatpush1.msra.mxu0 %v8317
  %9307 = vmatprep.subr.mxu0 %v8298
  %9308 = vmatpush1.msra.mxu0 %v8297
  %9309 = vmatprep.subr.mxu0 %v8278
  %9310 = vmatpush1.msra.mxu0 %v8277
  %9311 = vmatprep.subr.mxu0 %v8258
  %9312 = vmatpush1.msra.mxu0 %v8257
  %9313 = vmatprep.subr.mxu0 %v8238
  %9314 = vmatpush1.msra.mxu0 %v8237
  %9315 = vmatprep.subr.mxu0 %v8218
  %9316 = vmatpush1.msra.mxu0 %v8217
  %9317 = vmatprep.subr.mxu0 %v8198
  %9318 = vmatpush1.msra.mxu0 %v8197
  %9319 = vmatprep.subr.mxu0 %v8178
  %9320 = vmatpush1.msra.mxu0 %v8177
  %9321 = vmatprep.subr.mxu0 %v8158
  %9322 = vmatpush1.msra.mxu0 %v8157
  %9323 = vmatprep.subr.mxu0 %v8138
  %9324 = vmatpush1.msra.mxu0 %v8137
  %9325 = vmatprep.subr.mxu0 %v8118
  %9326 = vmatpush1.msra.mxu0 %v8117
  %9327 = vmatprep.subr.mxu0 %v8098
  %9328 = vmatpush1.msra.mxu0 %v8097
  %9329 = vmatprep.subr.mxu0 %v8078
  %9330 = vmatpush1.msra.mxu0 %v8077
  %9331 = vmatprep.subr.mxu0 %v8058
  %9332 = vmatpush1.msra.mxu0 %v8057
  %9333 = vmatprep.subr.mxu0 %v8038
  %9334 = vmatpush1.msra.mxu0 %v8037
  %9335 = vmatprep.subr.mxu0 0.0
  %9336 = vmatpush2.msra.mxu0 0.0
  %9337 = vmatprep.subr.mxu0 0.0
  %9338 = vmatpush2.msra.mxu0 0.0
  %9339 = vmatprep.subr.mxu0 0.0
  %9340 = vmatpush2.msra.mxu0 0.0
  %9341 = vmatprep.subr.mxu0 0.0
  %9342 = vmatpush2.msra.mxu0 0.0
  %9343 = vmatprep.subr.mxu0 0.0
  %9344 = vmatpush2.msra.mxu0 0.0
  %9345 = vmatprep.subr.mxu0 0.0
  %9346 = vmatpush2.msra.mxu0 0.0
  %9347 = vmatprep.subr.mxu0 0.0
  %9348 = vmatpush2.msra.mxu0 0.0
  %9349 = vmatprep.subr.mxu0 0.0
  %9350 = vmatpush2.msra.mxu0 0.0
  %9351 = vmatprep.subr.mxu0 0.0
  %9352 = vmatpush2.msra.mxu0 0.0
  %9353 = vmatprep.subr.mxu0 0.0
  %9354 = vmatpush2.msra.mxu0 0.0
  %9355 = vmatprep.subr.mxu0 0.0
  %9356 = vmatpush2.msra.mxu0 0.0
  %9357 = vmatprep.subr.mxu0 0.0
  %9358 = vmatpush2.msra.mxu0 0.0
  %9359 = vmatprep.subr.mxu0 %v8418
  %9360 = vmatpush2.msra.mxu0 %v8417
  %9361 = vmatprep.subr.mxu0 %v8398
  %9362 = vmatpush2.msra.mxu0 %v8397
  %9363 = vmatprep.subr.mxu0 %v8378
  %9364 = vmatpush2.msra.mxu0 %v8377
  %9365 = vmatprep.subr.mxu0 %v8358
  %9366 = vmatpush2.msra.mxu0 %v8357
  %9367 = vmatprep.mubr.f32.mxu0 %v8489
  %9368 = vmatmul.mubr.f32.gmra.mxu0 %v8423
  %v9369 = vpop.f32.mrf.mxu0
  %v9370 = vadd.f32 %v8450, %v9369
  %v9371 = vpop.f32.mrf.mxu0
  %v9372 = vadd.f32 %v8450, %v9371
  %9373 = vmatprep.mubr.f32.mxu0 %v8492
  %9374 = vmatmul.mubr.f32.gmra.mxu0 %v8425
  %v9375 = vpop.f32.mrf.mxu0
  %v9376 = vadd.f32 %v8455, %v9375
  %v9377 = vpop.f32.mrf.mxu0
  %v9378 = vadd.f32 %v8455, %v9377
  %9379 = vmatprep.mubr.f32.mxu0 %v8495
  %9380 = vmatmul.mubr.f32.gmra.mxu0 %v8427
  %v9381 = vpop.f32.mrf.mxu0
  %v9382 = vadd.f32 %v8460, %v9381
  %v9383 = vpop.f32.mrf.mxu0
  %v9384 = vadd.f32 %v8460, %v9383
  %9385 = vmatprep.mubr.f32.mxu0 %v8498
  %9386 = vmatmul.mubr.f32.gmra.mxu0 %v8429
  %v9387 = vpop.f32.mrf.mxu0
  %v9388 = vadd.f32 %v8465, %v9387
  %v9389 = vpop.f32.mrf.mxu0
  %v9390 = vadd.f32 %v8465, %v9389
  %9391 = vmatprep.mubr.f32.mxu0 %v8501
  %9392 = vmatmul.mubr.f32.gmra.mxu0 %v8431
  %v9393 = vpop.f32.mrf.mxu0
  %v9394 = vadd.f32 %v8470, %v9393
  %v9395 = vpop.f32.mrf.mxu0
  %v9396 = vadd.f32 %v8470, %v9395
  %9397 = vmatprep.mubr.f32.mxu0 %v8504
  %9398 = vmatmul.mubr.f32.gmra.mxu0 %v8433
  %v9399 = vpop.f32.mrf.mxu0
  %v9400 = vadd.f32 %v8475, %v9399
  %v9401 = vpop.f32.mrf.mxu0
  %v9402 = vadd.f32 %v8475, %v9401
  %9403 = vmatprep.mubr.f32.mxu0 %v8507
  %9404 = vmatmul.mubr.f32.gmra.mxu0 %v8435
  %v9405 = vpop.f32.mrf.mxu0
  %v9406 = vadd.f32 %v8480, %v9405
  %v9407 = vpop.f32.mrf.mxu0
  %v9408 = vadd.f32 %v8480, %v9407
  %9409 = vmatprep.mubr.f32.mxu0 %v8510
  %9410 = vmatmul.mubr.f32.gmra.mxu0 %v8437
  %v9411 = vpop.f32.mrf.mxu0
  %v9412 = vadd.f32 %v8485, %v9411
  %v9413 = vpop.f32.mrf.mxu0
  %v9414 = vadd.f32 %v8485, %v9413
  %9415 = vdwg.mxu0
  %9416 = vmatprep.subr.mxu0 %v8340
  %9417 = vmatpush1.msra.mxu0 %v8339
  %9418 = vmatprep.subr.mxu0 %v8320
  %9419 = vmatpush1.msra.mxu0 %v8319
  %9420 = vmatprep.subr.mxu0 %v8300
  %9421 = vmatpush1.msra.mxu0 %v8299
  %9422 = vmatprep.subr.mxu0 %v8280
  %9423 = vmatpush1.msra.mxu0 %v8279
  %9424 = vmatprep.subr.mxu0 %v8260
  %9425 = vmatpush1.msra.mxu0 %v8259
  %9426 = vmatprep.subr.mxu0 %v8240
  %9427 = vmatpush1.msra.mxu0 %v8239
  %9428 = vmatprep.subr.mxu0 %v8220
  %9429 = vmatpush1.msra.mxu0 %v8219
  %9430 = vmatprep.subr.mxu0 %v8200
  %9431 = vmatpush1.msra.mxu0 %v8199
  %9432 = vmatprep.subr.mxu0 %v8180
  %9433 = vmatpush1.msra.mxu0 %v8179
  %9434 = vmatprep.subr.mxu0 %v8160
  %9435 = vmatpush1.msra.mxu0 %v8159
  %9436 = vmatprep.subr.mxu0 %v8140
  %9437 = vmatpush1.msra.mxu0 %v8139
  %9438 = vmatprep.subr.mxu0 %v8120
  %9439 = vmatpush1.msra.mxu0 %v8119
  %9440 = vmatprep.subr.mxu0 %v8100
  %9441 = vmatpush1.msra.mxu0 %v8099
  %9442 = vmatprep.subr.mxu0 %v8080
  %9443 = vmatpush1.msra.mxu0 %v8079
  %9444 = vmatprep.subr.mxu0 %v8060
  %9445 = vmatpush1.msra.mxu0 %v8059
  %9446 = vmatprep.subr.mxu0 %v8040
  %9447 = vmatpush1.msra.mxu0 %v8039
  %9448 = vmatprep.subr.mxu0 0.0
  %9449 = vmatpush2.msra.mxu0 0.0
  %9450 = vmatprep.subr.mxu0 0.0
  %9451 = vmatpush2.msra.mxu0 0.0
  %9452 = vmatprep.subr.mxu0 0.0
  %9453 = vmatpush2.msra.mxu0 0.0
  %9454 = vmatprep.subr.mxu0 0.0
  %9455 = vmatpush2.msra.mxu0 0.0
  %9456 = vmatprep.subr.mxu0 0.0
  %9457 = vmatpush2.msra.mxu0 0.0
  %9458 = vmatprep.subr.mxu0 0.0
  %9459 = vmatpush2.msra.mxu0 0.0
  %9460 = vmatprep.subr.mxu0 0.0
  %9461 = vmatpush2.msra.mxu0 0.0
  %9462 = vmatprep.subr.mxu0 0.0
  %9463 = vmatpush2.msra.mxu0 0.0
  %9464 = vmatprep.subr.mxu0 0.0
  %9465 = vmatpush2.msra.mxu0 0.0
  %9466 = vmatprep.subr.mxu0 0.0
  %9467 = vmatpush2.msra.mxu0 0.0
  %9468 = vmatprep.subr.mxu0 0.0
  %9469 = vmatpush2.msra.mxu0 0.0
  %9470 = vmatprep.subr.mxu0 0.0
  %9471 = vmatpush2.msra.mxu0 0.0
  %9472 = vmatprep.subr.mxu0 %v8420
  %9473 = vmatpush2.msra.mxu0 %v8419
  %9474 = vmatprep.subr.mxu0 %v8400
  %9475 = vmatpush2.msra.mxu0 %v8399
  %9476 = vmatprep.subr.mxu0 %v8380
  %9477 = vmatpush2.msra.mxu0 %v8379
  %9478 = vmatprep.subr.mxu0 %v8360
  %9479 = vmatpush2.msra.mxu0 %v8359
  %9480 = vmatprep.mubr.f32.mxu0 %v8489
  %9481 = vmatmul.mubr.f32.gmra.mxu0 %v8423
  %v9482 = vpop.f32.mrf.mxu0
  %v9483 = vadd.f32 %v8450, %v9482
  %v9484 = vpop.f32.mrf.mxu0
  %v9485 = vadd.f32 %v8450, %v9484
  %9486 = vmatprep.mubr.f32.mxu0 %v8492
  %9487 = vmatmul.mubr.f32.gmra.mxu0 %v8425
  %v9488 = vpop.f32.mrf.mxu0
  %v9489 = vadd.f32 %v8455, %v9488
  %v9490 = vpop.f32.mrf.mxu0
  %v9491 = vadd.f32 %v8455, %v9490
  %9492 = vmatprep.mubr.f32.mxu0 %v8495
  %9493 = vmatmul.mubr.f32.gmra.mxu0 %v8427
  %v9494 = vpop.f32.mrf.mxu0
  %v9495 = vadd.f32 %v8460, %v9494
  %v9496 = vpop.f32.mrf.mxu0
  %v9497 = vadd.f32 %v8460, %v9496
  %9498 = vmatprep.mubr.f32.mxu0 %v8498
  %9499 = vmatmul.mubr.f32.gmra.mxu0 %v8429
  %v9500 = vpop.f32.mrf.mxu0
  %v9501 = vadd.f32 %v8465, %v9500
  %v9502 = vpop.f32.mrf.mxu0
  %v9503 = vadd.f32 %v8465, %v9502
  %9504 = vmatprep.mubr.f32.mxu0 %v8501
  %9505 = vmatmul.mubr.f32.gmra.mxu0 %v8431
  %v9506 = vpop.f32.mrf.mxu0
  %v9507 = vadd.f32 %v8470, %v9506
  %v9508 = vpop.f32.mrf.mxu0
  %v9509 = vadd.f32 %v8470, %v9508
  %9510 = vmatprep.mubr.f32.mxu0 %v8504
  %9511 = vmatmul.mubr.f32.gmra.mxu0 %v8433
  %v9512 = vpop.f32.mrf.mxu0
  %v9513 = vadd.f32 %v8475, %v9512
  %v9514 = vpop.f32.mrf.mxu0
  %v9515 = vadd.f32 %v8475, %v9514
  %9516 = vmatprep.mubr.f32.mxu0 %v8507
  %9517 = vmatmul.mubr.f32.gmra.mxu0 %v8435
  %v9518 = vpop.f32.mrf.mxu0
  %v9519 = vadd.f32 %v8480, %v9518
  %v9520 = vpop.f32.mrf.mxu0
  %v9521 = vadd.f32 %v8480, %v9520
  %9522 = vmatprep.mubr.f32.mxu0 %v8510
  %9523 = vmatmul.mubr.f32.gmra.mxu0 %v8437
  %v9524 = vpop.f32.mrf.mxu0
  %v9525 = vadd.f32 %v8485, %v9524
  %v9526 = vpop.f32.mrf.mxu0
  %v9527 = vadd.f32 %v8485, %v9526
  %9528 = vdwg.mxu0
  %9529 = vmatprep.subr.mxu0 %v8342
  %9530 = vmatpush1.msra.mxu0 %v8341
  %9531 = vmatprep.subr.mxu0 %v8322
  %9532 = vmatpush1.msra.mxu0 %v8321
  %9533 = vmatprep.subr.mxu0 %v8302
  %9534 = vmatpush1.msra.mxu0 %v8301
  %9535 = vmatprep.subr.mxu0 %v8282
  %9536 = vmatpush1.msra.mxu0 %v8281
  %9537 = vmatprep.subr.mxu0 %v8262
  %9538 = vmatpush1.msra.mxu0 %v8261
  %9539 = vmatprep.subr.mxu0 %v8242
  %9540 = vmatpush1.msra.mxu0 %v8241
  %9541 = vmatprep.subr.mxu0 %v8222
  %9542 = vmatpush1.msra.mxu0 %v8221
  %9543 = vmatprep.subr.mxu0 %v8202
  %9544 = vmatpush1.msra.mxu0 %v8201
  %9545 = vmatprep.subr.mxu0 %v8182
  %9546 = vmatpush1.msra.mxu0 %v8181
  %9547 = vmatprep.subr.mxu0 %v8162
  %9548 = vmatpush1.msra.mxu0 %v8161
  %9549 = vmatprep.subr.mxu0 %v8142
  %9550 = vmatpush1.msra.mxu0 %v8141
  %9551 = vmatprep.subr.mxu0 %v8122
  %9552 = vmatpush1.msra.mxu0 %v8121
  %9553 = vmatprep.subr.mxu0 %v8102
  %9554 = vmatpush1.msra.mxu0 %v8101
  %9555 = vmatprep.subr.mxu0 %v8082
  %9556 = vmatpush1.msra.mxu0 %v8081
  %9557 = vmatprep.subr.mxu0 %v8062
  %9558 = vmatpush1.msra.mxu0 %v8061
  %9559 = vmatprep.subr.mxu0 %v8042
  %9560 = vmatpush1.msra.mxu0 %v8041
  %9561 = vmatprep.subr.mxu0 0.0
  %9562 = vmatpush2.msra.mxu0 0.0
  %9563 = vmatprep.subr.mxu0 0.0
  %9564 = vmatpush2.msra.mxu0 0.0
  %9565 = vmatprep.subr.mxu0 0.0
  %9566 = vmatpush2.msra.mxu0 0.0
  %9567 = vmatprep.subr.mxu0 0.0
  %9568 = vmatpush2.msra.mxu0 0.0
  %9569 = vmatprep.subr.mxu0 0.0
  %9570 = vmatpush2.msra.mxu0 0.0
  %9571 = vmatprep.subr.mxu0 0.0
  %9572 = vmatpush2.msra.mxu0 0.0
  %9573 = vmatprep.subr.mxu0 0.0
  %9574 = vmatpush2.msra.mxu0 0.0
  %9575 = vmatprep.subr.mxu0 0.0
  %9576 = vmatpush2.msra.mxu0 0.0
  %9577 = vmatprep.subr.mxu0 0.0
  %9578 = vmatpush2.msra.mxu0 0.0
  %9579 = vmatprep.subr.mxu0 0.0
  %9580 = vmatpush2.msra.mxu0 0.0
  %9581 = vmatprep.subr.mxu0 0.0
  %9582 = vmatpush2.msra.mxu0 0.0
  %9583 = vmatprep.subr.mxu0 0.0
  %9584 = vmatpush2.msra.mxu0 0.0
  %9585 = vmatprep.subr.mxu0 %v8422
  %9586 = vmatpush2.msra.mxu0 %v8421
  %9587 = vmatprep.subr.mxu0 %v8402
  %9588 = vmatpush2.msra.mxu0 %v8401
  %9589 = vmatprep.subr.mxu0 %v8382
  %9590 = vmatpush2.msra.mxu0 %v8381
  %9591 = vmatprep.subr.mxu0 %v8362
  %9592 = vmatpush2.msra.mxu0 %v8361
  %9593 = vmatprep.mubr.f32.mxu0 %v8489
  %9594 = vmatmul.mubr.f32.gmra.mxu0 %v8423
  %v9595 = vpop.f32.mrf.mxu0
  %v9596 = vadd.f32 %v8450, %v9595
  %v9597 = vpop.f32.mrf.mxu0
  %v9598 = vadd.f32 %v8450, %v9597
  %9599 = vmatprep.mubr.f32.mxu0 %v8492
  %9600 = vmatmul.mubr.f32.gmra.mxu0 %v8425
  %v9601 = vpop.f32.mrf.mxu0
  %v9602 = vadd.f32 %v8455, %v9601
  %v9603 = vpop.f32.mrf.mxu0
  %v9604 = vadd.f32 %v8455, %v9603
  %9605 = vmatprep.mubr.f32.mxu0 %v8495
  %9606 = vmatmul.mubr.f32.gmra.mxu0 %v8427
  %v9607 = vpop.f32.mrf.mxu0
  %v9608 = vadd.f32 %v8460, %v9607
  %v9609 = vpop.f32.mrf.mxu0
  %v9610 = vadd.f32 %v8460, %v9609
  %9611 = vmatprep.mubr.f32.mxu0 %v8498
  %9612 = vmatmul.mubr.f32.gmra.mxu0 %v8429
  %v9613 = vpop.f32.mrf.mxu0
  %v9614 = vadd.f32 %v8465, %v9613
  %v9615 = vpop.f32.mrf.mxu0
  %v9616 = vadd.f32 %v8465, %v9615
  %9617 = vmatprep.mubr.f32.mxu0 %v8501
  %9618 = vmatmul.mubr.f32.gmra.mxu0 %v8431
  %v9619 = vpop.f32.mrf.mxu0
  %v9620 = vadd.f32 %v8470, %v9619
  %v9621 = vpop.f32.mrf.mxu0
  %v9622 = vadd.f32 %v8470, %v9621
  %9623 = vmatprep.mubr.f32.mxu0 %v8504
  %9624 = vmatmul.mubr.f32.gmra.mxu0 %v8433
  %v9625 = vpop.f32.mrf.mxu0
  %v9626 = vadd.f32 %v8475, %v9625
  %v9627 = vpop.f32.mrf.mxu0
  %v9628 = vadd.f32 %v8475, %v9627
  %9629 = vmatprep.mubr.f32.mxu0 %v8507
  %9630 = vmatmul.mubr.f32.gmra.mxu0 %v8435
  %v9631 = vpop.f32.mrf.mxu0
  %v9632 = vadd.f32 %v8480, %v9631
  %v9633 = vpop.f32.mrf.mxu0
  %v9634 = vadd.f32 %v8480, %v9633
  %9635 = vmatprep.mubr.f32.mxu0 %v8510
  %9636 = vmatmul.mubr.f32.gmra.mxu0 %v8437
  %v9637 = vpop.f32.mrf.mxu0
  %v9638 = vadd.f32 %v8485, %v9637
  %v9639 = vpop.f32.mrf.mxu0
  %v9640 = vadd.f32 %v8485, %v9639
  %9641 = vdwg.mxu0
  %v9642 = vmax.f32 %v8579, 0.0
  %v9643 = vmax.f32 %v8581, 0.0
  %v9644 = vmax.f32 %v8692, 0.0
  %v9645 = vmax.f32 %v8694, 0.0
  %v9646 = vmax.f32 %v8805, 0.0
  %v9647 = vmax.f32 %v8807, 0.0
  %v9648 = vmax.f32 %v8918, 0.0
  %v9649 = vmax.f32 %v8920, 0.0
  %v9650 = vmax.f32 %v9031, 0.0
  %v9651 = vmax.f32 %v9033, 0.0
  %v9652 = vmax.f32 %v9144, 0.0
  %v9653 = vmax.f32 %v9146, 0.0
  %v9654 = vmax.f32 %v9257, 0.0
  %v9655 = vmax.f32 %v9259, 0.0
  %v9656 = vmax.f32 %v9370, 0.0
  %v9657 = vmax.f32 %v9372, 0.0
  %v9658 = vmax.f32 %v9483, 0.0
  %v9659 = vmax.f32 %v9485, 0.0
  %v9660 = vmax.f32 %v9596, 0.0
  %v9661 = vmax.f32 %v9598, 0.0
  %v9662 = vmax.f32 %v8585, 0.0
  %v9663 = vmax.f32 %v8587, 0.0
  %v9664 = vmax.f32 %v8698, 0.0
  %v9665 = vmax.f32 %v8700, 0.0
  %v9666 = vmax.f32 %v8811, 0.0
  %v9667 = vmax.f32 %v8813, 0.0
  %v9668 = vmax.f32 %v8924, 0.0
  %v9669 = vmax.f32 %v8926, 0.0
  %v9670 = vmax.f32 %v9037, 0.0
  %v9671 = vmax.f32 %v9039, 0.0
  %v9672 = vmax.f32 %v9150, 0.0
  %v9673 = vmax.f32 %v9152, 0.0
  %v9674 = vmax.f32 %v9263, 0.0
  %v9675 = vmax.f32 %v9265, 0.0
  %v9676 = vmax.f32 %v9376, 0.0
  %v9677 = vmax.f32 %v9378, 0.0
  %v9678 = vmax.f32 %v9489, 0.0
  %v9679 = vmax.f32 %v9491, 0.0
  %v9680 = vmax.f32 %v9602, 0.0
  %v9681 = vmax.f32 %v9604, 0.0
  %v9682 = vmax.f32 %v8591, 0.0
  %v9683 = vmax.f32 %v8593, 0.0
  %v9684 = vmax.f32 %v8704, 0.0
  %v9685 = vmax.f32 %v8706, 0.0
  %v9686 = vmax.f32 %v8817, 0.0
  %v9687 = vmax.f32 %v8819, 0.0
  %v9688 = vmax.f32 %v8930, 0.0
  %v9689 = vmax.f32 %v8932, 0.0
  %v9690 = vmax.f32 %v9043, 0.0
  %v9691 = vmax.f32 %v9045, 0.0
  %v9692 = vmax.f32 %v9156, 0.0
  %v9693 = vmax.f32 %v9158, 0.0
  %v9694 = vmax.f32 %v9269, 0.0
  %v9695 = vmax.f32 %v9271, 0.0
  %v9696 = vmax.f32 %v9382, 0.0
  %v9697 = vmax.f32 %v9384, 0.0
  %v9698 = vmax.f32 %v9495, 0.0
  %v9699 = vmax.f32 %v9497, 0.0
  %v9700 = vmax.f32 %v9608, 0.0
  %v9701 = vmax.f32 %v9610, 0.0
  %v9702 = vmax.f32 %v8597, 0.0
  %v9703 = vmax.f32 %v8599, 0.0
  %v9704 = vmax.f32 %v8710, 0.0
  %v9705 = vmax.f32 %v8712, 0.0
  %v9706 = vmax.f32 %v8823, 0.0
  %v9707 = vmax.f32 %v8825, 0.0
  %v9708 = vmax.f32 %v8936, 0.0
  %v9709 = vmax.f32 %v8938, 0.0
  %v9710 = vmax.f32 %v9049, 0.0
  %v9711 = vmax.f32 %v9051, 0.0
  %v9712 = vmax.f32 %v9162, 0.0
  %v9713 = vmax.f32 %v9164, 0.0
  %v9714 = vmax.f32 %v9275, 0.0
  %v9715 = vmax.f32 %v9277, 0.0
  %v9716 = vmax.f32 %v9388, 0.0
  %v9717 = vmax.f32 %v9390, 0.0
  %v9718 = vmax.f32 %v9501, 0.0
  %v9719 = vmax.f32 %v9503, 0.0
  %v9720 = vmax.f32 %v9614, 0.0
  %v9721 = vmax.f32 %v9616, 0.0
  %v9722 = vmax.f32 %v8603, 0.0
  %v9723 = vmax.f32 %v8605, 0.0
  %v9724 = vmax.f32 %v8716, 0.0
  %v9725 = vmax.f32 %v8718, 0.0
  %v9726 = vmax.f32 %v8829, 0.0
  %v9727 = vmax.f32 %v8831, 0.0
  %v9728 = vmax.f32 %v8942, 0.0
  %v9729 = vmax.f32 %v8944, 0.0
  %v9730 = vmax.f32 %v9055, 0.0
  %v9731 = vmax.f32 %v9057, 0.0
  %v9732 = vmax.f32 %v9168, 0.0
  %v9733 = vmax.f32 %v9170, 0.0
  %v9734 = vmax.f32 %v9281, 0.0
  %v9735 = vmax.f32 %v9283, 0.0
  %v9736 = vmax.f32 %v9394, 0.0
  %v9737 = vmax.f32 %v9396, 0.0
  %v9738 = vmax.f32 %v9507, 0.0
  %v9739 = vmax.f32 %v9509, 0.0
  %v9740 = vmax.f32 %v9620, 0.0
  %v9741 = vmax.f32 %v9622, 0.0
  %v9742 = vmax.f32 %v8609, 0.0
  %v9743 = vmax.f32 %v8611, 0.0
  %v9744 = vmax.f32 %v8722, 0.0
  %v9745 = vmax.f32 %v8724, 0.0
  %v9746 = vmax.f32 %v8835, 0.0
  %v9747 = vmax.f32 %v8837, 0.0
  %v9748 = vmax.f32 %v8948, 0.0
  %v9749 = vmax.f32 %v8950, 0.0
  %v9750 = vmax.f32 %v9061, 0.0
  %v9751 = vmax.f32 %v9063, 0.0
  %v9752 = vmax.f32 %v9174, 0.0
  %v9753 = vmax.f32 %v9176, 0.0
  %v9754 = vmax.f32 %v9287, 0.0
  %v9755 = vmax.f32 %v9289, 0.0
  %v9756 = vmax.f32 %v9400, 0.0
  %v9757 = vmax.f32 %v9402, 0.0
  %v9758 = vmax.f32 %v9513, 0.0
  %v9759 = vmax.f32 %v9515, 0.0
  %v9760 = vmax.f32 %v9626, 0.0
  %v9761 = vmax.f32 %v9628, 0.0
  %v9762 = vmax.f32 %v8615, 0.0
  %v9763 = vmax.f32 %v8617, 0.0
  %v9764 = vmax.f32 %v8728, 0.0
  %v9765 = vmax.f32 %v8730, 0.0
  %v9766 = vmax.f32 %v8841, 0.0
  %v9767 = vmax.f32 %v8843, 0.0
  %v9768 = vmax.f32 %v8954, 0.0
  %v9769 = vmax.f32 %v8956, 0.0
  %v9770 = vmax.f32 %v9067, 0.0
  %v9771 = vmax.f32 %v9069, 0.0
  %v9772 = vmax.f32 %v9180, 0.0
  %v9773 = vmax.f32 %v9182, 0.0
  %v9774 = vmax.f32 %v9293, 0.0
  %v9775 = vmax.f32 %v9295, 0.0
  %v9776 = vmax.f32 %v9406, 0.0
  %v9777 = vmax.f32 %v9408, 0.0
  %v9778 = vmax.f32 %v9519, 0.0
  %v9779 = vmax.f32 %v9521, 0.0
  %v9780 = vmax.f32 %v9632, 0.0
  %v9781 = vmax.f32 %v9634, 0.0
  %v9782 = vmax.f32 %v8621, 0.0
  %v9783 = vmax.f32 %v8623, 0.0
  %v9784 = vmax.f32 %v8734, 0.0
  %v9785 = vmax.f32 %v8736, 0.0
  %v9786 = vmax.f32 %v8847, 0.0
  %v9787 = vmax.f32 %v8849, 0.0
  %v9788 = vmax.f32 %v8960, 0.0
  %v9789 = vmax.f32 %v8962, 0.0
  %v9790 = vmax.f32 %v9073, 0.0
  %v9791 = vmax.f32 %v9075, 0.0
  %v9792 = vmax.f32 %v9186, 0.0
  %v9793 = vmax.f32 %v9188, 0.0
  %v9794 = vmax.f32 %v9299, 0.0
  %v9795 = vmax.f32 %v9301, 0.0
  %v9796 = vmax.f32 %v9412, 0.0
  %v9797 = vmax.f32 %v9414, 0.0
  %v9798 = vmax.f32 %v9525, 0.0
  %v9799 = vmax.f32 %v9527, 0.0
  %v9800 = vmax.f32 %v9638, 0.0
  %v9801 = vmax.f32 %v9640, 0.0
  %v9802 = vld [vmem:[%s6] sm:$0xff]
  %v9803 = vld [vmem:[%s6 + $0x8] sm:$0xff]
  %v9804 = vld [vmem:[%s6 + $0x10] sm:$0xff]
  %v9805 = vld [vmem:[%s6 + $0x18] sm:$0xff]
  %v9806 = vld [vmem:[%s6 + $0x20] sm:$0xff]
  %v9807 = vld [vmem:[%s6 + $0x28] sm:$0xff]
  %v9808 = vld [vmem:[%s6 + $0x30] sm:$0xff]
  %v9809 = vld [vmem:[%s6 + $0x38] sm:$0xff]
  %9811 = vset.pattern.permute.xlu0 0
  %9812 = vperm.xlu0 %9811, %v9802
  %v9813 = vpop.permute.xlu0 %9812
  %9816 = vset.pattern.permute.xlu0 0
  %9817 = vperm.xlu0 %9816, %v9803
  %v9818 = vpop.permute.xlu0 %9817
  %9821 = vset.pattern.permute.xlu0 0
  %9822 = vperm.xlu0 %9821, %v9804
  %v9823 = vpop.permute.xlu0 %9822
  %9826 = vset.pattern.permute.xlu0 0
  %9827 = vperm.xlu0 %9826, %v9805
  %v9828 = vpop.permute.xlu0 %9827
  %9831 = vset.pattern.permute.xlu0 0
  %9832 = vperm.xlu0 %9831, %v9806
  %v9833 = vpop.permute.xlu0 %9832
  %9836 = vset.pattern.permute.xlu0 0
  %9837 = vperm.xlu0 %9836, %v9807
  %v9838 = vpop.permute.xlu0 %9837
  %9841 = vset.pattern.permute.xlu0 0
  %9842 = vperm.xlu0 %9841, %v9808
  %v9843 = vpop.permute.xlu0 %9842
  %9846 = vset.pattern.permute.xlu0 0
  %9847 = vperm.xlu0 %9846, %v9809
  %v9848 = vpop.permute.xlu0 %9847
  %v9850 = vmul.f32 %v9642, %v9813
  %v9851 = vmul.f32 %v9643, %v9813
  %v9852 = vmul.f32 %v9644, %v9813
  %v9853 = vmul.f32 %v9645, %v9813
  %v9854 = vmul.f32 %v9646, %v9813
  %v9855 = vmul.f32 %v9647, %v9813
  %v9856 = vmul.f32 %v9648, %v9813
  %v9857 = vmul.f32 %v9649, %v9813
  %v9858 = vmul.f32 %v9650, %v9813
  %v9859 = vmul.f32 %v9651, %v9813
  %v9860 = vmul.f32 %v9652, %v9813
  %v9861 = vmul.f32 %v9653, %v9813
  %v9862 = vmul.f32 %v9654, %v9813
  %v9863 = vmul.f32 %v9655, %v9813
  %v9864 = vmul.f32 %v9656, %v9813
  %v9865 = vmul.f32 %v9657, %v9813
  %v9866 = vmul.f32 %v9658, %v9813
  %v9867 = vmul.f32 %v9659, %v9813
  %v9868 = vmul.f32 %v9660, %v9813
  %v9869 = vmul.f32 %v9661, %v9813
  %v9870 = vmul.f32 %v9662, %v9818
  %v9871 = vmul.f32 %v9663, %v9818
  %v9872 = vmul.f32 %v9664, %v9818
  %v9873 = vmul.f32 %v9665, %v9818
  %v9874 = vmul.f32 %v9666, %v9818
  %v9875 = vmul.f32 %v9667, %v9818
  %v9876 = vmul.f32 %v9668, %v9818
  %v9877 = vmul.f32 %v9669, %v9818
  %v9878 = vmul.f32 %v9670, %v9818
  %v9879 = vmul.f32 %v9671, %v9818
  %v9880 = vmul.f32 %v9672, %v9818
  %v9881 = vmul.f32 %v9673, %v9818
  %v9882 = vmul.f32 %v9674, %v9818
  %v9883 = vmul.f32 %v9675, %v9818
  %v9884 = vmul.f32 %v9676, %v9818
  %v9885 = vmul.f32 %v9677, %v9818
  %v9886 = vmul.f32 %v9678, %v9818
  %v9887 = vmul.f32 %v9679, %v9818
  %v9888 = vmul.f32 %v9680, %v9818
  %v9889 = vmul.f32 %v9681, %v9818
  %v9890 = vmul.f32 %v9682, %v9823
  %v9891 = vmul.f32 %v9683, %v9823
  %v9892 = vmul.f32 %v9684, %v9823
  %v9893 = vmul.f32 %v9685, %v9823
  %v9894 = vmul.f32 %v9686, %v9823
  %v9895 = vmul.f32 %v9687, %v9823
  %v9896 = vmul.f32 %v9688, %v9823
  %v9897 = vmul.f32 %v9689, %v9823
  %v9898 = vmul.f32 %v9690, %v9823
  %v9899 = vmul.f32 %v9691, %v9823
  %v9900 = vmul.f32 %v9692, %v9823
  %v9901 = vmul.f32 %v9693, %v9823
  %v9902 = vmul.f32 %v9694, %v9823
  %v9903 = vmul.f32 %v9695, %v9823
  %v9904 = vmul.f32 %v9696, %v9823
  %v9905 = vmul.f32 %v9697, %v9823
  %v9906 = vmul.f32 %v9698, %v9823
  %v9907 = vmul.f32 %v9699, %v9823
  %v9908 = vmul.f32 %v9700, %v9823
  %v9909 = vmul.f32 %v9701, %v9823
  %v9910 = vmul.f32 %v9702, %v9828
  %v9911 = vmul.f32 %v9703, %v9828
  %v9912 = vmul.f32 %v9704, %v9828
  %v9913 = vmul.f32 %v9705, %v9828
  %v9914 = vmul.f32 %v9706, %v9828
  %v9915 = vmul.f32 %v9707, %v9828
  %v9916 = vmul.f32 %v9708, %v9828
  %v9917 = vmul.f32 %v9709, %v9828
  %v9918 = vmul.f32 %v9710, %v9828
  %v9919 = vmul.f32 %v9711, %v9828
  %v9920 = vmul.f32 %v9712, %v9828
  %v9921 = vmul.f32 %v9713, %v9828
  %v9922 = vmul.f32 %v9714, %v9828
  %v9923 = vmul.f32 %v9715, %v9828
  %v9924 = vmul.f32 %v9716, %v9828
  %v9925 = vmul.f32 %v9717, %v9828
  %v9926 = vmul.f32 %v9718, %v9828
  %v9927 = vmul.f32 %v9719, %v9828
  %v9928 = vmul.f32 %v9720, %v9828
  %v9929 = vmul.f32 %v9721, %v9828
  %v9930 = vmul.f32 %v9722, %v9833
  %v9931 = vmul.f32 %v9723, %v9833
  %v9932 = vmul.f32 %v9724, %v9833
  %v9933 = vmul.f32 %v9725, %v9833
  %v9934 = vmul.f32 %v9726, %v9833
  %v9935 = vmul.f32 %v9727, %v9833
  %v9936 = vmul.f32 %v9728, %v9833
  %v9937 = vmul.f32 %v9729, %v9833
  %v9938 = vmul.f32 %v9730, %v9833
  %v9939 = vmul.f32 %v9731, %v9833
  %v9940 = vmul.f32 %v9732, %v9833
  %v9941 = vmul.f32 %v9733, %v9833
  %v9942 = vmul.f32 %v9734, %v9833
  %v9943 = vmul.f32 %v9735, %v9833
  %v9944 = vmul.f32 %v9736, %v9833
  %v9945 = vmul.f32 %v9737, %v9833
  %v9946 = vmul.f32 %v9738, %v9833
  %v9947 = vmul.f32 %v9739, %v9833
  %v9948 = vmul.f32 %v9740, %v9833
  %v9949 = vmul.f32 %v9741, %v9833
  %v9950 = vmul.f32 %v9742, %v9838
  %v9951 = vmul.f32 %v9743, %v9838
  %v9952 = vmul.f32 %v9744, %v9838
  %v9953 = vmul.f32 %v9745, %v9838
  %v9954 = vmul.f32 %v9746, %v9838
  %v9955 = vmul.f32 %v9747, %v9838
  %v9956 = vmul.f32 %v9748, %v9838
  %v9957 = vmul.f32 %v9749, %v9838
  %v9958 = vmul.f32 %v9750, %v9838
  %v9959 = vmul.f32 %v9751, %v9838
  %v9960 = vmul.f32 %v9752, %v9838
  %v9961 = vmul.f32 %v9753, %v9838
  %v9962 = vmul.f32 %v9754, %v9838
  %v9963 = vmul.f32 %v9755, %v9838
  %v9964 = vmul.f32 %v9756, %v9838
  %v9965 = vmul.f32 %v9757, %v9838
  %v9966 = vmul.f32 %v9758, %v9838
  %v9967 = vmul.f32 %v9759, %v9838
  %v9968 = vmul.f32 %v9760, %v9838
  %v9969 = vmul.f32 %v9761, %v9838
  %v9970 = vmul.f32 %v9762, %v9843
  %v9971 = vmul.f32 %v9763, %v9843
  %v9972 = vmul.f32 %v9764, %v9843
  %v9973 = vmul.f32 %v9765, %v9843
  %v9974 = vmul.f32 %v9766, %v9843
  %v9975 = vmul.f32 %v9767, %v9843
  %v9976 = vmul.f32 %v9768, %v9843
  %v9977 = vmul.f32 %v9769, %v9843
  %v9978 = vmul.f32 %v9770, %v9843
  %v9979 = vmul.f32 %v9771, %v9843
  %v9980 = vmul.f32 %v9772, %v9843
  %v9981 = vmul.f32 %v9773, %v9843
  %v9982 = vmul.f32 %v9774, %v9843
  %v9983 = vmul.f32 %v9775, %v9843
  %v9984 = vmul.f32 %v9776, %v9843
  %v9985 = vmul.f32 %v9777, %v9843
  %v9986 = vmul.f32 %v9778, %v9843
  %v9987 = vmul.f32 %v9779, %v9843
  %v9988 = vmul.f32 %v9780, %v9843
  %v9989 = vmul.f32 %v9781, %v9843
  %v9990 = vmul.f32 %v9782, %v9848
  %v9991 = vmul.f32 %v9783, %v9848
  %v9992 = vmul.f32 %v9784, %v9848
  %v9993 = vmul.f32 %v9785, %v9848
  %v9994 = vmul.f32 %v9786, %v9848
  %v9995 = vmul.f32 %v9787, %v9848
  %v9996 = vmul.f32 %v9788, %v9848
  %v9997 = vmul.f32 %v9789, %v9848
  %v9998 = vmul.f32 %v9790, %v9848
  %v9999 = vmul.f32 %v9791, %v9848
  %v10000 = vmul.f32 %v9792, %v9848
  %v10001 = vmul.f32 %v9793, %v9848
  %v10002 = vmul.f32 %v9794, %v9848
  %v10003 = vmul.f32 %v9795, %v9848
  %v10004 = vmul.f32 %v9796, %v9848
  %v10005 = vmul.f32 %v9797, %v9848
  %v10006 = vmul.f32 %v9798, %v9848
  %v10007 = vmul.f32 %v9799, %v9848
  %v10008 = vmul.f32 %v9800, %v9848
  %v10009 = vmul.f32 %v9801, %v9848
  %v10010 = vadd.f32 %v9850, %v9870
  %v10011 = vadd.f32 %v10010, %v9890
  %v10012 = vadd.f32 %v10011, %v9910
  %v10013 = vadd.f32 %v10012, %v9930
  %v10014 = vadd.f32 %v10013, %v9950
  %v10015 = vadd.f32 %v10014, %v9970
  %v10016 = vadd.f32 %v10015, %v9990
  %v10017 = vrot.slane %v10016, 4
  %v10018 = vadd.f32 %v10016, %v10017
  %v10019 = vrot.slane %v10018, 2
  %v10020 = vadd.f32 %v10018, %v10019
  %v10021 = vrot.slane %v10020, 1
  %v10022 = vadd.f32 %v10020, %v10021
  %v10023 = vadd.f32 %v9851, %v9871
  %v10024 = vadd.f32 %v10023, %v9891
  %v10025 = vadd.f32 %v10024, %v9911
  %v10026 = vadd.f32 %v10025, %v9931
  %v10027 = vadd.f32 %v10026, %v9951
  %v10028 = vadd.f32 %v10027, %v9971
  %v10029 = vadd.f32 %v10028, %v9991
  %v10030 = vrot.slane %v10029, 4
  %v10031 = vadd.f32 %v10029, %v10030
  %v10032 = vrot.slane %v10031, 2
  %v10033 = vadd.f32 %v10031, %v10032
  %v10034 = vrot.slane %v10033, 1
  %v10035 = vadd.f32 %v10033, %v10034
  %v10036 = vadd.f32 %v9852, %v9872
  %v10037 = vadd.f32 %v10036, %v9892
  %v10038 = vadd.f32 %v10037, %v9912
  %v10039 = vadd.f32 %v10038, %v9932
  %v10040 = vadd.f32 %v10039, %v9952
  %v10041 = vadd.f32 %v10040, %v9972
  %v10042 = vadd.f32 %v10041, %v9992
  %v10043 = vrot.slane %v10042, 4
  %v10044 = vadd.f32 %v10042, %v10043
  %v10045 = vrot.slane %v10044, 2
  %v10046 = vadd.f32 %v10044, %v10045
  %v10047 = vrot.slane %v10046, 1
  %v10048 = vadd.f32 %v10046, %v10047
  %v10049 = vadd.f32 %v9853, %v9873
  %v10050 = vadd.f32 %v10049, %v9893
  %v10051 = vadd.f32 %v10050, %v9913
  %v10052 = vadd.f32 %v10051, %v9933
  %v10053 = vadd.f32 %v10052, %v9953
  %v10054 = vadd.f32 %v10053, %v9973
  %v10055 = vadd.f32 %v10054, %v9993
  %v10056 = vrot.slane %v10055, 4
  %v10057 = vadd.f32 %v10055, %v10056
  %v10058 = vrot.slane %v10057, 2
  %v10059 = vadd.f32 %v10057, %v10058
  %v10060 = vrot.slane %v10059, 1
  %v10061 = vadd.f32 %v10059, %v10060
  %v10062 = vadd.f32 %v9854, %v9874
  %v10063 = vadd.f32 %v10062, %v9894
  %v10064 = vadd.f32 %v10063, %v9914
  %v10065 = vadd.f32 %v10064, %v9934
  %v10066 = vadd.f32 %v10065, %v9954
  %v10067 = vadd.f32 %v10066, %v9974
  %v10068 = vadd.f32 %v10067, %v9994
  %v10069 = vrot.slane %v10068, 4
  %v10070 = vadd.f32 %v10068, %v10069
  %v10071 = vrot.slane %v10070, 2
  %v10072 = vadd.f32 %v10070, %v10071
  %v10073 = vrot.slane %v10072, 1
  %v10074 = vadd.f32 %v10072, %v10073
  %v10075 = vadd.f32 %v9855, %v9875
  %v10076 = vadd.f32 %v10075, %v9895
  %v10077 = vadd.f32 %v10076, %v9915
  %v10078 = vadd.f32 %v10077, %v9935
  %v10079 = vadd.f32 %v10078, %v9955
  %v10080 = vadd.f32 %v10079, %v9975
  %v10081 = vadd.f32 %v10080, %v9995
  %v10082 = vrot.slane %v10081, 4
  %v10083 = vadd.f32 %v10081, %v10082
  %v10084 = vrot.slane %v10083, 2
  %v10085 = vadd.f32 %v10083, %v10084
  %v10086 = vrot.slane %v10085, 1
  %v10087 = vadd.f32 %v10085, %v10086
  %v10088 = vadd.f32 %v9856, %v9876
  %v10089 = vadd.f32 %v10088, %v9896
  %v10090 = vadd.f32 %v10089, %v9916
  %v10091 = vadd.f32 %v10090, %v9936
  %v10092 = vadd.f32 %v10091, %v9956
  %v10093 = vadd.f32 %v10092, %v9976
  %v10094 = vadd.f32 %v10093, %v9996
  %v10095 = vrot.slane %v10094, 4
  %v10096 = vadd.f32 %v10094, %v10095
  %v10097 = vrot.slane %v10096, 2
  %v10098 = vadd.f32 %v10096, %v10097
  %v10099 = vrot.slane %v10098, 1
  %v10100 = vadd.f32 %v10098, %v10099
  %v10101 = vadd.f32 %v9857, %v9877
  %v10102 = vadd.f32 %v10101, %v9897
  %v10103 = vadd.f32 %v10102, %v9917
  %v10104 = vadd.f32 %v10103, %v9937
  %v10105 = vadd.f32 %v10104, %v9957
  %v10106 = vadd.f32 %v10105, %v9977
  %v10107 = vadd.f32 %v10106, %v9997
  %v10108 = vrot.slane %v10107, 4
  %v10109 = vadd.f32 %v10107, %v10108
  %v10110 = vrot.slane %v10109, 2
  %v10111 = vadd.f32 %v10109, %v10110
  %v10112 = vrot.slane %v10111, 1
  %v10113 = vadd.f32 %v10111, %v10112
  %v10114 = vadd.f32 %v9858, %v9878
  %v10115 = vadd.f32 %v10114, %v9898
  %v10116 = vadd.f32 %v10115, %v9918
  %v10117 = vadd.f32 %v10116, %v9938
  %v10118 = vadd.f32 %v10117, %v9958
  %v10119 = vadd.f32 %v10118, %v9978
  %v10120 = vadd.f32 %v10119, %v9998
  %v10121 = vrot.slane %v10120, 4
  %v10122 = vadd.f32 %v10120, %v10121
  %v10123 = vrot.slane %v10122, 2
  %v10124 = vadd.f32 %v10122, %v10123
  %v10125 = vrot.slane %v10124, 1
  %v10126 = vadd.f32 %v10124, %v10125
  %v10127 = vadd.f32 %v9859, %v9879
  %v10128 = vadd.f32 %v10127, %v9899
  %v10129 = vadd.f32 %v10128, %v9919
  %v10130 = vadd.f32 %v10129, %v9939
  %v10131 = vadd.f32 %v10130, %v9959
  %v10132 = vadd.f32 %v10131, %v9979
  %v10133 = vadd.f32 %v10132, %v9999
  %v10134 = vrot.slane %v10133, 4
  %v10135 = vadd.f32 %v10133, %v10134
  %v10136 = vrot.slane %v10135, 2
  %v10137 = vadd.f32 %v10135, %v10136
  %v10138 = vrot.slane %v10137, 1
  %v10139 = vadd.f32 %v10137, %v10138
  %v10140 = vadd.f32 %v9860, %v9880
  %v10141 = vadd.f32 %v10140, %v9900
  %v10142 = vadd.f32 %v10141, %v9920
  %v10143 = vadd.f32 %v10142, %v9940
  %v10144 = vadd.f32 %v10143, %v9960
  %v10145 = vadd.f32 %v10144, %v9980
  %v10146 = vadd.f32 %v10145, %v10000
  %v10147 = vrot.slane %v10146, 4
  %v10148 = vadd.f32 %v10146, %v10147
  %v10149 = vrot.slane %v10148, 2
  %v10150 = vadd.f32 %v10148, %v10149
  %v10151 = vrot.slane %v10150, 1
  %v10152 = vadd.f32 %v10150, %v10151
  %v10153 = vadd.f32 %v9861, %v9881
  %v10154 = vadd.f32 %v10153, %v9901
  %v10155 = vadd.f32 %v10154, %v9921
  %v10156 = vadd.f32 %v10155, %v9941
  %v10157 = vadd.f32 %v10156, %v9961
  %v10158 = vadd.f32 %v10157, %v9981
  %v10159 = vadd.f32 %v10158, %v10001
  %v10160 = vrot.slane %v10159, 4
  %v10161 = vadd.f32 %v10159, %v10160
  %v10162 = vrot.slane %v10161, 2
  %v10163 = vadd.f32 %v10161, %v10162
  %v10164 = vrot.slane %v10163, 1
  %v10165 = vadd.f32 %v10163, %v10164
  %v10166 = vadd.f32 %v9862, %v9882
  %v10167 = vadd.f32 %v10166, %v9902
  %v10168 = vadd.f32 %v10167, %v9922
  %v10169 = vadd.f32 %v10168, %v9942
  %v10170 = vadd.f32 %v10169, %v9962
  %v10171 = vadd.f32 %v10170, %v9982
  %v10172 = vadd.f32 %v10171, %v10002
  %v10173 = vrot.slane %v10172, 4
  %v10174 = vadd.f32 %v10172, %v10173
  %v10175 = vrot.slane %v10174, 2
  %v10176 = vadd.f32 %v10174, %v10175
  %v10177 = vrot.slane %v10176, 1
  %v10178 = vadd.f32 %v10176, %v10177
  %v10179 = vadd.f32 %v9863, %v9883
  %v10180 = vadd.f32 %v10179, %v9903
  %v10181 = vadd.f32 %v10180, %v9923
  %v10182 = vadd.f32 %v10181, %v9943
  %v10183 = vadd.f32 %v10182, %v9963
  %v10184 = vadd.f32 %v10183, %v9983
  %v10185 = vadd.f32 %v10184, %v10003
  %v10186 = vrot.slane %v10185, 4
  %v10187 = vadd.f32 %v10185, %v10186
  %v10188 = vrot.slane %v10187, 2
  %v10189 = vadd.f32 %v10187, %v10188
  %v10190 = vrot.slane %v10189, 1
  %v10191 = vadd.f32 %v10189, %v10190
  %v10192 = vadd.f32 %v9864, %v9884
  %v10193 = vadd.f32 %v10192, %v9904
  %v10194 = vadd.f32 %v10193, %v9924
  %v10195 = vadd.f32 %v10194, %v9944
  %v10196 = vadd.f32 %v10195, %v9964
  %v10197 = vadd.f32 %v10196, %v9984
  %v10198 = vadd.f32 %v10197, %v10004
  %v10199 = vrot.slane %v10198, 4
  %v10200 = vadd.f32 %v10198, %v10199
  %v10201 = vrot.slane %v10200, 2
  %v10202 = vadd.f32 %v10200, %v10201
  %v10203 = vrot.slane %v10202, 1
  %v10204 = vadd.f32 %v10202, %v10203
  %v10205 = vadd.f32 %v9865, %v9885
  %v10206 = vadd.f32 %v10205, %v9905
  %v10207 = vadd.f32 %v10206, %v9925
  %v10208 = vadd.f32 %v10207, %v9945
  %v10209 = vadd.f32 %v10208, %v9965
  %v10210 = vadd.f32 %v10209, %v9985
  %v10211 = vadd.f32 %v10210, %v10005
  %v10212 = vrot.slane %v10211, 4
  %v10213 = vadd.f32 %v10211, %v10212
  %v10214 = vrot.slane %v10213, 2
  %v10215 = vadd.f32 %v10213, %v10214
  %v10216 = vrot.slane %v10215, 1
  %v10217 = vadd.f32 %v10215, %v10216
  %v10218 = vadd.f32 %v9866, %v9886
  %v10219 = vadd.f32 %v10218, %v9906
  %v10220 = vadd.f32 %v10219, %v9926
  %v10221 = vadd.f32 %v10220, %v9946
  %v10222 = vadd.f32 %v10221, %v9966
  %v10223 = vadd.f32 %v10222, %v9986
  %v10224 = vadd.f32 %v10223, %v10006
  %v10225 = vrot.slane %v10224, 4
  %v10226 = vadd.f32 %v10224, %v10225
  %v10227 = vrot.slane %v10226, 2
  %v10228 = vadd.f32 %v10226, %v10227
  %v10229 = vrot.slane %v10228, 1
  %v10230 = vadd.f32 %v10228, %v10229
  %v10231 = vadd.f32 %v9867, %v9887
  %v10232 = vadd.f32 %v10231, %v9907
  %v10233 = vadd.f32 %v10232, %v9927
  %v10234 = vadd.f32 %v10233, %v9947
  %v10235 = vadd.f32 %v10234, %v9967
  %v10236 = vadd.f32 %v10235, %v9987
  %v10237 = vadd.f32 %v10236, %v10007
  %v10238 = vrot.slane %v10237, 4
  %v10239 = vadd.f32 %v10237, %v10238
  %v10240 = vrot.slane %v10239, 2
  %v10241 = vadd.f32 %v10239, %v10240
  %v10242 = vrot.slane %v10241, 1
  %v10243 = vadd.f32 %v10241, %v10242
  %v10244 = vadd.f32 %v9868, %v9888
  %v10245 = vadd.f32 %v10244, %v9908
  %v10246 = vadd.f32 %v10245, %v9928
  %v10247 = vadd.f32 %v10246, %v9948
  %v10248 = vadd.f32 %v10247, %v9968
  %v10249 = vadd.f32 %v10248, %v9988
  %v10250 = vadd.f32 %v10249, %v10008
  %v10251 = vrot.slane %v10250, 4
  %v10252 = vadd.f32 %v10250, %v10251
  %v10253 = vrot.slane %v10252, 2
  %v10254 = vadd.f32 %v10252, %v10253
  %v10255 = vrot.slane %v10254, 1
  %v10256 = vadd.f32 %v10254, %v10255
  %v10257 = vadd.f32 %v9869, %v9889
  %v10258 = vadd.f32 %v10257, %v9909
  %v10259 = vadd.f32 %v10258, %v9929
  %v10260 = vadd.f32 %v10259, %v9949
  %v10261 = vadd.f32 %v10260, %v9969
  %v10262 = vadd.f32 %v10261, %v9989
  %v10263 = vadd.f32 %v10262, %v10009
  %v10264 = vrot.slane %v10263, 4
  %v10265 = vadd.f32 %v10263, %v10264
  %v10266 = vrot.slane %v10265, 2
  %v10267 = vadd.f32 %v10265, %v10266
  %v10268 = vrot.slane %v10267, 1
  %v10269 = vadd.f32 %v10267, %v10268
  %v10270 = vld [vmem:[#allocation2] sm:$0x1]
  %10272 = vset.pattern.permute.xlu0 0
  %10273 = vperm.xlu0 %10272, %v10270
  %v10274 = vpop.permute.xlu0 %10273
  %v10276 = vlaneseq
  %v10277 = vshrl.u32 %v10276, 7
  %v10278 = vsub.s32 0, %v10277
  %v10279 = vrot.slane %v10274, %v10278
  %v10280 = vadd.f32 %v10022, %v10279
  %v10281 = vadd.f32 %v10035, %v10279
  %v10282 = vadd.f32 %v10048, %v10279
  %v10283 = vadd.f32 %v10061, %v10279
  %v10284 = vadd.f32 %v10074, %v10279
  %v10285 = vadd.f32 %v10087, %v10279
  %v10286 = vadd.f32 %v10100, %v10279
  %v10287 = vadd.f32 %v10113, %v10279
  %v10288 = vadd.f32 %v10126, %v10279
  %v10289 = vadd.f32 %v10139, %v10279
  %v10290 = vadd.f32 %v10152, %v10279
  %v10291 = vadd.f32 %v10165, %v10279
  %v10292 = vadd.f32 %v10178, %v10279
  %v10293 = vadd.f32 %v10191, %v10279
  %v10294 = vadd.f32 %v10204, %v10279
  %v10295 = vadd.f32 %v10217, %v10279
  %v10296 = vadd.f32 %v10230, %v10279
  %v10297 = vadd.f32 %v10243, %v10279
  %v10298 = vadd.f32 %v10256, %v10279
  %v10299 = vadd.f32 %v10269, %v10279
  %v10300 = vxor.u32 %v10280, 2147483648
  %v10301 = vxor.u32 %v10281, 2147483648
  %v10302 = vxor.u32 %v10282, 2147483648
  %v10303 = vxor.u32 %v10283, 2147483648
  %v10304 = vxor.u32 %v10284, 2147483648
  %v10305 = vxor.u32 %v10285, 2147483648
  %v10306 = vxor.u32 %v10286, 2147483648
  %v10307 = vxor.u32 %v10287, 2147483648
  %v10308 = vxor.u32 %v10288, 2147483648
  %v10309 = vxor.u32 %v10289, 2147483648
  %v10310 = vxor.u32 %v10290, 2147483648
  %v10311 = vxor.u32 %v10291, 2147483648
  %v10312 = vxor.u32 %v10292, 2147483648
  %v10313 = vxor.u32 %v10293, 2147483648
  %v10314 = vxor.u32 %v10294, 2147483648
  %v10315 = vxor.u32 %v10295, 2147483648
  %v10316 = vxor.u32 %v10296, 2147483648
  %v10317 = vxor.u32 %v10297, 2147483648
  %v10318 = vxor.u32 %v10298, 2147483648
  %v10319 = vxor.u32 %v10299, 2147483648
  %v10320 = vmul.f32 %v10300, 1.442695
  %v10321 = vpow.pop %v10320
  %v10322 = vmul.f32 %v10301, 1.442695
  %v10323 = vpow.pop %v10322
  %v10324 = vmul.f32 %v10302, 1.442695
  %v10325 = vpow.pop %v10324
  %v10326 = vmul.f32 %v10303, 1.442695
  %v10327 = vpow.pop %v10326
  %v10328 = vmul.f32 %v10304, 1.442695
  %v10329 = vpow.pop %v10328
  %v10330 = vmul.f32 %v10305, 1.442695
  %v10331 = vpow.pop %v10330
  %v10332 = vmul.f32 %v10306, 1.442695
  %v10333 = vpow.pop %v10332
  %v10334 = vmul.f32 %v10307, 1.442695
  %v10335 = vpow.pop %v10334
  %v10336 = vmul.f32 %v10308, 1.442695
  %v10337 = vpow.pop %v10336
  %v10338 = vmul.f32 %v10309, 1.442695
  %v10339 = vpow.pop %v10338
  %v10340 = vmul.f32 %v10310, 1.442695
  %v10341 = vpow.pop %v10340
  %v10342 = vmul.f32 %v10311, 1.442695
  %v10343 = vpow.pop %v10342
  %v10344 = vmul.f32 %v10312, 1.442695
  %v10345 = vpow.pop %v10344
  %v10346 = vmul.f32 %v10313, 1.442695
  %v10347 = vpow.pop %v10346
  %v10348 = vmul.f32 %v10314, 1.442695
  %v10349 = vpow.pop %v10348
  %v10350 = vmul.f32 %v10315, 1.442695
  %v10351 = vpow.pop %v10350
  %v10352 = vmul.f32 %v10316, 1.442695
  %v10353 = vpow.pop %v10352
  %v10354 = vmul.f32 %v10317, 1.442695
  %v10355 = vpow.pop %v10354
  %v10356 = vmul.f32 %v10318, 1.442695
  %v10357 = vpow.pop %v10356
  %v10358 = vmul.f32 %v10319, 1.442695
  %v10359 = vpow.pop %v10358
  %v10360 = vadd.f32 %v10321, 1.0
  %v10361 = vadd.f32 %v10323, 1.0
  %v10362 = vadd.f32 %v10325, 1.0
  %v10363 = vadd.f32 %v10327, 1.0
  %v10364 = vadd.f32 %v10329, 1.0
  %v10365 = vadd.f32 %v10331, 1.0
  %v10366 = vadd.f32 %v10333, 1.0
  %v10367 = vadd.f32 %v10335, 1.0
  %v10368 = vadd.f32 %v10337, 1.0
  %v10369 = vadd.f32 %v10339, 1.0
  %v10370 = vadd.f32 %v10341, 1.0
  %v10371 = vadd.f32 %v10343, 1.0
  %v10372 = vadd.f32 %v10345, 1.0
  %v10373 = vadd.f32 %v10347, 1.0
  %v10374 = vadd.f32 %v10349, 1.0
  %v10375 = vadd.f32 %v10351, 1.0
  %v10376 = vadd.f32 %v10353, 1.0
  %v10377 = vadd.f32 %v10355, 1.0
  %v10378 = vadd.f32 %v10357, 1.0
  %v10379 = vadd.f32 %v10359, 1.0
  %v10380 = vrcp.pop %v10360
  %v10381 = vmul.f32 1.0, %v10380
  %v10382 = vrcp.pop %v10361
  %v10383 = vmul.f32 1.0, %v10382
  %v10384 = vrcp.pop %v10362
  %v10385 = vmul.f32 1.0, %v10384
  %v10386 = vrcp.pop %v10363
  %v10387 = vmul.f32 1.0, %v10386
  %v10388 = vrcp.pop %v10364
  %v10389 = vmul.f32 1.0, %v10388
  %v10390 = vrcp.pop %v10365
  %v10391 = vmul.f32 1.0, %v10390
  %v10392 = vrcp.pop %v10366
  %v10393 = vmul.f32 1.0, %v10392
  %v10394 = vrcp.pop %v10367
  %v10395 = vmul.f32 1.0, %v10394
  %v10396 = vrcp.pop %v10368
  %v10397 = vmul.f32 1.0, %v10396
  %v10398 = vrcp.pop %v10369
  %v10399 = vmul.f32 1.0, %v10398
  %v10400 = vrcp.pop %v10370
  %v10401 = vmul.f32 1.0, %v10400
  %v10402 = vrcp.pop %v10371
  %v10403 = vmul.f32 1.0, %v10402
  %v10404 = vrcp.pop %v10372
  %v10405 = vmul.f32 1.0, %v10404
  %v10406 = vrcp.pop %v10373
  %v10407 = vmul.f32 1.0, %v10406
  %v10408 = vrcp.pop %v10374
  %v10409 = vmul.f32 1.0, %v10408
  %v10410 = vrcp.pop %v10375
  %v10411 = vmul.f32 1.0, %v10410
  %v10412 = vrcp.pop %v10376
  %v10413 = vmul.f32 1.0, %v10412
  %v10414 = vrcp.pop %v10377
  %v10415 = vmul.f32 1.0, %v10414
  %v10416 = vrcp.pop %v10378
  %v10417 = vmul.f32 1.0, %v10416
  %v10418 = vrcp.pop %v10379
  %v10419 = vmul.f32 1.0, %v10418
  %v10420 = vsub.f32 1.0, %v10381
  %v10421 = vsub.f32 1.0, %v10383
  %v10422 = vsub.f32 1.0, %v10385
  %v10423 = vsub.f32 1.0, %v10387
  %v10424 = vsub.f32 1.0, %v10389
  %v10425 = vsub.f32 1.0, %v10391
  %v10426 = vsub.f32 1.0, %v10393
  %v10427 = vsub.f32 1.0, %v10395
  %v10428 = vsub.f32 1.0, %v10397
  %v10429 = vsub.f32 1.0, %v10399
  %v10430 = vsub.f32 1.0, %v10401
  %v10431 = vsub.f32 1.0, %v10403
  %v10432 = vsub.f32 1.0, %v10405
  %v10433 = vsub.f32 1.0, %v10407
  %v10434 = vsub.f32 1.0, %v10409
  %v10435 = vsub.f32 1.0, %v10411
  %v10436 = vsub.f32 1.0, %v10413
  %v10437 = vsub.f32 1.0, %v10415
  %v10438 = vsub.f32 1.0, %v10417
  %v10439 = vsub.f32 1.0, %v10419
  %v10440 = vmul.f32 %v10420, %v10421
  %v10441 = vmul.f32 %v10440, %v10422
  %v10442 = vmul.f32 %v10441, %v10423
  %v10443 = vmul.f32 %v10442, %v10424
  %v10444 = vmul.f32 %v10443, %v10425
  %v10445 = vmul.f32 %v10444, %v10426
  %v10446 = vmul.f32 %v10445, %v10427
  %v10447 = vmul.f32 %v10446, %v10428
  %v10448 = vmul.f32 %v10447, %v10429
  %v10449 = vmul.f32 %v10448, %v10430
  %v10450 = vmul.f32 %v10449, %v10431
  %v10451 = vmul.f32 %v10450, %v10432
  %v10452 = vmul.f32 %v10451, %v10433
  %v10453 = vmul.f32 %v10452, %v10434
  %v10454 = vmul.f32 %v10453, %v10435
  %v10455 = vmul.f32 %v10454, %v10436
  %v10456 = vmul.f32 %v10455, %v10437
  %v10457 = vmul.f32 %v10456, %v10438
  %v10458 = vmul.f32 %v10457, %v10439
  %v10459 = vsub.f32 1.0, %v10458
  %10460 = vst [vmem:[%s8] sm:$0x1] %v10459
  // Predicated region
  $region34: #{neural_net_forward.1} parent=0 // pred_check
    _
  $region35: #{neural_net_forward.1} parent=0 // pred_check_branch
    %10462 = sbr.rel (0) target = $region37
  $region36: #{neural_net_forward.1} parent=0 // pred_region
    _
  $region37: #{neural_net_forward.1} parent=0 // pred_fallthru
    _
  // Predicated region
  $region38: #{neural_net_forward.1} parent=0 // pred_check
    _
  $region39: #{neural_net_forward.1} parent=0 // pred_check_branch
    %10464 = sbr.rel (0) target = $region41
  $region40: #{neural_net_forward.1} parent=0 // pred_region
    _
  $region41: #{neural_net_forward.1} parent=0 // pred_fallthru
    _

</llo_original>
